<compile_context>
chip_gen: v5e
topology: v5e:2x2
jax: 0.10.0
libtpu: 0.0.40
codegen_flags: <defaults>
</compile_context>

<pallas_src>
import jax
import jax.numpy as jnp
from jax.experimental import pallas as pl
from jax.experimental.pallas import tpu as pltpu

# ---------------------------------------------------------------------------
# Geometry fixed by the PyTorch module (CIFAR: 3x32x32 input, fc1 = 4*4*64).
# ---------------------------------------------------------------------------
_IH, _IC = 32, 3                 # input spatial / channels
_C1, _C2, _C3 = 32, 64, 64       # conv output channels
_S1, _P1 = 30, 15                # conv1 valid out / after 2x2 pool
_S2, _P2 = 13, 6                 # conv2 valid out / after 2x2 pool
_S3 = 4                          # conv3 valid out
_F1, _F2, _F2P = 256, 100, 128   # fc sizes; logits lane-padded to 128
_HALO = 2                        # halo rows for the full-width conv trick

_CONV1_ROWS = _S1 * _IH          # 960 conv1 output rows (ho*32 + wo)
_C1CHUNK = 120                   # conv1 register-accumulation chunk (rows)
_C2ROWS = _S2 * _P1              # 195 conv2 output rows (ho*15 + wo)
_C2CHUNKS = ((0, 96), (96, 99))  # conv2 register-accumulation chunks
_C3ROWS = _S3 * _P2              # 24 conv3 output rows (ho*6 + wo)
_FCSTRIDE = 32                   # per-image row stride in the fc staging slab
_B = 8                           # images per grid step


# ---------------------------------------------------------------------------
# In-kernel building blocks (traced Python, operate on VMEM refs)
# ---------------------------------------------------------------------------
def _conv3x3_rows(src_ref, w_ref, c_in, width, row0, nrows):
    """3x3 valid conv on a row chunk: 9 tap matmuls accumulated in registers.

    src_ref rows are the (h, w)-flattened activation at full width; output row
    r = ho*width + wo (columns wo >= width-2 are garbage, never consumed).
    Returns the f32 (nrows, c_out) value (no bias / activation applied).
    """
    acc = None
    for kh in range(3):
        for kw in range(3):
            lhs = src_ref[pl.ds(row0 + kh * width + kw, nrows), :]     # bf16
            wt = w_ref[pl.ds((kh * 3 + kw) * c_in, c_in), :]           # bf16
            d = jnp.dot(lhs, wt, preferred_element_type=jnp.float32)
            acc = d if acc is None else acc + d
    return acc


def _maxpool2x2(src_ref, width, half, dst_ref):
    """2x2/stride-2 max-pool of the (h,w)-flattened f32 src -> bf16 dst.

    Vertical max on two contiguous width-row slabs (written back in place),
    then one stride-2 horizontal reduce.  dst halo rows are NOT touched here.
    """
    for h2 in range(half):
        r0 = 2 * h2 * width
        r1 = r0 + width
        vert = jnp.maximum(src_ref[pl.ds(r0, width), :],
                           src_ref[pl.ds(r1, width), :])
        src_ref[pl.ds(r0, width), :] = vert
        m = jnp.maximum(src_ref[pl.ds(r0, half, stride=2), :],
                        src_ref[pl.ds(r0 + 1, half, stride=2), :])
        dst_ref[pl.ds(h2 * half, half), :] = m.astype(dst_ref.dtype)


def _fused_forward_kernel(x_ref, w1_ref, b1_ref, w2_ref, b2_ref, w3_ref, b3_ref,
                          wf1_ref, bf1_ref, wf2_ref, bf2_ref, o_ref,
                          acc1, pool1, acc2, pool2, fcin):
    B = o_ref.shape[0]                                   # images per grid step

    # Zero only the halo rows the full-width conv trick may read (finite pad).
    pool1[pl.ds(_P1 * _P1, _HALO), :] = jnp.zeros((_HALO, _C1), pool1.dtype)
    pool2[pl.ds(_P2 * _P2, _HALO), :] = jnp.zeros((_HALO, _C2), pool2.dtype)

    @pl.loop(0, B)
    def _per_image(b):
        xbase = pl.multiple_of(b * _CONV1_ROWS, 8)

        # conv1 (im2col GEMM, K=27) + bias + ReLU, one store per row chunk.
        for c in range(_CONV1_ROWS // _C1CHUNK):
            r = c * _C1CHUNK
            lhs = x_ref[pl.ds(xbase + r, _C1CHUNK), :]               # (120, 27)
            y = jnp.dot(lhs, w1_ref[...], preferred_element_type=jnp.float32)
            acc1[pl.ds(r, _C1CHUNK), :] = jnp.maximum(y + b1_ref[...], 0.0)

        # maxpool 2x2 -> 15x15x32   (dropout = identity in eval mode)
        _maxpool2x2(acc1, _IH, _P1, pool1)

        # conv2 + bias + ReLU : 15x15x32 -> 13x13x64 (register-accumulated taps)
        for (r0, nr) in _C2CHUNKS:
            y = _conv3x3_rows(pool1, w2_ref, _C1, _P1, r0, nr)
            acc2[pl.ds(r0, nr), :] = jnp.maximum(y + b2_ref[...], 0.0)

        # maxpool 2x2 -> 6x6x64
        _maxpool2x2(acc2, _P1, _P2, pool2)

        # conv3 + bias (NO relu, matching the reference model): 6x6x64 -> 4x6x64
        y3 = _conv3x3_rows(pool2, w3_ref, _C2, _P2, 0, _C3ROWS) + b3_ref[...]
        # Stage this image's 24 conv3 rows (16 valid) for the batched fc layers.
        fcin[pl.ds(b * _FCSTRIDE, _C3ROWS), :] = y3

    # fc1 + ReLU, batched over the B images: one (B,64)x(64,256) matmul per
    # valid 4x4 position (PyTorch .view ordering baked into wf1's row layout).
    h1 = None
    for h in range(_S3):
        for ww in range(_S3):
            q = h * _P2 + ww               # row offset inside each image's slab
            p = h * _S3 + ww               # position index in torch flatten order
            lhs = fcin[pl.ds(q, B, stride=_FCSTRIDE), :].astype(jnp.bfloat16)
            d = jnp.dot(lhs, wf1_ref[pl.ds(p * _C3, _C3), :],
                        preferred_element_type=jnp.float32)
            h1 = d if h1 is None else h1 + d
    h1 = jnp.maximum(h1 + bf1_ref[...], 0.0)                         # (B, 256)

    # fc2 into 128 padded lanes -> dense (B, 128) store.
    logits = jnp.dot(h1.astype(jnp.bfloat16), wf2_ref[...],
                     preferred_element_type=jnp.float32) + bf2_ref[...]
    o_ref[...] = logits.astype(o_ref.dtype)


# ---------------------------------------------------------------------------
# Parameters (PyTorch layout) and one-time conversion to kernel layout
# ---------------------------------------------------------------------------
def init_params(key):
    ks = jax.random.split(key, 10)
    s = 0.05
    return {
        "conv1_w": jax.random.normal(ks[0], (32, 3, 3, 3), jnp.float32) * s,
        "conv1_b": jax.random.normal(ks[1], (32,), jnp.float32) * s,
        "conv2_w": jax.random.normal(ks[2], (64, 32, 3, 3), jnp.float32) * s,
        "conv2_b": jax.random.normal(ks[3], (64,), jnp.float32) * s,
        "conv3_w": jax.random.normal(ks[4], (64, 64, 3, 3), jnp.float32) * s,
        "conv3_b": jax.random.normal(ks[5], (64,), jnp.float32) * s,
        "fc1_w": jax.random.normal(ks[6], (256, 4 * 4 * 64), jnp.float32) * s,
        "fc1_b": jax.random.normal(ks[7], (256,), jnp.float32) * s,
        "fc2_w": jax.random.normal(ks[8], (100, 256), jnp.float32) * s,
        "fc2_b": jax.random.normal(ks[9], (100,), jnp.float32) * s,
    }


def prepare_params(params):
    """One-time conversion of PyTorch-layout params into kernel-friendly layouts."""
    def conv_w(w):  # (Cout, Cin, 3, 3) -> (9*Cin, Cout); row = (kh*3 + kw)*Cin + ci
        co, ci, kh, kw = w.shape
        return jnp.transpose(w, (2, 3, 1, 0)).reshape(kh * kw * ci, co).astype(jnp.bfloat16)

    # fc1 rows reordered to (h, w, c) so the kernel consumes the channels-last
    # conv3 activation directly; matches torch x.view(-1, 4*4*64) (col c*16+h*4+w).
    wf1 = params["fc1_w"].reshape(_F1, _C3, _S3, _S3)                  # (o, c, h, w)
    wf1 = jnp.transpose(wf1, (2, 3, 1, 0)).reshape(_S3 * _S3 * _C3, _F1)
    wf2 = jnp.pad(params["fc2_w"].T, ((0, 0), (0, _F2P - _F2)))        # (256, 128)
    bf2 = jnp.pad(params["fc2_b"], (0, _F2P - _F2))

    return {
        "w1": conv_w(params["conv1_w"]),                               # (27, 32)
        "b1": params["conv1_b"].reshape(1, _C1).astype(jnp.float32),
        "w2": conv_w(params["conv2_w"]),                               # (288, 64)
        "b2": params["conv2_b"].reshape(1, _C2).astype(jnp.float32),
        "w3": conv_w(params["conv3_w"]),                               # (576, 64)
        "b3": params["conv3_b"].reshape(1, _C3).astype(jnp.float32),
        "wf1": wf1.astype(jnp.bfloat16),                               # (1024, 256)
        "bf1": params["fc1_b"].reshape(1, _F1).astype(jnp.float32),
        "wf2": wf2.astype(jnp.bfloat16),                               # (256, 128)
        "bf2": bf2.reshape(1, _F2P).astype(jnp.float32),
    }


# ---------------------------------------------------------------------------
# Forward pass: one fused pallas_call, grid tiles the batch (_B images / step)
# ---------------------------------------------------------------------------
@jax.jit
def forward(prep, x_nchw):
    N = x_nchw.shape[0]
    n_pad = (-N) % _B
    Np = N + n_pad

    # NCHW -> NHWC, flatten spatial to rows (h, w), append 2 zero halo rows, then
    # build the conv1 im2col slab: column j = (kh*3 + kw)*3 + ci (matches "w1").
    x = jnp.transpose(x_nchw, (0, 2, 3, 1)).astype(jnp.bfloat16)       # (N, 32, 32, 3)
    x = x.reshape(N, _IH * _IH, _IC)
    x = jnp.pad(x, ((0, n_pad), (0, _HALO), (0, 0)))                   # (Np, 1026, 3)
    taps = [x[:, kh * _IH + kw: kh * _IH + kw + _CONV1_ROWS, :]
            for kh in range(3) for kw in range(3)]
    x_im = jnp.concatenate(taps, axis=-1)                              # (Np, 960, 27)
    x_im = x_im.reshape(Np * _CONV1_ROWS, 9 * _IC)

    const = lambda i: (0, 0)
    out = pl.pallas_call(
        _fused_forward_kernel,
        out_shape=jax.ShapeDtypeStruct((Np, _F2P), jnp.float32),
        grid=(Np // _B,),
        in_specs=[
            pl.BlockSpec((_B * _CONV1_ROWS, 9 * _IC), lambda i: (i, 0)),  # im2col input
            pl.BlockSpec((9 * _IC, _C1), const),                          # conv1 w (27, 32)
            pl.BlockSpec((1, _C1), const),
            pl.BlockSpec((9 * _C1, _C2), const),                          # conv2 w (288, 64)
            pl.BlockSpec((1, _C2), const),
            pl.BlockSpec((9 * _C2, _C3), const),                          # conv3 w (576, 64)
            pl.BlockSpec((1, _C3), const),
            pl.BlockSpec((_S3 * _S3 * _C3, _F1), const),                  # fc1 w (1024, 256)
            pl.BlockSpec((1, _F1), const),
            pl.BlockSpec((_F1, _F2P), const),                             # fc2 w (256, 128)
            pl.BlockSpec((1, _F2P), const),
        ],
        out_specs=pl.BlockSpec((_B, _F2P), lambda i: (i, 0)),
        scratch_shapes=[
            pltpu.VMEM((_CONV1_ROWS, _C1), jnp.float32),                  # conv1 out (960, 32)
            pltpu.VMEM((_P1 * _P1 + _HALO, _C1), jnp.bfloat16),           # pool1     (227, 32)
            pltpu.VMEM((_C2ROWS, _C2), jnp.float32),                      # conv2 out (195, 64)
            pltpu.VMEM((_P2 * _P2 + _HALO, _C2), jnp.bfloat16),           # pool2     (38, 64)
            pltpu.VMEM((_B * _FCSTRIDE, _C3), jnp.float32),               # fc staging (256, 64)
        ],
        compiler_params=pltpu.CompilerParams(
            dimension_semantics=("parallel",),          # megacore-shard over batch tiles
            vmem_limit_bytes=32 * 1024 * 1024,
        ),
    )(x_im, prep["w1"], prep["b1"], prep["w2"], prep["b2"], prep["w3"],
      prep["b3"], prep["wf1"], prep["bf1"], prep["wf2"], prep["bf2"])

    return out[:N, :_F2]


if __name__ == "__main__":
    key = jax.random.PRNGKey(0)
    k_param, k_x = jax.random.split(key)
    params = init_params(k_param)
    prep = prepare_params(params)   # one-time layout conversion (no .T inside forward)
    # CIFAR-100 shaped input (spatial size fixed by the fc1 flatten = 4*4*64);
    # 16 images -> 2 grid steps of 8 (keeps the "parallel" axis shardable on v7x).
    x = jax.random.normal(k_x, (16, 3, 32, 32), jnp.float32)

    out = forward(prep, x)
    out = jax.block_until_ready(out)
    assert out.shape == (16, 100), out.shape
    assert bool(jnp.all(jnp.isfinite(out)))
    print("KERNEL_OK")
</pallas_src>

<mosaic_0001>
module attributes {stable_mosaic.version = 11 : i64} {
  func.func @_fused_forward_kernel(%arg0: i32, %arg1: memref<7680x27xbf16, #tpu.memory_space<vmem>>, %arg2: memref<27x32xbf16, #tpu.memory_space<vmem>>, %arg3: memref<1x32xf32, #tpu.memory_space<vmem>>, %arg4: memref<288x64xbf16, #tpu.memory_space<vmem>>, %arg5: memref<1x64xf32, #tpu.memory_space<vmem>>, %arg6: memref<576x64xbf16, #tpu.memory_space<vmem>>, %arg7: memref<1x64xf32, #tpu.memory_space<vmem>>, %arg8: memref<1024x256xbf16, #tpu.memory_space<vmem>>, %arg9: memref<1x256xf32, #tpu.memory_space<vmem>>, %arg10: memref<256x128xbf16, #tpu.memory_space<vmem>>, %arg11: memref<1x128xf32, #tpu.memory_space<vmem>>, %arg12: memref<8x128xf32, #tpu.memory_space<vmem>>, %arg13: memref<960x32xf32, #tpu.memory_space<vmem>>, %arg14: memref<227x32xbf16, #tpu.memory_space<vmem>>, %arg15: memref<195x64xf32, #tpu.memory_space<vmem>>, %arg16: memref<38x64xbf16, #tpu.memory_space<vmem>>, %arg17: memref<256x64xf32, #tpu.memory_space<vmem>>) attributes {dimension_semantics = [#tpu.dimension_semantics<parallel>], iteration_bounds = array<i64: 2>, scalar_prefetch = 0 : i64, scratch_operands = 5 : i64, tpu.core_type = #tpu.core_type<tc>, window_params = [{transform_indices = @transform_0, window_bounds = array<i64: 7680, 27>}, {pipeline_mode = #tpu.pipeline_mode<synchronous>, transform_indices = @transform_1, window_bounds = array<i64: 27, 32>}, {pipeline_mode = #tpu.pipeline_mode<synchronous>, transform_indices = @transform_2, window_bounds = array<i64: 1, 32>}, {pipeline_mode = #tpu.pipeline_mode<synchronous>, transform_indices = @transform_3, window_bounds = array<i64: 288, 64>}, {pipeline_mode = #tpu.pipeline_mode<synchronous>, transform_indices = @transform_4, window_bounds = array<i64: 1, 64>}, {pipeline_mode = #tpu.pipeline_mode<synchronous>, transform_indices = @transform_5, window_bounds = array<i64: 576, 64>}, {pipeline_mode = #tpu.pipeline_mode<synchronous>, transform_indices = @transform_6, window_bounds = array<i64: 1, 64>}, {pipeline_mode = #tpu.pipeline_mode<synchronous>, transform_indices = @transform_7, window_bounds = array<i64: 1024, 256>}, {pipeline_mode = #tpu.pipeline_mode<synchronous>, transform_indices = @transform_8, window_bounds = array<i64: 1, 256>}, {pipeline_mode = #tpu.pipeline_mode<synchronous>, transform_indices = @transform_9, window_bounds = array<i64: 256, 128>}, {pipeline_mode = #tpu.pipeline_mode<synchronous>, transform_indices = @transform_10, window_bounds = array<i64: 1, 128>}, {transform_indices = @transform_11, window_bounds = array<i64: 8, 128>}]} {
    %cst = arith.constant 0.000000e+00 : bf16
    %0 = vector.broadcast %cst : bf16 to vector<2x32xbf16>
    %c225 = arith.constant 225 : index
    %c0 = arith.constant 0 : index
    %1 = vector.load %arg14[%c225, %c0] : memref<227x32xbf16, #tpu.memory_space<vmem>>, vector<2x32xbf16>
    tpu.vector_store %arg14[%c225, %c0], %0 {strides = array<i32>} : memref<227x32xbf16, #tpu.memory_space<vmem>>, vector<2x32xbf16>,
    %cst_0 = arith.constant 0.000000e+00 : bf16
    %2 = vector.broadcast %cst_0 : bf16 to vector<2x64xbf16>
    %c36 = arith.constant 36 : index
    %c0_1 = arith.constant 0 : index
    %3 = vector.load %arg16[%c36, %c0_1] : memref<38x64xbf16, #tpu.memory_space<vmem>>, vector<2x64xbf16>
    tpu.vector_store %arg16[%c36, %c0_1], %2 {strides = array<i32>} : memref<38x64xbf16, #tpu.memory_space<vmem>>, vector<2x64xbf16>,
    %c0_i32 = arith.constant 0 : i32
    %c8_i32 = arith.constant 8 : i32
    %4 = arith.addi %c0_i32, %c8_i32 : i32
    %c1_i32 = arith.constant 1 : i32
    scf.for %arg18 = %c0_i32 to %4 step %c1_i32  : i32 {
      %c1_i32_63 = arith.constant 1 : i32
      %96 = arith.muli %arg18, %c1_i32_63 : i32
      %c0_i32_64 = arith.constant 0 : i32
      %97 = arith.addi %c0_i32_64, %96 : i32
      %c960_i32 = arith.constant 960 : i32
      %98 = arith.muli %97, %c960_i32 : i32
      %99 = tpu.assume_multiple %98, 8 : i32
      %c0_i32_65 = arith.constant 0 : i32
      %100 = arith.addi %99, %c0_i32_65 : i32
      %101 = arith.index_cast %100 : i32 to index
      %c0_66 = arith.constant 0 : index
      %102 = vector.load %arg1[%101, %c0_66] : memref<7680x27xbf16, #tpu.memory_space<vmem>>, vector<120x27xbf16>
      %c0_67 = arith.constant 0 : index
      %c0_68 = arith.constant 0 : index
      %103 = vector.load %arg2[%c0_67, %c0_68] : memref<27x32xbf16, #tpu.memory_space<vmem>>, vector<27x32xbf16>
      %cst_69 = arith.constant dense<0.000000e+00> : vector<120x32xf32>
      %104 = tpu.matmul %102, %103, %cst_69 {dimension_numbers = #tpu.dot_dimension_numbers<[1], [0], [0], [1], [0, 0, 1, 1], [], []>} : vector<120x27xbf16>, vector<27x32xbf16>, vector<120x32xf32> -> vector<120x32xf32>
      %c0_70 = arith.constant 0 : index
      %c0_71 = arith.constant 0 : index
      %105 = vector.load %arg3[%c0_70, %c0_71] : memref<1x32xf32, #tpu.memory_space<vmem>>, vector<1x32xf32>
      %106 = vector.broadcast %105 : vector<1x32xf32> to vector<120x32xf32>
      %107 = arith.addf %104, %106 : vector<120x32xf32>
      %cst_72 = arith.constant 0.000000e+00 : f32
      %108 = vector.broadcast %cst_72 : f32 to vector<120x32xf32>
      %109 = arith.maximumf %107, %108 : vector<120x32xf32>
      %c0_73 = arith.constant 0 : index
      %c0_74 = arith.constant 0 : index
      %110 = vector.load %arg13[%c0_73, %c0_74] : memref<960x32xf32, #tpu.memory_space<vmem>>, vector<120x32xf32>
      tpu.vector_store %arg13[%c0_73, %c0_74], %109 {strides = array<i32>} : memref<960x32xf32, #tpu.memory_space<vmem>>, vector<120x32xf32>,
      %c120_i32 = arith.constant 120 : i32
      %111 = arith.addi %99, %c120_i32 : i32
      %112 = arith.index_cast %111 : i32 to index
      %c0_75 = arith.constant 0 : index
      %113 = vector.load %arg1[%112, %c0_75] : memref<7680x27xbf16, #tpu.memory_space<vmem>>, vector<120x27xbf16>
      %c0_76 = arith.constant 0 : index
      %c0_77 = arith.constant 0 : index
      %114 = vector.load %arg2[%c0_76, %c0_77] : memref<27x32xbf16, #tpu.memory_space<vmem>>, vector<27x32xbf16>
      %cst_78 = arith.constant dense<0.000000e+00> : vector<120x32xf32>
      %115 = tpu.matmul %113, %114, %cst_78 {dimension_numbers = #tpu.dot_dimension_numbers<[1], [0], [0], [1], [0, 0, 1, 1], [], []>} : vector<120x27xbf16>, vector<27x32xbf16>, vector<120x32xf32> -> vector<120x32xf32>
      %c0_79 = arith.constant 0 : index
      %c0_80 = arith.constant 0 : index
      %116 = vector.load %arg3[%c0_79, %c0_80] : memref<1x32xf32, #tpu.memory_space<vmem>>, vector<1x32xf32>
      %117 = vector.broadcast %116 : vector<1x32xf32> to vector<120x32xf32>
      %118 = arith.addf %115, %117 : vector<120x32xf32>
      %cst_81 = arith.constant 0.000000e+00 : f32
      %119 = vector.broadcast %cst_81 : f32 to vector<120x32xf32>
      %120 = arith.maximumf %118, %119 : vector<120x32xf32>
      %c120 = arith.constant 120 : index
      %c0_82 = arith.constant 0 : index
      %121 = vector.load %arg13[%c120, %c0_82] : memref<960x32xf32, #tpu.memory_space<vmem>>, vector<120x32xf32>
      tpu.vector_store %arg13[%c120, %c0_82], %120 {strides = array<i32>} : memref<960x32xf32, #tpu.memory_space<vmem>>, vector<120x32xf32>,
      %c240_i32 = arith.constant 240 : i32
      %122 = arith.addi %99, %c240_i32 : i32
      %123 = arith.index_cast %122 : i32 to index
      %c0_83 = arith.constant 0 : index
      %124 = vector.load %arg1[%123, %c0_83] : memref<7680x27xbf16, #tpu.memory_space<vmem>>, vector<120x27xbf16>
      %c0_84 = arith.constant 0 : index
      %c0_85 = arith.constant 0 : index
      %125 = vector.load %arg2[%c0_84, %c0_85] : memref<27x32xbf16, #tpu.memory_space<vmem>>, vector<27x32xbf16>
      %cst_86 = arith.constant dense<0.000000e+00> : vector<120x32xf32>
      %126 = tpu.matmul %124, %125, %cst_86 {dimension_numbers = #tpu.dot_dimension_numbers<[1], [0], [0], [1], [0, 0, 1, 1], [], []>} : vector<120x27xbf16>, vector<27x32xbf16>, vector<120x32xf32> -> vector<120x32xf32>
      %c0_87 = arith.constant 0 : index
      %c0_88 = arith.constant 0 : index
      %127 = vector.load %arg3[%c0_87, %c0_88] : memref<1x32xf32, #tpu.memory_space<vmem>>, vector<1x32xf32>
      %128 = vector.broadcast %127 : vector<1x32xf32> to vector<120x32xf32>
      %129 = arith.addf %126, %128 : vector<120x32xf32>
      %cst_89 = arith.constant 0.000000e+00 : f32
      %130 = vector.broadcast %cst_89 : f32 to vector<120x32xf32>
      %131 = arith.maximumf %129, %130 : vector<120x32xf32>
      %c240 = arith.constant 240 : index
      %c0_90 = arith.constant 0 : index
      %132 = vector.load %arg13[%c240, %c0_90] : memref<960x32xf32, #tpu.memory_space<vmem>>, vector<120x32xf32>
      tpu.vector_store %arg13[%c240, %c0_90], %131 {strides = array<i32>} : memref<960x32xf32, #tpu.memory_space<vmem>>, vector<120x32xf32>,
      %c360_i32 = arith.constant 360 : i32
      %133 = arith.addi %99, %c360_i32 : i32
      %134 = arith.index_cast %133 : i32 to index
      %c0_91 = arith.constant 0 : index
      %135 = vector.load %arg1[%134, %c0_91] : memref<7680x27xbf16, #tpu.memory_space<vmem>>, vector<120x27xbf16>
      %c0_92 = arith.constant 0 : index
      %c0_93 = arith.constant 0 : index
      %136 = vector.load %arg2[%c0_92, %c0_93] : memref<27x32xbf16, #tpu.memory_space<vmem>>, vector<27x32xbf16>
      %cst_94 = arith.constant dense<0.000000e+00> : vector<120x32xf32>
      %137 = tpu.matmul %135, %136, %cst_94 {dimension_numbers = #tpu.dot_dimension_numbers<[1], [0], [0], [1], [0, 0, 1, 1], [], []>} : vector<120x27xbf16>, vector<27x32xbf16>, vector<120x32xf32> -> vector<120x32xf32>
      %c0_95 = arith.constant 0 : index
      %c0_96 = arith.constant 0 : index
      %138 = vector.load %arg3[%c0_95, %c0_96] : memref<1x32xf32, #tpu.memory_space<vmem>>, vector<1x32xf32>
      %139 = vector.broadcast %138 : vector<1x32xf32> to vector<120x32xf32>
      %140 = arith.addf %137, %139 : vector<120x32xf32>
      %cst_97 = arith.constant 0.000000e+00 : f32
      %141 = vector.broadcast %cst_97 : f32 to vector<120x32xf32>
      %142 = arith.maximumf %140, %141 : vector<120x32xf32>
      %c360 = arith.constant 360 : index
      %c0_98 = arith.constant 0 : index
      %143 = vector.load %arg13[%c360, %c0_98] : memref<960x32xf32, #tpu.memory_space<vmem>>, vector<120x32xf32>
      tpu.vector_store %arg13[%c360, %c0_98], %142 {strides = array<i32>} : memref<960x32xf32, #tpu.memory_space<vmem>>, vector<120x32xf32>,
      %c480_i32 = arith.constant 480 : i32
      %144 = arith.addi %99, %c480_i32 : i32
      %145 = arith.index_cast %144 : i32 to index
      %c0_99 = arith.constant 0 : index
      %146 = vector.load %arg1[%145, %c0_99] : memref<7680x27xbf16, #tpu.memory_space<vmem>>, vector<120x27xbf16>
      %c0_100 = arith.constant 0 : index
      %c0_101 = arith.constant 0 : index
      %147 = vector.load %arg2[%c0_100, %c0_101] : memref<27x32xbf16, #tpu.memory_space<vmem>>, vector<27x32xbf16>
      %cst_102 = arith.constant dense<0.000000e+00> : vector<120x32xf32>
      %148 = tpu.matmul %146, %147, %cst_102 {dimension_numbers = #tpu.dot_dimension_numbers<[1], [0], [0], [1], [0, 0, 1, 1], [], []>} : vector<120x27xbf16>, vector<27x32xbf16>, vector<120x32xf32> -> vector<120x32xf32>
      %c0_103 = arith.constant 0 : index
      %c0_104 = arith.constant 0 : index
      %149 = vector.load %arg3[%c0_103, %c0_104] : memref<1x32xf32, #tpu.memory_space<vmem>>, vector<1x32xf32>
      %150 = vector.broadcast %149 : vector<1x32xf32> to vector<120x32xf32>
      %151 = arith.addf %148, %150 : vector<120x32xf32>
      %cst_105 = arith.constant 0.000000e+00 : f32
      %152 = vector.broadcast %cst_105 : f32 to vector<120x32xf32>
      %153 = arith.maximumf %151, %152 : vector<120x32xf32>
      %c480 = arith.constant 480 : index
      %c0_106 = arith.constant 0 : index
      %154 = vector.load %arg13[%c480, %c0_106] : memref<960x32xf32, #tpu.memory_space<vmem>>, vector<120x32xf32>
      tpu.vector_store %arg13[%c480, %c0_106], %153 {strides = array<i32>} : memref<960x32xf32, #tpu.memory_space<vmem>>, vector<120x32xf32>,
      %c600_i32 = arith.constant 600 : i32
      %155 = arith.addi %99, %c600_i32 : i32
      %156 = arith.index_cast %155 : i32 to index
      %c0_107 = arith.constant 0 : index
      %157 = vector.load %arg1[%156, %c0_107] : memref<7680x27xbf16, #tpu.memory_space<vmem>>, vector<120x27xbf16>
      %c0_108 = arith.constant 0 : index
      %c0_109 = arith.constant 0 : index
      %158 = vector.load %arg2[%c0_108, %c0_109] : memref<27x32xbf16, #tpu.memory_space<vmem>>, vector<27x32xbf16>
      %cst_110 = arith.constant dense<0.000000e+00> : vector<120x32xf32>
      %159 = tpu.matmul %157, %158, %cst_110 {dimension_numbers = #tpu.dot_dimension_numbers<[1], [0], [0], [1], [0, 0, 1, 1], [], []>} : vector<120x27xbf16>, vector<27x32xbf16>, vector<120x32xf32> -> vector<120x32xf32>
      %c0_111 = arith.constant 0 : index
      %c0_112 = arith.constant 0 : index
      %160 = vector.load %arg3[%c0_111, %c0_112] : memref<1x32xf32, #tpu.memory_space<vmem>>, vector<1x32xf32>
      %161 = vector.broadcast %160 : vector<1x32xf32> to vector<120x32xf32>
      %162 = arith.addf %159, %161 : vector<120x32xf32>
      %cst_113 = arith.constant 0.000000e+00 : f32
      %163 = vector.broadcast %cst_113 : f32 to vector<120x32xf32>
      %164 = arith.maximumf %162, %163 : vector<120x32xf32>
      %c600 = arith.constant 600 : index
      %c0_114 = arith.constant 0 : index
      %165 = vector.load %arg13[%c600, %c0_114] : memref<960x32xf32, #tpu.memory_space<vmem>>, vector<120x32xf32>
      tpu.vector_store %arg13[%c600, %c0_114], %164 {strides = array<i32>} : memref<960x32xf32, #tpu.memory_space<vmem>>, vector<120x32xf32>,
      %c720_i32 = arith.constant 720 : i32
      %166 = arith.addi %99, %c720_i32 : i32
      %167 = arith.index_cast %166 : i32 to index
      %c0_115 = arith.constant 0 : index
      %168 = vector.load %arg1[%167, %c0_115] : memref<7680x27xbf16, #tpu.memory_space<vmem>>, vector<120x27xbf16>
      %c0_116 = arith.constant 0 : index
      %c0_117 = arith.constant 0 : index
      %169 = vector.load %arg2[%c0_116, %c0_117] : memref<27x32xbf16, #tpu.memory_space<vmem>>, vector<27x32xbf16>
      %cst_118 = arith.constant dense<0.000000e+00> : vector<120x32xf32>
      %170 = tpu.matmul %168, %169, %cst_118 {dimension_numbers = #tpu.dot_dimension_numbers<[1], [0], [0], [1], [0, 0, 1, 1], [], []>} : vector<120x27xbf16>, vector<27x32xbf16>, vector<120x32xf32> -> vector<120x32xf32>
      %c0_119 = arith.constant 0 : index
      %c0_120 = arith.constant 0 : index
      %171 = vector.load %arg3[%c0_119, %c0_120] : memref<1x32xf32, #tpu.memory_space<vmem>>, vector<1x32xf32>
      %172 = vector.broadcast %171 : vector<1x32xf32> to vector<120x32xf32>
      %173 = arith.addf %170, %172 : vector<120x32xf32>
      %cst_121 = arith.constant 0.000000e+00 : f32
      %174 = vector.broadcast %cst_121 : f32 to vector<120x32xf32>
      %175 = arith.maximumf %173, %174 : vector<120x32xf32>
      %c720 = arith.constant 720 : index
      %c0_122 = arith.constant 0 : index
      %176 = vector.load %arg13[%c720, %c0_122] : memref<960x32xf32, #tpu.memory_space<vmem>>, vector<120x32xf32>
      tpu.vector_store %arg13[%c720, %c0_122], %175 {strides = array<i32>} : memref<960x32xf32, #tpu.memory_space<vmem>>, vector<120x32xf32>,
      %c840_i32 = arith.constant 840 : i32
      %177 = arith.addi %99, %c840_i32 : i32
      %178 = arith.index_cast %177 : i32 to index
      %c0_123 = arith.constant 0 : index
      %179 = vector.load %arg1[%178, %c0_123] : memref<7680x27xbf16, #tpu.memory_space<vmem>>, vector<120x27xbf16>
      %c0_124 = arith.constant 0 : index
      %c0_125 = arith.constant 0 : index
      %180 = vector.load %arg2[%c0_124, %c0_125] : memref<27x32xbf16, #tpu.memory_space<vmem>>, vector<27x32xbf16>
      %cst_126 = arith.constant dense<0.000000e+00> : vector<120x32xf32>
      %181 = tpu.matmul %179, %180, %cst_126 {dimension_numbers = #tpu.dot_dimension_numbers<[1], [0], [0], [1], [0, 0, 1, 1], [], []>} : vector<120x27xbf16>, vector<27x32xbf16>, vector<120x32xf32> -> vector<120x32xf32>
      %c0_127 = arith.constant 0 : index
      %c0_128 = arith.constant 0 : index
      %182 = vector.load %arg3[%c0_127, %c0_128] : memref<1x32xf32, #tpu.memory_space<vmem>>, vector<1x32xf32>
      %183 = vector.broadcast %182 : vector<1x32xf32> to vector<120x32xf32>
      %184 = arith.addf %181, %183 : vector<120x32xf32>
      %cst_129 = arith.constant 0.000000e+00 : f32
      %185 = vector.broadcast %cst_129 : f32 to vector<120x32xf32>
      %186 = arith.maximumf %184, %185 : vector<120x32xf32>
      %c840 = arith.constant 840 : index
      %c0_130 = arith.constant 0 : index
      %187 = vector.load %arg13[%c840, %c0_130] : memref<960x32xf32, #tpu.memory_space<vmem>>, vector<120x32xf32>
      tpu.vector_store %arg13[%c840, %c0_130], %186 {strides = array<i32>} : memref<960x32xf32, #tpu.memory_space<vmem>>, vector<120x32xf32>,
      %c0_131 = arith.constant 0 : index
      %c0_132 = arith.constant 0 : index
      %188 = vector.load %arg13[%c0_131, %c0_132] : memref<960x32xf32, #tpu.memory_space<vmem>>, vector<32x32xf32>
      %c32 = arith.constant 32 : index
      %c0_133 = arith.constant 0 : index
      %189 = vector.load %arg13[%c32, %c0_133] : memref<960x32xf32, #tpu.memory_space<vmem>>, vector<32x32xf32>
      %190 = arith.maximumf %188, %189 : vector<32x32xf32>
      %c0_134 = arith.constant 0 : index
      %c0_135 = arith.constant 0 : index
      %191 = vector.load %arg13[%c0_134, %c0_135] : memref<960x32xf32, #tpu.memory_space<vmem>>, vector<32x32xf32>
      tpu.vector_store %arg13[%c0_134, %c0_135], %190 {strides = array<i32>} : memref<960x32xf32, #tpu.memory_space<vmem>>, vector<32x32xf32>,
      %c0_136 = arith.constant 0 : index
      %c0_137 = arith.constant 0 : index
      %192 = tpu.strided_load %arg13[%c0_136, %c0_137] {strides = array<i32: 2, 1>} : memref<960x32xf32, #tpu.memory_space<vmem>>, vector<15x32xf32>
      %c1_138 = arith.constant 1 : index
      %c0_139 = arith.constant 0 : index
      %193 = tpu.strided_load %arg13[%c1_138, %c0_139] {strides = array<i32: 2, 1>} : memref<960x32xf32, #tpu.memory_space<vmem>>, vector<15x32xf32>
      %194 = arith.maximumf %192, %193 : vector<15x32xf32>
      %195 = arith.truncf %194 : vector<15x32xf32> to vector<15x32xbf16>
      %c0_140 = arith.constant 0 : index
      %c0_141 = arith.constant 0 : index
      %196 = vector.load %arg14[%c0_140, %c0_141] : memref<227x32xbf16, #tpu.memory_space<vmem>>, vector<15x32xbf16>
      tpu.vector_store %arg14[%c0_140, %c0_141], %195 {strides = array<i32>} : memref<227x32xbf16, #tpu.memory_space<vmem>>, vector<15x32xbf16>,
      %c64_142 = arith.constant 64 : index
      %c0_143 = arith.constant 0 : index
      %197 = vector.load %arg13[%c64_142, %c0_143] : memref<960x32xf32, #tpu.memory_space<vmem>>, vector<32x32xf32>
      %c96 = arith.constant 96 : index
      %c0_144 = arith.constant 0 : index
      %198 = vector.load %arg13[%c96, %c0_144] : memref<960x32xf32, #tpu.memory_space<vmem>>, vector<32x32xf32>
      %199 = arith.maximumf %197, %198 : vector<32x32xf32>
      %c64_145 = arith.constant 64 : index
      %c0_146 = arith.constant 0 : index
      %200 = vector.load %arg13[%c64_145, %c0_146] : memref<960x32xf32, #tpu.memory_space<vmem>>, vector<32x32xf32>
      tpu.vector_store %arg13[%c64_145, %c0_146], %199 {strides = array<i32>} : memref<960x32xf32, #tpu.memory_space<vmem>>, vector<32x32xf32>,
      %c64_147 = arith.constant 64 : index
      %c0_148 = arith.constant 0 : index
      %201 = tpu.strided_load %arg13[%c64_147, %c0_148] {strides = array<i32: 2, 1>} : memref<960x32xf32, #tpu.memory_space<vmem>>, vector<15x32xf32>
      %c65 = arith.constant 65 : index
      %c0_149 = arith.constant 0 : index
      %202 = tpu.strided_load %arg13[%c65, %c0_149] {strides = array<i32: 2, 1>} : memref<960x32xf32, #tpu.memory_space<vmem>>, vector<15x32xf32>
      %203 = arith.maximumf %201, %202 : vector<15x32xf32>
      %204 = arith.truncf %203 : vector<15x32xf32> to vector<15x32xbf16>
      %c15_150 = arith.constant 15 : index
      %c0_151 = arith.constant 0 : index
      %205 = vector.load %arg14[%c15_150, %c0_151] : memref<227x32xbf16, #tpu.memory_space<vmem>>, vector<15x32xbf16>
      tpu.vector_store %arg14[%c15_150, %c0_151], %204 {strides = array<i32>} : memref<227x32xbf16, #tpu.memory_space<vmem>>, vector<15x32xbf16>,
      %c128_152 = arith.constant 128 : index
      %c0_153 = arith.constant 0 : index
      %206 = vector.load %arg13[%c128_152, %c0_153] : memref<960x32xf32, #tpu.memory_space<vmem>>, vector<32x32xf32>
      %c160 = arith.constant 160 : index
      %c0_154 = arith.constant 0 : index
      %207 = vector.load %arg13[%c160, %c0_154] : memref<960x32xf32, #tpu.memory_space<vmem>>, vector<32x32xf32>
      %208 = arith.maximumf %206, %207 : vector<32x32xf32>
      %c128_155 = arith.constant 128 : index
      %c0_156 = arith.constant 0 : index
      %209 = vector.load %arg13[%c128_155, %c0_156] : memref<960x32xf32, #tpu.memory_space<vmem>>, vector<32x32xf32>
      tpu.vector_store %arg13[%c128_155, %c0_156], %208 {strides = array<i32>} : memref<960x32xf32, #tpu.memory_space<vmem>>, vector<32x32xf32>,
      %c128_157 = arith.constant 128 : index
      %c0_158 = arith.constant 0 : index
      %210 = tpu.strided_load %arg13[%c128_157, %c0_158] {strides = array<i32: 2, 1>} : memref<960x32xf32, #tpu.memory_space<vmem>>, vector<15x32xf32>
      %c129 = arith.constant 129 : index
      %c0_159 = arith.constant 0 : index
      %211 = tpu.strided_load %arg13[%c129, %c0_159] {strides = array<i32: 2, 1>} : memref<960x32xf32, #tpu.memory_space<vmem>>, vector<15x32xf32>
      %212 = arith.maximumf %210, %211 : vector<15x32xf32>
      %213 = arith.truncf %212 : vector<15x32xf32> to vector<15x32xbf16>
      %c30 = arith.constant 30 : index
      %c0_160 = arith.constant 0 : index
      %214 = vector.load %arg14[%c30, %c0_160] : memref<227x32xbf16, #tpu.memory_space<vmem>>, vector<15x32xbf16>
      tpu.vector_store %arg14[%c30, %c0_160], %213 {strides = array<i32>} : memref<227x32xbf16, #tpu.memory_space<vmem>>, vector<15x32xbf16>,
      %c192_161 = arith.constant 192 : index
      %c0_162 = arith.constant 0 : index
      %215 = vector.load %arg13[%c192_161, %c0_162] : memref<960x32xf32, #tpu.memory_space<vmem>>, vector<32x32xf32>
      %c224 = arith.constant 224 : index
      %c0_163 = arith.constant 0 : index
      %216 = vector.load %arg13[%c224, %c0_163] : memref<960x32xf32, #tpu.memory_space<vmem>>, vector<32x32xf32>
      %217 = arith.maximumf %215, %216 : vector<32x32xf32>
      %c192_164 = arith.constant 192 : index
      %c0_165 = arith.constant 0 : index
      %218 = vector.load %arg13[%c192_164, %c0_165] : memref<960x32xf32, #tpu.memory_space<vmem>>, vector<32x32xf32>
      tpu.vector_store %arg13[%c192_164, %c0_165], %217 {strides = array<i32>} : memref<960x32xf32, #tpu.memory_space<vmem>>, vector<32x32xf32>,
      %c192_166 = arith.constant 192 : index
      %c0_167 = arith.constant 0 : index
      %219 = tpu.strided_load %arg13[%c192_166, %c0_167] {strides = array<i32: 2, 1>} : memref<960x32xf32, #tpu.memory_space<vmem>>, vector<15x32xf32>
      %c193 = arith.constant 193 : index
      %c0_168 = arith.constant 0 : index
      %220 = tpu.strided_load %arg13[%c193, %c0_168] {strides = array<i32: 2, 1>} : memref<960x32xf32, #tpu.memory_space<vmem>>, vector<15x32xf32>
      %221 = arith.maximumf %219, %220 : vector<15x32xf32>
      %222 = arith.truncf %221 : vector<15x32xf32> to vector<15x32xbf16>
      %c45 = arith.constant 45 : index
      %c0_169 = arith.constant 0 : index
      %223 = vector.load %arg14[%c45, %c0_169] : memref<227x32xbf16, #tpu.memory_space<vmem>>, vector<15x32xbf16>
      tpu.vector_store %arg14[%c45, %c0_169], %222 {strides = array<i32>} : memref<227x32xbf16, #tpu.memory_space<vmem>>, vector<15x32xbf16>,
      %c256_170 = arith.constant 256 : index
      %c0_171 = arith.constant 0 : index
      %224 = vector.load %arg13[%c256_170, %c0_171] : memref<960x32xf32, #tpu.memory_space<vmem>>, vector<32x32xf32>
      %c288 = arith.constant 288 : index
      %c0_172 = arith.constant 0 : index
      %225 = vector.load %arg13[%c288, %c0_172] : memref<960x32xf32, #tpu.memory_space<vmem>>, vector<32x32xf32>
      %226 = arith.maximumf %224, %225 : vector<32x32xf32>
      %c256_173 = arith.constant 256 : index
      %c0_174 = arith.constant 0 : index
      %227 = vector.load %arg13[%c256_173, %c0_174] : memref<960x32xf32, #tpu.memory_space<vmem>>, vector<32x32xf32>
      tpu.vector_store %arg13[%c256_173, %c0_174], %226 {strides = array<i32>} : memref<960x32xf32, #tpu.memory_space<vmem>>, vector<32x32xf32>,
      %c256_175 = arith.constant 256 : index
      %c0_176 = arith.constant 0 : index
      %228 = tpu.strided_load %arg13[%c256_175, %c0_176] {strides = array<i32: 2, 1>} : memref<960x32xf32, #tpu.memory_space<vmem>>, vector<15x32xf32>
      %c257 = arith.constant 257 : index
      %c0_177 = arith.constant 0 : index
      %229 = tpu.strided_load %arg13[%c257, %c0_177] {strides = array<i32: 2, 1>} : memref<960x32xf32, #tpu.memory_space<vmem>>, vector<15x32xf32>
      %230 = arith.maximumf %228, %229 : vector<15x32xf32>
      %231 = arith.truncf %230 : vector<15x32xf32> to vector<15x32xbf16>
      %c60 = arith.constant 60 : index
      %c0_178 = arith.constant 0 : index
      %232 = vector.load %arg14[%c60, %c0_178] : memref<227x32xbf16, #tpu.memory_space<vmem>>, vector<15x32xbf16>
      tpu.vector_store %arg14[%c60, %c0_178], %231 {strides = array<i32>} : memref<227x32xbf16, #tpu.memory_space<vmem>>, vector<15x32xbf16>,
      %c320_179 = arith.constant 320 : index
      %c0_180 = arith.constant 0 : index
      %233 = vector.load %arg13[%c320_179, %c0_180] : memref<960x32xf32, #tpu.memory_space<vmem>>, vector<32x32xf32>
      %c352 = arith.constant 352 : index
      %c0_181 = arith.constant 0 : index
      %234 = vector.load %arg13[%c352, %c0_181] : memref<960x32xf32, #tpu.memory_space<vmem>>, vector<32x32xf32>
      %235 = arith.maximumf %233, %234 : vector<32x32xf32>
      %c320_182 = arith.constant 320 : index
      %c0_183 = arith.constant 0 : index
      %236 = vector.load %arg13[%c320_182, %c0_183] : memref<960x32xf32, #tpu.memory_space<vmem>>, vector<32x32xf32>
      tpu.vector_store %arg13[%c320_182, %c0_183], %235 {strides = array<i32>} : memref<960x32xf32, #tpu.memory_space<vmem>>, vector<32x32xf32>,
      %c320_184 = arith.constant 320 : index
      %c0_185 = arith.constant 0 : index
      %237 = tpu.strided_load %arg13[%c320_184, %c0_185] {strides = array<i32: 2, 1>} : memref<960x32xf32, #tpu.memory_space<vmem>>, vector<15x32xf32>
      %c321 = arith.constant 321 : index
      %c0_186 = arith.constant 0 : index
      %238 = tpu.strided_load %arg13[%c321, %c0_186] {strides = array<i32: 2, 1>} : memref<960x32xf32, #tpu.memory_space<vmem>>, vector<15x32xf32>
      %239 = arith.maximumf %237, %238 : vector<15x32xf32>
      %240 = arith.truncf %239 : vector<15x32xf32> to vector<15x32xbf16>
      %c75 = arith.constant 75 : index
      %c0_187 = arith.constant 0 : index
      %241 = vector.load %arg14[%c75, %c0_187] : memref<227x32xbf16, #tpu.memory_space<vmem>>, vector<15x32xbf16>
      tpu.vector_store %arg14[%c75, %c0_187], %240 {strides = array<i32>} : memref<227x32xbf16, #tpu.memory_space<vmem>>, vector<15x32xbf16>,
      %c384_188 = arith.constant 384 : index
      %c0_189 = arith.constant 0 : index
      %242 = vector.load %arg13[%c384_188, %c0_189] : memref<960x32xf32, #tpu.memory_space<vmem>>, vector<32x32xf32>
      %c416 = arith.constant 416 : index
      %c0_190 = arith.constant 0 : index
      %243 = vector.load %arg13[%c416, %c0_190] : memref<960x32xf32, #tpu.memory_space<vmem>>, vector<32x32xf32>
      %244 = arith.maximumf %242, %243 : vector<32x32xf32>
      %c384_191 = arith.constant 384 : index
      %c0_192 = arith.constant 0 : index
      %245 = vector.load %arg13[%c384_191, %c0_192] : memref<960x32xf32, #tpu.memory_space<vmem>>, vector<32x32xf32>
      tpu.vector_store %arg13[%c384_191, %c0_192], %244 {strides = array<i32>} : memref<960x32xf32, #tpu.memory_space<vmem>>, vector<32x32xf32>,
      %c384_193 = arith.constant 384 : index
      %c0_194 = arith.constant 0 : index
      %246 = tpu.strided_load %arg13[%c384_193, %c0_194] {strides = array<i32: 2, 1>} : memref<960x32xf32, #tpu.memory_space<vmem>>, vector<15x32xf32>
      %c385 = arith.constant 385 : index
      %c0_195 = arith.constant 0 : index
      %247 = tpu.strided_load %arg13[%c385, %c0_195] {strides = array<i32: 2, 1>} : memref<960x32xf32, #tpu.memory_space<vmem>>, vector<15x32xf32>
      %248 = arith.maximumf %246, %247 : vector<15x32xf32>
      %249 = arith.truncf %248 : vector<15x32xf32> to vector<15x32xbf16>
      %c90 = arith.constant 90 : index
      %c0_196 = arith.constant 0 : index
      %250 = vector.load %arg14[%c90, %c0_196] : memref<227x32xbf16, #tpu.memory_space<vmem>>, vector<15x32xbf16>
      tpu.vector_store %arg14[%c90, %c0_196], %249 {strides = array<i32>} : memref<227x32xbf16, #tpu.memory_space<vmem>>, vector<15x32xbf16>,
      %c448_197 = arith.constant 448 : index
      %c0_198 = arith.constant 0 : index
      %251 = vector.load %arg13[%c448_197, %c0_198] : memref<960x32xf32, #tpu.memory_space<vmem>>, vector<32x32xf32>
      %c480_199 = arith.constant 480 : index
      %c0_200 = arith.constant 0 : index
      %252 = vector.load %arg13[%c480_199, %c0_200] : memref<960x32xf32, #tpu.memory_space<vmem>>, vector<32x32xf32>
      %253 = arith.maximumf %251, %252 : vector<32x32xf32>
      %c448_201 = arith.constant 448 : index
      %c0_202 = arith.constant 0 : index
      %254 = vector.load %arg13[%c448_201, %c0_202] : memref<960x32xf32, #tpu.memory_space<vmem>>, vector<32x32xf32>
      tpu.vector_store %arg13[%c448_201, %c0_202], %253 {strides = array<i32>} : memref<960x32xf32, #tpu.memory_space<vmem>>, vector<32x32xf32>,
      %c448_203 = arith.constant 448 : index
      %c0_204 = arith.constant 0 : index
      %255 = tpu.strided_load %arg13[%c448_203, %c0_204] {strides = array<i32: 2, 1>} : memref<960x32xf32, #tpu.memory_space<vmem>>, vector<15x32xf32>
      %c449 = arith.constant 449 : index
      %c0_205 = arith.constant 0 : index
      %256 = tpu.strided_load %arg13[%c449, %c0_205] {strides = array<i32: 2, 1>} : memref<960x32xf32, #tpu.memory_space<vmem>>, vector<15x32xf32>
      %257 = arith.maximumf %255, %256 : vector<15x32xf32>
      %258 = arith.truncf %257 : vector<15x32xf32> to vector<15x32xbf16>
      %c105 = arith.constant 105 : index
      %c0_206 = arith.constant 0 : index
      %259 = vector.load %arg14[%c105, %c0_206] : memref<227x32xbf16, #tpu.memory_space<vmem>>, vector<15x32xbf16>
      tpu.vector_store %arg14[%c105, %c0_206], %258 {strides = array<i32>} : memref<227x32xbf16, #tpu.memory_space<vmem>>, vector<15x32xbf16>,
      %c512_207 = arith.constant 512 : index
      %c0_208 = arith.constant 0 : index
      %260 = vector.load %arg13[%c512_207, %c0_208] : memref<960x32xf32, #tpu.memory_space<vmem>>, vector<32x32xf32>
      %c544 = arith.constant 544 : index
      %c0_209 = arith.constant 0 : index
      %261 = vector.load %arg13[%c544, %c0_209] : memref<960x32xf32, #tpu.memory_space<vmem>>, vector<32x32xf32>
      %262 = arith.maximumf %260, %261 : vector<32x32xf32>
      %c512_210 = arith.constant 512 : index
      %c0_211 = arith.constant 0 : index
      %263 = vector.load %arg13[%c512_210, %c0_211] : memref<960x32xf32, #tpu.memory_space<vmem>>, vector<32x32xf32>
      tpu.vector_store %arg13[%c512_210, %c0_211], %262 {strides = array<i32>} : memref<960x32xf32, #tpu.memory_space<vmem>>, vector<32x32xf32>,
      %c512_212 = arith.constant 512 : index
      %c0_213 = arith.constant 0 : index
      %264 = tpu.strided_load %arg13[%c512_212, %c0_213] {strides = array<i32: 2, 1>} : memref<960x32xf32, #tpu.memory_space<vmem>>, vector<15x32xf32>
      %c513 = arith.constant 513 : index
      %c0_214 = arith.constant 0 : index
      %265 = tpu.strided_load %arg13[%c513, %c0_214] {strides = array<i32: 2, 1>} : memref<960x32xf32, #tpu.memory_space<vmem>>, vector<15x32xf32>
      %266 = arith.maximumf %264, %265 : vector<15x32xf32>
      %267 = arith.truncf %266 : vector<15x32xf32> to vector<15x32xbf16>
      %c120_215 = arith.constant 120 : index
      %c0_216 = arith.constant 0 : index
      %268 = vector.load %arg14[%c120_215, %c0_216] : memref<227x32xbf16, #tpu.memory_space<vmem>>, vector<15x32xbf16>
      tpu.vector_store %arg14[%c120_215, %c0_216], %267 {strides = array<i32>} : memref<227x32xbf16, #tpu.memory_space<vmem>>, vector<15x32xbf16>,
      %c576_217 = arith.constant 576 : index
      %c0_218 = arith.constant 0 : index
      %269 = vector.load %arg13[%c576_217, %c0_218] : memref<960x32xf32, #tpu.memory_space<vmem>>, vector<32x32xf32>
      %c608 = arith.constant 608 : index
      %c0_219 = arith.constant 0 : index
      %270 = vector.load %arg13[%c608, %c0_219] : memref<960x32xf32, #tpu.memory_space<vmem>>, vector<32x32xf32>
      %271 = arith.maximumf %269, %270 : vector<32x32xf32>
      %c576_220 = arith.constant 576 : index
      %c0_221 = arith.constant 0 : index
      %272 = vector.load %arg13[%c576_220, %c0_221] : memref<960x32xf32, #tpu.memory_space<vmem>>, vector<32x32xf32>
      tpu.vector_store %arg13[%c576_220, %c0_221], %271 {strides = array<i32>} : memref<960x32xf32, #tpu.memory_space<vmem>>, vector<32x32xf32>,
      %c576_222 = arith.constant 576 : index
      %c0_223 = arith.constant 0 : index
      %273 = tpu.strided_load %arg13[%c576_222, %c0_223] {strides = array<i32: 2, 1>} : memref<960x32xf32, #tpu.memory_space<vmem>>, vector<15x32xf32>
      %c577 = arith.constant 577 : index
      %c0_224 = arith.constant 0 : index
      %274 = tpu.strided_load %arg13[%c577, %c0_224] {strides = array<i32: 2, 1>} : memref<960x32xf32, #tpu.memory_space<vmem>>, vector<15x32xf32>
      %275 = arith.maximumf %273, %274 : vector<15x32xf32>
      %276 = arith.truncf %275 : vector<15x32xf32> to vector<15x32xbf16>
      %c135 = arith.constant 135 : index
      %c0_225 = arith.constant 0 : index
      %277 = vector.load %arg14[%c135, %c0_225] : memref<227x32xbf16, #tpu.memory_space<vmem>>, vector<15x32xbf16>
      tpu.vector_store %arg14[%c135, %c0_225], %276 {strides = array<i32>} : memref<227x32xbf16, #tpu.memory_space<vmem>>, vector<15x32xbf16>,
      %c640_226 = arith.constant 640 : index
      %c0_227 = arith.constant 0 : index
      %278 = vector.load %arg13[%c640_226, %c0_227] : memref<960x32xf32, #tpu.memory_space<vmem>>, vector<32x32xf32>
      %c672 = arith.constant 672 : index
      %c0_228 = arith.constant 0 : index
      %279 = vector.load %arg13[%c672, %c0_228] : memref<960x32xf32, #tpu.memory_space<vmem>>, vector<32x32xf32>
      %280 = arith.maximumf %278, %279 : vector<32x32xf32>
      %c640_229 = arith.constant 640 : index
      %c0_230 = arith.constant 0 : index
      %281 = vector.load %arg13[%c640_229, %c0_230] : memref<960x32xf32, #tpu.memory_space<vmem>>, vector<32x32xf32>
      tpu.vector_store %arg13[%c640_229, %c0_230], %280 {strides = array<i32>} : memref<960x32xf32, #tpu.memory_space<vmem>>, vector<32x32xf32>,
      %c640_231 = arith.constant 640 : index
      %c0_232 = arith.constant 0 : index
      %282 = tpu.strided_load %arg13[%c640_231, %c0_232] {strides = array<i32: 2, 1>} : memref<960x32xf32, #tpu.memory_space<vmem>>, vector<15x32xf32>
      %c641 = arith.constant 641 : index
      %c0_233 = arith.constant 0 : index
      %283 = tpu.strided_load %arg13[%c641, %c0_233] {strides = array<i32: 2, 1>} : memref<960x32xf32, #tpu.memory_space<vmem>>, vector<15x32xf32>
      %284 = arith.maximumf %282, %283 : vector<15x32xf32>
      %285 = arith.truncf %284 : vector<15x32xf32> to vector<15x32xbf16>
      %c150 = arith.constant 150 : index
      %c0_234 = arith.constant 0 : index
      %286 = vector.load %arg14[%c150, %c0_234] : memref<227x32xbf16, #tpu.memory_space<vmem>>, vector<15x32xbf16>
      tpu.vector_store %arg14[%c150, %c0_234], %285 {strides = array<i32>} : memref<227x32xbf16, #tpu.memory_space<vmem>>, vector<15x32xbf16>,
      %c704_235 = arith.constant 704 : index
      %c0_236 = arith.constant 0 : index
      %287 = vector.load %arg13[%c704_235, %c0_236] : memref<960x32xf32, #tpu.memory_space<vmem>>, vector<32x32xf32>
      %c736 = arith.constant 736 : index
      %c0_237 = arith.constant 0 : index
      %288 = vector.load %arg13[%c736, %c0_237] : memref<960x32xf32, #tpu.memory_space<vmem>>, vector<32x32xf32>
      %289 = arith.maximumf %287, %288 : vector<32x32xf32>
      %c704_238 = arith.constant 704 : index
      %c0_239 = arith.constant 0 : index
      %290 = vector.load %arg13[%c704_238, %c0_239] : memref<960x32xf32, #tpu.memory_space<vmem>>, vector<32x32xf32>
      tpu.vector_store %arg13[%c704_238, %c0_239], %289 {strides = array<i32>} : memref<960x32xf32, #tpu.memory_space<vmem>>, vector<32x32xf32>,
      %c704_240 = arith.constant 704 : index
      %c0_241 = arith.constant 0 : index
      %291 = tpu.strided_load %arg13[%c704_240, %c0_241] {strides = array<i32: 2, 1>} : memref<960x32xf32, #tpu.memory_space<vmem>>, vector<15x32xf32>
      %c705 = arith.constant 705 : index
      %c0_242 = arith.constant 0 : index
      %292 = tpu.strided_load %arg13[%c705, %c0_242] {strides = array<i32: 2, 1>} : memref<960x32xf32, #tpu.memory_space<vmem>>, vector<15x32xf32>
      %293 = arith.maximumf %291, %292 : vector<15x32xf32>
      %294 = arith.truncf %293 : vector<15x32xf32> to vector<15x32xbf16>
      %c165 = arith.constant 165 : index
      %c0_243 = arith.constant 0 : index
      %295 = vector.load %arg14[%c165, %c0_243] : memref<227x32xbf16, #tpu.memory_space<vmem>>, vector<15x32xbf16>
      tpu.vector_store %arg14[%c165, %c0_243], %294 {strides = array<i32>} : memref<227x32xbf16, #tpu.memory_space<vmem>>, vector<15x32xbf16>,
      %c768_244 = arith.constant 768 : index
      %c0_245 = arith.constant 0 : index
      %296 = vector.load %arg13[%c768_244, %c0_245] : memref<960x32xf32, #tpu.memory_space<vmem>>, vector<32x32xf32>
      %c800 = arith.constant 800 : index
      %c0_246 = arith.constant 0 : index
      %297 = vector.load %arg13[%c800, %c0_246] : memref<960x32xf32, #tpu.memory_space<vmem>>, vector<32x32xf32>
      %298 = arith.maximumf %296, %297 : vector<32x32xf32>
      %c768_247 = arith.constant 768 : index
      %c0_248 = arith.constant 0 : index
      %299 = vector.load %arg13[%c768_247, %c0_248] : memref<960x32xf32, #tpu.memory_space<vmem>>, vector<32x32xf32>
      tpu.vector_store %arg13[%c768_247, %c0_248], %298 {strides = array<i32>} : memref<960x32xf32, #tpu.memory_space<vmem>>, vector<32x32xf32>,
      %c768_249 = arith.constant 768 : index
      %c0_250 = arith.constant 0 : index
      %300 = tpu.strided_load %arg13[%c768_249, %c0_250] {strides = array<i32: 2, 1>} : memref<960x32xf32, #tpu.memory_space<vmem>>, vector<15x32xf32>
      %c769 = arith.constant 769 : index
      %c0_251 = arith.constant 0 : index
      %301 = tpu.strided_load %arg13[%c769, %c0_251] {strides = array<i32: 2, 1>} : memref<960x32xf32, #tpu.memory_space<vmem>>, vector<15x32xf32>
      %302 = arith.maximumf %300, %301 : vector<15x32xf32>
      %303 = arith.truncf %302 : vector<15x32xf32> to vector<15x32xbf16>
      %c180 = arith.constant 180 : index
      %c0_252 = arith.constant 0 : index
      %304 = vector.load %arg14[%c180, %c0_252] : memref<227x32xbf16, #tpu.memory_space<vmem>>, vector<15x32xbf16>
      tpu.vector_store %arg14[%c180, %c0_252], %303 {strides = array<i32>} : memref<227x32xbf16, #tpu.memory_space<vmem>>, vector<15x32xbf16>,
      %c832_253 = arith.constant 832 : index
      %c0_254 = arith.constant 0 : index
      %305 = vector.load %arg13[%c832_253, %c0_254] : memref<960x32xf32, #tpu.memory_space<vmem>>, vector<32x32xf32>
      %c864 = arith.constant 864 : index
      %c0_255 = arith.constant 0 : index
      %306 = vector.load %arg13[%c864, %c0_255] : memref<960x32xf32, #tpu.memory_space<vmem>>, vector<32x32xf32>
      %307 = arith.maximumf %305, %306 : vector<32x32xf32>
      %c832_256 = arith.constant 832 : index
      %c0_257 = arith.constant 0 : index
      %308 = vector.load %arg13[%c832_256, %c0_257] : memref<960x32xf32, #tpu.memory_space<vmem>>, vector<32x32xf32>
      tpu.vector_store %arg13[%c832_256, %c0_257], %307 {strides = array<i32>} : memref<960x32xf32, #tpu.memory_space<vmem>>, vector<32x32xf32>,
      %c832_258 = arith.constant 832 : index
      %c0_259 = arith.constant 0 : index
      %309 = tpu.strided_load %arg13[%c832_258, %c0_259] {strides = array<i32: 2, 1>} : memref<960x32xf32, #tpu.memory_space<vmem>>, vector<15x32xf32>
      %c833 = arith.constant 833 : index
      %c0_260 = arith.constant 0 : index
      %310 = tpu.strided_load %arg13[%c833, %c0_260] {strides = array<i32: 2, 1>} : memref<960x32xf32, #tpu.memory_space<vmem>>, vector<15x32xf32>
      %311 = arith.maximumf %309, %310 : vector<15x32xf32>
      %312 = arith.truncf %311 : vector<15x32xf32> to vector<15x32xbf16>
      %c195 = arith.constant 195 : index
      %c0_261 = arith.constant 0 : index
      %313 = vector.load %arg14[%c195, %c0_261] : memref<227x32xbf16, #tpu.memory_space<vmem>>, vector<15x32xbf16>
      tpu.vector_store %arg14[%c195, %c0_261], %312 {strides = array<i32>} : memref<227x32xbf16, #tpu.memory_space<vmem>>, vector<15x32xbf16>,
      %c896_262 = arith.constant 896 : index
      %c0_263 = arith.constant 0 : index
      %314 = vector.load %arg13[%c896_262, %c0_263] : memref<960x32xf32, #tpu.memory_space<vmem>>, vector<32x32xf32>
      %c928 = arith.constant 928 : index
      %c0_264 = arith.constant 0 : index
      %315 = vector.load %arg13[%c928, %c0_264] : memref<960x32xf32, #tpu.memory_space<vmem>>, vector<32x32xf32>
      %316 = arith.maximumf %314, %315 : vector<32x32xf32>
      %c896_265 = arith.constant 896 : index
      %c0_266 = arith.constant 0 : index
      %317 = vector.load %arg13[%c896_265, %c0_266] : memref<960x32xf32, #tpu.memory_space<vmem>>, vector<32x32xf32>
      tpu.vector_store %arg13[%c896_265, %c0_266], %316 {strides = array<i32>} : memref<960x32xf32, #tpu.memory_space<vmem>>, vector<32x32xf32>,
      %c896_267 = arith.constant 896 : index
      %c0_268 = arith.constant 0 : index
      %318 = tpu.strided_load %arg13[%c896_267, %c0_268] {strides = array<i32: 2, 1>} : memref<960x32xf32, #tpu.memory_space<vmem>>, vector<15x32xf32>
      %c897 = arith.constant 897 : index
      %c0_269 = arith.constant 0 : index
      %319 = tpu.strided_load %arg13[%c897, %c0_269] {strides = array<i32: 2, 1>} : memref<960x32xf32, #tpu.memory_space<vmem>>, vector<15x32xf32>
      %320 = arith.maximumf %318, %319 : vector<15x32xf32>
      %321 = arith.truncf %320 : vector<15x32xf32> to vector<15x32xbf16>
      %c210 = arith.constant 210 : index
      %c0_270 = arith.constant 0 : index
      %322 = vector.load %arg14[%c210, %c0_270] : memref<227x32xbf16, #tpu.memory_space<vmem>>, vector<15x32xbf16>
      tpu.vector_store %arg14[%c210, %c0_270], %321 {strides = array<i32>} : memref<227x32xbf16, #tpu.memory_space<vmem>>, vector<15x32xbf16>,
      %c0_271 = arith.constant 0 : index
      %c0_272 = arith.constant 0 : index
      %323 = vector.load %arg14[%c0_271, %c0_272] : memref<227x32xbf16, #tpu.memory_space<vmem>>, vector<96x32xbf16>
      %c0_273 = arith.constant 0 : index
      %c0_274 = arith.constant 0 : index
      %324 = vector.load %arg4[%c0_273, %c0_274] : memref<288x64xbf16, #tpu.memory_space<vmem>>, vector<32x64xbf16>
      %cst_275 = arith.constant dense<0.000000e+00> : vector<96x64xf32>
      %325 = tpu.matmul %323, %324, %cst_275 {dimension_numbers = #tpu.dot_dimension_numbers<[1], [0], [0], [1], [0, 0, 1, 1], [], []>} : vector<96x32xbf16>, vector<32x64xbf16>, vector<96x64xf32> -> vector<96x64xf32>
      %c1_276 = arith.constant 1 : index
      %c0_277 = arith.constant 0 : index
      %326 = vector.load %arg14[%c1_276, %c0_277] : memref<227x32xbf16, #tpu.memory_space<vmem>>, vector<96x32xbf16>
      %c32_278 = arith.constant 32 : index
      %c0_279 = arith.constant 0 : index
      %327 = vector.load %arg4[%c32_278, %c0_279] : memref<288x64xbf16, #tpu.memory_space<vmem>>, vector<32x64xbf16>
      %cst_280 = arith.constant dense<0.000000e+00> : vector<96x64xf32>
      %328 = tpu.matmul %326, %327, %cst_280 {dimension_numbers = #tpu.dot_dimension_numbers<[1], [0], [0], [1], [0, 0, 1, 1], [], []>} : vector<96x32xbf16>, vector<32x64xbf16>, vector<96x64xf32> -> vector<96x64xf32>
      %329 = arith.addf %325, %328 : vector<96x64xf32>
      %c2_281 = arith.constant 2 : index
      %c0_282 = arith.constant 0 : index
      %330 = vector.load %arg14[%c2_281, %c0_282] : memref<227x32xbf16, #tpu.memory_space<vmem>>, vector<96x32xbf16>
      %c64_283 = arith.constant 64 : index
      %c0_284 = arith.constant 0 : index
      %331 = vector.load %arg4[%c64_283, %c0_284] : memref<288x64xbf16, #tpu.memory_space<vmem>>, vector<32x64xbf16>
      %cst_285 = arith.constant dense<0.000000e+00> : vector<96x64xf32>
      %332 = tpu.matmul %330, %331, %cst_285 {dimension_numbers = #tpu.dot_dimension_numbers<[1], [0], [0], [1], [0, 0, 1, 1], [], []>} : vector<96x32xbf16>, vector<32x64xbf16>, vector<96x64xf32> -> vector<96x64xf32>
      %333 = arith.addf %329, %332 : vector<96x64xf32>
      %c15_286 = arith.constant 15 : index
      %c0_287 = arith.constant 0 : index
      %334 = vector.load %arg14[%c15_286, %c0_287] : memref<227x32xbf16, #tpu.memory_space<vmem>>, vector<96x32xbf16>
      %c96_288 = arith.constant 96 : index
      %c0_289 = arith.constant 0 : index
      %335 = vector.load %arg4[%c96_288, %c0_289] : memref<288x64xbf16, #tpu.memory_space<vmem>>, vector<32x64xbf16>
      %cst_290 = arith.constant dense<0.000000e+00> : vector<96x64xf32>
      %336 = tpu.matmul %334, %335, %cst_290 {dimension_numbers = #tpu.dot_dimension_numbers<[1], [0], [0], [1], [0, 0, 1, 1], [], []>} : vector<96x32xbf16>, vector<32x64xbf16>, vector<96x64xf32> -> vector<96x64xf32>
      %337 = arith.addf %333, %336 : vector<96x64xf32>
      %c16 = arith.constant 16 : index
      %c0_291 = arith.constant 0 : index
      %338 = vector.load %arg14[%c16, %c0_291] : memref<227x32xbf16, #tpu.memory_space<vmem>>, vector<96x32xbf16>
      %c128_292 = arith.constant 128 : index
      %c0_293 = arith.constant 0 : index
      %339 = vector.load %arg4[%c128_292, %c0_293] : memref<288x64xbf16, #tpu.memory_space<vmem>>, vector<32x64xbf16>
      %cst_294 = arith.constant dense<0.000000e+00> : vector<96x64xf32>
      %340 = tpu.matmul %338, %339, %cst_294 {dimension_numbers = #tpu.dot_dimension_numbers<[1], [0], [0], [1], [0, 0, 1, 1], [], []>} : vector<96x32xbf16>, vector<32x64xbf16>, vector<96x64xf32> -> vector<96x64xf32>
      %341 = arith.addf %337, %340 : vector<96x64xf32>
      %c17 = arith.constant 17 : index
      %c0_295 = arith.constant 0 : index
      %342 = vector.load %arg14[%c17, %c0_295] : memref<227x32xbf16, #tpu.memory_space<vmem>>, vector<96x32xbf16>
      %c160_296 = arith.constant 160 : index
      %c0_297 = arith.constant 0 : index
      %343 = vector.load %arg4[%c160_296, %c0_297] : memref<288x64xbf16, #tpu.memory_space<vmem>>, vector<32x64xbf16>
      %cst_298 = arith.constant dense<0.000000e+00> : vector<96x64xf32>
      %344 = tpu.matmul %342, %343, %cst_298 {dimension_numbers = #tpu.dot_dimension_numbers<[1], [0], [0], [1], [0, 0, 1, 1], [], []>} : vector<96x32xbf16>, vector<32x64xbf16>, vector<96x64xf32> -> vector<96x64xf32>
      %345 = arith.addf %341, %344 : vector<96x64xf32>
      %c30_299 = arith.constant 30 : index
      %c0_300 = arith.constant 0 : index
      %346 = vector.load %arg14[%c30_299, %c0_300] : memref<227x32xbf16, #tpu.memory_space<vmem>>, vector<96x32xbf16>
      %c192_301 = arith.constant 192 : index
      %c0_302 = arith.constant 0 : index
      %347 = vector.load %arg4[%c192_301, %c0_302] : memref<288x64xbf16, #tpu.memory_space<vmem>>, vector<32x64xbf16>
      %cst_303 = arith.constant dense<0.000000e+00> : vector<96x64xf32>
      %348 = tpu.matmul %346, %347, %cst_303 {dimension_numbers = #tpu.dot_dimension_numbers<[1], [0], [0], [1], [0, 0, 1, 1], [], []>} : vector<96x32xbf16>, vector<32x64xbf16>, vector<96x64xf32> -> vector<96x64xf32>
      %349 = arith.addf %345, %348 : vector<96x64xf32>
      %c31 = arith.constant 31 : index
      %c0_304 = arith.constant 0 : index
      %350 = vector.load %arg14[%c31, %c0_304] : memref<227x32xbf16, #tpu.memory_space<vmem>>, vector<96x32xbf16>
      %c224_305 = arith.constant 224 : index
      %c0_306 = arith.constant 0 : index
      %351 = vector.load %arg4[%c224_305, %c0_306] : memref<288x64xbf16, #tpu.memory_space<vmem>>, vector<32x64xbf16>
      %cst_307 = arith.constant dense<0.000000e+00> : vector<96x64xf32>
      %352 = tpu.matmul %350, %351, %cst_307 {dimension_numbers = #tpu.dot_dimension_numbers<[1], [0], [0], [1], [0, 0, 1, 1], [], []>} : vector<96x32xbf16>, vector<32x64xbf16>, vector<96x64xf32> -> vector<96x64xf32>
      %353 = arith.addf %349, %352 : vector<96x64xf32>
      %c32_308 = arith.constant 32 : index
      %c0_309 = arith.constant 0 : index
      %354 = vector.load %arg14[%c32_308, %c0_309] : memref<227x32xbf16, #tpu.memory_space<vmem>>, vector<96x32xbf16>
      %c256_310 = arith.constant 256 : index
      %c0_311 = arith.constant 0 : index
      %355 = vector.load %arg4[%c256_310, %c0_311] : memref<288x64xbf16, #tpu.memory_space<vmem>>, vector<32x64xbf16>
      %cst_312 = arith.constant dense<0.000000e+00> : vector<96x64xf32>
      %356 = tpu.matmul %354, %355, %cst_312 {dimension_numbers = #tpu.dot_dimension_numbers<[1], [0], [0], [1], [0, 0, 1, 1], [], []>} : vector<96x32xbf16>, vector<32x64xbf16>, vector<96x64xf32> -> vector<96x64xf32>
      %357 = arith.addf %353, %356 : vector<96x64xf32>
      %c0_313 = arith.constant 0 : index
      %c0_314 = arith.constant 0 : index
      %358 = vector.load %arg5[%c0_313, %c0_314] : memref<1x64xf32, #tpu.memory_space<vmem>>, vector<1x64xf32>
      %359 = vector.broadcast %358 : vector<1x64xf32> to vector<96x64xf32>
      %360 = arith.addf %357, %359 : vector<96x64xf32>
      %cst_315 = arith.constant 0.000000e+00 : f32
      %361 = vector.broadcast %cst_315 : f32 to vector<96x64xf32>
      %362 = arith.maximumf %360, %361 : vector<96x64xf32>
      %c0_316 = arith.constant 0 : index
      %c0_317 = arith.constant 0 : index
      %363 = vector.load %arg15[%c0_316, %c0_317] : memref<195x64xf32, #tpu.memory_space<vmem>>, vector<96x64xf32>
      tpu.vector_store %arg15[%c0_316, %c0_317], %362 {strides = array<i32>} : memref<195x64xf32, #tpu.memory_space<vmem>>, vector<96x64xf32>,
      %c96_318 = arith.constant 96 : index
      %c0_319 = arith.constant 0 : index
      %364 = vector.load %arg14[%c96_318, %c0_319] : memref<227x32xbf16, #tpu.memory_space<vmem>>, vector<99x32xbf16>
      %c0_320 = arith.constant 0 : index
      %c0_321 = arith.constant 0 : index
      %365 = vector.load %arg4[%c0_320, %c0_321] : memref<288x64xbf16, #tpu.memory_space<vmem>>, vector<32x64xbf16>
      %cst_322 = arith.constant dense<0.000000e+00> : vector<99x64xf32>
      %366 = tpu.matmul %364, %365, %cst_322 {dimension_numbers = #tpu.dot_dimension_numbers<[1], [0], [0], [1], [0, 0, 1, 1], [], []>} : vector<99x32xbf16>, vector<32x64xbf16>, vector<99x64xf32> -> vector<99x64xf32>
      %c97 = arith.constant 97 : index
      %c0_323 = arith.constant 0 : index
      %367 = vector.load %arg14[%c97, %c0_323] : memref<227x32xbf16, #tpu.memory_space<vmem>>, vector<99x32xbf16>
      %c32_324 = arith.constant 32 : index
      %c0_325 = arith.constant 0 : index
      %368 = vector.load %arg4[%c32_324, %c0_325] : memref<288x64xbf16, #tpu.memory_space<vmem>>, vector<32x64xbf16>
      %cst_326 = arith.constant dense<0.000000e+00> : vector<99x64xf32>
      %369 = tpu.matmul %367, %368, %cst_326 {dimension_numbers = #tpu.dot_dimension_numbers<[1], [0], [0], [1], [0, 0, 1, 1], [], []>} : vector<99x32xbf16>, vector<32x64xbf16>, vector<99x64xf32> -> vector<99x64xf32>
      %370 = arith.addf %366, %369 : vector<99x64xf32>
      %c98 = arith.constant 98 : index
      %c0_327 = arith.constant 0 : index
      %371 = vector.load %arg14[%c98, %c0_327] : memref<227x32xbf16, #tpu.memory_space<vmem>>, vector<99x32xbf16>
      %c64_328 = arith.constant 64 : index
      %c0_329 = arith.constant 0 : index
      %372 = vector.load %arg4[%c64_328, %c0_329] : memref<288x64xbf16, #tpu.memory_space<vmem>>, vector<32x64xbf16>
      %cst_330 = arith.constant dense<0.000000e+00> : vector<99x64xf32>
      %373 = tpu.matmul %371, %372, %cst_330 {dimension_numbers = #tpu.dot_dimension_numbers<[1], [0], [0], [1], [0, 0, 1, 1], [], []>} : vector<99x32xbf16>, vector<32x64xbf16>, vector<99x64xf32> -> vector<99x64xf32>
      %374 = arith.addf %370, %373 : vector<99x64xf32>
      %c111 = arith.constant 111 : index
      %c0_331 = arith.constant 0 : index
      %375 = vector.load %arg14[%c111, %c0_331] : memref<227x32xbf16, #tpu.memory_space<vmem>>, vector<99x32xbf16>
      %c96_332 = arith.constant 96 : index
      %c0_333 = arith.constant 0 : index
      %376 = vector.load %arg4[%c96_332, %c0_333] : memref<288x64xbf16, #tpu.memory_space<vmem>>, vector<32x64xbf16>
      %cst_334 = arith.constant dense<0.000000e+00> : vector<99x64xf32>
      %377 = tpu.matmul %375, %376, %cst_334 {dimension_numbers = #tpu.dot_dimension_numbers<[1], [0], [0], [1], [0, 0, 1, 1], [], []>} : vector<99x32xbf16>, vector<32x64xbf16>, vector<99x64xf32> -> vector<99x64xf32>
      %378 = arith.addf %374, %377 : vector<99x64xf32>
      %c112 = arith.constant 112 : index
      %c0_335 = arith.constant 0 : index
      %379 = vector.load %arg14[%c112, %c0_335] : memref<227x32xbf16, #tpu.memory_space<vmem>>, vector<99x32xbf16>
      %c128_336 = arith.constant 128 : index
      %c0_337 = arith.constant 0 : index
      %380 = vector.load %arg4[%c128_336, %c0_337] : memref<288x64xbf16, #tpu.memory_space<vmem>>, vector<32x64xbf16>
      %cst_338 = arith.constant dense<0.000000e+00> : vector<99x64xf32>
      %381 = tpu.matmul %379, %380, %cst_338 {dimension_numbers = #tpu.dot_dimension_numbers<[1], [0], [0], [1], [0, 0, 1, 1], [], []>} : vector<99x32xbf16>, vector<32x64xbf16>, vector<99x64xf32> -> vector<99x64xf32>
      %382 = arith.addf %378, %381 : vector<99x64xf32>
      %c113 = arith.constant 113 : index
      %c0_339 = arith.constant 0 : index
      %383 = vector.load %arg14[%c113, %c0_339] : memref<227x32xbf16, #tpu.memory_space<vmem>>, vector<99x32xbf16>
      %c160_340 = arith.constant 160 : index
      %c0_341 = arith.constant 0 : index
      %384 = vector.load %arg4[%c160_340, %c0_341] : memref<288x64xbf16, #tpu.memory_space<vmem>>, vector<32x64xbf16>
      %cst_342 = arith.constant dense<0.000000e+00> : vector<99x64xf32>
      %385 = tpu.matmul %383, %384, %cst_342 {dimension_numbers = #tpu.dot_dimension_numbers<[1], [0], [0], [1], [0, 0, 1, 1], [], []>} : vector<99x32xbf16>, vector<32x64xbf16>, vector<99x64xf32> -> vector<99x64xf32>
      %386 = arith.addf %382, %385 : vector<99x64xf32>
      %c126 = arith.constant 126 : index
      %c0_343 = arith.constant 0 : index
      %387 = vector.load %arg14[%c126, %c0_343] : memref<227x32xbf16, #tpu.memory_space<vmem>>, vector<99x32xbf16>
      %c192_344 = arith.constant 192 : index
      %c0_345 = arith.constant 0 : index
      %388 = vector.load %arg4[%c192_344, %c0_345] : memref<288x64xbf16, #tpu.memory_space<vmem>>, vector<32x64xbf16>
      %cst_346 = arith.constant dense<0.000000e+00> : vector<99x64xf32>
      %389 = tpu.matmul %387, %388, %cst_346 {dimension_numbers = #tpu.dot_dimension_numbers<[1], [0], [0], [1], [0, 0, 1, 1], [], []>} : vector<99x32xbf16>, vector<32x64xbf16>, vector<99x64xf32> -> vector<99x64xf32>
      %390 = arith.addf %386, %389 : vector<99x64xf32>
      %c127 = arith.constant 127 : index
      %c0_347 = arith.constant 0 : index
      %391 = vector.load %arg14[%c127, %c0_347] : memref<227x32xbf16, #tpu.memory_space<vmem>>, vector<99x32xbf16>
      %c224_348 = arith.constant 224 : index
      %c0_349 = arith.constant 0 : index
      %392 = vector.load %arg4[%c224_348, %c0_349] : memref<288x64xbf16, #tpu.memory_space<vmem>>, vector<32x64xbf16>
      %cst_350 = arith.constant dense<0.000000e+00> : vector<99x64xf32>
      %393 = tpu.matmul %391, %392, %cst_350 {dimension_numbers = #tpu.dot_dimension_numbers<[1], [0], [0], [1], [0, 0, 1, 1], [], []>} : vector<99x32xbf16>, vector<32x64xbf16>, vector<99x64xf32> -> vector<99x64xf32>
      %394 = arith.addf %390, %393 : vector<99x64xf32>
      %c128_351 = arith.constant 128 : index
      %c0_352 = arith.constant 0 : index
      %395 = vector.load %arg14[%c128_351, %c0_352] : memref<227x32xbf16, #tpu.memory_space<vmem>>, vector<99x32xbf16>
      %c256_353 = arith.constant 256 : index
      %c0_354 = arith.constant 0 : index
      %396 = vector.load %arg4[%c256_353, %c0_354] : memref<288x64xbf16, #tpu.memory_space<vmem>>, vector<32x64xbf16>
      %cst_355 = arith.constant dense<0.000000e+00> : vector<99x64xf32>
      %397 = tpu.matmul %395, %396, %cst_355 {dimension_numbers = #tpu.dot_dimension_numbers<[1], [0], [0], [1], [0, 0, 1, 1], [], []>} : vector<99x32xbf16>, vector<32x64xbf16>, vector<99x64xf32> -> vector<99x64xf32>
      %398 = arith.addf %394, %397 : vector<99x64xf32>
      %c0_356 = arith.constant 0 : index
      %c0_357 = arith.constant 0 : index
      %399 = vector.load %arg5[%c0_356, %c0_357] : memref<1x64xf32, #tpu.memory_space<vmem>>, vector<1x64xf32>
      %400 = vector.broadcast %399 : vector<1x64xf32> to vector<99x64xf32>
      %401 = arith.addf %398, %400 : vector<99x64xf32>
      %cst_358 = arith.constant 0.000000e+00 : f32
      %402 = vector.broadcast %cst_358 : f32 to vector<99x64xf32>
      %403 = arith.maximumf %401, %402 : vector<99x64xf32>
      %c96_359 = arith.constant 96 : index
      %c0_360 = arith.constant 0 : index
      %404 = vector.load %arg15[%c96_359, %c0_360] : memref<195x64xf32, #tpu.memory_space<vmem>>, vector<99x64xf32>
      tpu.vector_store %arg15[%c96_359, %c0_360], %403 {strides = array<i32>} : memref<195x64xf32, #tpu.memory_space<vmem>>, vector<99x64xf32>,
      %c0_361 = arith.constant 0 : index
      %c0_362 = arith.constant 0 : index
      %405 = vector.load %arg15[%c0_361, %c0_362] : memref<195x64xf32, #tpu.memory_space<vmem>>, vector<15x64xf32>
      %c15_363 = arith.constant 15 : index
      %c0_364 = arith.constant 0 : index
      %406 = vector.load %arg15[%c15_363, %c0_364] : memref<195x64xf32, #tpu.memory_space<vmem>>, vector<15x64xf32>
      %407 = arith.maximumf %405, %406 : vector<15x64xf32>
      %c0_365 = arith.constant 0 : index
      %c0_366 = arith.constant 0 : index
      %408 = vector.load %arg15[%c0_365, %c0_366] : memref<195x64xf32, #tpu.memory_space<vmem>>, vector<15x64xf32>
      tpu.vector_store %arg15[%c0_365, %c0_366], %407 {strides = array<i32>} : memref<195x64xf32, #tpu.memory_space<vmem>>, vector<15x64xf32>,
      %c0_367 = arith.constant 0 : index
      %c0_368 = arith.constant 0 : index
      %409 = tpu.strided_load %arg15[%c0_367, %c0_368] {strides = array<i32: 2, 1>} : memref<195x64xf32, #tpu.memory_space<vmem>>, vector<6x64xf32>
      %c1_369 = arith.constant 1 : index
      %c0_370 = arith.constant 0 : index
      %410 = tpu.strided_load %arg15[%c1_369, %c0_370] {strides = array<i32: 2, 1>} : memref<195x64xf32, #tpu.memory_space<vmem>>, vector<6x64xf32>
      %411 = arith.maximumf %409, %410 : vector<6x64xf32>
      %412 = arith.truncf %411 : vector<6x64xf32> to vector<6x64xbf16>
      %c0_371 = arith.constant 0 : index
      %c0_372 = arith.constant 0 : index
      %413 = vector.load %arg16[%c0_371, %c0_372] : memref<38x64xbf16, #tpu.memory_space<vmem>>, vector<6x64xbf16>
      tpu.vector_store %arg16[%c0_371, %c0_372], %412 {strides = array<i32>} : memref<38x64xbf16, #tpu.memory_space<vmem>>, vector<6x64xbf16>,
      %c30_373 = arith.constant 30 : index
      %c0_374 = arith.constant 0 : index
      %414 = vector.load %arg15[%c30_373, %c0_374] : memref<195x64xf32, #tpu.memory_space<vmem>>, vector<15x64xf32>
      %c45_375 = arith.constant 45 : index
      %c0_376 = arith.constant 0 : index
      %415 = vector.load %arg15[%c45_375, %c0_376] : memref<195x64xf32, #tpu.memory_space<vmem>>, vector<15x64xf32>
      %416 = arith.maximumf %414, %415 : vector<15x64xf32>
      %c30_377 = arith.constant 30 : index
      %c0_378 = arith.constant 0 : index
      %417 = vector.load %arg15[%c30_377, %c0_378] : memref<195x64xf32, #tpu.memory_space<vmem>>, vector<15x64xf32>
      tpu.vector_store %arg15[%c30_377, %c0_378], %416 {strides = array<i32>} : memref<195x64xf32, #tpu.memory_space<vmem>>, vector<15x64xf32>,
      %c30_379 = arith.constant 30 : index
      %c0_380 = arith.constant 0 : index
      %418 = tpu.strided_load %arg15[%c30_379, %c0_380] {strides = array<i32: 2, 1>} : memref<195x64xf32, #tpu.memory_space<vmem>>, vector<6x64xf32>
      %c31_381 = arith.constant 31 : index
      %c0_382 = arith.constant 0 : index
      %419 = tpu.strided_load %arg15[%c31_381, %c0_382] {strides = array<i32: 2, 1>} : memref<195x64xf32, #tpu.memory_space<vmem>>, vector<6x64xf32>
      %420 = arith.maximumf %418, %419 : vector<6x64xf32>
      %421 = arith.truncf %420 : vector<6x64xf32> to vector<6x64xbf16>
      %c6_383 = arith.constant 6 : index
      %c0_384 = arith.constant 0 : index
      %422 = vector.load %arg16[%c6_383, %c0_384] : memref<38x64xbf16, #tpu.memory_space<vmem>>, vector<6x64xbf16>
      tpu.vector_store %arg16[%c6_383, %c0_384], %421 {strides = array<i32>} : memref<38x64xbf16, #tpu.memory_space<vmem>>, vector<6x64xbf16>,
      %c60_385 = arith.constant 60 : index
      %c0_386 = arith.constant 0 : index
      %423 = vector.load %arg15[%c60_385, %c0_386] : memref<195x64xf32, #tpu.memory_space<vmem>>, vector<15x64xf32>
      %c75_387 = arith.constant 75 : index
      %c0_388 = arith.constant 0 : index
      %424 = vector.load %arg15[%c75_387, %c0_388] : memref<195x64xf32, #tpu.memory_space<vmem>>, vector<15x64xf32>
      %425 = arith.maximumf %423, %424 : vector<15x64xf32>
      %c60_389 = arith.constant 60 : index
      %c0_390 = arith.constant 0 : index
      %426 = vector.load %arg15[%c60_389, %c0_390] : memref<195x64xf32, #tpu.memory_space<vmem>>, vector<15x64xf32>
      tpu.vector_store %arg15[%c60_389, %c0_390], %425 {strides = array<i32>} : memref<195x64xf32, #tpu.memory_space<vmem>>, vector<15x64xf32>,
      %c60_391 = arith.constant 60 : index
      %c0_392 = arith.constant 0 : index
      %427 = tpu.strided_load %arg15[%c60_391, %c0_392] {strides = array<i32: 2, 1>} : memref<195x64xf32, #tpu.memory_space<vmem>>, vector<6x64xf32>
      %c61 = arith.constant 61 : index
      %c0_393 = arith.constant 0 : index
      %428 = tpu.strided_load %arg15[%c61, %c0_393] {strides = array<i32: 2, 1>} : memref<195x64xf32, #tpu.memory_space<vmem>>, vector<6x64xf32>
      %429 = arith.maximumf %427, %428 : vector<6x64xf32>
      %430 = arith.truncf %429 : vector<6x64xf32> to vector<6x64xbf16>
      %c12_394 = arith.constant 12 : index
      %c0_395 = arith.constant 0 : index
      %431 = vector.load %arg16[%c12_394, %c0_395] : memref<38x64xbf16, #tpu.memory_space<vmem>>, vector<6x64xbf16>
      tpu.vector_store %arg16[%c12_394, %c0_395], %430 {strides = array<i32>} : memref<38x64xbf16, #tpu.memory_space<vmem>>, vector<6x64xbf16>,
      %c90_396 = arith.constant 90 : index
      %c0_397 = arith.constant 0 : index
      %432 = vector.load %arg15[%c90_396, %c0_397] : memref<195x64xf32, #tpu.memory_space<vmem>>, vector<15x64xf32>
      %c105_398 = arith.constant 105 : index
      %c0_399 = arith.constant 0 : index
      %433 = vector.load %arg15[%c105_398, %c0_399] : memref<195x64xf32, #tpu.memory_space<vmem>>, vector<15x64xf32>
      %434 = arith.maximumf %432, %433 : vector<15x64xf32>
      %c90_400 = arith.constant 90 : index
      %c0_401 = arith.constant 0 : index
      %435 = vector.load %arg15[%c90_400, %c0_401] : memref<195x64xf32, #tpu.memory_space<vmem>>, vector<15x64xf32>
      tpu.vector_store %arg15[%c90_400, %c0_401], %434 {strides = array<i32>} : memref<195x64xf32, #tpu.memory_space<vmem>>, vector<15x64xf32>,
      %c90_402 = arith.constant 90 : index
      %c0_403 = arith.constant 0 : index
      %436 = tpu.strided_load %arg15[%c90_402, %c0_403] {strides = array<i32: 2, 1>} : memref<195x64xf32, #tpu.memory_space<vmem>>, vector<6x64xf32>
      %c91 = arith.constant 91 : index
      %c0_404 = arith.constant 0 : index
      %437 = tpu.strided_load %arg15[%c91, %c0_404] {strides = array<i32: 2, 1>} : memref<195x64xf32, #tpu.memory_space<vmem>>, vector<6x64xf32>
      %438 = arith.maximumf %436, %437 : vector<6x64xf32>
      %439 = arith.truncf %438 : vector<6x64xf32> to vector<6x64xbf16>
      %c18_405 = arith.constant 18 : index
      %c0_406 = arith.constant 0 : index
      %440 = vector.load %arg16[%c18_405, %c0_406] : memref<38x64xbf16, #tpu.memory_space<vmem>>, vector<6x64xbf16>
      tpu.vector_store %arg16[%c18_405, %c0_406], %439 {strides = array<i32>} : memref<38x64xbf16, #tpu.memory_space<vmem>>, vector<6x64xbf16>,
      %c120_407 = arith.constant 120 : index
      %c0_408 = arith.constant 0 : index
      %441 = vector.load %arg15[%c120_407, %c0_408] : memref<195x64xf32, #tpu.memory_space<vmem>>, vector<15x64xf32>
      %c135_409 = arith.constant 135 : index
      %c0_410 = arith.constant 0 : index
      %442 = vector.load %arg15[%c135_409, %c0_410] : memref<195x64xf32, #tpu.memory_space<vmem>>, vector<15x64xf32>
      %443 = arith.maximumf %441, %442 : vector<15x64xf32>
      %c120_411 = arith.constant 120 : index
      %c0_412 = arith.constant 0 : index
      %444 = vector.load %arg15[%c120_411, %c0_412] : memref<195x64xf32, #tpu.memory_space<vmem>>, vector<15x64xf32>
      tpu.vector_store %arg15[%c120_411, %c0_412], %443 {strides = array<i32>} : memref<195x64xf32, #tpu.memory_space<vmem>>, vector<15x64xf32>,
      %c120_413 = arith.constant 120 : index
      %c0_414 = arith.constant 0 : index
      %445 = tpu.strided_load %arg15[%c120_413, %c0_414] {strides = array<i32: 2, 1>} : memref<195x64xf32, #tpu.memory_space<vmem>>, vector<6x64xf32>
      %c121 = arith.constant 121 : index
      %c0_415 = arith.constant 0 : index
      %446 = tpu.strided_load %arg15[%c121, %c0_415] {strides = array<i32: 2, 1>} : memref<195x64xf32, #tpu.memory_space<vmem>>, vector<6x64xf32>
      %447 = arith.maximumf %445, %446 : vector<6x64xf32>
      %448 = arith.truncf %447 : vector<6x64xf32> to vector<6x64xbf16>
      %c24 = arith.constant 24 : index
      %c0_416 = arith.constant 0 : index
      %449 = vector.load %arg16[%c24, %c0_416] : memref<38x64xbf16, #tpu.memory_space<vmem>>, vector<6x64xbf16>
      tpu.vector_store %arg16[%c24, %c0_416], %448 {strides = array<i32>} : memref<38x64xbf16, #tpu.memory_space<vmem>>, vector<6x64xbf16>,
      %c150_417 = arith.constant 150 : index
      %c0_418 = arith.constant 0 : index
      %450 = vector.load %arg15[%c150_417, %c0_418] : memref<195x64xf32, #tpu.memory_space<vmem>>, vector<15x64xf32>
      %c165_419 = arith.constant 165 : index
      %c0_420 = arith.constant 0 : index
      %451 = vector.load %arg15[%c165_419, %c0_420] : memref<195x64xf32, #tpu.memory_space<vmem>>, vector<15x64xf32>
      %452 = arith.maximumf %450, %451 : vector<15x64xf32>
      %c150_421 = arith.constant 150 : index
      %c0_422 = arith.constant 0 : index
      %453 = vector.load %arg15[%c150_421, %c0_422] : memref<195x64xf32, #tpu.memory_space<vmem>>, vector<15x64xf32>
      tpu.vector_store %arg15[%c150_421, %c0_422], %452 {strides = array<i32>} : memref<195x64xf32, #tpu.memory_space<vmem>>, vector<15x64xf32>,
      %c150_423 = arith.constant 150 : index
      %c0_424 = arith.constant 0 : index
      %454 = tpu.strided_load %arg15[%c150_423, %c0_424] {strides = array<i32: 2, 1>} : memref<195x64xf32, #tpu.memory_space<vmem>>, vector<6x64xf32>
      %c151 = arith.constant 151 : index
      %c0_425 = arith.constant 0 : index
      %455 = tpu.strided_load %arg15[%c151, %c0_425] {strides = array<i32: 2, 1>} : memref<195x64xf32, #tpu.memory_space<vmem>>, vector<6x64xf32>
      %456 = arith.maximumf %454, %455 : vector<6x64xf32>
      %457 = arith.truncf %456 : vector<6x64xf32> to vector<6x64xbf16>
      %c30_426 = arith.constant 30 : index
      %c0_427 = arith.constant 0 : index
      %458 = vector.load %arg16[%c30_426, %c0_427] : memref<38x64xbf16, #tpu.memory_space<vmem>>, vector<6x64xbf16>
      tpu.vector_store %arg16[%c30_426, %c0_427], %457 {strides = array<i32>} : memref<38x64xbf16, #tpu.memory_space<vmem>>, vector<6x64xbf16>,
      %c0_428 = arith.constant 0 : index
      %c0_429 = arith.constant 0 : index
      %459 = vector.load %arg16[%c0_428, %c0_429] : memref<38x64xbf16, #tpu.memory_space<vmem>>, vector<24x64xbf16>
      %c0_430 = arith.constant 0 : index
      %c0_431 = arith.constant 0 : index
      %460 = vector.load %arg6[%c0_430, %c0_431] : memref<576x64xbf16, #tpu.memory_space<vmem>>, vector<64x64xbf16>
      %cst_432 = arith.constant dense<0.000000e+00> : vector<24x64xf32>
      %461 = tpu.matmul %459, %460, %cst_432 {dimension_numbers = #tpu.dot_dimension_numbers<[1], [0], [0], [1], [0, 0, 1, 1], [], []>} : vector<24x64xbf16>, vector<64x64xbf16>, vector<24x64xf32> -> vector<24x64xf32>
      %c1_433 = arith.constant 1 : index
      %c0_434 = arith.constant 0 : index
      %462 = vector.load %arg16[%c1_433, %c0_434] : memref<38x64xbf16, #tpu.memory_space<vmem>>, vector<24x64xbf16>
      %c64_435 = arith.constant 64 : index
      %c0_436 = arith.constant 0 : index
      %463 = vector.load %arg6[%c64_435, %c0_436] : memref<576x64xbf16, #tpu.memory_space<vmem>>, vector<64x64xbf16>
      %cst_437 = arith.constant dense<0.000000e+00> : vector<24x64xf32>
      %464 = tpu.matmul %462, %463, %cst_437 {dimension_numbers = #tpu.dot_dimension_numbers<[1], [0], [0], [1], [0, 0, 1, 1], [], []>} : vector<24x64xbf16>, vector<64x64xbf16>, vector<24x64xf32> -> vector<24x64xf32>
      %465 = arith.addf %461, %464 : vector<24x64xf32>
      %c2_438 = arith.constant 2 : index
      %c0_439 = arith.constant 0 : index
      %466 = vector.load %arg16[%c2_438, %c0_439] : memref<38x64xbf16, #tpu.memory_space<vmem>>, vector<24x64xbf16>
      %c128_440 = arith.constant 128 : index
      %c0_441 = arith.constant 0 : index
      %467 = vector.load %arg6[%c128_440, %c0_441] : memref<576x64xbf16, #tpu.memory_space<vmem>>, vector<64x64xbf16>
      %cst_442 = arith.constant dense<0.000000e+00> : vector<24x64xf32>
      %468 = tpu.matmul %466, %467, %cst_442 {dimension_numbers = #tpu.dot_dimension_numbers<[1], [0], [0], [1], [0, 0, 1, 1], [], []>} : vector<24x64xbf16>, vector<64x64xbf16>, vector<24x64xf32> -> vector<24x64xf32>
      %469 = arith.addf %465, %468 : vector<24x64xf32>
      %c6_443 = arith.constant 6 : index
      %c0_444 = arith.constant 0 : index
      %470 = vector.load %arg16[%c6_443, %c0_444] : memref<38x64xbf16, #tpu.memory_space<vmem>>, vector<24x64xbf16>
      %c192_445 = arith.constant 192 : index
      %c0_446 = arith.constant 0 : index
      %471 = vector.load %arg6[%c192_445, %c0_446] : memref<576x64xbf16, #tpu.memory_space<vmem>>, vector<64x64xbf16>
      %cst_447 = arith.constant dense<0.000000e+00> : vector<24x64xf32>
      %472 = tpu.matmul %470, %471, %cst_447 {dimension_numbers = #tpu.dot_dimension_numbers<[1], [0], [0], [1], [0, 0, 1, 1], [], []>} : vector<24x64xbf16>, vector<64x64xbf16>, vector<24x64xf32> -> vector<24x64xf32>
      %473 = arith.addf %469, %472 : vector<24x64xf32>
      %c7_448 = arith.constant 7 : index
      %c0_449 = arith.constant 0 : index
      %474 = vector.load %arg16[%c7_448, %c0_449] : memref<38x64xbf16, #tpu.memory_space<vmem>>, vector<24x64xbf16>
      %c256_450 = arith.constant 256 : index
      %c0_451 = arith.constant 0 : index
      %475 = vector.load %arg6[%c256_450, %c0_451] : memref<576x64xbf16, #tpu.memory_space<vmem>>, vector<64x64xbf16>
      %cst_452 = arith.constant dense<0.000000e+00> : vector<24x64xf32>
      %476 = tpu.matmul %474, %475, %cst_452 {dimension_numbers = #tpu.dot_dimension_numbers<[1], [0], [0], [1], [0, 0, 1, 1], [], []>} : vector<24x64xbf16>, vector<64x64xbf16>, vector<24x64xf32> -> vector<24x64xf32>
      %477 = arith.addf %473, %476 : vector<24x64xf32>
      %c8_453 = arith.constant 8 : index
      %c0_454 = arith.constant 0 : index
      %478 = vector.load %arg16[%c8_453, %c0_454] : memref<38x64xbf16, #tpu.memory_space<vmem>>, vector<24x64xbf16>
      %c320_455 = arith.constant 320 : index
      %c0_456 = arith.constant 0 : index
      %479 = vector.load %arg6[%c320_455, %c0_456] : memref<576x64xbf16, #tpu.memory_space<vmem>>, vector<64x64xbf16>
      %cst_457 = arith.constant dense<0.000000e+00> : vector<24x64xf32>
      %480 = tpu.matmul %478, %479, %cst_457 {dimension_numbers = #tpu.dot_dimension_numbers<[1], [0], [0], [1], [0, 0, 1, 1], [], []>} : vector<24x64xbf16>, vector<64x64xbf16>, vector<24x64xf32> -> vector<24x64xf32>
      %481 = arith.addf %477, %480 : vector<24x64xf32>
      %c12_458 = arith.constant 12 : index
      %c0_459 = arith.constant 0 : index
      %482 = vector.load %arg16[%c12_458, %c0_459] : memref<38x64xbf16, #tpu.memory_space<vmem>>, vector<24x64xbf16>
      %c384_460 = arith.constant 384 : index
      %c0_461 = arith.constant 0 : index
      %483 = vector.load %arg6[%c384_460, %c0_461] : memref<576x64xbf16, #tpu.memory_space<vmem>>, vector<64x64xbf16>
      %cst_462 = arith.constant dense<0.000000e+00> : vector<24x64xf32>
      %484 = tpu.matmul %482, %483, %cst_462 {dimension_numbers = #tpu.dot_dimension_numbers<[1], [0], [0], [1], [0, 0, 1, 1], [], []>} : vector<24x64xbf16>, vector<64x64xbf16>, vector<24x64xf32> -> vector<24x64xf32>
      %485 = arith.addf %481, %484 : vector<24x64xf32>
      %c13_463 = arith.constant 13 : index
      %c0_464 = arith.constant 0 : index
      %486 = vector.load %arg16[%c13_463, %c0_464] : memref<38x64xbf16, #tpu.memory_space<vmem>>, vector<24x64xbf16>
      %c448_465 = arith.constant 448 : index
      %c0_466 = arith.constant 0 : index
      %487 = vector.load %arg6[%c448_465, %c0_466] : memref<576x64xbf16, #tpu.memory_space<vmem>>, vector<64x64xbf16>
      %cst_467 = arith.constant dense<0.000000e+00> : vector<24x64xf32>
      %488 = tpu.matmul %486, %487, %cst_467 {dimension_numbers = #tpu.dot_dimension_numbers<[1], [0], [0], [1], [0, 0, 1, 1], [], []>} : vector<24x64xbf16>, vector<64x64xbf16>, vector<24x64xf32> -> vector<24x64xf32>
      %489 = arith.addf %485, %488 : vector<24x64xf32>
      %c14_468 = arith.constant 14 : index
      %c0_469 = arith.constant 0 : index
      %490 = vector.load %arg16[%c14_468, %c0_469] : memref<38x64xbf16, #tpu.memory_space<vmem>>, vector<24x64xbf16>
      %c512_470 = arith.constant 512 : index
      %c0_471 = arith.constant 0 : index
      %491 = vector.load %arg6[%c512_470, %c0_471] : memref<576x64xbf16, #tpu.memory_space<vmem>>, vector<64x64xbf16>
      %cst_472 = arith.constant dense<0.000000e+00> : vector<24x64xf32>
      %492 = tpu.matmul %490, %491, %cst_472 {dimension_numbers = #tpu.dot_dimension_numbers<[1], [0], [0], [1], [0, 0, 1, 1], [], []>} : vector<24x64xbf16>, vector<64x64xbf16>, vector<24x64xf32> -> vector<24x64xf32>
      %493 = arith.addf %489, %492 : vector<24x64xf32>
      %c0_473 = arith.constant 0 : index
      %c0_474 = arith.constant 0 : index
      %494 = vector.load %arg7[%c0_473, %c0_474] : memref<1x64xf32, #tpu.memory_space<vmem>>, vector<1x64xf32>
      %495 = vector.broadcast %494 : vector<1x64xf32> to vector<24x64xf32>
      %496 = arith.addf %493, %495 : vector<24x64xf32>
      %c32_i32 = arith.constant 32 : i32
      %497 = arith.muli %97, %c32_i32 : i32
      %498 = arith.index_cast %497 : i32 to index
      %c0_475 = arith.constant 0 : index
      %499 = vector.load %arg17[%498, %c0_475] : memref<256x64xf32, #tpu.memory_space<vmem>>, vector<24x64xf32>
      tpu.vector_store %arg17[%498, %c0_475], %496 {strides = array<i32>} : memref<256x64xf32, #tpu.memory_space<vmem>>, vector<24x64xf32>,
    }
    %c8_i32_2 = arith.constant 8 : i32
    %c0_3 = arith.constant 0 : index
    %c0_4 = arith.constant 0 : index
    %5 = tpu.strided_load %arg17[%c0_3, %c0_4] {strides = array<i32: 32, 1>} : memref<256x64xf32, #tpu.memory_space<vmem>>, vector<8x64xf32>
    %6 = arith.truncf %5 : vector<8x64xf32> to vector<8x64xbf16>
    %c0_5 = arith.constant 0 : index
    %c0_6 = arith.constant 0 : index
    %7 = vector.load %arg8[%c0_5, %c0_6] : memref<1024x256xbf16, #tpu.memory_space<vmem>>, vector<64x256xbf16>
    %cst_7 = arith.constant dense<0.000000e+00> : vector<8x256xf32>
    %8 = tpu.matmul %6, %7, %cst_7 {dimension_numbers = #tpu.dot_dimension_numbers<[1], [0], [0], [1], [0, 0, 1, 1], [], []>} : vector<8x64xbf16>, vector<64x256xbf16>, vector<8x256xf32> -> vector<8x256xf32>
    %c1 = arith.constant 1 : index
    %c0_8 = arith.constant 0 : index
    %9 = tpu.strided_load %arg17[%c1, %c0_8] {strides = array<i32: 32, 1>} : memref<256x64xf32, #tpu.memory_space<vmem>>, vector<8x64xf32>
    %10 = arith.truncf %9 : vector<8x64xf32> to vector<8x64xbf16>
    %c64 = arith.constant 64 : index
    %c0_9 = arith.constant 0 : index
    %11 = vector.load %arg8[%c64, %c0_9] : memref<1024x256xbf16, #tpu.memory_space<vmem>>, vector<64x256xbf16>
    %cst_10 = arith.constant dense<0.000000e+00> : vector<8x256xf32>
    %12 = tpu.matmul %10, %11, %cst_10 {dimension_numbers = #tpu.dot_dimension_numbers<[1], [0], [0], [1], [0, 0, 1, 1], [], []>} : vector<8x64xbf16>, vector<64x256xbf16>, vector<8x256xf32> -> vector<8x256xf32>
    %13 = arith.addf %8, %12 : vector<8x256xf32>
    %c2 = arith.constant 2 : index
    %c0_11 = arith.constant 0 : index
    %14 = tpu.strided_load %arg17[%c2, %c0_11] {strides = array<i32: 32, 1>} : memref<256x64xf32, #tpu.memory_space<vmem>>, vector<8x64xf32>
    %15 = arith.truncf %14 : vector<8x64xf32> to vector<8x64xbf16>
    %c128 = arith.constant 128 : index
    %c0_12 = arith.constant 0 : index
    %16 = vector.load %arg8[%c128, %c0_12] : memref<1024x256xbf16, #tpu.memory_space<vmem>>, vector<64x256xbf16>
    %cst_13 = arith.constant dense<0.000000e+00> : vector<8x256xf32>
    %17 = tpu.matmul %15, %16, %cst_13 {dimension_numbers = #tpu.dot_dimension_numbers<[1], [0], [0], [1], [0, 0, 1, 1], [], []>} : vector<8x64xbf16>, vector<64x256xbf16>, vector<8x256xf32> -> vector<8x256xf32>
    %18 = arith.addf %13, %17 : vector<8x256xf32>
    %c3 = arith.constant 3 : index
    %c0_14 = arith.constant 0 : index
    %19 = tpu.strided_load %arg17[%c3, %c0_14] {strides = array<i32: 32, 1>} : memref<256x64xf32, #tpu.memory_space<vmem>>, vector<8x64xf32>
    %20 = arith.truncf %19 : vector<8x64xf32> to vector<8x64xbf16>
    %c192 = arith.constant 192 : index
    %c0_15 = arith.constant 0 : index
    %21 = vector.load %arg8[%c192, %c0_15] : memref<1024x256xbf16, #tpu.memory_space<vmem>>, vector<64x256xbf16>
    %cst_16 = arith.constant dense<0.000000e+00> : vector<8x256xf32>
    %22 = tpu.matmul %20, %21, %cst_16 {dimension_numbers = #tpu.dot_dimension_numbers<[1], [0], [0], [1], [0, 0, 1, 1], [], []>} : vector<8x64xbf16>, vector<64x256xbf16>, vector<8x256xf32> -> vector<8x256xf32>
    %23 = arith.addf %18, %22 : vector<8x256xf32>
    %c6 = arith.constant 6 : index
    %c0_17 = arith.constant 0 : index
    %24 = tpu.strided_load %arg17[%c6, %c0_17] {strides = array<i32: 32, 1>} : memref<256x64xf32, #tpu.memory_space<vmem>>, vector<8x64xf32>
    %25 = arith.truncf %24 : vector<8x64xf32> to vector<8x64xbf16>
    %c256 = arith.constant 256 : index
    %c0_18 = arith.constant 0 : index
    %26 = vector.load %arg8[%c256, %c0_18] : memref<1024x256xbf16, #tpu.memory_space<vmem>>, vector<64x256xbf16>
    %cst_19 = arith.constant dense<0.000000e+00> : vector<8x256xf32>
    %27 = tpu.matmul %25, %26, %cst_19 {dimension_numbers = #tpu.dot_dimension_numbers<[1], [0], [0], [1], [0, 0, 1, 1], [], []>} : vector<8x64xbf16>, vector<64x256xbf16>, vector<8x256xf32> -> vector<8x256xf32>
    %28 = arith.addf %23, %27 : vector<8x256xf32>
    %c7 = arith.constant 7 : index
    %c0_20 = arith.constant 0 : index
    %29 = tpu.strided_load %arg17[%c7, %c0_20] {strides = array<i32: 32, 1>} : memref<256x64xf32, #tpu.memory_space<vmem>>, vector<8x64xf32>
    %30 = arith.truncf %29 : vector<8x64xf32> to vector<8x64xbf16>
    %c320 = arith.constant 320 : index
    %c0_21 = arith.constant 0 : index
    %31 = vector.load %arg8[%c320, %c0_21] : memref<1024x256xbf16, #tpu.memory_space<vmem>>, vector<64x256xbf16>
    %cst_22 = arith.constant dense<0.000000e+00> : vector<8x256xf32>
    %32 = tpu.matmul %30, %31, %cst_22 {dimension_numbers = #tpu.dot_dimension_numbers<[1], [0], [0], [1], [0, 0, 1, 1], [], []>} : vector<8x64xbf16>, vector<64x256xbf16>, vector<8x256xf32> -> vector<8x256xf32>
    %33 = arith.addf %28, %32 : vector<8x256xf32>
    %c8 = arith.constant 8 : index
    %c0_23 = arith.constant 0 : index
    %34 = tpu.strided_load %arg17[%c8, %c0_23] {strides = array<i32: 32, 1>} : memref<256x64xf32, #tpu.memory_space<vmem>>, vector<8x64xf32>
    %35 = arith.truncf %34 : vector<8x64xf32> to vector<8x64xbf16>
    %c384 = arith.constant 384 : index
    %c0_24 = arith.constant 0 : index
    %36 = vector.load %arg8[%c384, %c0_24] : memref<1024x256xbf16, #tpu.memory_space<vmem>>, vector<64x256xbf16>
    %cst_25 = arith.constant dense<0.000000e+00> : vector<8x256xf32>
    %37 = tpu.matmul %35, %36, %cst_25 {dimension_numbers = #tpu.dot_dimension_numbers<[1], [0], [0], [1], [0, 0, 1, 1], [], []>} : vector<8x64xbf16>, vector<64x256xbf16>, vector<8x256xf32> -> vector<8x256xf32>
    %38 = arith.addf %33, %37 : vector<8x256xf32>
    %c9 = arith.constant 9 : index
    %c0_26 = arith.constant 0 : index
    %39 = tpu.strided_load %arg17[%c9, %c0_26] {strides = array<i32: 32, 1>} : memref<256x64xf32, #tpu.memory_space<vmem>>, vector<8x64xf32>
    %40 = arith.truncf %39 : vector<8x64xf32> to vector<8x64xbf16>
    %c448 = arith.constant 448 : index
    %c0_27 = arith.constant 0 : index
    %41 = vector.load %arg8[%c448, %c0_27] : memref<1024x256xbf16, #tpu.memory_space<vmem>>, vector<64x256xbf16>
    %cst_28 = arith.constant dense<0.000000e+00> : vector<8x256xf32>
    %42 = tpu.matmul %40, %41, %cst_28 {dimension_numbers = #tpu.dot_dimension_numbers<[1], [0], [0], [1], [0, 0, 1, 1], [], []>} : vector<8x64xbf16>, vector<64x256xbf16>, vector<8x256xf32> -> vector<8x256xf32>
    %43 = arith.addf %38, %42 : vector<8x256xf32>
    %c12 = arith.constant 12 : index
    %c0_29 = arith.constant 0 : index
    %44 = tpu.strided_load %arg17[%c12, %c0_29] {strides = array<i32: 32, 1>} : memref<256x64xf32, #tpu.memory_space<vmem>>, vector<8x64xf32>
    %45 = arith.truncf %44 : vector<8x64xf32> to vector<8x64xbf16>
    %c512 = arith.constant 512 : index
    %c0_30 = arith.constant 0 : index
    %46 = vector.load %arg8[%c512, %c0_30] : memref<1024x256xbf16, #tpu.memory_space<vmem>>, vector<64x256xbf16>
    %cst_31 = arith.constant dense<0.000000e+00> : vector<8x256xf32>
    %47 = tpu.matmul %45, %46, %cst_31 {dimension_numbers = #tpu.dot_dimension_numbers<[1], [0], [0], [1], [0, 0, 1, 1], [], []>} : vector<8x64xbf16>, vector<64x256xbf16>, vector<8x256xf32> -> vector<8x256xf32>
    %48 = arith.addf %43, %47 : vector<8x256xf32>
    %c13 = arith.constant 13 : index
    %c0_32 = arith.constant 0 : index
    %49 = tpu.strided_load %arg17[%c13, %c0_32] {strides = array<i32: 32, 1>} : memref<256x64xf32, #tpu.memory_space<vmem>>, vector<8x64xf32>
    %50 = arith.truncf %49 : vector<8x64xf32> to vector<8x64xbf16>
    %c576 = arith.constant 576 : index
    %c0_33 = arith.constant 0 : index
    %51 = vector.load %arg8[%c576, %c0_33] : memref<1024x256xbf16, #tpu.memory_space<vmem>>, vector<64x256xbf16>
    %cst_34 = arith.constant dense<0.000000e+00> : vector<8x256xf32>
    %52 = tpu.matmul %50, %51, %cst_34 {dimension_numbers = #tpu.dot_dimension_numbers<[1], [0], [0], [1], [0, 0, 1, 1], [], []>} : vector<8x64xbf16>, vector<64x256xbf16>, vector<8x256xf32> -> vector<8x256xf32>
    %53 = arith.addf %48, %52 : vector<8x256xf32>
    %c14 = arith.constant 14 : index
    %c0_35 = arith.constant 0 : index
    %54 = tpu.strided_load %arg17[%c14, %c0_35] {strides = array<i32: 32, 1>} : memref<256x64xf32, #tpu.memory_space<vmem>>, vector<8x64xf32>
    %55 = arith.truncf %54 : vector<8x64xf32> to vector<8x64xbf16>
    %c640 = arith.constant 640 : index
    %c0_36 = arith.constant 0 : index
    %56 = vector.load %arg8[%c640, %c0_36] : memref<1024x256xbf16, #tpu.memory_space<vmem>>, vector<64x256xbf16>
    %cst_37 = arith.constant dense<0.000000e+00> : vector<8x256xf32>
    %57 = tpu.matmul %55, %56, %cst_37 {dimension_numbers = #tpu.dot_dimension_numbers<[1], [0], [0], [1], [0, 0, 1, 1], [], []>} : vector<8x64xbf16>, vector<64x256xbf16>, vector<8x256xf32> -> vector<8x256xf32>
    %58 = arith.addf %53, %57 : vector<8x256xf32>
    %c15 = arith.constant 15 : index
    %c0_38 = arith.constant 0 : index
    %59 = tpu.strided_load %arg17[%c15, %c0_38] {strides = array<i32: 32, 1>} : memref<256x64xf32, #tpu.memory_space<vmem>>, vector<8x64xf32>
    %60 = arith.truncf %59 : vector<8x64xf32> to vector<8x64xbf16>
    %c704 = arith.constant 704 : index
    %c0_39 = arith.constant 0 : index
    %61 = vector.load %arg8[%c704, %c0_39] : memref<1024x256xbf16, #tpu.memory_space<vmem>>, vector<64x256xbf16>
    %cst_40 = arith.constant dense<0.000000e+00> : vector<8x256xf32>
    %62 = tpu.matmul %60, %61, %cst_40 {dimension_numbers = #tpu.dot_dimension_numbers<[1], [0], [0], [1], [0, 0, 1, 1], [], []>} : vector<8x64xbf16>, vector<64x256xbf16>, vector<8x256xf32> -> vector<8x256xf32>
    %63 = arith.addf %58, %62 : vector<8x256xf32>
    %c18 = arith.constant 18 : index
    %c0_41 = arith.constant 0 : index
    %64 = tpu.strided_load %arg17[%c18, %c0_41] {strides = array<i32: 32, 1>} : memref<256x64xf32, #tpu.memory_space<vmem>>, vector<8x64xf32>
    %65 = arith.truncf %64 : vector<8x64xf32> to vector<8x64xbf16>
    %c768 = arith.constant 768 : index
    %c0_42 = arith.constant 0 : index
    %66 = vector.load %arg8[%c768, %c0_42] : memref<1024x256xbf16, #tpu.memory_space<vmem>>, vector<64x256xbf16>
    %cst_43 = arith.constant dense<0.000000e+00> : vector<8x256xf32>
    %67 = tpu.matmul %65, %66, %cst_43 {dimension_numbers = #tpu.dot_dimension_numbers<[1], [0], [0], [1], [0, 0, 1, 1], [], []>} : vector<8x64xbf16>, vector<64x256xbf16>, vector<8x256xf32> -> vector<8x256xf32>
    %68 = arith.addf %63, %67 : vector<8x256xf32>
    %c19 = arith.constant 19 : index
    %c0_44 = arith.constant 0 : index
    %69 = tpu.strided_load %arg17[%c19, %c0_44] {strides = array<i32: 32, 1>} : memref<256x64xf32, #tpu.memory_space<vmem>>, vector<8x64xf32>
    %70 = arith.truncf %69 : vector<8x64xf32> to vector<8x64xbf16>
    %c832 = arith.constant 832 : index
    %c0_45 = arith.constant 0 : index
    %71 = vector.load %arg8[%c832, %c0_45] : memref<1024x256xbf16, #tpu.memory_space<vmem>>, vector<64x256xbf16>
    %cst_46 = arith.constant dense<0.000000e+00> : vector<8x256xf32>
    %72 = tpu.matmul %70, %71, %cst_46 {dimension_numbers = #tpu.dot_dimension_numbers<[1], [0], [0], [1], [0, 0, 1, 1], [], []>} : vector<8x64xbf16>, vector<64x256xbf16>, vector<8x256xf32> -> vector<8x256xf32>
    %73 = arith.addf %68, %72 : vector<8x256xf32>
    %c20 = arith.constant 20 : index
    %c0_47 = arith.constant 0 : index
    %74 = tpu.strided_load %arg17[%c20, %c0_47] {strides = array<i32: 32, 1>} : memref<256x64xf32, #tpu.memory_space<vmem>>, vector<8x64xf32>
    %75 = arith.truncf %74 : vector<8x64xf32> to vector<8x64xbf16>
    %c896 = arith.constant 896 : index
    %c0_48 = arith.constant 0 : index
    %76 = vector.load %arg8[%c896, %c0_48] : memref<1024x256xbf16, #tpu.memory_space<vmem>>, vector<64x256xbf16>
    %cst_49 = arith.constant dense<0.000000e+00> : vector<8x256xf32>
    %77 = tpu.matmul %75, %76, %cst_49 {dimension_numbers = #tpu.dot_dimension_numbers<[1], [0], [0], [1], [0, 0, 1, 1], [], []>} : vector<8x64xbf16>, vector<64x256xbf16>, vector<8x256xf32> -> vector<8x256xf32>
    %78 = arith.addf %73, %77 : vector<8x256xf32>
    %c21 = arith.constant 21 : index
    %c0_50 = arith.constant 0 : index
    %79 = tpu.strided_load %arg17[%c21, %c0_50] {strides = array<i32: 32, 1>} : memref<256x64xf32, #tpu.memory_space<vmem>>, vector<8x64xf32>
    %80 = arith.truncf %79 : vector<8x64xf32> to vector<8x64xbf16>
    %c960 = arith.constant 960 : index
    %c0_51 = arith.constant 0 : index
    %81 = vector.load %arg8[%c960, %c0_51] : memref<1024x256xbf16, #tpu.memory_space<vmem>>, vector<64x256xbf16>
    %cst_52 = arith.constant dense<0.000000e+00> : vector<8x256xf32>
    %82 = tpu.matmul %80, %81, %cst_52 {dimension_numbers = #tpu.dot_dimension_numbers<[1], [0], [0], [1], [0, 0, 1, 1], [], []>} : vector<8x64xbf16>, vector<64x256xbf16>, vector<8x256xf32> -> vector<8x256xf32>
    %83 = arith.addf %78, %82 : vector<8x256xf32>
    %c0_53 = arith.constant 0 : index
    %c0_54 = arith.constant 0 : index
    %84 = vector.load %arg9[%c0_53, %c0_54] : memref<1x256xf32, #tpu.memory_space<vmem>>, vector<1x256xf32>
    %85 = vector.broadcast %84 : vector<1x256xf32> to vector<8x256xf32>
    %86 = arith.addf %83, %85 : vector<8x256xf32>
    %cst_55 = arith.constant 0.000000e+00 : f32
    %87 = vector.broadcast %cst_55 : f32 to vector<8x256xf32>
    %88 = arith.maximumf %86, %87 : vector<8x256xf32>
    %89 = arith.truncf %88 : vector<8x256xf32> to vector<8x256xbf16>
    %c0_56 = arith.constant 0 : index
    %c0_57 = arith.constant 0 : index
    %90 = vector.load %arg10[%c0_56, %c0_57] : memref<256x128xbf16, #tpu.memory_space<vmem>>, vector<256x128xbf16>
    %cst_58 = arith.constant dense<0.000000e+00> : vector<8x128xf32>
    %91 = tpu.matmul %89, %90, %cst_58 {dimension_numbers = #tpu.dot_dimension_numbers<[1], [0], [0], [1], [0, 0, 1, 1], [], []>} : vector<8x256xbf16>, vector<256x128xbf16>, vector<8x128xf32> -> vector<8x128xf32>
    %c0_59 = arith.constant 0 : index
    %c0_60 = arith.constant 0 : index
    %92 = vector.load %arg11[%c0_59, %c0_60] : memref<1x128xf32, #tpu.memory_space<vmem>>, vector<1x128xf32>
    %93 = vector.broadcast %92 : vector<1x128xf32> to vector<8x128xf32>
    %94 = arith.addf %91, %93 : vector<8x128xf32>
    %c0_61 = arith.constant 0 : index
    %c0_62 = arith.constant 0 : index
    %95 = vector.load %arg12[%c0_61, %c0_62] : memref<8x128xf32, #tpu.memory_space<vmem>>, vector<8x128xf32>
    tpu.vector_store %arg12[%c0_61, %c0_62], %94 {strides = array<i32>} : memref<8x128xf32, #tpu.memory_space<vmem>>, vector<8x128xf32>,
    return
  }
  func.func @transform_0(%arg0: i32) -> (i32, i32) {
    %c0_i32 = arith.constant 0 : i32
    %c0_i32_0 = arith.constant 0 : i32
    return %arg0, %c0_i32 : i32, i32
  }
  func.func @transform_1(%arg0: i32) -> (i32, i32) {
    %c0_i32 = arith.constant 0 : i32
    %c0_i32_0 = arith.constant 0 : i32
    %c0_i32_1 = arith.constant 0 : i32
    return %c0_i32, %c0_i32_0 : i32, i32
  }
  func.func @transform_2(%arg0: i32) -> (i32, i32) {
    %c0_i32 = arith.constant 0 : i32
    %c0_i32_0 = arith.constant 0 : i32
    %c0_i32_1 = arith.constant 0 : i32
    return %c0_i32, %c0_i32_0 : i32, i32
  }
  func.func @transform_3(%arg0: i32) -> (i32, i32) {
    %c0_i32 = arith.constant 0 : i32
    %c0_i32_0 = arith.constant 0 : i32
    %c0_i32_1 = arith.constant 0 : i32
    return %c0_i32, %c0_i32_0 : i32, i32
  }
  func.func @transform_4(%arg0: i32) -> (i32, i32) {
    %c0_i32 = arith.constant 0 : i32
    %c0_i32_0 = arith.constant 0 : i32
    %c0_i32_1 = arith.constant 0 : i32
    return %c0_i32, %c0_i32_0 : i32, i32
  }
  func.func @transform_5(%arg0: i32) -> (i32, i32) {
    %c0_i32 = arith.constant 0 : i32
    %c0_i32_0 = arith.constant 0 : i32
    %c0_i32_1 = arith.constant 0 : i32
    return %c0_i32, %c0_i32_0 : i32, i32
  }
  func.func @transform_6(%arg0: i32) -> (i32, i32) {
    %c0_i32 = arith.constant 0 : i32
    %c0_i32_0 = arith.constant 0 : i32
    %c0_i32_1 = arith.constant 0 : i32
    return %c0_i32, %c0_i32_0 : i32, i32
  }
  func.func @transform_7(%arg0: i32) -> (i32, i32) {
    %c0_i32 = arith.constant 0 : i32
    %c0_i32_0 = arith.constant 0 : i32
    %c0_i32_1 = arith.constant 0 : i32
    return %c0_i32, %c0_i32_0 : i32, i32
  }
  func.func @transform_8(%arg0: i32) -> (i32, i32) {
    %c0_i32 = arith.constant 0 : i32
    %c0_i32_0 = arith.constant 0 : i32
    %c0_i32_1 = arith.constant 0 : i32
    return %c0_i32, %c0_i32_0 : i32, i32
  }
  func.func @transform_9(%arg0: i32) -> (i32, i32) {
    %c0_i32 = arith.constant 0 : i32
    %c0_i32_0 = arith.constant 0 : i32
    %c0_i32_1 = arith.constant 0 : i32
    return %c0_i32, %c0_i32_0 : i32, i32
  }
  func.func @transform_10(%arg0: i32) -> (i32, i32) {
    %c0_i32 = arith.constant 0 : i32
    %c0_i32_0 = arith.constant 0 : i32
    %c0_i32_1 = arith.constant 0 : i32
    return %c0_i32, %c0_i32_0 : i32, i32
  }
  func.func @transform_11(%arg0: i32) -> (i32, i32) {
    %c0_i32 = arith.constant 0 : i32
    %c0_i32_0 = arith.constant 0 : i32
    return %arg0, %c0_i32 : i32, i32
  }
}

</mosaic_0001>

<llo_original>
// kernel: forward.1
$region0: #{forward.1}
  #allocation0 [shape = 'u32[]', space=smem, size = 0x4, offset = 0x4, fixed_abs, tag = 'smem constant byte address 0x4 - core index']
  #allocation1 [shape = 'u32[72,128]{1,0:T(1,128)}', space=vmem, size = 0x9000, scoped, tag = 'internal scratch']
  #allocation2 [shape = 'f32[960,32]{1,0:T(8,128)}', space=vmem, size = 0x78000, scoped, tag = 'scratch operand']
  #allocation3 [shape = 'bf16[227,32]{1,0:T(8,128)(2,1)}', space=vmem, size = 0xe800, scoped, tag = 'scratch operand']
  #allocation4 [shape = 'f32[195,64]{1,0:T(8,128)}', space=vmem, size = 0x19000, scoped, tag = 'scratch operand']
  #allocation5 [shape = 'bf16[38,64]{1,0:T(8,128)(2,1)}', space=vmem, size = 0x2800, scoped, tag = 'scratch operand']
  #allocation6 [shape = 'f32[256,64]{1,0:T(8,128)}', space=vmem, size = 0x20000, scoped, tag = 'scratch operand']
  %s0 = inlined_call_operand.vmem [shape: bf16[15360,27], index: 0, kind: input, shape index: {}]
  %s1 = inlined_call_operand.vmem [shape: bf16[27,32], index: 1, kind: input, shape index: {}]
  %s2 = inlined_call_operand.vmem [shape: f32[1,32], index: 2, kind: input, shape index: {}]
  %s3 = inlined_call_operand.vmem [shape: bf16[288,64], index: 3, kind: input, shape index: {}]
  %s4 = inlined_call_operand.vmem [shape: f32[1,64], index: 4, kind: input, shape index: {}]
  %s5 = inlined_call_operand.vmem [shape: bf16[576,64], index: 5, kind: input, shape index: {}]
  %s6 = inlined_call_operand.vmem [shape: f32[1,64], index: 6, kind: input, shape index: {}]
  %s7 = inlined_call_operand.vmem [shape: bf16[1024,256], index: 7, kind: input, shape index: {}]
  %s8 = inlined_call_operand.vmem [shape: f32[1,256], index: 8, kind: input, shape index: {}]
  %s9 = inlined_call_operand.vmem [shape: bf16[256,128], index: 9, kind: input, shape index: {}]
  %s10 = inlined_call_operand.vmem [shape: f32[1,128], index: 10, kind: input, shape index: {}]
  %s11 = inlined_call_operand.hbm [shape: f32[16,128], index: 11, kind: output, shape index: {}]
  %s12 = sld [smem:[#allocation0]]
  $region84: #{forward.1} parent=0
    _
  %s14 = ssub.s32 1, %s12
  %s15 = scalar_select 0, %s14, %s12
  $region1: #{forward.1} parent=0
    #allocation7 [shape = 'u8[8192]{0}', space=vmem, size = 0x2000, scoped, tag = 'output window, operand 0']
    #allocation8 [shape = 's32[2]{0}', space=sflag, size = 0x8, scoped, tag = 'scoped memory for forward.1']
    %16 = vsyncpa [#allocation8], 0
    %s17 = scalar_lea.sflag [#allocation8], 1
    %18 = vsyncpa %s17, 0
    loop: start=0, step=1, limit=4
    $region2: #{forward.1} parent=1 // loop_pre_header
      _
    $region3: #{forward.1} parent=1 // loop_header
      %s20 = sphi 0, %s24
      %p21 = scmp.ge.s32.totalorder %s20, 4
      %s30 = sphi 0, %s32
      %s33 = sphi 0, %s30
      %s34 = sphi 0, %s33
      %s50 = sphi 0, %s34
      %s54 = sphi 0, %s54
      %s56 = sphi 0, %s54
      %s57 = sphi 0, %s56
      %s71 = sphi 0, %s57
      %s75 = sphi 0, %s75
      %s77 = sphi 0, %s75
      %s78 = sphi 0, %s77
      %s92 = sphi 0, %s78
      %s96 = sphi 0, %s96
      %s98 = sphi 0, %s96
      %s99 = sphi 0, %s98
      %s113 = sphi 0, %s99
      %s117 = sphi 0, %s117
      %s119 = sphi 0, %s117
      %s120 = sphi 0, %s119
      %s134 = sphi 0, %s120
      %s138 = sphi 0, %s138
      %s140 = sphi 0, %s138
      %s141 = sphi 0, %s140
      %s155 = sphi 0, %s141
      %s159 = sphi 0, %s159
      %s161 = sphi 0, %s159
      %s162 = sphi 0, %s161
      %s176 = sphi 0, %s162
      %s180 = sphi 0, %s180
      %s182 = sphi 0, %s180
      %s183 = sphi 0, %s182
      %s197 = sphi 0, %s183
      %s201 = sphi 0, %s201
      %s203 = sphi 0, %s201
      %s204 = sphi 0, %s203
      %s218 = sphi 0, %s204
      %s222 = sphi 0, %s222
      %s224 = sphi 0, %s222
      %s225 = sphi 0, %s224
      %s239 = sphi 0, %s225
      %s243 = sphi 0, %s243
      %s245 = sphi 0, %s243
      %s246 = sphi 0, %s245
      %s260 = sphi 0, %s246
      %s266 = sphi 0, %s268
      %s269 = sphi 0, %s266
      %s270 = sphi 0, %s269
      %s286 = sphi 0, %s270
    $region4: #{forward.1} parent=1 // loop_header_branch
      %23 = sbr.rel (%p21) target = $region8
    $region5: #{forward.1} parent=1 // loop_body
      %s25 = ssub.s32 %s20, 1
      %s26 = ssub.s32 %s20, 2
      %s27 = sadd.s32 %s20, 1
      %s28 = ssub.s32 %s20, %s27
      %p29 = scmp.eq.s32.totalorder %s28, 0
      %s31 = sadd.s32 %s30, 1
      %s32 = scalar_select %p29, %s30, %s31
      %p35 = pneg %p29
      %p36 = scmp.eq.s32.totalorder %s20, 1
      %p37 = por %p35, %p36
      %p38 = scmp.ne.s32.totalorder %s30, %s33
      %p39 = scmp.eq.s32.totalorder %s20, 0
      %p40 = por %p38, %p39
      %p41 = scmp.ne.s32.totalorder %s30, %s33
      %p42 = scmp.eq.s32.totalorder %s25, 1
      %p43 = por %p41, %p42
      %p44 = scmp.ne.s32.totalorder %s33, %s34
      %p45 = scmp.eq.s32.totalorder %s25, 0
      %p46 = por %p44, %p45
      %p47 = scmp.ne.s32.totalorder %s33, %s34
      %p48 = scmp.eq.s32.totalorder %s26, 1
      %p49 = por %p47, %p48
      %p51 = scmp.ne.s32.totalorder %s34, %s50
      %p52 = scmp.eq.s32.totalorder %s26, 0
      %p53 = por %p51, %p52
      %s55 = sadd.s32 %s54, 1
      %p58 = scmp.eq.s32.totalorder %s20, 1
      %p59 = scmp.ne.s32.totalorder %s54, %s56
      %p60 = scmp.eq.s32.totalorder %s20, 0
      %p61 = por %p59, %p60
      %p62 = scmp.ne.s32.totalorder %s54, %s56
      %p63 = scmp.eq.s32.totalorder %s25, 1
      %p64 = por %p62, %p63
      %p65 = scmp.ne.s32.totalorder %s56, %s57
      %p66 = scmp.eq.s32.totalorder %s25, 0
      %p67 = por %p65, %p66
      %p68 = scmp.ne.s32.totalorder %s56, %s57
      %p69 = scmp.eq.s32.totalorder %s26, 1
      %p70 = por %p68, %p69
      %p72 = scmp.ne.s32.totalorder %s57, %s71
      %p73 = scmp.eq.s32.totalorder %s26, 0
      %p74 = por %p72, %p73
      %s76 = sadd.s32 %s75, 1
      %p79 = scmp.eq.s32.totalorder %s20, 1
      %p80 = scmp.ne.s32.totalorder %s75, %s77
      %p81 = scmp.eq.s32.totalorder %s20, 0
      %p82 = por %p80, %p81
      %p83 = scmp.ne.s32.totalorder %s75, %s77
      %p84 = scmp.eq.s32.totalorder %s25, 1
      %p85 = por %p83, %p84
      %p86 = scmp.ne.s32.totalorder %s77, %s78
      %p87 = scmp.eq.s32.totalorder %s25, 0
      %p88 = por %p86, %p87
      %p89 = scmp.ne.s32.totalorder %s77, %s78
      %p90 = scmp.eq.s32.totalorder %s26, 1
      %p91 = por %p89, %p90
      %p93 = scmp.ne.s32.totalorder %s78, %s92
      %p94 = scmp.eq.s32.totalorder %s26, 0
      %p95 = por %p93, %p94
      %s97 = sadd.s32 %s96, 1
      %p100 = scmp.eq.s32.totalorder %s20, 1
      %p101 = scmp.ne.s32.totalorder %s96, %s98
      %p102 = scmp.eq.s32.totalorder %s20, 0
      %p103 = por %p101, %p102
      %p104 = scmp.ne.s32.totalorder %s96, %s98
      %p105 = scmp.eq.s32.totalorder %s25, 1
      %p106 = por %p104, %p105
      %p107 = scmp.ne.s32.totalorder %s98, %s99
      %p108 = scmp.eq.s32.totalorder %s25, 0
      %p109 = por %p107, %p108
      %p110 = scmp.ne.s32.totalorder %s98, %s99
      %p111 = scmp.eq.s32.totalorder %s26, 1
      %p112 = por %p110, %p111
      %p114 = scmp.ne.s32.totalorder %s99, %s113
      %p115 = scmp.eq.s32.totalorder %s26, 0
      %p116 = por %p114, %p115
      %s118 = sadd.s32 %s117, 1
      %p121 = scmp.eq.s32.totalorder %s20, 1
      %p122 = scmp.ne.s32.totalorder %s117, %s119
      %p123 = scmp.eq.s32.totalorder %s20, 0
      %p124 = por %p122, %p123
      %p125 = scmp.ne.s32.totalorder %s117, %s119
      %p126 = scmp.eq.s32.totalorder %s25, 1
      %p127 = por %p125, %p126
      %p128 = scmp.ne.s32.totalorder %s119, %s120
      %p129 = scmp.eq.s32.totalorder %s25, 0
      %p130 = por %p128, %p129
      %p131 = scmp.ne.s32.totalorder %s119, %s120
      %p132 = scmp.eq.s32.totalorder %s26, 1
      %p133 = por %p131, %p132
      %p135 = scmp.ne.s32.totalorder %s120, %s134
      %p136 = scmp.eq.s32.totalorder %s26, 0
      %p137 = por %p135, %p136
      %s139 = sadd.s32 %s138, 1
      %p142 = scmp.eq.s32.totalorder %s20, 1
      %p143 = scmp.ne.s32.totalorder %s138, %s140
      %p144 = scmp.eq.s32.totalorder %s20, 0
      %p145 = por %p143, %p144
      %p146 = scmp.ne.s32.totalorder %s138, %s140
      %p147 = scmp.eq.s32.totalorder %s25, 1
      %p148 = por %p146, %p147
      %p149 = scmp.ne.s32.totalorder %s140, %s141
      %p150 = scmp.eq.s32.totalorder %s25, 0
      %p151 = por %p149, %p150
      %p152 = scmp.ne.s32.totalorder %s140, %s141
      %p153 = scmp.eq.s32.totalorder %s26, 1
      %p154 = por %p152, %p153
      %p156 = scmp.ne.s32.totalorder %s141, %s155
      %p157 = scmp.eq.s32.totalorder %s26, 0
      %p158 = por %p156, %p157
      %s160 = sadd.s32 %s159, 1
      %p163 = scmp.eq.s32.totalorder %s20, 1
      %p164 = scmp.ne.s32.totalorder %s159, %s161
      %p165 = scmp.eq.s32.totalorder %s20, 0
      %p166 = por %p164, %p165
      %p167 = scmp.ne.s32.totalorder %s159, %s161
      %p168 = scmp.eq.s32.totalorder %s25, 1
      %p169 = por %p167, %p168
      %p170 = scmp.ne.s32.totalorder %s161, %s162
      %p171 = scmp.eq.s32.totalorder %s25, 0
      %p172 = por %p170, %p171
      %p173 = scmp.ne.s32.totalorder %s161, %s162
      %p174 = scmp.eq.s32.totalorder %s26, 1
      %p175 = por %p173, %p174
      %p177 = scmp.ne.s32.totalorder %s162, %s176
      %p178 = scmp.eq.s32.totalorder %s26, 0
      %p179 = por %p177, %p178
      %s181 = sadd.s32 %s180, 1
      %p184 = scmp.eq.s32.totalorder %s20, 1
      %p185 = scmp.ne.s32.totalorder %s180, %s182
      %p186 = scmp.eq.s32.totalorder %s20, 0
      %p187 = por %p185, %p186
      %p188 = scmp.ne.s32.totalorder %s180, %s182
      %p189 = scmp.eq.s32.totalorder %s25, 1
      %p190 = por %p188, %p189
      %p191 = scmp.ne.s32.totalorder %s182, %s183
      %p192 = scmp.eq.s32.totalorder %s25, 0
      %p193 = por %p191, %p192
      %p194 = scmp.ne.s32.totalorder %s182, %s183
      %p195 = scmp.eq.s32.totalorder %s26, 1
      %p196 = por %p194, %p195
      %p198 = scmp.ne.s32.totalorder %s183, %s197
      %p199 = scmp.eq.s32.totalorder %s26, 0
      %p200 = por %p198, %p199
      %s202 = sadd.s32 %s201, 1
      %p205 = scmp.eq.s32.totalorder %s20, 1
      %p206 = scmp.ne.s32.totalorder %s201, %s203
      %p207 = scmp.eq.s32.totalorder %s20, 0
      %p208 = por %p206, %p207
      %p209 = scmp.ne.s32.totalorder %s201, %s203
      %p210 = scmp.eq.s32.totalorder %s25, 1
      %p211 = por %p209, %p210
      %p212 = scmp.ne.s32.totalorder %s203, %s204
      %p213 = scmp.eq.s32.totalorder %s25, 0
      %p214 = por %p212, %p213
      %p215 = scmp.ne.s32.totalorder %s203, %s204
      %p216 = scmp.eq.s32.totalorder %s26, 1
      %p217 = por %p215, %p216
      %p219 = scmp.ne.s32.totalorder %s204, %s218
      %p220 = scmp.eq.s32.totalorder %s26, 0
      %p221 = por %p219, %p220
      %s223 = sadd.s32 %s222, 1
      %p226 = scmp.eq.s32.totalorder %s20, 1
      %p227 = scmp.ne.s32.totalorder %s222, %s224
      %p228 = scmp.eq.s32.totalorder %s20, 0
      %p229 = por %p227, %p228
      %p230 = scmp.ne.s32.totalorder %s222, %s224
      %p231 = scmp.eq.s32.totalorder %s25, 1
      %p232 = por %p230, %p231
      %p233 = scmp.ne.s32.totalorder %s224, %s225
      %p234 = scmp.eq.s32.totalorder %s25, 0
      %p235 = por %p233, %p234
      %p236 = scmp.ne.s32.totalorder %s224, %s225
      %p237 = scmp.eq.s32.totalorder %s26, 1
      %p238 = por %p236, %p237
      %p240 = scmp.ne.s32.totalorder %s225, %s239
      %p241 = scmp.eq.s32.totalorder %s26, 0
      %p242 = por %p240, %p241
      %s244 = sadd.s32 %s243, 1
      %p247 = scmp.eq.s32.totalorder %s20, 1
      %p248 = scmp.ne.s32.totalorder %s243, %s245
      %p249 = scmp.eq.s32.totalorder %s20, 0
      %p250 = por %p248, %p249
      %p251 = scmp.ne.s32.totalorder %s243, %s245
      %p252 = scmp.eq.s32.totalorder %s25, 1
      %p253 = por %p251, %p252
      %p254 = scmp.ne.s32.totalorder %s245, %s246
      %p255 = scmp.eq.s32.totalorder %s25, 0
      %p256 = por %p254, %p255
      %p257 = scmp.ne.s32.totalorder %s245, %s246
      %p258 = scmp.eq.s32.totalorder %s26, 1
      %p259 = por %p257, %p258
      %p261 = scmp.ne.s32.totalorder %s246, %s260
      %p262 = scmp.eq.s32.totalorder %s26, 0
      %p263 = por %p261, %p262
      %s264 = ssub.s32 %s20, %s27
      %p265 = scmp.eq.s32.totalorder %s264, 0
      %s267 = sadd.s32 %s266, 1
      %s268 = scalar_select %p265, %s266, %s267
      %p271 = pneg %p265
      %p272 = scmp.eq.s32.totalorder %s20, 1
      %p273 = por %p271, %p272
      %p274 = scmp.ne.s32.totalorder %s266, %s269
      %p275 = scmp.eq.s32.totalorder %s20, 0
      %p276 = por %p274, %p275
      %p277 = scmp.ne.s32.totalorder %s266, %s269
      %p278 = scmp.eq.s32.totalorder %s25, 1
      %p279 = por %p277, %p278
      %p280 = scmp.ne.s32.totalorder %s269, %s270
      %p281 = scmp.eq.s32.totalorder %s25, 0
      %p282 = por %p280, %p281
      %p283 = scmp.ne.s32.totalorder %s269, %s270
      %p284 = scmp.eq.s32.totalorder %s26, 1
      %p285 = por %p283, %p284
      %p287 = scmp.ne.s32.totalorder %s270, %s286
      %p288 = scmp.eq.s32.totalorder %s26, 0
      %p289 = por %p287, %p288
      %p290 = scmp.le.s32.totalorder 1, %s20
      %p291 = scmp.lt.s32.totalorder %s20, 3
      %p292 = pnand %p290, %p291
      %p293 = pneg %p292
      // Predicated region
      $region9: #{forward.1} parent=5 // pred_check
        _
      $region10: #{forward.1} parent=5 // pred_check_branch
        %295 = sbr.rel (%p292) target = $region12
      $region11: #{forward.1} parent=5 // pred_region
        %s296 = ssub.s32 %s20, 1
        // Predicated region
        $region13: #{forward.1} parent=11 // pred_check
          %p297 = pneg %p67
        $region14: #{forward.1} parent=11 // pred_check_branch
          %299 = sbr.rel (%p297) target = $region16
        $region15: #{forward.1} parent=11 // pred_region
          _
        $region16: #{forward.1} parent=11 // pred_fallthru
          _
        // Predicated region
        $region17: #{forward.1} parent=11 // pred_check
          %p300 = pneg %p88
        $region18: #{forward.1} parent=11 // pred_check_branch
          %302 = sbr.rel (%p300) target = $region20
        $region19: #{forward.1} parent=11 // pred_region
          _
        $region20: #{forward.1} parent=11 // pred_fallthru
          _
        // Predicated region
        $region21: #{forward.1} parent=11 // pred_check
          %p303 = pneg %p109
        $region22: #{forward.1} parent=11 // pred_check_branch
          %305 = sbr.rel (%p303) target = $region24
        $region23: #{forward.1} parent=11 // pred_region
          _
        $region24: #{forward.1} parent=11 // pred_fallthru
          _
        // Predicated region
        $region25: #{forward.1} parent=11 // pred_check
          %p306 = pneg %p130
        $region26: #{forward.1} parent=11 // pred_check_branch
          %308 = sbr.rel (%p306) target = $region28
        $region27: #{forward.1} parent=11 // pred_region
          _
        $region28: #{forward.1} parent=11 // pred_fallthru
          _
        // Predicated region
        $region29: #{forward.1} parent=11 // pred_check
          %p309 = pneg %p151
        $region30: #{forward.1} parent=11 // pred_check_branch
          %311 = sbr.rel (%p309) target = $region32
        $region31: #{forward.1} parent=11 // pred_region
          _
        $region32: #{forward.1} parent=11 // pred_fallthru
          _
        // Predicated region
        $region33: #{forward.1} parent=11 // pred_check
          %p312 = pneg %p172
        $region34: #{forward.1} parent=11 // pred_check_branch
          %314 = sbr.rel (%p312) target = $region36
        $region35: #{forward.1} parent=11 // pred_region
          _
        $region36: #{forward.1} parent=11 // pred_fallthru
          _
        // Predicated region
        $region37: #{forward.1} parent=11 // pred_check
          %p315 = pneg %p193
        $region38: #{forward.1} parent=11 // pred_check_branch
          %317 = sbr.rel (%p315) target = $region40
        $region39: #{forward.1} parent=11 // pred_region
          _
        $region40: #{forward.1} parent=11 // pred_fallthru
          _
        // Predicated region
        $region41: #{forward.1} parent=11 // pred_check
          %p318 = pneg %p214
        $region42: #{forward.1} parent=11 // pred_check_branch
          %320 = sbr.rel (%p318) target = $region44
        $region43: #{forward.1} parent=11 // pred_region
          _
        $region44: #{forward.1} parent=11 // pred_fallthru
          _
        // Predicated region
        $region45: #{forward.1} parent=11 // pred_check
          %p321 = pneg %p235
        $region46: #{forward.1} parent=11 // pred_check_branch
          %323 = sbr.rel (%p321) target = $region48
        $region47: #{forward.1} parent=11 // pred_region
          _
        $region48: #{forward.1} parent=11 // pred_fallthru
          _
        // Predicated region
        $region49: #{forward.1} parent=11 // pred_check
          %p324 = pneg %p256
        $region50: #{forward.1} parent=11 // pred_check_branch
          %326 = sbr.rel (%p324) target = $region52
        $region51: #{forward.1} parent=11 // pred_region
          _
        $region52: #{forward.1} parent=11 // pred_fallthru
          _
      $region12: #{forward.1} parent=5 // pred_fallthru
        _
      %p327 = scmp.lt.s32.totalorder %s20, 2
      // Predicated region
      $region53: #{forward.1} parent=5 // pred_check
        %p328 = pneg %p327
      $region54: #{forward.1} parent=5 // pred_check_branch
        %330 = sbr.rel (%p328) target = $region56
      $region55: #{forward.1} parent=5 // pred_region
        // Predicated region
        $region57: #{forward.1} parent=55 // pred_check
          %p331 = pneg %p40
        $region58: #{forward.1} parent=55 // pred_check_branch
          %333 = sbr.rel (%p331) target = $region60
        $region59: #{forward.1} parent=55 // pred_region
          %s334 = smul.u32 960, %s20
          %p335 = scmp.lt.s32.totalorder %s334, 1919
          %s336 = scalar_select %p335, %s334, 1919
          %s337 = smul.addr %s336, 4
          %s338 = scalar_lea.vmem %s0, %s337
          %s339 = smul.u32 960, %s20
        $region60: #{forward.1} parent=55 // pred_fallthru
          _
      $region56: #{forward.1} parent=5 // pred_fallthru
        _
      %p340 = scmp.le.s32.totalorder 1, %s20
      %p341 = scmp.lt.s32.totalorder %s20, 3
      %p342 = pnand %p340, %p341
      %p343 = pneg %p342
      // Predicated region
      $region61: #{forward.1} parent=5 // pred_check
        _
      $region62: #{forward.1} parent=5 // pred_check_branch
        %345 = sbr.rel (%p342) target = $region64
      $region63: #{forward.1} parent=5 // pred_region
        %s346 = ssub.s32 %s20, 1
        %s347 = smul.u32 960, %s25
        %p348 = scmp.lt.s32.totalorder %s347, 1919
        %s349 = scalar_select %p348, %s347, 1919
        %s350 = smul.addr %s349, 4
        %s351 = scalar_lea.vmem %s0, %s350
        %p352 = pneg %p46
        %p353 = pneg %p43
        %p354 = pneg %p67
        %p355 = pneg %p64
        %p356 = pneg %p88
        %p357 = pneg %p85
        %p358 = pneg %p109
        %p359 = pneg %p106
        %p360 = pneg %p130
        %p361 = pneg %p127
        %p362 = pneg %p151
        %p363 = pneg %p148
        %p364 = pneg %p172
        %p365 = pneg %p169
        %p366 = pneg %p193
        %p367 = pneg %p190
        %p368 = pneg %p214
        %p369 = pneg %p211
        %p370 = pneg %p235
        %p371 = pneg %p232
        %p372 = pneg %p256
        %p373 = pneg %p253
        %p374 = pneg %p282
        %p375 = pneg %p279
        %s376 = sand.u32 %s269, 1
        %s377 = scalar_lea.sflag [#allocation8], %s376
        %s378 = sand.u32 %s269, 1
        %s379 = smul.addr %s378, 8
        %s380 = scalar_lea.vmem [#allocation7], %s379
        %s381 = smul.u32 960, %s25
        %p382 = scmp.lt.s32.totalorder %s381, 1919
        %s383 = scalar_select %p382, %s381, 1919
        %s384 = smul.addr %s383, 4
        %s385 = scalar_lea.vmem %s0, %s384
        %s386 = smul.u32 960, %s25
        %vm388 = vcmask 254976
        %vm389 = vsmask.f32 1282
        %vm390 = vmand %vm388, %vm389
        %v391 = vld [vmem:[#allocation3 + $0x70] sm:$0x3]
        %v392 = vsel %vm390, 0, %v391
        %393 = vst [vmem:[#allocation3 + $0x70] sm:$0x3] %v392
        %vm394 = vcmask 518146
        %395 = vst.msk [vmem:[#allocation5 + $0x10] sm:$0x4] %vm394, 0
        loop: start=0, step=1, limit=8
        $region65: #{forward.1} parent=63 // loop_pre_header
          _
        $region66: #{forward.1} parent=63 // loop_header
          %s397 = sphi 0, %s401
          %p398 = scmp.ge.s32.totalorder %s397, 8
        $region67: #{forward.1} parent=63 // loop_header_branch
          %400 = sbr.rel (%p398) target = $region71
        $region68: #{forward.1} parent=63 // loop_body
          %s402 = smul.u32 %s397, 960
          %s403 = sshra.s32 %s402, 3
          %s404 = sand.u32 %s402, 7
          %s405 = smul.addr %s403, 4
          %s406 = scalar_lea.vmem %s385, %s405
          %v407 = vld [vmem:[%s406] sm:$0xf]
          %v408 = vld [vmem:[%s406 + $0x4] sm:$0xf]
          %v409 = vld [vmem:[%s406 + $0x8] sm:$0xf]
          %v410 = vld [vmem:[%s406 + $0xc] sm:$0xf]
          %v411 = vld [vmem:[%s406 + $0x10] sm:$0xf]
          %v412 = vld [vmem:[%s406 + $0x14] sm:$0xf]
          %v413 = vld [vmem:[%s406 + $0x18] sm:$0xf]
          %v414 = vld [vmem:[%s406 + $0x1c] sm:$0xf]
          %v415 = vld [vmem:[%s406 + $0x20] sm:$0xf]
          %v416 = vld [vmem:[%s406 + $0x24] sm:$0xf]
          %v417 = vld [vmem:[%s406 + $0x28] sm:$0xf]
          %v418 = vld [vmem:[%s406 + $0x2c] sm:$0xf]
          %v419 = vld [vmem:[%s406 + $0x30] sm:$0xf]
          %v420 = vld [vmem:[%s406 + $0x34] sm:$0xf]
          %v421 = vld [vmem:[%s406 + $0x38] sm:$0xf]
          %v422 = vld [vmem:[%s1] sm:$0xf]
          %v423 = vld [vmem:[%s1 + $0x4] sm:$0xf]
          %v424 = vld [vmem:[%s1 + $0x8] sm:$0xf]
          %v425 = vld [vmem:[%s1 + $0xc] sm:$0x3]
          %v426 = vld [vmem:[%s2] sm:$0x1]
          %v428 = vperm.slane %v426, 0
          %v445 = vunpack.c.l.b16 %v407
          %v446 = vunpack.c.l.b16 %v408
          %v447 = vunpack.c.l.b16 %v409
          %v448 = vunpack.c.l.b16 %v410
          %v449 = vunpack.c.l.b16 %v411
          %v450 = vunpack.c.l.b16 %v412
          %v451 = vunpack.c.l.b16 %v413
          %v452 = vunpack.c.l.b16 %v414
          %v453 = vunpack.c.l.b16 %v415
          %v454 = vunpack.c.l.b16 %v416
          %v455 = vunpack.c.l.b16 %v417
          %v456 = vunpack.c.l.b16 %v418
          %v457 = vunpack.c.l.b16 %v419
          %v458 = vunpack.c.l.b16 %v420
          %v459 = vunpack.c.l.b16 %v421
          %v460 = vpack.c.b16 %v446, %v445
          %v461 = vpack.c.b16 %v448, %v447
          %v462 = vpack.c.b16 %v450, %v449
          %v463 = vpack.c.b16 %v452, %v451
          %v464 = vpack.c.b16 %v454, %v453
          %v465 = vpack.c.b16 %v456, %v455
          %v466 = vpack.c.b16 %v458, %v457
          %v467 = vpack.c.b16 %v459, %v459
          %v472 = vunpack.c.l.b16 %v422
          %v473 = vunpack.c.l.b16 %v423
          %v474 = vunpack.c.l.b16 %v424
          %v475 = vunpack.c.l.b16 %v425
          %v476 = vpack.c.b16 %v473, %v472
          %v477 = vpack.c.b16 %v475, %v474
          %vm479 = vcmask 220160
          %v481 = vsel %vm479, %v460, 0
          %v484 = vsel %vm479, %v461, 0
          %v487 = vsel %vm479, %v462, 0
          %v490 = vsel %vm479, %v463, 0
          %v493 = vsel %vm479, %v464, 0
          %v496 = vsel %vm479, %v465, 0
          %v499 = vsel %vm479, %v466, 0
          %v502 = vsel %vm479, %v467, 0
          %vm504 = vcmask 1044480
          %vm505 = vcmask 1045504
          %v506 = vsel %vm504, 4294967295, 65535
          %v507 = vsel %vm505, %v506, 0
          %v509 = vand.u32 %v477, %v507
          %511 = vmatpush.bf16.msra.mxu0 0
          %512 = vmatpush.bf16.msra.mxu0 0
          %513 = vmatpush.bf16.msra.mxu0 0
          %514 = vmatpush.bf16.msra.mxu0 0
          %515 = vmatpush.bf16.msra.mxu0 0
          %516 = vmatpush.bf16.msra.mxu0 0
          %517 = vmatpush.bf16.msra.mxu0 %v509
          %518 = vmatpush.bf16.msra.mxu0 %v476
          %519 = vmatmul.bf16.gmra.mxu0 %v481
          %v520 = vpop.f32.mrf.mxu0
          %v521 = vadd.f32 %v428, %v520
          %v522 = vpop.f32.mrf.mxu0
          %v523 = vadd.f32 %v428, %v522
          %524 = vmatmul.bf16.gmra.mxu0 %v484
          %v525 = vpop.f32.mrf.mxu0
          %v526 = vadd.f32 %v428, %v525
          %v527 = vpop.f32.mrf.mxu0
          %v528 = vadd.f32 %v428, %v527
          %529 = vmatmul.bf16.gmra.mxu0 %v487
          %v530 = vpop.f32.mrf.mxu0
          %v531 = vadd.f32 %v428, %v530
          %v532 = vpop.f32.mrf.mxu0
          %v533 = vadd.f32 %v428, %v532
          %534 = vmatmul.bf16.gmra.mxu0 %v490
          %v535 = vpop.f32.mrf.mxu0
          %v536 = vadd.f32 %v428, %v535
          %v537 = vpop.f32.mrf.mxu0
          %v538 = vadd.f32 %v428, %v537
          %539 = vmatmul.bf16.gmra.mxu0 %v493
          %v540 = vpop.f32.mrf.mxu0
          %v541 = vadd.f32 %v428, %v540
          %v542 = vpop.f32.mrf.mxu0
          %v543 = vadd.f32 %v428, %v542
          %544 = vmatmul.bf16.gmra.mxu0 %v496
          %v545 = vpop.f32.mrf.mxu0
          %v546 = vadd.f32 %v428, %v545
          %v547 = vpop.f32.mrf.mxu0
          %v548 = vadd.f32 %v428, %v547
          %549 = vmatmul.bf16.gmra.mxu0 %v499
          %v550 = vpop.f32.mrf.mxu0
          %v551 = vadd.f32 %v428, %v550
          %v552 = vpop.f32.mrf.mxu0
          %v553 = vadd.f32 %v428, %v552
          %554 = vmatmul.bf16.gmra.mxu0 %v502
          %v555 = vpop.f32.mrf.mxu0
          %v556 = vadd.f32 %v428, %v555
          %v557 = vpop.f32.mrf.mxu0
          %558 = vdwg.mxu0
          %v559 = vmax.f32 %v521, 0.0
          %v560 = vmax.f32 %v523, 0.0
          %v561 = vmax.f32 %v526, 0.0
          %v562 = vmax.f32 %v528, 0.0
          %v563 = vmax.f32 %v531, 0.0
          %v564 = vmax.f32 %v533, 0.0
          %v565 = vmax.f32 %v536, 0.0
          %v566 = vmax.f32 %v538, 0.0
          %v567 = vmax.f32 %v541, 0.0
          %v568 = vmax.f32 %v543, 0.0
          %v569 = vmax.f32 %v546, 0.0
          %v570 = vmax.f32 %v548, 0.0
          %v571 = vmax.f32 %v551, 0.0
          %v572 = vmax.f32 %v553, 0.0
          %v573 = vmax.f32 %v556, 0.0
          %vm574 = vcmask 261120
          %575 = vst.msk [vmem:[#allocation2] sm:$0xff] %vm574, %v559
          %576 = vst.msk [vmem:[#allocation2 + $0x8] sm:$0xff] %vm574, %v560
          %577 = vst.msk [vmem:[#allocation2 + $0x10] sm:$0xff] %vm574, %v561
          %578 = vst.msk [vmem:[#allocation2 + $0x18] sm:$0xff] %vm574, %v562
          %579 = vst.msk [vmem:[#allocation2 + $0x20] sm:$0xff] %vm574, %v563
          %580 = vst.msk [vmem:[#allocation2 + $0x28] sm:$0xff] %vm574, %v564
          %581 = vst.msk [vmem:[#allocation2 + $0x30] sm:$0xff] %vm574, %v565
          %582 = vst.msk [vmem:[#allocation2 + $0x38] sm:$0xff] %vm574, %v566
          %583 = vst.msk [vmem:[#allocation2 + $0x40] sm:$0xff] %vm574, %v567
          %584 = vst.msk [vmem:[#allocation2 + $0x48] sm:$0xff] %vm574, %v568
          %585 = vst.msk [vmem:[#allocation2 + $0x50] sm:$0xff] %vm574, %v569
          %586 = vst.msk [vmem:[#allocation2 + $0x58] sm:$0xff] %vm574, %v570
          %587 = vst.msk [vmem:[#allocation2 + $0x60] sm:$0xff] %vm574, %v571
          %588 = vst.msk [vmem:[#allocation2 + $0x68] sm:$0xff] %vm574, %v572
          %589 = vst.msk [vmem:[#allocation2 + $0x70] sm:$0xff] %vm574, %v573
          %s590 = sadd.s32 %s402, 120
          %s591 = sshra.s32 %s590, 3
          %s592 = sand.u32 %s590, 7
          %s593 = smul.addr %s591, 4
          %s594 = scalar_lea.vmem %s385, %s593
          %v595 = vld [vmem:[%s594] sm:$0xf]
          %v596 = vld [vmem:[%s594 + $0x4] sm:$0xf]
          %v597 = vld [vmem:[%s594 + $0x8] sm:$0xf]
          %v598 = vld [vmem:[%s594 + $0xc] sm:$0xf]
          %v599 = vld [vmem:[%s594 + $0x10] sm:$0xf]
          %v600 = vld [vmem:[%s594 + $0x14] sm:$0xf]
          %v601 = vld [vmem:[%s594 + $0x18] sm:$0xf]
          %v602 = vld [vmem:[%s594 + $0x1c] sm:$0xf]
          %v603 = vld [vmem:[%s594 + $0x20] sm:$0xf]
          %v604 = vld [vmem:[%s594 + $0x24] sm:$0xf]
          %v605 = vld [vmem:[%s594 + $0x28] sm:$0xf]
          %v606 = vld [vmem:[%s594 + $0x2c] sm:$0xf]
          %v607 = vld [vmem:[%s594 + $0x30] sm:$0xf]
          %v608 = vld [vmem:[%s594 + $0x34] sm:$0xf]
          %v609 = vld [vmem:[%s594 + $0x38] sm:$0xf]
          %v610 = vld [vmem:[%s1] sm:$0xf]
          %v611 = vld [vmem:[%s1 + $0x4] sm:$0xf]
          %v612 = vld [vmem:[%s1 + $0x8] sm:$0xf]
          %v613 = vld [vmem:[%s1 + $0xc] sm:$0x3]
          %v614 = vld [vmem:[%s2] sm:$0x1]
          %v616 = vperm.slane %v614, 0
          %v633 = vunpack.c.l.b16 %v595
          %v634 = vunpack.c.l.b16 %v596
          %v635 = vunpack.c.l.b16 %v597
          %v636 = vunpack.c.l.b16 %v598
          %v637 = vunpack.c.l.b16 %v599
          %v638 = vunpack.c.l.b16 %v600
          %v639 = vunpack.c.l.b16 %v601
          %v640 = vunpack.c.l.b16 %v602
          %v641 = vunpack.c.l.b16 %v603
          %v642 = vunpack.c.l.b16 %v604
          %v643 = vunpack.c.l.b16 %v605
          %v644 = vunpack.c.l.b16 %v606
          %v645 = vunpack.c.l.b16 %v607
          %v646 = vunpack.c.l.b16 %v608
          %v647 = vunpack.c.l.b16 %v609
          %v648 = vpack.c.b16 %v634, %v633
          %v649 = vpack.c.b16 %v636, %v635
          %v650 = vpack.c.b16 %v638, %v637
          %v651 = vpack.c.b16 %v640, %v639
          %v652 = vpack.c.b16 %v642, %v641
          %v653 = vpack.c.b16 %v644, %v643
          %v654 = vpack.c.b16 %v646, %v645
          %v655 = vpack.c.b16 %v647, %v647
          %v660 = vunpack.c.l.b16 %v610
          %v661 = vunpack.c.l.b16 %v611
          %v662 = vunpack.c.l.b16 %v612
          %v663 = vunpack.c.l.b16 %v613
          %v664 = vpack.c.b16 %v661, %v660
          %v665 = vpack.c.b16 %v663, %v662
          %v668 = vsel %vm479, %v648, 0
          %v671 = vsel %vm479, %v649, 0
          %v674 = vsel %vm479, %v650, 0
          %v677 = vsel %vm479, %v651, 0
          %v680 = vsel %vm479, %v652, 0
          %v683 = vsel %vm479, %v653, 0
          %v686 = vsel %vm479, %v654, 0
          %v689 = vsel %vm479, %v655, 0
          %v692 = vand.u32 %v665, %v507
          %694 = vmatpush.bf16.msra.mxu0 0
          %695 = vmatpush.bf16.msra.mxu0 0
          %696 = vmatpush.bf16.msra.mxu0 0
          %697 = vmatpush.bf16.msra.mxu0 0
          %698 = vmatpush.bf16.msra.mxu0 0
          %699 = vmatpush.bf16.msra.mxu0 0
          %700 = vmatpush.bf16.msra.mxu0 %v692
          %701 = vmatpush.bf16.msra.mxu0 %v664
          %702 = vmatmul.bf16.gmra.mxu0 %v668
          %v703 = vpop.f32.mrf.mxu0
          %v704 = vadd.f32 %v616, %v703
          %v705 = vpop.f32.mrf.mxu0
          %v706 = vadd.f32 %v616, %v705
          %707 = vmatmul.bf16.gmra.mxu0 %v671
          %v708 = vpop.f32.mrf.mxu0
          %v709 = vadd.f32 %v616, %v708
          %v710 = vpop.f32.mrf.mxu0
          %v711 = vadd.f32 %v616, %v710
          %712 = vmatmul.bf16.gmra.mxu0 %v674
          %v713 = vpop.f32.mrf.mxu0
          %v714 = vadd.f32 %v616, %v713
          %v715 = vpop.f32.mrf.mxu0
          %v716 = vadd.f32 %v616, %v715
          %717 = vmatmul.bf16.gmra.mxu0 %v677
          %v718 = vpop.f32.mrf.mxu0
          %v719 = vadd.f32 %v616, %v718
          %v720 = vpop.f32.mrf.mxu0
          %v721 = vadd.f32 %v616, %v720
          %722 = vmatmul.bf16.gmra.mxu0 %v680
          %v723 = vpop.f32.mrf.mxu0
          %v724 = vadd.f32 %v616, %v723
          %v725 = vpop.f32.mrf.mxu0
          %v726 = vadd.f32 %v616, %v725
          %727 = vmatmul.bf16.gmra.mxu0 %v683
          %v728 = vpop.f32.mrf.mxu0
          %v729 = vadd.f32 %v616, %v728
          %v730 = vpop.f32.mrf.mxu0
          %v731 = vadd.f32 %v616, %v730
          %732 = vmatmul.bf16.gmra.mxu0 %v686
          %v733 = vpop.f32.mrf.mxu0
          %v734 = vadd.f32 %v616, %v733
          %v735 = vpop.f32.mrf.mxu0
          %v736 = vadd.f32 %v616, %v735
          %737 = vmatmul.bf16.gmra.mxu0 %v689
          %v738 = vpop.f32.mrf.mxu0
          %v739 = vadd.f32 %v616, %v738
          %v740 = vpop.f32.mrf.mxu0
          %741 = vdwg.mxu0
          %v742 = vmax.f32 %v704, 0.0
          %v743 = vmax.f32 %v706, 0.0
          %v744 = vmax.f32 %v709, 0.0
          %v745 = vmax.f32 %v711, 0.0
          %v746 = vmax.f32 %v714, 0.0
          %v747 = vmax.f32 %v716, 0.0
          %v748 = vmax.f32 %v719, 0.0
          %v749 = vmax.f32 %v721, 0.0
          %v750 = vmax.f32 %v724, 0.0
          %v751 = vmax.f32 %v726, 0.0
          %v752 = vmax.f32 %v729, 0.0
          %v753 = vmax.f32 %v731, 0.0
          %v754 = vmax.f32 %v734, 0.0
          %v755 = vmax.f32 %v736, 0.0
          %v756 = vmax.f32 %v739, 0.0
          %757 = vst.msk [vmem:[#allocation2 + $0x78] sm:$0xff] %vm574, %v742
          %758 = vst.msk [vmem:[#allocation2 + $0x80] sm:$0xff] %vm574, %v743
          %759 = vst.msk [vmem:[#allocation2 + $0x88] sm:$0xff] %vm574, %v744
          %760 = vst.msk [vmem:[#allocation2 + $0x90] sm:$0xff] %vm574, %v745
          %761 = vst.msk [vmem:[#allocation2 + $0x98] sm:$0xff] %vm574, %v746
          %762 = vst.msk [vmem:[#allocation2 + $0xa0] sm:$0xff] %vm574, %v747
          %763 = vst.msk [vmem:[#allocation2 + $0xa8] sm:$0xff] %vm574, %v748
          %764 = vst.msk [vmem:[#allocation2 + $0xb0] sm:$0xff] %vm574, %v749
          %765 = vst.msk [vmem:[#allocation2 + $0xb8] sm:$0xff] %vm574, %v750
          %766 = vst.msk [vmem:[#allocation2 + $0xc0] sm:$0xff] %vm574, %v751
          %767 = vst.msk [vmem:[#allocation2 + $0xc8] sm:$0xff] %vm574, %v752
          %768 = vst.msk [vmem:[#allocation2 + $0xd0] sm:$0xff] %vm574, %v753
          %769 = vst.msk [vmem:[#allocation2 + $0xd8] sm:$0xff] %vm574, %v754
          %770 = vst.msk [vmem:[#allocation2 + $0xe0] sm:$0xff] %vm574, %v755
          %771 = vst.msk [vmem:[#allocation2 + $0xe8] sm:$0xff] %vm574, %v756
          %s772 = sadd.s32 %s402, 240
          %s773 = sshra.s32 %s772, 3
          %s774 = sand.u32 %s772, 7
          %s775 = smul.addr %s773, 4
          %s776 = scalar_lea.vmem %s385, %s775
          %v777 = vld [vmem:[%s776] sm:$0xf]
          %v778 = vld [vmem:[%s776 + $0x4] sm:$0xf]
          %v779 = vld [vmem:[%s776 + $0x8] sm:$0xf]
          %v780 = vld [vmem:[%s776 + $0xc] sm:$0xf]
          %v781 = vld [vmem:[%s776 + $0x10] sm:$0xf]
          %v782 = vld [vmem:[%s776 + $0x14] sm:$0xf]
          %v783 = vld [vmem:[%s776 + $0x18] sm:$0xf]
          %v784 = vld [vmem:[%s776 + $0x1c] sm:$0xf]
          %v785 = vld [vmem:[%s776 + $0x20] sm:$0xf]
          %v786 = vld [vmem:[%s776 + $0x24] sm:$0xf]
          %v787 = vld [vmem:[%s776 + $0x28] sm:$0xf]
          %v788 = vld [vmem:[%s776 + $0x2c] sm:$0xf]
          %v789 = vld [vmem:[%s776 + $0x30] sm:$0xf]
          %v790 = vld [vmem:[%s776 + $0x34] sm:$0xf]
          %v791 = vld [vmem:[%s776 + $0x38] sm:$0xf]
          %v792 = vld [vmem:[%s1] sm:$0xf]
          %v793 = vld [vmem:[%s1 + $0x4] sm:$0xf]
          %v794 = vld [vmem:[%s1 + $0x8] sm:$0xf]
          %v795 = vld [vmem:[%s1 + $0xc] sm:$0x3]
          %v796 = vld [vmem:[%s2] sm:$0x1]
          %v798 = vperm.slane %v796, 0
          %v815 = vunpack.c.l.b16 %v777
          %v816 = vunpack.c.l.b16 %v778
          %v817 = vunpack.c.l.b16 %v779
          %v818 = vunpack.c.l.b16 %v780
          %v819 = vunpack.c.l.b16 %v781
          %v820 = vunpack.c.l.b16 %v782
          %v821 = vunpack.c.l.b16 %v783
          %v822 = vunpack.c.l.b16 %v784
          %v823 = vunpack.c.l.b16 %v785
          %v824 = vunpack.c.l.b16 %v786
          %v825 = vunpack.c.l.b16 %v787
          %v826 = vunpack.c.l.b16 %v788
          %v827 = vunpack.c.l.b16 %v789
          %v828 = vunpack.c.l.b16 %v790
          %v829 = vunpack.c.l.b16 %v791
          %v830 = vpack.c.b16 %v816, %v815
          %v831 = vpack.c.b16 %v818, %v817
          %v832 = vpack.c.b16 %v820, %v819
          %v833 = vpack.c.b16 %v822, %v821
          %v834 = vpack.c.b16 %v824, %v823
          %v835 = vpack.c.b16 %v826, %v825
          %v836 = vpack.c.b16 %v828, %v827
          %v837 = vpack.c.b16 %v829, %v829
          %v842 = vunpack.c.l.b16 %v792
          %v843 = vunpack.c.l.b16 %v793
          %v844 = vunpack.c.l.b16 %v794
          %v845 = vunpack.c.l.b16 %v795
          %v846 = vpack.c.b16 %v843, %v842
          %v847 = vpack.c.b16 %v845, %v844
          %v850 = vsel %vm479, %v830, 0
          %v853 = vsel %vm479, %v831, 0
          %v856 = vsel %vm479, %v832, 0
          %v859 = vsel %vm479, %v833, 0
          %v862 = vsel %vm479, %v834, 0
          %v865 = vsel %vm479, %v835, 0
          %v868 = vsel %vm479, %v836, 0
          %v871 = vsel %vm479, %v837, 0
          %v874 = vand.u32 %v847, %v507
          %876 = vmatpush.bf16.msra.mxu0 0
          %877 = vmatpush.bf16.msra.mxu0 0
          %878 = vmatpush.bf16.msra.mxu0 0
          %879 = vmatpush.bf16.msra.mxu0 0
          %880 = vmatpush.bf16.msra.mxu0 0
          %881 = vmatpush.bf16.msra.mxu0 0
          %882 = vmatpush.bf16.msra.mxu0 %v874
          %883 = vmatpush.bf16.msra.mxu0 %v846
          %884 = vmatmul.bf16.gmra.mxu0 %v850
          %v885 = vpop.f32.mrf.mxu0
          %v886 = vadd.f32 %v798, %v885
          %v887 = vpop.f32.mrf.mxu0
          %v888 = vadd.f32 %v798, %v887
          %889 = vmatmul.bf16.gmra.mxu0 %v853
          %v890 = vpop.f32.mrf.mxu0
          %v891 = vadd.f32 %v798, %v890
          %v892 = vpop.f32.mrf.mxu0
          %v893 = vadd.f32 %v798, %v892
          %894 = vmatmul.bf16.gmra.mxu0 %v856
          %v895 = vpop.f32.mrf.mxu0
          %v896 = vadd.f32 %v798, %v895
          %v897 = vpop.f32.mrf.mxu0
          %v898 = vadd.f32 %v798, %v897
          %899 = vmatmul.bf16.gmra.mxu0 %v859
          %v900 = vpop.f32.mrf.mxu0
          %v901 = vadd.f32 %v798, %v900
          %v902 = vpop.f32.mrf.mxu0
          %v903 = vadd.f32 %v798, %v902
          %904 = vmatmul.bf16.gmra.mxu0 %v862
          %v905 = vpop.f32.mrf.mxu0
          %v906 = vadd.f32 %v798, %v905
          %v907 = vpop.f32.mrf.mxu0
          %v908 = vadd.f32 %v798, %v907
          %909 = vmatmul.bf16.gmra.mxu0 %v865
          %v910 = vpop.f32.mrf.mxu0
          %v911 = vadd.f32 %v798, %v910
          %v912 = vpop.f32.mrf.mxu0
          %v913 = vadd.f32 %v798, %v912
          %914 = vmatmul.bf16.gmra.mxu0 %v868
          %v915 = vpop.f32.mrf.mxu0
          %v916 = vadd.f32 %v798, %v915
          %v917 = vpop.f32.mrf.mxu0
          %v918 = vadd.f32 %v798, %v917
          %919 = vmatmul.bf16.gmra.mxu0 %v871
          %v920 = vpop.f32.mrf.mxu0
          %v921 = vadd.f32 %v798, %v920
          %v922 = vpop.f32.mrf.mxu0
          %923 = vdwg.mxu0
          %v924 = vmax.f32 %v886, 0.0
          %v925 = vmax.f32 %v888, 0.0
          %v926 = vmax.f32 %v891, 0.0
          %v927 = vmax.f32 %v893, 0.0
          %v928 = vmax.f32 %v896, 0.0
          %v929 = vmax.f32 %v898, 0.0
          %v930 = vmax.f32 %v901, 0.0
          %v931 = vmax.f32 %v903, 0.0
          %v932 = vmax.f32 %v906, 0.0
          %v933 = vmax.f32 %v908, 0.0
          %v934 = vmax.f32 %v911, 0.0
          %v935 = vmax.f32 %v913, 0.0
          %v936 = vmax.f32 %v916, 0.0
          %v937 = vmax.f32 %v918, 0.0
          %v938 = vmax.f32 %v921, 0.0
          %939 = vst.msk [vmem:[#allocation2 + $0xf0] sm:$0xff] %vm574, %v924
          %940 = vst.msk [vmem:[#allocation2 + $0xf8] sm:$0xff] %vm574, %v925
          %941 = vst.msk [vmem:[#allocation2 + $0x100] sm:$0xff] %vm574, %v926
          %942 = vst.msk [vmem:[#allocation2 + $0x108] sm:$0xff] %vm574, %v927
          %943 = vst.msk [vmem:[#allocation2 + $0x110] sm:$0xff] %vm574, %v928
          %944 = vst.msk [vmem:[#allocation2 + $0x118] sm:$0xff] %vm574, %v929
          %945 = vst.msk [vmem:[#allocation2 + $0x120] sm:$0xff] %vm574, %v930
          %946 = vst.msk [vmem:[#allocation2 + $0x128] sm:$0xff] %vm574, %v931
          %947 = vst.msk [vmem:[#allocation2 + $0x130] sm:$0xff] %vm574, %v932
          %948 = vst.msk [vmem:[#allocation2 + $0x138] sm:$0xff] %vm574, %v933
          %949 = vst.msk [vmem:[#allocation2 + $0x140] sm:$0xff] %vm574, %v934
          %950 = vst.msk [vmem:[#allocation2 + $0x148] sm:$0xff] %vm574, %v935
          %951 = vst.msk [vmem:[#allocation2 + $0x150] sm:$0xff] %vm574, %v936
          %952 = vst.msk [vmem:[#allocation2 + $0x158] sm:$0xff] %vm574, %v937
          %953 = vst.msk [vmem:[#allocation2 + $0x160] sm:$0xff] %vm574, %v938
          %s954 = sadd.s32 %s402, 360
          %s955 = sshra.s32 %s954, 3
          %s956 = sand.u32 %s954, 7
          %s957 = smul.addr %s955, 4
          %s958 = scalar_lea.vmem %s385, %s957
          %v959 = vld [vmem:[%s958] sm:$0xf]
          %v960 = vld [vmem:[%s958 + $0x4] sm:$0xf]
          %v961 = vld [vmem:[%s958 + $0x8] sm:$0xf]
          %v962 = vld [vmem:[%s958 + $0xc] sm:$0xf]
          %v963 = vld [vmem:[%s958 + $0x10] sm:$0xf]
          %v964 = vld [vmem:[%s958 + $0x14] sm:$0xf]
          %v965 = vld [vmem:[%s958 + $0x18] sm:$0xf]
          %v966 = vld [vmem:[%s958 + $0x1c] sm:$0xf]
          %v967 = vld [vmem:[%s958 + $0x20] sm:$0xf]
          %v968 = vld [vmem:[%s958 + $0x24] sm:$0xf]
          %v969 = vld [vmem:[%s958 + $0x28] sm:$0xf]
          %v970 = vld [vmem:[%s958 + $0x2c] sm:$0xf]
          %v971 = vld [vmem:[%s958 + $0x30] sm:$0xf]
          %v972 = vld [vmem:[%s958 + $0x34] sm:$0xf]
          %v973 = vld [vmem:[%s958 + $0x38] sm:$0xf]
          %v974 = vld [vmem:[%s1] sm:$0xf]
          %v975 = vld [vmem:[%s1 + $0x4] sm:$0xf]
          %v976 = vld [vmem:[%s1 + $0x8] sm:$0xf]
          %v977 = vld [vmem:[%s1 + $0xc] sm:$0x3]
          %v978 = vld [vmem:[%s2] sm:$0x1]
          %v980 = vperm.slane %v978, 0
          %v997 = vunpack.c.l.b16 %v959
          %v998 = vunpack.c.l.b16 %v960
          %v999 = vunpack.c.l.b16 %v961
          %v1000 = vunpack.c.l.b16 %v962
          %v1001 = vunpack.c.l.b16 %v963
          %v1002 = vunpack.c.l.b16 %v964
          %v1003 = vunpack.c.l.b16 %v965
          %v1004 = vunpack.c.l.b16 %v966
          %v1005 = vunpack.c.l.b16 %v967
          %v1006 = vunpack.c.l.b16 %v968
          %v1007 = vunpack.c.l.b16 %v969
          %v1008 = vunpack.c.l.b16 %v970
          %v1009 = vunpack.c.l.b16 %v971
          %v1010 = vunpack.c.l.b16 %v972
          %v1011 = vunpack.c.l.b16 %v973
          %v1012 = vpack.c.b16 %v998, %v997
          %v1013 = vpack.c.b16 %v1000, %v999
          %v1014 = vpack.c.b16 %v1002, %v1001
          %v1015 = vpack.c.b16 %v1004, %v1003
          %v1016 = vpack.c.b16 %v1006, %v1005
          %v1017 = vpack.c.b16 %v1008, %v1007
          %v1018 = vpack.c.b16 %v1010, %v1009
          %v1019 = vpack.c.b16 %v1011, %v1011
          %v1024 = vunpack.c.l.b16 %v974
          %v1025 = vunpack.c.l.b16 %v975
          %v1026 = vunpack.c.l.b16 %v976
          %v1027 = vunpack.c.l.b16 %v977
          %v1028 = vpack.c.b16 %v1025, %v1024
          %v1029 = vpack.c.b16 %v1027, %v1026
          %v1032 = vsel %vm479, %v1012, 0
          %v1035 = vsel %vm479, %v1013, 0
          %v1038 = vsel %vm479, %v1014, 0
          %v1041 = vsel %vm479, %v1015, 0
          %v1044 = vsel %vm479, %v1016, 0
          %v1047 = vsel %vm479, %v1017, 0
          %v1050 = vsel %vm479, %v1018, 0
          %v1053 = vsel %vm479, %v1019, 0
          %v1056 = vand.u32 %v1029, %v507
          %1058 = vmatpush.bf16.msra.mxu0 0
          %1059 = vmatpush.bf16.msra.mxu0 0
          %1060 = vmatpush.bf16.msra.mxu0 0
          %1061 = vmatpush.bf16.msra.mxu0 0
          %1062 = vmatpush.bf16.msra.mxu0 0
          %1063 = vmatpush.bf16.msra.mxu0 0
          %1064 = vmatpush.bf16.msra.mxu0 %v1056
          %1065 = vmatpush.bf16.msra.mxu0 %v1028
          %1066 = vmatmul.bf16.gmra.mxu0 %v1032
          %v1067 = vpop.f32.mrf.mxu0
          %v1068 = vadd.f32 %v980, %v1067
          %v1069 = vpop.f32.mrf.mxu0
          %v1070 = vadd.f32 %v980, %v1069
          %1071 = vmatmul.bf16.gmra.mxu0 %v1035
          %v1072 = vpop.f32.mrf.mxu0
          %v1073 = vadd.f32 %v980, %v1072
          %v1074 = vpop.f32.mrf.mxu0
          %v1075 = vadd.f32 %v980, %v1074
          %1076 = vmatmul.bf16.gmra.mxu0 %v1038
          %v1077 = vpop.f32.mrf.mxu0
          %v1078 = vadd.f32 %v980, %v1077
          %v1079 = vpop.f32.mrf.mxu0
          %v1080 = vadd.f32 %v980, %v1079
          %1081 = vmatmul.bf16.gmra.mxu0 %v1041
          %v1082 = vpop.f32.mrf.mxu0
          %v1083 = vadd.f32 %v980, %v1082
          %v1084 = vpop.f32.mrf.mxu0
          %v1085 = vadd.f32 %v980, %v1084
          %1086 = vmatmul.bf16.gmra.mxu0 %v1044
          %v1087 = vpop.f32.mrf.mxu0
          %v1088 = vadd.f32 %v980, %v1087
          %v1089 = vpop.f32.mrf.mxu0
          %v1090 = vadd.f32 %v980, %v1089
          %1091 = vmatmul.bf16.gmra.mxu0 %v1047
          %v1092 = vpop.f32.mrf.mxu0
          %v1093 = vadd.f32 %v980, %v1092
          %v1094 = vpop.f32.mrf.mxu0
          %v1095 = vadd.f32 %v980, %v1094
          %1096 = vmatmul.bf16.gmra.mxu0 %v1050
          %v1097 = vpop.f32.mrf.mxu0
          %v1098 = vadd.f32 %v980, %v1097
          %v1099 = vpop.f32.mrf.mxu0
          %v1100 = vadd.f32 %v980, %v1099
          %1101 = vmatmul.bf16.gmra.mxu0 %v1053
          %v1102 = vpop.f32.mrf.mxu0
          %v1103 = vadd.f32 %v980, %v1102
          %v1104 = vpop.f32.mrf.mxu0
          %1105 = vdwg.mxu0
          %v1106 = vmax.f32 %v1068, 0.0
          %v1107 = vmax.f32 %v1070, 0.0
          %v1108 = vmax.f32 %v1073, 0.0
          %v1109 = vmax.f32 %v1075, 0.0
          %v1110 = vmax.f32 %v1078, 0.0
          %v1111 = vmax.f32 %v1080, 0.0
          %v1112 = vmax.f32 %v1083, 0.0
          %v1113 = vmax.f32 %v1085, 0.0
          %v1114 = vmax.f32 %v1088, 0.0
          %v1115 = vmax.f32 %v1090, 0.0
          %v1116 = vmax.f32 %v1093, 0.0
          %v1117 = vmax.f32 %v1095, 0.0
          %v1118 = vmax.f32 %v1098, 0.0
          %v1119 = vmax.f32 %v1100, 0.0
          %v1120 = vmax.f32 %v1103, 0.0
          %1121 = vst.msk [vmem:[#allocation2 + $0x168] sm:$0xff] %vm574, %v1106
          %1122 = vst.msk [vmem:[#allocation2 + $0x170] sm:$0xff] %vm574, %v1107
          %1123 = vst.msk [vmem:[#allocation2 + $0x178] sm:$0xff] %vm574, %v1108
          %1124 = vst.msk [vmem:[#allocation2 + $0x180] sm:$0xff] %vm574, %v1109
          %1125 = vst.msk [vmem:[#allocation2 + $0x188] sm:$0xff] %vm574, %v1110
          %1126 = vst.msk [vmem:[#allocation2 + $0x190] sm:$0xff] %vm574, %v1111
          %1127 = vst.msk [vmem:[#allocation2 + $0x198] sm:$0xff] %vm574, %v1112
          %1128 = vst.msk [vmem:[#allocation2 + $0x1a0] sm:$0xff] %vm574, %v1113
          %1129 = vst.msk [vmem:[#allocation2 + $0x1a8] sm:$0xff] %vm574, %v1114
          %1130 = vst.msk [vmem:[#allocation2 + $0x1b0] sm:$0xff] %vm574, %v1115
          %1131 = vst.msk [vmem:[#allocation2 + $0x1b8] sm:$0xff] %vm574, %v1116
          %1132 = vst.msk [vmem:[#allocation2 + $0x1c0] sm:$0xff] %vm574, %v1117
          %1133 = vst.msk [vmem:[#allocation2 + $0x1c8] sm:$0xff] %vm574, %v1118
          %1134 = vst.msk [vmem:[#allocation2 + $0x1d0] sm:$0xff] %vm574, %v1119
          %1135 = vst.msk [vmem:[#allocation2 + $0x1d8] sm:$0xff] %vm574, %v1120
          %s1136 = sadd.s32 %s402, 480
          %s1137 = sshra.s32 %s1136, 3
          %s1138 = sand.u32 %s1136, 7
          %s1139 = smul.addr %s1137, 4
          %s1140 = scalar_lea.vmem %s385, %s1139
          %v1141 = vld [vmem:[%s1140] sm:$0xf]
          %v1142 = vld [vmem:[%s1140 + $0x4] sm:$0xf]
          %v1143 = vld [vmem:[%s1140 + $0x8] sm:$0xf]
          %v1144 = vld [vmem:[%s1140 + $0xc] sm:$0xf]
          %v1145 = vld [vmem:[%s1140 + $0x10] sm:$0xf]
          %v1146 = vld [vmem:[%s1140 + $0x14] sm:$0xf]
          %v1147 = vld [vmem:[%s1140 + $0x18] sm:$0xf]
          %v1148 = vld [vmem:[%s1140 + $0x1c] sm:$0xf]
          %v1149 = vld [vmem:[%s1140 + $0x20] sm:$0xf]
          %v1150 = vld [vmem:[%s1140 + $0x24] sm:$0xf]
          %v1151 = vld [vmem:[%s1140 + $0x28] sm:$0xf]
          %v1152 = vld [vmem:[%s1140 + $0x2c] sm:$0xf]
          %v1153 = vld [vmem:[%s1140 + $0x30] sm:$0xf]
          %v1154 = vld [vmem:[%s1140 + $0x34] sm:$0xf]
          %v1155 = vld [vmem:[%s1140 + $0x38] sm:$0xf]
          %v1156 = vld [vmem:[%s1] sm:$0xf]
          %v1157 = vld [vmem:[%s1 + $0x4] sm:$0xf]
          %v1158 = vld [vmem:[%s1 + $0x8] sm:$0xf]
          %v1159 = vld [vmem:[%s1 + $0xc] sm:$0x3]
          %v1160 = vld [vmem:[%s2] sm:$0x1]
          %v1162 = vperm.slane %v1160, 0
          %v1179 = vunpack.c.l.b16 %v1141
          %v1180 = vunpack.c.l.b16 %v1142
          %v1181 = vunpack.c.l.b16 %v1143
          %v1182 = vunpack.c.l.b16 %v1144
          %v1183 = vunpack.c.l.b16 %v1145
          %v1184 = vunpack.c.l.b16 %v1146
          %v1185 = vunpack.c.l.b16 %v1147
          %v1186 = vunpack.c.l.b16 %v1148
          %v1187 = vunpack.c.l.b16 %v1149
          %v1188 = vunpack.c.l.b16 %v1150
          %v1189 = vunpack.c.l.b16 %v1151
          %v1190 = vunpack.c.l.b16 %v1152
          %v1191 = vunpack.c.l.b16 %v1153
          %v1192 = vunpack.c.l.b16 %v1154
          %v1193 = vunpack.c.l.b16 %v1155
          %v1194 = vpack.c.b16 %v1180, %v1179
          %v1195 = vpack.c.b16 %v1182, %v1181
          %v1196 = vpack.c.b16 %v1184, %v1183
          %v1197 = vpack.c.b16 %v1186, %v1185
          %v1198 = vpack.c.b16 %v1188, %v1187
          %v1199 = vpack.c.b16 %v1190, %v1189
          %v1200 = vpack.c.b16 %v1192, %v1191
          %v1201 = vpack.c.b16 %v1193, %v1193
          %v1206 = vunpack.c.l.b16 %v1156
          %v1207 = vunpack.c.l.b16 %v1157
          %v1208 = vunpack.c.l.b16 %v1158
          %v1209 = vunpack.c.l.b16 %v1159
          %v1210 = vpack.c.b16 %v1207, %v1206
          %v1211 = vpack.c.b16 %v1209, %v1208
          %v1214 = vsel %vm479, %v1194, 0
          %v1217 = vsel %vm479, %v1195, 0
          %v1220 = vsel %vm479, %v1196, 0
          %v1223 = vsel %vm479, %v1197, 0
          %v1226 = vsel %vm479, %v1198, 0
          %v1229 = vsel %vm479, %v1199, 0
          %v1232 = vsel %vm479, %v1200, 0
          %v1235 = vsel %vm479, %v1201, 0
          %v1238 = vand.u32 %v1211, %v507
          %1240 = vmatpush.bf16.msra.mxu0 0
          %1241 = vmatpush.bf16.msra.mxu0 0
          %1242 = vmatpush.bf16.msra.mxu0 0
          %1243 = vmatpush.bf16.msra.mxu0 0
          %1244 = vmatpush.bf16.msra.mxu0 0
          %1245 = vmatpush.bf16.msra.mxu0 0
          %1246 = vmatpush.bf16.msra.mxu0 %v1238
          %1247 = vmatpush.bf16.msra.mxu0 %v1210
          %1248 = vmatmul.bf16.gmra.mxu0 %v1214
          %v1249 = vpop.f32.mrf.mxu0
          %v1250 = vadd.f32 %v1162, %v1249
          %v1251 = vpop.f32.mrf.mxu0
          %v1252 = vadd.f32 %v1162, %v1251
          %1253 = vmatmul.bf16.gmra.mxu0 %v1217
          %v1254 = vpop.f32.mrf.mxu0
          %v1255 = vadd.f32 %v1162, %v1254
          %v1256 = vpop.f32.mrf.mxu0
          %v1257 = vadd.f32 %v1162, %v1256
          %1258 = vmatmul.bf16.gmra.mxu0 %v1220
          %v1259 = vpop.f32.mrf.mxu0
          %v1260 = vadd.f32 %v1162, %v1259
          %v1261 = vpop.f32.mrf.mxu0
          %v1262 = vadd.f32 %v1162, %v1261
          %1263 = vmatmul.bf16.gmra.mxu0 %v1223
          %v1264 = vpop.f32.mrf.mxu0
          %v1265 = vadd.f32 %v1162, %v1264
          %v1266 = vpop.f32.mrf.mxu0
          %v1267 = vadd.f32 %v1162, %v1266
          %1268 = vmatmul.bf16.gmra.mxu0 %v1226
          %v1269 = vpop.f32.mrf.mxu0
          %v1270 = vadd.f32 %v1162, %v1269
          %v1271 = vpop.f32.mrf.mxu0
          %v1272 = vadd.f32 %v1162, %v1271
          %1273 = vmatmul.bf16.gmra.mxu0 %v1229
          %v1274 = vpop.f32.mrf.mxu0
          %v1275 = vadd.f32 %v1162, %v1274
          %v1276 = vpop.f32.mrf.mxu0
          %v1277 = vadd.f32 %v1162, %v1276
          %1278 = vmatmul.bf16.gmra.mxu0 %v1232
          %v1279 = vpop.f32.mrf.mxu0
          %v1280 = vadd.f32 %v1162, %v1279
          %v1281 = vpop.f32.mrf.mxu0
          %v1282 = vadd.f32 %v1162, %v1281
          %1283 = vmatmul.bf16.gmra.mxu0 %v1235
          %v1284 = vpop.f32.mrf.mxu0
          %v1285 = vadd.f32 %v1162, %v1284
          %v1286 = vpop.f32.mrf.mxu0
          %1287 = vdwg.mxu0
          %v1288 = vmax.f32 %v1250, 0.0
          %v1289 = vmax.f32 %v1252, 0.0
          %v1290 = vmax.f32 %v1255, 0.0
          %v1291 = vmax.f32 %v1257, 0.0
          %v1292 = vmax.f32 %v1260, 0.0
          %v1293 = vmax.f32 %v1262, 0.0
          %v1294 = vmax.f32 %v1265, 0.0
          %v1295 = vmax.f32 %v1267, 0.0
          %v1296 = vmax.f32 %v1270, 0.0
          %v1297 = vmax.f32 %v1272, 0.0
          %v1298 = vmax.f32 %v1275, 0.0
          %v1299 = vmax.f32 %v1277, 0.0
          %v1300 = vmax.f32 %v1280, 0.0
          %v1301 = vmax.f32 %v1282, 0.0
          %v1302 = vmax.f32 %v1285, 0.0
          %1303 = vst.msk [vmem:[#allocation2 + $0x1e0] sm:$0xff] %vm574, %v1288
          %1304 = vst.msk [vmem:[#allocation2 + $0x1e8] sm:$0xff] %vm574, %v1289
          %1305 = vst.msk [vmem:[#allocation2 + $0x1f0] sm:$0xff] %vm574, %v1290
          %1306 = vst.msk [vmem:[#allocation2 + $0x1f8] sm:$0xff] %vm574, %v1291
          %1307 = vst.msk [vmem:[#allocation2 + $0x200] sm:$0xff] %vm574, %v1292
          %1308 = vst.msk [vmem:[#allocation2 + $0x208] sm:$0xff] %vm574, %v1293
          %1309 = vst.msk [vmem:[#allocation2 + $0x210] sm:$0xff] %vm574, %v1294
          %1310 = vst.msk [vmem:[#allocation2 + $0x218] sm:$0xff] %vm574, %v1295
          %1311 = vst.msk [vmem:[#allocation2 + $0x220] sm:$0xff] %vm574, %v1296
          %1312 = vst.msk [vmem:[#allocation2 + $0x228] sm:$0xff] %vm574, %v1297
          %1313 = vst.msk [vmem:[#allocation2 + $0x230] sm:$0xff] %vm574, %v1298
          %1314 = vst.msk [vmem:[#allocation2 + $0x238] sm:$0xff] %vm574, %v1299
          %1315 = vst.msk [vmem:[#allocation2 + $0x240] sm:$0xff] %vm574, %v1300
          %1316 = vst.msk [vmem:[#allocation2 + $0x248] sm:$0xff] %vm574, %v1301
          %1317 = vst.msk [vmem:[#allocation2 + $0x250] sm:$0xff] %vm574, %v1302
          %s1318 = sadd.s32 %s402, 600
          %s1319 = sshra.s32 %s1318, 3
          %s1320 = sand.u32 %s1318, 7
          %s1321 = smul.addr %s1319, 4
          %s1322 = scalar_lea.vmem %s385, %s1321
          %v1323 = vld [vmem:[%s1322] sm:$0xf]
          %v1324 = vld [vmem:[%s1322 + $0x4] sm:$0xf]
          %v1325 = vld [vmem:[%s1322 + $0x8] sm:$0xf]
          %v1326 = vld [vmem:[%s1322 + $0xc] sm:$0xf]
          %v1327 = vld [vmem:[%s1322 + $0x10] sm:$0xf]
          %v1328 = vld [vmem:[%s1322 + $0x14] sm:$0xf]
          %v1329 = vld [vmem:[%s1322 + $0x18] sm:$0xf]
          %v1330 = vld [vmem:[%s1322 + $0x1c] sm:$0xf]
          %v1331 = vld [vmem:[%s1322 + $0x20] sm:$0xf]
          %v1332 = vld [vmem:[%s1322 + $0x24] sm:$0xf]
          %v1333 = vld [vmem:[%s1322 + $0x28] sm:$0xf]
          %v1334 = vld [vmem:[%s1322 + $0x2c] sm:$0xf]
          %v1335 = vld [vmem:[%s1322 + $0x30] sm:$0xf]
          %v1336 = vld [vmem:[%s1322 + $0x34] sm:$0xf]
          %v1337 = vld [vmem:[%s1322 + $0x38] sm:$0xf]
          %v1338 = vld [vmem:[%s1] sm:$0xf]
          %v1339 = vld [vmem:[%s1 + $0x4] sm:$0xf]
          %v1340 = vld [vmem:[%s1 + $0x8] sm:$0xf]
          %v1341 = vld [vmem:[%s1 + $0xc] sm:$0x3]
          %v1342 = vld [vmem:[%s2] sm:$0x1]
          %v1344 = vperm.slane %v1342, 0
          %v1361 = vunpack.c.l.b16 %v1323
          %v1362 = vunpack.c.l.b16 %v1324
          %v1363 = vunpack.c.l.b16 %v1325
          %v1364 = vunpack.c.l.b16 %v1326
          %v1365 = vunpack.c.l.b16 %v1327
          %v1366 = vunpack.c.l.b16 %v1328
          %v1367 = vunpack.c.l.b16 %v1329
          %v1368 = vunpack.c.l.b16 %v1330
          %v1369 = vunpack.c.l.b16 %v1331
          %v1370 = vunpack.c.l.b16 %v1332
          %v1371 = vunpack.c.l.b16 %v1333
          %v1372 = vunpack.c.l.b16 %v1334
          %v1373 = vunpack.c.l.b16 %v1335
          %v1374 = vunpack.c.l.b16 %v1336
          %v1375 = vunpack.c.l.b16 %v1337
          %v1376 = vpack.c.b16 %v1362, %v1361
          %v1377 = vpack.c.b16 %v1364, %v1363
          %v1378 = vpack.c.b16 %v1366, %v1365
          %v1379 = vpack.c.b16 %v1368, %v1367
          %v1380 = vpack.c.b16 %v1370, %v1369
          %v1381 = vpack.c.b16 %v1372, %v1371
          %v1382 = vpack.c.b16 %v1374, %v1373
          %v1383 = vpack.c.b16 %v1375, %v1375
          %v1388 = vunpack.c.l.b16 %v1338
          %v1389 = vunpack.c.l.b16 %v1339
          %v1390 = vunpack.c.l.b16 %v1340
          %v1391 = vunpack.c.l.b16 %v1341
          %v1392 = vpack.c.b16 %v1389, %v1388
          %v1393 = vpack.c.b16 %v1391, %v1390
          %v1396 = vsel %vm479, %v1376, 0
          %v1399 = vsel %vm479, %v1377, 0
          %v1402 = vsel %vm479, %v1378, 0
          %v1405 = vsel %vm479, %v1379, 0
          %v1408 = vsel %vm479, %v1380, 0
          %v1411 = vsel %vm479, %v1381, 0
          %v1414 = vsel %vm479, %v1382, 0
          %v1417 = vsel %vm479, %v1383, 0
          %v1420 = vand.u32 %v1393, %v507
          %1422 = vmatpush.bf16.msra.mxu0 0
          %1423 = vmatpush.bf16.msra.mxu0 0
          %1424 = vmatpush.bf16.msra.mxu0 0
          %1425 = vmatpush.bf16.msra.mxu0 0
          %1426 = vmatpush.bf16.msra.mxu0 0
          %1427 = vmatpush.bf16.msra.mxu0 0
          %1428 = vmatpush.bf16.msra.mxu0 %v1420
          %1429 = vmatpush.bf16.msra.mxu0 %v1392
          %1430 = vmatmul.bf16.gmra.mxu0 %v1396
          %v1431 = vpop.f32.mrf.mxu0
          %v1432 = vadd.f32 %v1344, %v1431
          %v1433 = vpop.f32.mrf.mxu0
          %v1434 = vadd.f32 %v1344, %v1433
          %1435 = vmatmul.bf16.gmra.mxu0 %v1399
          %v1436 = vpop.f32.mrf.mxu0
          %v1437 = vadd.f32 %v1344, %v1436
          %v1438 = vpop.f32.mrf.mxu0
          %v1439 = vadd.f32 %v1344, %v1438
          %1440 = vmatmul.bf16.gmra.mxu0 %v1402
          %v1441 = vpop.f32.mrf.mxu0
          %v1442 = vadd.f32 %v1344, %v1441
          %v1443 = vpop.f32.mrf.mxu0
          %v1444 = vadd.f32 %v1344, %v1443
          %1445 = vmatmul.bf16.gmra.mxu0 %v1405
          %v1446 = vpop.f32.mrf.mxu0
          %v1447 = vadd.f32 %v1344, %v1446
          %v1448 = vpop.f32.mrf.mxu0
          %v1449 = vadd.f32 %v1344, %v1448
          %1450 = vmatmul.bf16.gmra.mxu0 %v1408
          %v1451 = vpop.f32.mrf.mxu0
          %v1452 = vadd.f32 %v1344, %v1451
          %v1453 = vpop.f32.mrf.mxu0
          %v1454 = vadd.f32 %v1344, %v1453
          %1455 = vmatmul.bf16.gmra.mxu0 %v1411
          %v1456 = vpop.f32.mrf.mxu0
          %v1457 = vadd.f32 %v1344, %v1456
          %v1458 = vpop.f32.mrf.mxu0
          %v1459 = vadd.f32 %v1344, %v1458
          %1460 = vmatmul.bf16.gmra.mxu0 %v1414
          %v1461 = vpop.f32.mrf.mxu0
          %v1462 = vadd.f32 %v1344, %v1461
          %v1463 = vpop.f32.mrf.mxu0
          %v1464 = vadd.f32 %v1344, %v1463
          %1465 = vmatmul.bf16.gmra.mxu0 %v1417
          %v1466 = vpop.f32.mrf.mxu0
          %v1467 = vadd.f32 %v1344, %v1466
          %v1468 = vpop.f32.mrf.mxu0
          %1469 = vdwg.mxu0
          %v1470 = vmax.f32 %v1432, 0.0
          %v1471 = vmax.f32 %v1434, 0.0
          %v1472 = vmax.f32 %v1437, 0.0
          %v1473 = vmax.f32 %v1439, 0.0
          %v1474 = vmax.f32 %v1442, 0.0
          %v1475 = vmax.f32 %v1444, 0.0
          %v1476 = vmax.f32 %v1447, 0.0
          %v1477 = vmax.f32 %v1449, 0.0
          %v1478 = vmax.f32 %v1452, 0.0
          %v1479 = vmax.f32 %v1454, 0.0
          %v1480 = vmax.f32 %v1457, 0.0
          %v1481 = vmax.f32 %v1459, 0.0
          %v1482 = vmax.f32 %v1462, 0.0
          %v1483 = vmax.f32 %v1464, 0.0
          %v1484 = vmax.f32 %v1467, 0.0
          %1485 = vst.msk [vmem:[#allocation2 + $0x258] sm:$0xff] %vm574, %v1470
          %1486 = vst.msk [vmem:[#allocation2 + $0x260] sm:$0xff] %vm574, %v1471
          %1487 = vst.msk [vmem:[#allocation2 + $0x268] sm:$0xff] %vm574, %v1472
          %1488 = vst.msk [vmem:[#allocation2 + $0x270] sm:$0xff] %vm574, %v1473
          %1489 = vst.msk [vmem:[#allocation2 + $0x278] sm:$0xff] %vm574, %v1474
          %1490 = vst.msk [vmem:[#allocation2 + $0x280] sm:$0xff] %vm574, %v1475
          %1491 = vst.msk [vmem:[#allocation2 + $0x288] sm:$0xff] %vm574, %v1476
          %1492 = vst.msk [vmem:[#allocation2 + $0x290] sm:$0xff] %vm574, %v1477
          %1493 = vst.msk [vmem:[#allocation2 + $0x298] sm:$0xff] %vm574, %v1478
          %1494 = vst.msk [vmem:[#allocation2 + $0x2a0] sm:$0xff] %vm574, %v1479
          %1495 = vst.msk [vmem:[#allocation2 + $0x2a8] sm:$0xff] %vm574, %v1480
          %1496 = vst.msk [vmem:[#allocation2 + $0x2b0] sm:$0xff] %vm574, %v1481
          %1497 = vst.msk [vmem:[#allocation2 + $0x2b8] sm:$0xff] %vm574, %v1482
          %1498 = vst.msk [vmem:[#allocation2 + $0x2c0] sm:$0xff] %vm574, %v1483
          %1499 = vst.msk [vmem:[#allocation2 + $0x2c8] sm:$0xff] %vm574, %v1484
          %s1500 = sadd.s32 %s402, 720
          %s1501 = sshra.s32 %s1500, 3
          %s1502 = sand.u32 %s1500, 7
          %s1503 = smul.addr %s1501, 4
          %s1504 = scalar_lea.vmem %s385, %s1503
          %v1505 = vld [vmem:[%s1504] sm:$0xf]
          %v1506 = vld [vmem:[%s1504 + $0x4] sm:$0xf]
          %v1507 = vld [vmem:[%s1504 + $0x8] sm:$0xf]
          %v1508 = vld [vmem:[%s1504 + $0xc] sm:$0xf]
          %v1509 = vld [vmem:[%s1504 + $0x10] sm:$0xf]
          %v1510 = vld [vmem:[%s1504 + $0x14] sm:$0xf]
          %v1511 = vld [vmem:[%s1504 + $0x18] sm:$0xf]
          %v1512 = vld [vmem:[%s1504 + $0x1c] sm:$0xf]
          %v1513 = vld [vmem:[%s1504 + $0x20] sm:$0xf]
          %v1514 = vld [vmem:[%s1504 + $0x24] sm:$0xf]
          %v1515 = vld [vmem:[%s1504 + $0x28] sm:$0xf]
          %v1516 = vld [vmem:[%s1504 + $0x2c] sm:$0xf]
          %v1517 = vld [vmem:[%s1504 + $0x30] sm:$0xf]
          %v1518 = vld [vmem:[%s1504 + $0x34] sm:$0xf]
          %v1519 = vld [vmem:[%s1504 + $0x38] sm:$0xf]
          %v1520 = vld [vmem:[%s1] sm:$0xf]
          %v1521 = vld [vmem:[%s1 + $0x4] sm:$0xf]
          %v1522 = vld [vmem:[%s1 + $0x8] sm:$0xf]
          %v1523 = vld [vmem:[%s1 + $0xc] sm:$0x3]
          %v1524 = vld [vmem:[%s2] sm:$0x1]
          %v1526 = vperm.slane %v1524, 0
          %v1543 = vunpack.c.l.b16 %v1505
          %v1544 = vunpack.c.l.b16 %v1506
          %v1545 = vunpack.c.l.b16 %v1507
          %v1546 = vunpack.c.l.b16 %v1508
          %v1547 = vunpack.c.l.b16 %v1509
          %v1548 = vunpack.c.l.b16 %v1510
          %v1549 = vunpack.c.l.b16 %v1511
          %v1550 = vunpack.c.l.b16 %v1512
          %v1551 = vunpack.c.l.b16 %v1513
          %v1552 = vunpack.c.l.b16 %v1514
          %v1553 = vunpack.c.l.b16 %v1515
          %v1554 = vunpack.c.l.b16 %v1516
          %v1555 = vunpack.c.l.b16 %v1517
          %v1556 = vunpack.c.l.b16 %v1518
          %v1557 = vunpack.c.l.b16 %v1519
          %v1558 = vpack.c.b16 %v1544, %v1543
          %v1559 = vpack.c.b16 %v1546, %v1545
          %v1560 = vpack.c.b16 %v1548, %v1547
          %v1561 = vpack.c.b16 %v1550, %v1549
          %v1562 = vpack.c.b16 %v1552, %v1551
          %v1563 = vpack.c.b16 %v1554, %v1553
          %v1564 = vpack.c.b16 %v1556, %v1555
          %v1565 = vpack.c.b16 %v1557, %v1557
          %v1570 = vunpack.c.l.b16 %v1520
          %v1571 = vunpack.c.l.b16 %v1521
          %v1572 = vunpack.c.l.b16 %v1522
          %v1573 = vunpack.c.l.b16 %v1523
          %v1574 = vpack.c.b16 %v1571, %v1570
          %v1575 = vpack.c.b16 %v1573, %v1572
          %v1578 = vsel %vm479, %v1558, 0
          %v1581 = vsel %vm479, %v1559, 0
          %v1584 = vsel %vm479, %v1560, 0
          %v1587 = vsel %vm479, %v1561, 0
          %v1590 = vsel %vm479, %v1562, 0
          %v1593 = vsel %vm479, %v1563, 0
          %v1596 = vsel %vm479, %v1564, 0
          %v1599 = vsel %vm479, %v1565, 0
          %v1602 = vand.u32 %v1575, %v507
          %1604 = vmatpush.bf16.msra.mxu0 0
          %1605 = vmatpush.bf16.msra.mxu0 0
          %1606 = vmatpush.bf16.msra.mxu0 0
          %1607 = vmatpush.bf16.msra.mxu0 0
          %1608 = vmatpush.bf16.msra.mxu0 0
          %1609 = vmatpush.bf16.msra.mxu0 0
          %1610 = vmatpush.bf16.msra.mxu0 %v1602
          %1611 = vmatpush.bf16.msra.mxu0 %v1574
          %1612 = vmatmul.bf16.gmra.mxu0 %v1578
          %v1613 = vpop.f32.mrf.mxu0
          %v1614 = vadd.f32 %v1526, %v1613
          %v1615 = vpop.f32.mrf.mxu0
          %v1616 = vadd.f32 %v1526, %v1615
          %1617 = vmatmul.bf16.gmra.mxu0 %v1581
          %v1618 = vpop.f32.mrf.mxu0
          %v1619 = vadd.f32 %v1526, %v1618
          %v1620 = vpop.f32.mrf.mxu0
          %v1621 = vadd.f32 %v1526, %v1620
          %1622 = vmatmul.bf16.gmra.mxu0 %v1584
          %v1623 = vpop.f32.mrf.mxu0
          %v1624 = vadd.f32 %v1526, %v1623
          %v1625 = vpop.f32.mrf.mxu0
          %v1626 = vadd.f32 %v1526, %v1625
          %1627 = vmatmul.bf16.gmra.mxu0 %v1587
          %v1628 = vpop.f32.mrf.mxu0
          %v1629 = vadd.f32 %v1526, %v1628
          %v1630 = vpop.f32.mrf.mxu0
          %v1631 = vadd.f32 %v1526, %v1630
          %1632 = vmatmul.bf16.gmra.mxu0 %v1590
          %v1633 = vpop.f32.mrf.mxu0
          %v1634 = vadd.f32 %v1526, %v1633
          %v1635 = vpop.f32.mrf.mxu0
          %v1636 = vadd.f32 %v1526, %v1635
          %1637 = vmatmul.bf16.gmra.mxu0 %v1593
          %v1638 = vpop.f32.mrf.mxu0
          %v1639 = vadd.f32 %v1526, %v1638
          %v1640 = vpop.f32.mrf.mxu0
          %v1641 = vadd.f32 %v1526, %v1640
          %1642 = vmatmul.bf16.gmra.mxu0 %v1596
          %v1643 = vpop.f32.mrf.mxu0
          %v1644 = vadd.f32 %v1526, %v1643
          %v1645 = vpop.f32.mrf.mxu0
          %v1646 = vadd.f32 %v1526, %v1645
          %1647 = vmatmul.bf16.gmra.mxu0 %v1599
          %v1648 = vpop.f32.mrf.mxu0
          %v1649 = vadd.f32 %v1526, %v1648
          %v1650 = vpop.f32.mrf.mxu0
          %1651 = vdwg.mxu0
          %v1652 = vmax.f32 %v1614, 0.0
          %v1653 = vmax.f32 %v1616, 0.0
          %v1654 = vmax.f32 %v1619, 0.0
          %v1655 = vmax.f32 %v1621, 0.0
          %v1656 = vmax.f32 %v1624, 0.0
          %v1657 = vmax.f32 %v1626, 0.0
          %v1658 = vmax.f32 %v1629, 0.0
          %v1659 = vmax.f32 %v1631, 0.0
          %v1660 = vmax.f32 %v1634, 0.0
          %v1661 = vmax.f32 %v1636, 0.0
          %v1662 = vmax.f32 %v1639, 0.0
          %v1663 = vmax.f32 %v1641, 0.0
          %v1664 = vmax.f32 %v1644, 0.0
          %v1665 = vmax.f32 %v1646, 0.0
          %v1666 = vmax.f32 %v1649, 0.0
          %1667 = vst.msk [vmem:[#allocation2 + $0x2d0] sm:$0xff] %vm574, %v1652
          %1668 = vst.msk [vmem:[#allocation2 + $0x2d8] sm:$0xff] %vm574, %v1653
          %1669 = vst.msk [vmem:[#allocation2 + $0x2e0] sm:$0xff] %vm574, %v1654
          %1670 = vst.msk [vmem:[#allocation2 + $0x2e8] sm:$0xff] %vm574, %v1655
          %1671 = vst.msk [vmem:[#allocation2 + $0x2f0] sm:$0xff] %vm574, %v1656
          %1672 = vst.msk [vmem:[#allocation2 + $0x2f8] sm:$0xff] %vm574, %v1657
          %1673 = vst.msk [vmem:[#allocation2 + $0x300] sm:$0xff] %vm574, %v1658
          %1674 = vst.msk [vmem:[#allocation2 + $0x308] sm:$0xff] %vm574, %v1659
          %1675 = vst.msk [vmem:[#allocation2 + $0x310] sm:$0xff] %vm574, %v1660
          %1676 = vst.msk [vmem:[#allocation2 + $0x318] sm:$0xff] %vm574, %v1661
          %1677 = vst.msk [vmem:[#allocation2 + $0x320] sm:$0xff] %vm574, %v1662
          %1678 = vst.msk [vmem:[#allocation2 + $0x328] sm:$0xff] %vm574, %v1663
          %1679 = vst.msk [vmem:[#allocation2 + $0x330] sm:$0xff] %vm574, %v1664
          %1680 = vst.msk [vmem:[#allocation2 + $0x338] sm:$0xff] %vm574, %v1665
          %1681 = vst.msk [vmem:[#allocation2 + $0x340] sm:$0xff] %vm574, %v1666
          %s1682 = sadd.s32 %s402, 840
          %s1683 = sshra.s32 %s1682, 3
          %s1684 = sand.u32 %s1682, 7
          %s1685 = smul.addr %s1683, 4
          %s1686 = scalar_lea.vmem %s385, %s1685
          %v1687 = vld [vmem:[%s1686] sm:$0xf]
          %v1688 = vld [vmem:[%s1686 + $0x4] sm:$0xf]
          %v1689 = vld [vmem:[%s1686 + $0x8] sm:$0xf]
          %v1690 = vld [vmem:[%s1686 + $0xc] sm:$0xf]
          %v1691 = vld [vmem:[%s1686 + $0x10] sm:$0xf]
          %v1692 = vld [vmem:[%s1686 + $0x14] sm:$0xf]
          %v1693 = vld [vmem:[%s1686 + $0x18] sm:$0xf]
          %v1694 = vld [vmem:[%s1686 + $0x1c] sm:$0xf]
          %v1695 = vld [vmem:[%s1686 + $0x20] sm:$0xf]
          %v1696 = vld [vmem:[%s1686 + $0x24] sm:$0xf]
          %v1697 = vld [vmem:[%s1686 + $0x28] sm:$0xf]
          %v1698 = vld [vmem:[%s1686 + $0x2c] sm:$0xf]
          %v1699 = vld [vmem:[%s1686 + $0x30] sm:$0xf]
          %v1700 = vld [vmem:[%s1686 + $0x34] sm:$0xf]
          %v1701 = vld [vmem:[%s1686 + $0x38] sm:$0xf]
          %v1702 = vld [vmem:[%s1] sm:$0xf]
          %v1703 = vld [vmem:[%s1 + $0x4] sm:$0xf]
          %v1704 = vld [vmem:[%s1 + $0x8] sm:$0xf]
          %v1705 = vld [vmem:[%s1 + $0xc] sm:$0x3]
          %v1706 = vld [vmem:[%s2] sm:$0x1]
          %v1708 = vperm.slane %v1706, 0
          %v1725 = vunpack.c.l.b16 %v1687
          %v1726 = vunpack.c.l.b16 %v1688
          %v1727 = vunpack.c.l.b16 %v1689
          %v1728 = vunpack.c.l.b16 %v1690
          %v1729 = vunpack.c.l.b16 %v1691
          %v1730 = vunpack.c.l.b16 %v1692
          %v1731 = vunpack.c.l.b16 %v1693
          %v1732 = vunpack.c.l.b16 %v1694
          %v1733 = vunpack.c.l.b16 %v1695
          %v1734 = vunpack.c.l.b16 %v1696
          %v1735 = vunpack.c.l.b16 %v1697
          %v1736 = vunpack.c.l.b16 %v1698
          %v1737 = vunpack.c.l.b16 %v1699
          %v1738 = vunpack.c.l.b16 %v1700
          %v1739 = vunpack.c.l.b16 %v1701
          %v1740 = vpack.c.b16 %v1726, %v1725
          %v1741 = vpack.c.b16 %v1728, %v1727
          %v1742 = vpack.c.b16 %v1730, %v1729
          %v1743 = vpack.c.b16 %v1732, %v1731
          %v1744 = vpack.c.b16 %v1734, %v1733
          %v1745 = vpack.c.b16 %v1736, %v1735
          %v1746 = vpack.c.b16 %v1738, %v1737
          %v1747 = vpack.c.b16 %v1739, %v1739
          %v1752 = vunpack.c.l.b16 %v1702
          %v1753 = vunpack.c.l.b16 %v1703
          %v1754 = vunpack.c.l.b16 %v1704
          %v1755 = vunpack.c.l.b16 %v1705
          %v1756 = vpack.c.b16 %v1753, %v1752
          %v1757 = vpack.c.b16 %v1755, %v1754
          %v1760 = vsel %vm479, %v1740, 0
          %v1763 = vsel %vm479, %v1741, 0
          %v1766 = vsel %vm479, %v1742, 0
          %v1769 = vsel %vm479, %v1743, 0
          %v1772 = vsel %vm479, %v1744, 0
          %v1775 = vsel %vm479, %v1745, 0
          %v1778 = vsel %vm479, %v1746, 0
          %v1781 = vsel %vm479, %v1747, 0
          %v1784 = vand.u32 %v1757, %v507
          %1786 = vmatpush.bf16.msra.mxu0 0
          %1787 = vmatpush.bf16.msra.mxu0 0
          %1788 = vmatpush.bf16.msra.mxu0 0
          %1789 = vmatpush.bf16.msra.mxu0 0
          %1790 = vmatpush.bf16.msra.mxu0 0
          %1791 = vmatpush.bf16.msra.mxu0 0
          %1792 = vmatpush.bf16.msra.mxu0 %v1784
          %1793 = vmatpush.bf16.msra.mxu0 %v1756
          %1794 = vmatmul.bf16.gmra.mxu0 %v1760
          %v1795 = vpop.f32.mrf.mxu0
          %v1796 = vadd.f32 %v1708, %v1795
          %v1797 = vpop.f32.mrf.mxu0
          %v1798 = vadd.f32 %v1708, %v1797
          %1799 = vmatmul.bf16.gmra.mxu0 %v1763
          %v1800 = vpop.f32.mrf.mxu0
          %v1801 = vadd.f32 %v1708, %v1800
          %v1802 = vpop.f32.mrf.mxu0
          %v1803 = vadd.f32 %v1708, %v1802
          %1804 = vmatmul.bf16.gmra.mxu0 %v1766
          %v1805 = vpop.f32.mrf.mxu0
          %v1806 = vadd.f32 %v1708, %v1805
          %v1807 = vpop.f32.mrf.mxu0
          %v1808 = vadd.f32 %v1708, %v1807
          %1809 = vmatmul.bf16.gmra.mxu0 %v1769
          %v1810 = vpop.f32.mrf.mxu0
          %v1811 = vadd.f32 %v1708, %v1810
          %v1812 = vpop.f32.mrf.mxu0
          %v1813 = vadd.f32 %v1708, %v1812
          %1814 = vmatmul.bf16.gmra.mxu0 %v1772
          %v1815 = vpop.f32.mrf.mxu0
          %v1816 = vadd.f32 %v1708, %v1815
          %v1817 = vpop.f32.mrf.mxu0
          %v1818 = vadd.f32 %v1708, %v1817
          %1819 = vmatmul.bf16.gmra.mxu0 %v1775
          %v1820 = vpop.f32.mrf.mxu0
          %v1821 = vadd.f32 %v1708, %v1820
          %v1822 = vpop.f32.mrf.mxu0
          %v1823 = vadd.f32 %v1708, %v1822
          %1824 = vmatmul.bf16.gmra.mxu0 %v1778
          %v1825 = vpop.f32.mrf.mxu0
          %v1826 = vadd.f32 %v1708, %v1825
          %v1827 = vpop.f32.mrf.mxu0
          %v1828 = vadd.f32 %v1708, %v1827
          %1829 = vmatmul.bf16.gmra.mxu0 %v1781
          %v1830 = vpop.f32.mrf.mxu0
          %v1831 = vadd.f32 %v1708, %v1830
          %v1832 = vpop.f32.mrf.mxu0
          %1833 = vdwg.mxu0
          %v1834 = vmax.f32 %v1796, 0.0
          %v1835 = vmax.f32 %v1798, 0.0
          %v1836 = vmax.f32 %v1801, 0.0
          %v1837 = vmax.f32 %v1803, 0.0
          %v1838 = vmax.f32 %v1806, 0.0
          %v1839 = vmax.f32 %v1808, 0.0
          %v1840 = vmax.f32 %v1811, 0.0
          %v1841 = vmax.f32 %v1813, 0.0
          %v1842 = vmax.f32 %v1816, 0.0
          %v1843 = vmax.f32 %v1818, 0.0
          %v1844 = vmax.f32 %v1821, 0.0
          %v1845 = vmax.f32 %v1823, 0.0
          %v1846 = vmax.f32 %v1826, 0.0
          %v1847 = vmax.f32 %v1828, 0.0
          %v1848 = vmax.f32 %v1831, 0.0
          %1849 = vst.msk [vmem:[#allocation2 + $0x348] sm:$0xff] %vm574, %v1834
          %1850 = vst.msk [vmem:[#allocation2 + $0x350] sm:$0xff] %vm574, %v1835
          %1851 = vst.msk [vmem:[#allocation2 + $0x358] sm:$0xff] %vm574, %v1836
          %1852 = vst.msk [vmem:[#allocation2 + $0x360] sm:$0xff] %vm574, %v1837
          %1853 = vst.msk [vmem:[#allocation2 + $0x368] sm:$0xff] %vm574, %v1838
          %1854 = vst.msk [vmem:[#allocation2 + $0x370] sm:$0xff] %vm574, %v1839
          %1855 = vst.msk [vmem:[#allocation2 + $0x378] sm:$0xff] %vm574, %v1840
          %1856 = vst.msk [vmem:[#allocation2 + $0x380] sm:$0xff] %vm574, %v1841
          %1857 = vst.msk [vmem:[#allocation2 + $0x388] sm:$0xff] %vm574, %v1842
          %1858 = vst.msk [vmem:[#allocation2 + $0x390] sm:$0xff] %vm574, %v1843
          %1859 = vst.msk [vmem:[#allocation2 + $0x398] sm:$0xff] %vm574, %v1844
          %1860 = vst.msk [vmem:[#allocation2 + $0x3a0] sm:$0xff] %vm574, %v1845
          %1861 = vst.msk [vmem:[#allocation2 + $0x3a8] sm:$0xff] %vm574, %v1846
          %1862 = vst.msk [vmem:[#allocation2 + $0x3b0] sm:$0xff] %vm574, %v1847
          %1863 = vst.msk [vmem:[#allocation2 + $0x3b8] sm:$0xff] %vm574, %v1848
          %v1864 = vld [vmem:[#allocation2] sm:$0xff]
          %v1865 = vld [vmem:[#allocation2 + $0x8] sm:$0xff]
          %v1866 = vld [vmem:[#allocation2 + $0x10] sm:$0xff]
          %v1867 = vld [vmem:[#allocation2 + $0x18] sm:$0xff]
          %v1868 = vld [vmem:[#allocation2 + $0x20] sm:$0xff]
          %v1869 = vld [vmem:[#allocation2 + $0x28] sm:$0xff]
          %v1870 = vld [vmem:[#allocation2 + $0x30] sm:$0xff]
          %v1871 = vld [vmem:[#allocation2 + $0x38] sm:$0xff]
          %v1872 = vmax.f32 %v1864, %v1868
          %v1873 = vmax.f32 %v1865, %v1869
          %v1874 = vmax.f32 %v1866, %v1870
          %v1875 = vmax.f32 %v1867, %v1871
          %1876 = vst.msk [vmem:[#allocation2] sm:$0xff] %vm574, %v1872
          %1877 = vst.msk [vmem:[#allocation2 + $0x8] sm:$0xff] %vm574, %v1873
          %1878 = vst.msk [vmem:[#allocation2 + $0x10] sm:$0xff] %vm574, %v1874
          %1879 = vst.msk [vmem:[#allocation2 + $0x18] sm:$0xff] %vm574, %v1875
          %v1880 = vld [vmem:[#allocation2] ss:$2 sm:$0xff]
          %s1881 = scalar_lea.vmem [#allocation2], 16
          %v1882 = vld [vmem:[%s1881] ss:$2 sm:$0x7f]
          %s1883 = scalar_lea.vmem [#allocation2], 1
          %v1884 = vld [vmem:[%s1883] ss:$2 sm:$0xff]
          %s1885 = scalar_lea.vmem [#allocation2], 17
          %v1886 = vld [vmem:[%s1885] ss:$2 sm:$0x7f]
          %v1887 = vmax.f32 %v1880, %v1884
          %v1888 = vmax.f32 %v1882, %v1886
          %v1889 = vpack.c.bf16 %v1887, %v1887
          %v1890 = vpack.c.bf16 %v1888, %v1888
          %vm1891 = vcmask 257024
          %1892 = vst.msk [vmem:[#allocation3] sm:$0xf] %vm1891, %v1889
          %vm1893 = vcmask 257024
          %vm1894 = vsmask.f32 3328
          %vm1895 = vmand %vm1893, %vm1894
          %v1896 = vld [vmem:[#allocation3 + $0x4] sm:$0xf]
          %v1897 = vsel %vm1895, %v1890, %v1896
          %1898 = vst [vmem:[#allocation3 + $0x4] sm:$0xf] %v1897
          %v1899 = vld [vmem:[#allocation2 + $0x40] sm:$0xff]
          %v1900 = vld [vmem:[#allocation2 + $0x48] sm:$0xff]
          %v1901 = vld [vmem:[#allocation2 + $0x50] sm:$0xff]
          %v1902 = vld [vmem:[#allocation2 + $0x58] sm:$0xff]
          %v1903 = vld [vmem:[#allocation2 + $0x60] sm:$0xff]
          %v1904 = vld [vmem:[#allocation2 + $0x68] sm:$0xff]
          %v1905 = vld [vmem:[#allocation2 + $0x70] sm:$0xff]
          %v1906 = vld [vmem:[#allocation2 + $0x78] sm:$0xff]
          %v1907 = vmax.f32 %v1899, %v1903
          %v1908 = vmax.f32 %v1900, %v1904
          %v1909 = vmax.f32 %v1901, %v1905
          %v1910 = vmax.f32 %v1902, %v1906
          %1911 = vst.msk [vmem:[#allocation2 + $0x40] sm:$0xff] %vm574, %v1907
          %1912 = vst.msk [vmem:[#allocation2 + $0x48] sm:$0xff] %vm574, %v1908
          %1913 = vst.msk [vmem:[#allocation2 + $0x50] sm:$0xff] %vm574, %v1909
          %1914 = vst.msk [vmem:[#allocation2 + $0x58] sm:$0xff] %vm574, %v1910
          %s1915 = scalar_lea.vmem [#allocation2], 64
          %v1916 = vld [vmem:[%s1915] ss:$2 sm:$0xff]
          %s1917 = scalar_lea.vmem [#allocation2], 80
          %v1918 = vld [vmem:[%s1917] ss:$2 sm:$0x7f]
          %s1919 = scalar_lea.vmem [#allocation2], 65
          %v1920 = vld [vmem:[%s1919] ss:$2 sm:$0xff]
          %s1921 = scalar_lea.vmem [#allocation2], 81
          %v1922 = vld [vmem:[%s1921] ss:$2 sm:$0x7f]
          %v1923 = vmax.f32 %v1916, %v1920
          %v1924 = vmax.f32 %v1918, %v1922
          %v1925 = vpack.c.bf16 %v1923, %v1923
          %v1926 = vpack.c.bf16 %v1924, %v1924
          %vm1927 = vsmask.f32 7440
          %vm1928 = vmor %vm1894, %vm1927
          %v1930 = vshll.u32 %v1925, 16
          %v1932 = vrot.slane %v1930, 5
          %v1933 = vshrl.u32 %v1925, 16
          %v1935 = vrot.slane %v1933, 4
          %v1936 = vor.u32 %v1935, %v1932
          %v1937 = vrot.slane %v1936, 4
          %v1939 = vshll.u32 %v1926, 16
          %v1941 = vrot.slane %v1939, 5
          %v1942 = vsel %vm1928, %v1937, %v1941
          %v1943 = vshrl.u32 %v1926, 16
          %v1945 = vrot.slane %v1943, 4
          %v1946 = vor.u32 %v1945, %v1941
          %v1947 = vrot.slane %v1946, 4
          %vm1951 = vcmask 257027
          %vm1952 = vsmask.f32 7950
          %vm1953 = vmand %vm1951, %vm1952
          %v1954 = vld [vmem:[#allocation3 + $0x4] sm:$0x8]
          %v1955 = vsel %vm1953, %v1932, %v1954
          %1956 = vst [vmem:[#allocation3 + $0x4] sm:$0x8] %v1955
          %1957 = vst.msk [vmem:[#allocation3 + $0x8] sm:$0xf] %vm1891, %v1942
          %vm1958 = vcmask 256000
          %1959 = vst.msk [vmem:[#allocation3 + $0xc] sm:$0x7] %vm1958, %v1947
          %v1960 = vld [vmem:[#allocation2 + $0x80] sm:$0xff]
          %v1961 = vld [vmem:[#allocation2 + $0x88] sm:$0xff]
          %v1962 = vld [vmem:[#allocation2 + $0x90] sm:$0xff]
          %v1963 = vld [vmem:[#allocation2 + $0x98] sm:$0xff]
          %v1964 = vld [vmem:[#allocation2 + $0xa0] sm:$0xff]
          %v1965 = vld [vmem:[#allocation2 + $0xa8] sm:$0xff]
          %v1966 = vld [vmem:[#allocation2 + $0xb0] sm:$0xff]
          %v1967 = vld [vmem:[#allocation2 + $0xb8] sm:$0xff]
          %v1968 = vmax.f32 %v1960, %v1964
          %v1969 = vmax.f32 %v1961, %v1965
          %v1970 = vmax.f32 %v1962, %v1966
          %v1971 = vmax.f32 %v1963, %v1967
          %1972 = vst.msk [vmem:[#allocation2 + $0x80] sm:$0xff] %vm574, %v1968
          %1973 = vst.msk [vmem:[#allocation2 + $0x88] sm:$0xff] %vm574, %v1969
          %1974 = vst.msk [vmem:[#allocation2 + $0x90] sm:$0xff] %vm574, %v1970
          %1975 = vst.msk [vmem:[#allocation2 + $0x98] sm:$0xff] %vm574, %v1971
          %s1976 = scalar_lea.vmem [#allocation2], 128
          %v1977 = vld [vmem:[%s1976] ss:$2 sm:$0xff]
          %s1978 = scalar_lea.vmem [#allocation2], 144
          %v1979 = vld [vmem:[%s1978] ss:$2 sm:$0x7f]
          %s1980 = scalar_lea.vmem [#allocation2], 129
          %v1981 = vld [vmem:[%s1980] ss:$2 sm:$0xff]
          %s1982 = scalar_lea.vmem [#allocation2], 145
          %v1983 = vld [vmem:[%s1982] ss:$2 sm:$0x7f]
          %v1984 = vmax.f32 %v1977, %v1981
          %v1985 = vmax.f32 %v1979, %v1983
          %v1986 = vpack.c.bf16 %v1984, %v1984
          %v1987 = vpack.c.bf16 %v1985, %v1985
          %vm1990 = vcmask 1042432
          %vm1991 = vcmask 1046532
          %vm1992 = vmor %vm1990, %vm1991
          %v1993 = vrot.slane %v1986, 5
          %v1994 = vrot.slane %v1993, 4
          %v1995 = vrot.slane %v1987, 5
          %v1996 = vsel %vm1992, %v1994, %v1995
          %v1997 = vrot.slane %v1995, 4
          %vm2001 = vcmask 257027
          %2002 = vst.msk [vmem:[#allocation3 + $0xc] sm:$0x8] %vm2001, %v1993
          %2003 = vst.msk [vmem:[#allocation3 + $0x10] sm:$0xf] %vm1891, %v1996
          %vm2004 = vcmask 256000
          %vm2005 = vsmask.f32 2304
          %vm2006 = vmand %vm2004, %vm2005
          %v2007 = vld [vmem:[#allocation3 + $0x14] sm:$0x7]
          %v2008 = vsel %vm2006, %v1997, %v2007
          %2009 = vst [vmem:[#allocation3 + $0x14] sm:$0x7] %v2008
          %v2010 = vld [vmem:[#allocation2 + $0xc0] sm:$0xff]
          %v2011 = vld [vmem:[#allocation2 + $0xc8] sm:$0xff]
          %v2012 = vld [vmem:[#allocation2 + $0xd0] sm:$0xff]
          %v2013 = vld [vmem:[#allocation2 + $0xd8] sm:$0xff]
          %v2014 = vld [vmem:[#allocation2 + $0xe0] sm:$0xff]
          %v2015 = vld [vmem:[#allocation2 + $0xe8] sm:$0xff]
          %v2016 = vld [vmem:[#allocation2 + $0xf0] sm:$0xff]
          %v2017 = vld [vmem:[#allocation2 + $0xf8] sm:$0xff]
          %v2018 = vmax.f32 %v2010, %v2014
          %v2019 = vmax.f32 %v2011, %v2015
          %v2020 = vmax.f32 %v2012, %v2016
          %v2021 = vmax.f32 %v2013, %v2017
          %2022 = vst.msk [vmem:[#allocation2 + $0xc0] sm:$0xff] %vm574, %v2018
          %2023 = vst.msk [vmem:[#allocation2 + $0xc8] sm:$0xff] %vm574, %v2019
          %2024 = vst.msk [vmem:[#allocation2 + $0xd0] sm:$0xff] %vm574, %v2020
          %2025 = vst.msk [vmem:[#allocation2 + $0xd8] sm:$0xff] %vm574, %v2021
          %s2026 = scalar_lea.vmem [#allocation2], 192
          %v2027 = vld [vmem:[%s2026] ss:$2 sm:$0xff]
          %s2028 = scalar_lea.vmem [#allocation2], 208
          %v2029 = vld [vmem:[%s2028] ss:$2 sm:$0x7f]
          %s2030 = scalar_lea.vmem [#allocation2], 193
          %v2031 = vld [vmem:[%s2030] ss:$2 sm:$0xff]
          %s2032 = scalar_lea.vmem [#allocation2], 209
          %v2033 = vld [vmem:[%s2032] ss:$2 sm:$0x7f]
          %v2034 = vmax.f32 %v2027, %v2031
          %v2035 = vmax.f32 %v2029, %v2033
          %v2036 = vpack.c.bf16 %v2034, %v2034
          %v2037 = vpack.c.bf16 %v2035, %v2035
          %vm2038 = vsmask.f32 6416
          %vm2039 = vmor %vm2005, %vm2038
          %v2041 = vshrl.u32 %v2036, 16
          %v2043 = vrot.slane %v2041, 5
          %v2044 = vshll.u32 %v2036, 16
          %v2046 = vrot.slane %v2044, 6
          %v2047 = vor.u32 %v2043, %v2046
          %v2048 = vrot.slane %v2047, 4
          %v2050 = vshrl.u32 %v2037, 16
          %v2052 = vrot.slane %v2050, 5
          %v2053 = vshll.u32 %v2037, 16
          %v2055 = vrot.slane %v2053, 6
          %v2056 = vor.u32 %v2052, %v2055
          %v2057 = vsel %vm2039, %v2048, %v2056
          %v2058 = vrot.slane %v2056, 4
          %vm2062 = vcmask 257026
          %vm2063 = vsmask.f32 7946
          %vm2064 = vmand %vm2062, %vm2063
          %v2065 = vld [vmem:[#allocation3 + $0x14] sm:$0xc]
          %v2066 = vsel %vm2064, %v2047, %v2065
          %2067 = vst [vmem:[#allocation3 + $0x14] sm:$0xc] %v2066
          %2068 = vst.msk [vmem:[#allocation3 + $0x18] sm:$0xf] %vm1891, %v2057
          %vm2069 = vcmask 254976
          %2070 = vst.msk [vmem:[#allocation3 + $0x1c] sm:$0x3] %vm2069, %v2058
          %v2071 = vld [vmem:[#allocation2 + $0x100] sm:$0xff]
          %v2072 = vld [vmem:[#allocation2 + $0x108] sm:$0xff]
          %v2073 = vld [vmem:[#allocation2 + $0x110] sm:$0xff]
          %v2074 = vld [vmem:[#allocation2 + $0x118] sm:$0xff]
          %v2075 = vld [vmem:[#allocation2 + $0x120] sm:$0xff]
          %v2076 = vld [vmem:[#allocation2 + $0x128] sm:$0xff]
          %v2077 = vld [vmem:[#allocation2 + $0x130] sm:$0xff]
          %v2078 = vld [vmem:[#allocation2 + $0x138] sm:$0xff]
          %v2079 = vmax.f32 %v2071, %v2075
          %v2080 = vmax.f32 %v2072, %v2076
          %v2081 = vmax.f32 %v2073, %v2077
          %v2082 = vmax.f32 %v2074, %v2078
          %2083 = vst.msk [vmem:[#allocation2 + $0x100] sm:$0xff] %vm574, %v2079
          %2084 = vst.msk [vmem:[#allocation2 + $0x108] sm:$0xff] %vm574, %v2080
          %2085 = vst.msk [vmem:[#allocation2 + $0x110] sm:$0xff] %vm574, %v2081
          %2086 = vst.msk [vmem:[#allocation2 + $0x118] sm:$0xff] %vm574, %v2082
          %s2087 = scalar_lea.vmem [#allocation2], 256
          %v2088 = vld [vmem:[%s2087] ss:$2 sm:$0xff]
          %s2089 = scalar_lea.vmem [#allocation2], 272
          %v2090 = vld [vmem:[%s2089] ss:$2 sm:$0x7f]
          %s2091 = scalar_lea.vmem [#allocation2], 257
          %v2092 = vld [vmem:[%s2091] ss:$2 sm:$0xff]
          %s2093 = scalar_lea.vmem [#allocation2], 273
          %v2094 = vld [vmem:[%s2093] ss:$2 sm:$0x7f]
          %v2095 = vmax.f32 %v2088, %v2092
          %v2096 = vmax.f32 %v2090, %v2094
          %v2097 = vpack.c.bf16 %v2095, %v2095
          %v2098 = vpack.c.bf16 %v2096, %v2096
          %vm2101 = vcmask 1041408
          %vm2102 = vcmask 1045508
          %vm2103 = vmor %vm2101, %vm2102
          %v2104 = vrot.slane %v2097, 6
          %v2105 = vrot.slane %v2104, 4
          %v2106 = vrot.slane %v2098, 6
          %v2107 = vsel %vm2103, %v2105, %v2106
          %v2108 = vrot.slane %v2106, 4
          %vm2112 = vcmask 257026
          %2113 = vst.msk [vmem:[#allocation3 + $0x1c] sm:$0xc] %vm2112, %v2104
          %2114 = vst.msk [vmem:[#allocation3 + $0x20] sm:$0xf] %vm1891, %v2107
          %vm2115 = vsmask.f32 1280
          %vm2116 = vmand %vm388, %vm2115
          %v2117 = vld [vmem:[#allocation3 + $0x24] sm:$0x3]
          %v2118 = vsel %vm2116, %v2108, %v2117
          %2119 = vst [vmem:[#allocation3 + $0x24] sm:$0x3] %v2118
          %v2120 = vld [vmem:[#allocation2 + $0x140] sm:$0xff]
          %v2121 = vld [vmem:[#allocation2 + $0x148] sm:$0xff]
          %v2122 = vld [vmem:[#allocation2 + $0x150] sm:$0xff]
          %v2123 = vld [vmem:[#allocation2 + $0x158] sm:$0xff]
          %v2124 = vld [vmem:[#allocation2 + $0x160] sm:$0xff]
          %v2125 = vld [vmem:[#allocation2 + $0x168] sm:$0xff]
          %v2126 = vld [vmem:[#allocation2 + $0x170] sm:$0xff]
          %v2127 = vld [vmem:[#allocation2 + $0x178] sm:$0xff]
          %v2128 = vmax.f32 %v2120, %v2124
          %v2129 = vmax.f32 %v2121, %v2125
          %v2130 = vmax.f32 %v2122, %v2126
          %v2131 = vmax.f32 %v2123, %v2127
          %2132 = vst.msk [vmem:[#allocation2 + $0x140] sm:$0xff] %vm574, %v2128
          %2133 = vst.msk [vmem:[#allocation2 + $0x148] sm:$0xff] %vm574, %v2129
          %2134 = vst.msk [vmem:[#allocation2 + $0x150] sm:$0xff] %vm574, %v2130
          %2135 = vst.msk [vmem:[#allocation2 + $0x158] sm:$0xff] %vm574, %v2131
          %s2136 = scalar_lea.vmem [#allocation2], 320
          %v2137 = vld [vmem:[%s2136] ss:$2 sm:$0xff]
          %s2138 = scalar_lea.vmem [#allocation2], 336
          %v2139 = vld [vmem:[%s2138] ss:$2 sm:$0x7f]
          %s2140 = scalar_lea.vmem [#allocation2], 321
          %v2141 = vld [vmem:[%s2140] ss:$2 sm:$0xff]
          %s2142 = scalar_lea.vmem [#allocation2], 337
          %v2143 = vld [vmem:[%s2142] ss:$2 sm:$0x7f]
          %v2144 = vmax.f32 %v2137, %v2141
          %v2145 = vmax.f32 %v2139, %v2143
          %v2146 = vpack.c.bf16 %v2144, %v2144
          %v2147 = vpack.c.bf16 %v2145, %v2145
          %vm2148 = vsmask.f32 5392
          %vm2149 = vmor %vm2115, %vm2148
          %v2151 = vshrl.u32 %v2146, 16
          %v2153 = vrot.slane %v2151, 6
          %v2154 = vshll.u32 %v2146, 16
          %v2156 = vrot.slane %v2154, 7
          %v2157 = vor.u32 %v2153, %v2156
          %v2158 = vrot.slane %v2157, 4
          %v2160 = vshrl.u32 %v2147, 16
          %v2162 = vrot.slane %v2160, 6
          %v2163 = vshll.u32 %v2147, 16
          %v2165 = vrot.slane %v2163, 7
          %v2166 = vor.u32 %v2162, %v2165
          %v2167 = vsel %vm2149, %v2158, %v2166
          %v2168 = vrot.slane %v2166, 4
          %vm2172 = vcmask 257025
          %vm2173 = vsmask.f32 7942
          %vm2174 = vmand %vm2172, %vm2173
          %v2175 = vld [vmem:[#allocation3 + $0x24] sm:$0xe]
          %v2176 = vsel %vm2174, %v2157, %v2175
          %2177 = vst [vmem:[#allocation3 + $0x24] sm:$0xe] %v2176
          %2178 = vst.msk [vmem:[#allocation3 + $0x28] sm:$0xf] %vm1891, %v2167
          %vm2179 = vcmask 253952
          %2180 = vst.msk [vmem:[#allocation3 + $0x2c] sm:$0x1] %vm2179, %v2168
          %v2181 = vld [vmem:[#allocation2 + $0x180] sm:$0xff]
          %v2182 = vld [vmem:[#allocation2 + $0x188] sm:$0xff]
          %v2183 = vld [vmem:[#allocation2 + $0x190] sm:$0xff]
          %v2184 = vld [vmem:[#allocation2 + $0x198] sm:$0xff]
          %v2185 = vld [vmem:[#allocation2 + $0x1a0] sm:$0xff]
          %v2186 = vld [vmem:[#allocation2 + $0x1a8] sm:$0xff]
          %v2187 = vld [vmem:[#allocation2 + $0x1b0] sm:$0xff]
          %v2188 = vld [vmem:[#allocation2 + $0x1b8] sm:$0xff]
          %v2189 = vmax.f32 %v2181, %v2185
          %v2190 = vmax.f32 %v2182, %v2186
          %v2191 = vmax.f32 %v2183, %v2187
          %v2192 = vmax.f32 %v2184, %v2188
          %2193 = vst.msk [vmem:[#allocation2 + $0x180] sm:$0xff] %vm574, %v2189
          %2194 = vst.msk [vmem:[#allocation2 + $0x188] sm:$0xff] %vm574, %v2190
          %2195 = vst.msk [vmem:[#allocation2 + $0x190] sm:$0xff] %vm574, %v2191
          %2196 = vst.msk [vmem:[#allocation2 + $0x198] sm:$0xff] %vm574, %v2192
          %s2197 = scalar_lea.vmem [#allocation2], 384
          %v2198 = vld [vmem:[%s2197] ss:$2 sm:$0xff]
          %s2199 = scalar_lea.vmem [#allocation2], 400
          %v2200 = vld [vmem:[%s2199] ss:$2 sm:$0x7f]
          %s2201 = scalar_lea.vmem [#allocation2], 385
          %v2202 = vld [vmem:[%s2201] ss:$2 sm:$0xff]
          %s2203 = scalar_lea.vmem [#allocation2], 401
          %v2204 = vld [vmem:[%s2203] ss:$2 sm:$0x7f]
          %v2205 = vmax.f32 %v2198, %v2202
          %v2206 = vmax.f32 %v2200, %v2204
          %v2207 = vpack.c.bf16 %v2205, %v2205
          %v2208 = vpack.c.bf16 %v2206, %v2206
          %vm2211 = vcmask 1040384
          %vm2212 = vcmask 1044484
          %vm2213 = vmor %vm2211, %vm2212
          %v2214 = vrot.slane %v2207, 7
          %v2215 = vrot.slane %v2214, 4
          %v2216 = vrot.slane %v2208, 7
          %v2217 = vsel %vm2213, %v2215, %v2216
          %v2218 = vrot.slane %v2216, 4
          %vm2222 = vcmask 257025
          %2223 = vst.msk [vmem:[#allocation3 + $0x2c] sm:$0xe] %vm2222, %v2214
          %2224 = vst.msk [vmem:[#allocation3 + $0x30] sm:$0xf] %vm1891, %v2217
          %vm2225 = vcmask 253952
          %vm2226 = vsmask.f32 256
          %vm2227 = vmand %vm2225, %vm2226
          %v2228 = vld [vmem:[#allocation3 + $0x34] sm:$0x1]
          %v2229 = vsel %vm2227, %v2218, %v2228
          %2230 = vst [vmem:[#allocation3 + $0x34] sm:$0x1] %v2229
          %v2231 = vld [vmem:[#allocation2 + $0x1c0] sm:$0xff]
          %v2232 = vld [vmem:[#allocation2 + $0x1c8] sm:$0xff]
          %v2233 = vld [vmem:[#allocation2 + $0x1d0] sm:$0xff]
          %v2234 = vld [vmem:[#allocation2 + $0x1d8] sm:$0xff]
          %v2235 = vld [vmem:[#allocation2 + $0x1e0] sm:$0xff]
          %v2236 = vld [vmem:[#allocation2 + $0x1e8] sm:$0xff]
          %v2237 = vld [vmem:[#allocation2 + $0x1f0] sm:$0xff]
          %v2238 = vld [vmem:[#allocation2 + $0x1f8] sm:$0xff]
          %v2239 = vmax.f32 %v2231, %v2235
          %v2240 = vmax.f32 %v2232, %v2236
          %v2241 = vmax.f32 %v2233, %v2237
          %v2242 = vmax.f32 %v2234, %v2238
          %2243 = vst.msk [vmem:[#allocation2 + $0x1c0] sm:$0xff] %vm574, %v2239
          %2244 = vst.msk [vmem:[#allocation2 + $0x1c8] sm:$0xff] %vm574, %v2240
          %2245 = vst.msk [vmem:[#allocation2 + $0x1d0] sm:$0xff] %vm574, %v2241
          %2246 = vst.msk [vmem:[#allocation2 + $0x1d8] sm:$0xff] %vm574, %v2242
          %s2247 = scalar_lea.vmem [#allocation2], 448
          %v2248 = vld [vmem:[%s2247] ss:$2 sm:$0xff]
          %s2249 = scalar_lea.vmem [#allocation2], 464
          %v2250 = vld [vmem:[%s2249] ss:$2 sm:$0x7f]
          %s2251 = scalar_lea.vmem [#allocation2], 449
          %v2252 = vld [vmem:[%s2251] ss:$2 sm:$0xff]
          %s2253 = scalar_lea.vmem [#allocation2], 465
          %v2254 = vld [vmem:[%s2253] ss:$2 sm:$0x7f]
          %v2255 = vmax.f32 %v2248, %v2252
          %v2256 = vmax.f32 %v2250, %v2254
          %v2257 = vpack.c.bf16 %v2255, %v2255
          %v2258 = vpack.c.bf16 %v2256, %v2256
          %vm2259 = vsmask.f32 4368
          %vm2260 = vmor %vm2226, %vm2259
          %v2262 = vshrl.u32 %v2257, 16
          %v2264 = vrot.slane %v2262, 7
          %v2265 = vshll.u32 %v2257, 16
          %v2267 = vor.u32 %v2264, %v2265
          %v2268 = vrot.slane %v2264, 4
          %v2270 = vshrl.u32 %v2258, 16
          %v2272 = vrot.slane %v2270, 7
          %v2273 = vshll.u32 %v2258, 16
          %v2275 = vor.u32 %v2272, %v2273
          %v2276 = vsel %vm2260, %v2268, %v2275
          %vm2279 = vsmask.f32 7938
          %vm2280 = vmand %vm1893, %vm2279
          %v2281 = vld [vmem:[#allocation3 + $0x34] sm:$0xf]
          %v2282 = vsel %vm2280, %v2267, %v2281
          %2283 = vst [vmem:[#allocation3 + $0x34] sm:$0xf] %v2282
          %2284 = vst.msk [vmem:[#allocation3 + $0x38] sm:$0xf] %vm1891, %v2276
          %v2285 = vld [vmem:[#allocation2 + $0x200] sm:$0xff]
          %v2286 = vld [vmem:[#allocation2 + $0x208] sm:$0xff]
          %v2287 = vld [vmem:[#allocation2 + $0x210] sm:$0xff]
          %v2288 = vld [vmem:[#allocation2 + $0x218] sm:$0xff]
          %v2289 = vld [vmem:[#allocation2 + $0x220] sm:$0xff]
          %v2290 = vld [vmem:[#allocation2 + $0x228] sm:$0xff]
          %v2291 = vld [vmem:[#allocation2 + $0x230] sm:$0xff]
          %v2292 = vld [vmem:[#allocation2 + $0x238] sm:$0xff]
          %v2293 = vmax.f32 %v2285, %v2289
          %v2294 = vmax.f32 %v2286, %v2290
          %v2295 = vmax.f32 %v2287, %v2291
          %v2296 = vmax.f32 %v2288, %v2292
          %2297 = vst.msk [vmem:[#allocation2 + $0x200] sm:$0xff] %vm574, %v2293
          %2298 = vst.msk [vmem:[#allocation2 + $0x208] sm:$0xff] %vm574, %v2294
          %2299 = vst.msk [vmem:[#allocation2 + $0x210] sm:$0xff] %vm574, %v2295
          %2300 = vst.msk [vmem:[#allocation2 + $0x218] sm:$0xff] %vm574, %v2296
          %s2301 = scalar_lea.vmem [#allocation2], 512
          %v2302 = vld [vmem:[%s2301] ss:$2 sm:$0xff]
          %s2303 = scalar_lea.vmem [#allocation2], 528
          %v2304 = vld [vmem:[%s2303] ss:$2 sm:$0x7f]
          %s2305 = scalar_lea.vmem [#allocation2], 513
          %v2306 = vld [vmem:[%s2305] ss:$2 sm:$0xff]
          %s2307 = scalar_lea.vmem [#allocation2], 529
          %v2308 = vld [vmem:[%s2307] ss:$2 sm:$0x7f]
          %v2309 = vmax.f32 %v2302, %v2306
          %v2310 = vmax.f32 %v2304, %v2308
          %v2311 = vpack.c.bf16 %v2309, %v2309
          %v2312 = vpack.c.bf16 %v2310, %v2310
          %2313 = vst.msk [vmem:[#allocation3 + $0x3c] sm:$0xf] %vm1891, %v2311
          %v2314 = vld [vmem:[#allocation3 + $0x40] sm:$0xf]
          %v2315 = vsel %vm1895, %v2312, %v2314
          %2316 = vst [vmem:[#allocation3 + $0x40] sm:$0xf] %v2315
          %v2317 = vld [vmem:[#allocation2 + $0x240] sm:$0xff]
          %v2318 = vld [vmem:[#allocation2 + $0x248] sm:$0xff]
          %v2319 = vld [vmem:[#allocation2 + $0x250] sm:$0xff]
          %v2320 = vld [vmem:[#allocation2 + $0x258] sm:$0xff]
          %v2321 = vld [vmem:[#allocation2 + $0x260] sm:$0xff]
          %v2322 = vld [vmem:[#allocation2 + $0x268] sm:$0xff]
          %v2323 = vld [vmem:[#allocation2 + $0x270] sm:$0xff]
          %v2324 = vld [vmem:[#allocation2 + $0x278] sm:$0xff]
          %v2325 = vmax.f32 %v2317, %v2321
          %v2326 = vmax.f32 %v2318, %v2322
          %v2327 = vmax.f32 %v2319, %v2323
          %v2328 = vmax.f32 %v2320, %v2324
          %2329 = vst.msk [vmem:[#allocation2 + $0x240] sm:$0xff] %vm574, %v2325
          %2330 = vst.msk [vmem:[#allocation2 + $0x248] sm:$0xff] %vm574, %v2326
          %2331 = vst.msk [vmem:[#allocation2 + $0x250] sm:$0xff] %vm574, %v2327
          %2332 = vst.msk [vmem:[#allocation2 + $0x258] sm:$0xff] %vm574, %v2328
          %s2333 = scalar_lea.vmem [#allocation2], 576
          %v2334 = vld [vmem:[%s2333] ss:$2 sm:$0xff]
          %s2335 = scalar_lea.vmem [#allocation2], 592
          %v2336 = vld [vmem:[%s2335] ss:$2 sm:$0x7f]
          %s2337 = scalar_lea.vmem [#allocation2], 577
          %v2338 = vld [vmem:[%s2337] ss:$2 sm:$0xff]
          %s2339 = scalar_lea.vmem [#allocation2], 593
          %v2340 = vld [vmem:[%s2339] ss:$2 sm:$0x7f]
          %v2341 = vmax.f32 %v2334, %v2338
          %v2342 = vmax.f32 %v2336, %v2340
          %v2343 = vpack.c.bf16 %v2341, %v2341
          %v2344 = vpack.c.bf16 %v2342, %v2342
          %v2346 = vshll.u32 %v2343, 16
          %v2348 = vrot.slane %v2346, 5
          %v2349 = vshrl.u32 %v2343, 16
          %v2351 = vrot.slane %v2349, 4
          %v2352 = vor.u32 %v2351, %v2348
          %v2353 = vrot.slane %v2352, 4
          %v2355 = vshll.u32 %v2344, 16
          %v2357 = vrot.slane %v2355, 5
          %v2358 = vsel %vm1928, %v2353, %v2357
          %v2359 = vshrl.u32 %v2344, 16
          %v2361 = vrot.slane %v2359, 4
          %v2362 = vor.u32 %v2361, %v2357
          %v2363 = vrot.slane %v2362, 4
          %v2367 = vld [vmem:[#allocation3 + $0x40] sm:$0x8]
          %v2368 = vsel %vm1953, %v2348, %v2367
          %2369 = vst [vmem:[#allocation3 + $0x40] sm:$0x8] %v2368
          %2370 = vst.msk [vmem:[#allocation3 + $0x44] sm:$0xf] %vm1891, %v2358
          %2371 = vst.msk [vmem:[#allocation3 + $0x48] sm:$0x7] %vm1958, %v2363
          %v2372 = vld [vmem:[#allocation2 + $0x280] sm:$0xff]
          %v2373 = vld [vmem:[#allocation2 + $0x288] sm:$0xff]
          %v2374 = vld [vmem:[#allocation2 + $0x290] sm:$0xff]
          %v2375 = vld [vmem:[#allocation2 + $0x298] sm:$0xff]
          %v2376 = vld [vmem:[#allocation2 + $0x2a0] sm:$0xff]
          %v2377 = vld [vmem:[#allocation2 + $0x2a8] sm:$0xff]
          %v2378 = vld [vmem:[#allocation2 + $0x2b0] sm:$0xff]
          %v2379 = vld [vmem:[#allocation2 + $0x2b8] sm:$0xff]
          %v2380 = vmax.f32 %v2372, %v2376
          %v2381 = vmax.f32 %v2373, %v2377
          %v2382 = vmax.f32 %v2374, %v2378
          %v2383 = vmax.f32 %v2375, %v2379
          %2384 = vst.msk [vmem:[#allocation2 + $0x280] sm:$0xff] %vm574, %v2380
          %2385 = vst.msk [vmem:[#allocation2 + $0x288] sm:$0xff] %vm574, %v2381
          %2386 = vst.msk [vmem:[#allocation2 + $0x290] sm:$0xff] %vm574, %v2382
          %2387 = vst.msk [vmem:[#allocation2 + $0x298] sm:$0xff] %vm574, %v2383
          %s2388 = scalar_lea.vmem [#allocation2], 640
          %v2389 = vld [vmem:[%s2388] ss:$2 sm:$0xff]
          %s2390 = scalar_lea.vmem [#allocation2], 656
          %v2391 = vld [vmem:[%s2390] ss:$2 sm:$0x7f]
          %s2392 = scalar_lea.vmem [#allocation2], 641
          %v2393 = vld [vmem:[%s2392] ss:$2 sm:$0xff]
          %s2394 = scalar_lea.vmem [#allocation2], 657
          %v2395 = vld [vmem:[%s2394] ss:$2 sm:$0x7f]
          %v2396 = vmax.f32 %v2389, %v2393
          %v2397 = vmax.f32 %v2391, %v2395
          %v2398 = vpack.c.bf16 %v2396, %v2396
          %v2399 = vpack.c.bf16 %v2397, %v2397
          %v2402 = vrot.slane %v2398, 5
          %v2403 = vrot.slane %v2402, 4
          %v2404 = vrot.slane %v2399, 5
          %v2405 = vsel %vm1992, %v2403, %v2404
          %v2406 = vrot.slane %v2404, 4
          %2410 = vst.msk [vmem:[#allocation3 + $0x48] sm:$0x8] %vm2001, %v2402
          %2411 = vst.msk [vmem:[#allocation3 + $0x4c] sm:$0xf] %vm1891, %v2405
          %v2412 = vld [vmem:[#allocation3 + $0x50] sm:$0x7]
          %v2413 = vsel %vm2006, %v2406, %v2412
          %2414 = vst [vmem:[#allocation3 + $0x50] sm:$0x7] %v2413
          %v2415 = vld [vmem:[#allocation2 + $0x2c0] sm:$0xff]
          %v2416 = vld [vmem:[#allocation2 + $0x2c8] sm:$0xff]
          %v2417 = vld [vmem:[#allocation2 + $0x2d0] sm:$0xff]
          %v2418 = vld [vmem:[#allocation2 + $0x2d8] sm:$0xff]
          %v2419 = vld [vmem:[#allocation2 + $0x2e0] sm:$0xff]
          %v2420 = vld [vmem:[#allocation2 + $0x2e8] sm:$0xff]
          %v2421 = vld [vmem:[#allocation2 + $0x2f0] sm:$0xff]
          %v2422 = vld [vmem:[#allocation2 + $0x2f8] sm:$0xff]
          %v2423 = vmax.f32 %v2415, %v2419
          %v2424 = vmax.f32 %v2416, %v2420
          %v2425 = vmax.f32 %v2417, %v2421
          %v2426 = vmax.f32 %v2418, %v2422
          %2427 = vst.msk [vmem:[#allocation2 + $0x2c0] sm:$0xff] %vm574, %v2423
          %2428 = vst.msk [vmem:[#allocation2 + $0x2c8] sm:$0xff] %vm574, %v2424
          %2429 = vst.msk [vmem:[#allocation2 + $0x2d0] sm:$0xff] %vm574, %v2425
          %2430 = vst.msk [vmem:[#allocation2 + $0x2d8] sm:$0xff] %vm574, %v2426
          %s2431 = scalar_lea.vmem [#allocation2], 704
          %v2432 = vld [vmem:[%s2431] ss:$2 sm:$0xff]
          %s2433 = scalar_lea.vmem [#allocation2], 720
          %v2434 = vld [vmem:[%s2433] ss:$2 sm:$0x7f]
          %s2435 = scalar_lea.vmem [#allocation2], 705
          %v2436 = vld [vmem:[%s2435] ss:$2 sm:$0xff]
          %s2437 = scalar_lea.vmem [#allocation2], 721
          %v2438 = vld [vmem:[%s2437] ss:$2 sm:$0x7f]
          %v2439 = vmax.f32 %v2432, %v2436
          %v2440 = vmax.f32 %v2434, %v2438
          %v2441 = vpack.c.bf16 %v2439, %v2439
          %v2442 = vpack.c.bf16 %v2440, %v2440
          %v2444 = vshrl.u32 %v2441, 16
          %v2446 = vrot.slane %v2444, 5
          %v2447 = vshll.u32 %v2441, 16
          %v2449 = vrot.slane %v2447, 6
          %v2450 = vor.u32 %v2446, %v2449
          %v2451 = vrot.slane %v2450, 4
          %v2453 = vshrl.u32 %v2442, 16
          %v2455 = vrot.slane %v2453, 5
          %v2456 = vshll.u32 %v2442, 16
          %v2458 = vrot.slane %v2456, 6
          %v2459 = vor.u32 %v2455, %v2458
          %v2460 = vsel %vm2039, %v2451, %v2459
          %v2461 = vrot.slane %v2459, 4
          %v2465 = vld [vmem:[#allocation3 + $0x50] sm:$0xc]
          %v2466 = vsel %vm2064, %v2450, %v2465
          %2467 = vst [vmem:[#allocation3 + $0x50] sm:$0xc] %v2466
          %2468 = vst.msk [vmem:[#allocation3 + $0x54] sm:$0xf] %vm1891, %v2460
          %2469 = vst.msk [vmem:[#allocation3 + $0x58] sm:$0x3] %vm2069, %v2461
          %v2470 = vld [vmem:[#allocation2 + $0x300] sm:$0xff]
          %v2471 = vld [vmem:[#allocation2 + $0x308] sm:$0xff]
          %v2472 = vld [vmem:[#allocation2 + $0x310] sm:$0xff]
          %v2473 = vld [vmem:[#allocation2 + $0x318] sm:$0xff]
          %v2474 = vld [vmem:[#allocation2 + $0x320] sm:$0xff]
          %v2475 = vld [vmem:[#allocation2 + $0x328] sm:$0xff]
          %v2476 = vld [vmem:[#allocation2 + $0x330] sm:$0xff]
          %v2477 = vld [vmem:[#allocation2 + $0x338] sm:$0xff]
          %v2478 = vmax.f32 %v2470, %v2474
          %v2479 = vmax.f32 %v2471, %v2475
          %v2480 = vmax.f32 %v2472, %v2476
          %v2481 = vmax.f32 %v2473, %v2477
          %2482 = vst.msk [vmem:[#allocation2 + $0x300] sm:$0xff] %vm574, %v2478
          %2483 = vst.msk [vmem:[#allocation2 + $0x308] sm:$0xff] %vm574, %v2479
          %2484 = vst.msk [vmem:[#allocation2 + $0x310] sm:$0xff] %vm574, %v2480
          %2485 = vst.msk [vmem:[#allocation2 + $0x318] sm:$0xff] %vm574, %v2481
          %s2486 = scalar_lea.vmem [#allocation2], 768
          %v2487 = vld [vmem:[%s2486] ss:$2 sm:$0xff]
          %s2488 = scalar_lea.vmem [#allocation2], 784
          %v2489 = vld [vmem:[%s2488] ss:$2 sm:$0x7f]
          %s2490 = scalar_lea.vmem [#allocation2], 769
          %v2491 = vld [vmem:[%s2490] ss:$2 sm:$0xff]
          %s2492 = scalar_lea.vmem [#allocation2], 785
          %v2493 = vld [vmem:[%s2492] ss:$2 sm:$0x7f]
          %v2494 = vmax.f32 %v2487, %v2491
          %v2495 = vmax.f32 %v2489, %v2493
          %v2496 = vpack.c.bf16 %v2494, %v2494
          %v2497 = vpack.c.bf16 %v2495, %v2495
          %v2500 = vrot.slane %v2496, 6
          %v2501 = vrot.slane %v2500, 4
          %v2502 = vrot.slane %v2497, 6
          %v2503 = vsel %vm2103, %v2501, %v2502
          %v2504 = vrot.slane %v2502, 4
          %2508 = vst.msk [vmem:[#allocation3 + $0x58] sm:$0xc] %vm2112, %v2500
          %2509 = vst.msk [vmem:[#allocation3 + $0x5c] sm:$0xf] %vm1891, %v2503
          %v2510 = vld [vmem:[#allocation3 + $0x60] sm:$0x3]
          %v2511 = vsel %vm2116, %v2504, %v2510
          %2512 = vst [vmem:[#allocation3 + $0x60] sm:$0x3] %v2511
          %v2513 = vld [vmem:[#allocation2 + $0x340] sm:$0xff]
          %v2514 = vld [vmem:[#allocation2 + $0x348] sm:$0xff]
          %v2515 = vld [vmem:[#allocation2 + $0x350] sm:$0xff]
          %v2516 = vld [vmem:[#allocation2 + $0x358] sm:$0xff]
          %v2517 = vld [vmem:[#allocation2 + $0x360] sm:$0xff]
          %v2518 = vld [vmem:[#allocation2 + $0x368] sm:$0xff]
          %v2519 = vld [vmem:[#allocation2 + $0x370] sm:$0xff]
          %v2520 = vld [vmem:[#allocation2 + $0x378] sm:$0xff]
          %v2521 = vmax.f32 %v2513, %v2517
          %v2522 = vmax.f32 %v2514, %v2518
          %v2523 = vmax.f32 %v2515, %v2519
          %v2524 = vmax.f32 %v2516, %v2520
          %2525 = vst.msk [vmem:[#allocation2 + $0x340] sm:$0xff] %vm574, %v2521
          %2526 = vst.msk [vmem:[#allocation2 + $0x348] sm:$0xff] %vm574, %v2522
          %2527 = vst.msk [vmem:[#allocation2 + $0x350] sm:$0xff] %vm574, %v2523
          %2528 = vst.msk [vmem:[#allocation2 + $0x358] sm:$0xff] %vm574, %v2524
          %s2529 = scalar_lea.vmem [#allocation2], 832
          %v2530 = vld [vmem:[%s2529] ss:$2 sm:$0xff]
          %s2531 = scalar_lea.vmem [#allocation2], 848
          %v2532 = vld [vmem:[%s2531] ss:$2 sm:$0x7f]
          %s2533 = scalar_lea.vmem [#allocation2], 833
          %v2534 = vld [vmem:[%s2533] ss:$2 sm:$0xff]
          %s2535 = scalar_lea.vmem [#allocation2], 849
          %v2536 = vld [vmem:[%s2535] ss:$2 sm:$0x7f]
          %v2537 = vmax.f32 %v2530, %v2534
          %v2538 = vmax.f32 %v2532, %v2536
          %v2539 = vpack.c.bf16 %v2537, %v2537
          %v2540 = vpack.c.bf16 %v2538, %v2538
          %v2542 = vshrl.u32 %v2539, 16
          %v2544 = vrot.slane %v2542, 6
          %v2545 = vshll.u32 %v2539, 16
          %v2547 = vrot.slane %v2545, 7
          %v2548 = vor.u32 %v2544, %v2547
          %v2549 = vrot.slane %v2548, 4
          %v2551 = vshrl.u32 %v2540, 16
          %v2553 = vrot.slane %v2551, 6
          %v2554 = vshll.u32 %v2540, 16
          %v2556 = vrot.slane %v2554, 7
          %v2557 = vor.u32 %v2553, %v2556
          %v2558 = vsel %vm2149, %v2549, %v2557
          %v2559 = vrot.slane %v2557, 4
          %v2563 = vld [vmem:[#allocation3 + $0x60] sm:$0xe]
          %v2564 = vsel %vm2174, %v2548, %v2563
          %2565 = vst [vmem:[#allocation3 + $0x60] sm:$0xe] %v2564
          %2566 = vst.msk [vmem:[#allocation3 + $0x64] sm:$0xf] %vm1891, %v2558
          %2567 = vst.msk [vmem:[#allocation3 + $0x68] sm:$0x1] %vm2179, %v2559
          %v2568 = vld [vmem:[#allocation2 + $0x380] sm:$0xff]
          %v2569 = vld [vmem:[#allocation2 + $0x388] sm:$0xff]
          %v2570 = vld [vmem:[#allocation2 + $0x390] sm:$0xff]
          %v2571 = vld [vmem:[#allocation2 + $0x398] sm:$0xff]
          %v2572 = vld [vmem:[#allocation2 + $0x3a0] sm:$0xff]
          %v2573 = vld [vmem:[#allocation2 + $0x3a8] sm:$0xff]
          %v2574 = vld [vmem:[#allocation2 + $0x3b0] sm:$0xff]
          %v2575 = vld [vmem:[#allocation2 + $0x3b8] sm:$0xff]
          %v2576 = vmax.f32 %v2568, %v2572
          %v2577 = vmax.f32 %v2569, %v2573
          %v2578 = vmax.f32 %v2570, %v2574
          %v2579 = vmax.f32 %v2571, %v2575
          %2580 = vst.msk [vmem:[#allocation2 + $0x380] sm:$0xff] %vm574, %v2576
          %2581 = vst.msk [vmem:[#allocation2 + $0x388] sm:$0xff] %vm574, %v2577
          %2582 = vst.msk [vmem:[#allocation2 + $0x390] sm:$0xff] %vm574, %v2578
          %2583 = vst.msk [vmem:[#allocation2 + $0x398] sm:$0xff] %vm574, %v2579
          %s2584 = scalar_lea.vmem [#allocation2], 896
          %v2585 = vld [vmem:[%s2584] ss:$2 sm:$0xff]
          %s2586 = scalar_lea.vmem [#allocation2], 912
          %v2587 = vld [vmem:[%s2586] ss:$2 sm:$0x7f]
          %s2588 = scalar_lea.vmem [#allocation2], 897
          %v2589 = vld [vmem:[%s2588] ss:$2 sm:$0xff]
          %s2590 = scalar_lea.vmem [#allocation2], 913
          %v2591 = vld [vmem:[%s2590] ss:$2 sm:$0x7f]
          %v2592 = vmax.f32 %v2585, %v2589
          %v2593 = vmax.f32 %v2587, %v2591
          %v2594 = vpack.c.bf16 %v2592, %v2592
          %v2595 = vpack.c.bf16 %v2593, %v2593
          %v2598 = vrot.slane %v2594, 7
          %v2599 = vrot.slane %v2598, 4
          %v2600 = vrot.slane %v2595, 7
          %v2601 = vsel %vm2213, %v2599, %v2600
          %v2602 = vrot.slane %v2600, 4
          %2606 = vst.msk [vmem:[#allocation3 + $0x68] sm:$0xe] %vm2222, %v2598
          %2607 = vst.msk [vmem:[#allocation3 + $0x6c] sm:$0xf] %vm1891, %v2601
          %v2608 = vld [vmem:[#allocation3 + $0x70] sm:$0x1]
          %v2609 = vsel %vm2227, %v2602, %v2608
          %2610 = vst [vmem:[#allocation3 + $0x70] sm:$0x1] %v2609
          %v2611 = vld [vmem:[#allocation3] sm:$0xf]
          %v2612 = vld [vmem:[#allocation3 + $0x4] sm:$0xf]
          %v2613 = vld [vmem:[#allocation3 + $0x8] sm:$0xf]
          %v2614 = vld [vmem:[#allocation3 + $0xc] sm:$0xf]
          %v2615 = vld [vmem:[#allocation3 + $0x10] sm:$0xf]
          %v2616 = vld [vmem:[#allocation3 + $0x14] sm:$0xf]
          %v2617 = vld [vmem:[#allocation3 + $0x18] sm:$0xf]
          %v2618 = vld [vmem:[#allocation3 + $0x1c] sm:$0xf]
          %v2619 = vld [vmem:[#allocation3 + $0x20] sm:$0xf]
          %v2620 = vld [vmem:[#allocation3 + $0x24] sm:$0xf]
          %v2621 = vld [vmem:[#allocation3 + $0x28] sm:$0xf]
          %v2622 = vld [vmem:[#allocation3 + $0x2c] sm:$0xf]
          %v2623 = vld [vmem:[%s3] sm:$0xf]
          %v2624 = vld [vmem:[%s3 + $0x4] sm:$0xf]
          %v2625 = vld [vmem:[%s3 + $0x8] sm:$0xf]
          %v2626 = vld [vmem:[%s3 + $0xc] sm:$0xf]
          %v2627 = vld [vmem:[#allocation3 + $0x30] sm:$0x1]
          %v2628 = vld [vmem:[%s3 + $0x10] sm:$0xf]
          %v2629 = vld [vmem:[%s3 + $0x14] sm:$0xf]
          %v2630 = vld [vmem:[%s3 + $0x18] sm:$0xf]
          %v2631 = vld [vmem:[%s3 + $0x1c] sm:$0xf]
          %v2645 = vunpack.c.l.b16 %v2611
          %v2646 = vunpack.c.l.b16 %v2612
          %v2647 = vunpack.c.l.b16 %v2613
          %v2648 = vunpack.c.l.b16 %v2614
          %v2649 = vunpack.c.l.b16 %v2615
          %v2650 = vunpack.c.l.b16 %v2616
          %v2651 = vunpack.c.l.b16 %v2617
          %v2652 = vunpack.c.l.b16 %v2618
          %v2653 = vunpack.c.l.b16 %v2619
          %v2654 = vunpack.c.l.b16 %v2620
          %v2655 = vunpack.c.l.b16 %v2621
          %v2656 = vunpack.c.l.b16 %v2622
          %v2657 = vunpack.c.l.b16 %v2627
          %v2658 = vpack.c.b16 %v2646, %v2645
          %v2659 = vpack.c.b16 %v2648, %v2647
          %v2660 = vpack.c.b16 %v2650, %v2649
          %v2661 = vpack.c.b16 %v2652, %v2651
          %v2662 = vpack.c.b16 %v2654, %v2653
          %v2663 = vpack.c.b16 %v2656, %v2655
          %v2664 = vpack.c.b16 %v2657, %v2657
          %vm2665 = vsmask.f32 7424
          %v2667 = vshrl.u32 %v2658, 16
          %v2669 = vshll.u32 %v2658, 16
          %v2671 = vrot.slane %v2669, 1
          %v2672 = vor.u32 %v2667, %v2671
          %v2674 = vshll.u32 %v2659, 16
          %v2676 = vrot.slane %v2674, 1
          %v2677 = vsel %vm2665, %v2672, %v2676
          %v2678 = vshrl.u32 %v2659, 16
          %v2680 = vor.u32 %v2678, %v2676
          %v2682 = vshll.u32 %v2660, 16
          %v2684 = vrot.slane %v2682, 1
          %v2685 = vsel %vm2665, %v2680, %v2684
          %v2686 = vshrl.u32 %v2660, 16
          %v2688 = vor.u32 %v2686, %v2684
          %v2690 = vshll.u32 %v2661, 16
          %v2692 = vrot.slane %v2690, 1
          %v2693 = vsel %vm2665, %v2688, %v2692
          %v2694 = vshrl.u32 %v2661, 16
          %v2696 = vor.u32 %v2694, %v2692
          %v2698 = vshll.u32 %v2662, 16
          %v2700 = vrot.slane %v2698, 1
          %v2701 = vsel %vm2665, %v2696, %v2700
          %v2702 = vshrl.u32 %v2662, 16
          %v2704 = vor.u32 %v2702, %v2700
          %v2706 = vshll.u32 %v2663, 16
          %v2708 = vrot.slane %v2706, 1
          %v2709 = vsel %vm2665, %v2704, %v2708
          %v2710 = vshrl.u32 %v2663, 16
          %v2712 = vor.u32 %v2710, %v2708
          %v2714 = vshll.u32 %v2664, 16
          %v2716 = vrot.slane %v2714, 1
          %v2717 = vsel %vm2665, %v2712, %v2716
          %v2722 = vunpack.c.l.b16 %v2628
          %v2723 = vunpack.c.l.b16 %v2629
          %v2724 = vunpack.c.l.b16 %v2630
          %v2725 = vunpack.c.l.b16 %v2631
          %v2726 = vpack.c.b16 %v2723, %v2722
          %v2727 = vpack.c.b16 %v2725, %v2724
          %v2731 = vsel %vm574, %v2677, 0
          %v2734 = vsel %vm574, %v2685, 0
          %v2737 = vsel %vm574, %v2693, 0
          %v2740 = vsel %vm574, %v2701, 0
          %v2743 = vsel %vm574, %v2709, 0
          %v2746 = vsel %vm574, %v2717, 0
          %2748 = vmatpush.bf16.msra.mxu0 0
          %2749 = vmatpush.bf16.msra.mxu0 0
          %2750 = vmatpush.bf16.msra.mxu0 0
          %2751 = vmatpush.bf16.msra.mxu0 0
          %2752 = vmatpush.bf16.msra.mxu0 0
          %2753 = vmatpush.bf16.msra.mxu0 0
          %2754 = vmatpush.bf16.msra.mxu0 %v2727
          %2755 = vmatpush.bf16.msra.mxu0 %v2726
          %2756 = vmatmul.bf16.gmra.mxu0 %v2731
          %v2757 = vpop.f32.mrf.mxu0
          %v2758 = vadd.f32 0.0, %v2757
          %v2759 = vpop.f32.mrf.mxu0
          %v2760 = vadd.f32 0.0, %v2759
          %2761 = vmatmul.bf16.gmra.mxu0 %v2734
          %v2762 = vpop.f32.mrf.mxu0
          %v2763 = vadd.f32 0.0, %v2762
          %v2764 = vpop.f32.mrf.mxu0
          %v2765 = vadd.f32 0.0, %v2764
          %2766 = vmatmul.bf16.gmra.mxu0 %v2737
          %v2767 = vpop.f32.mrf.mxu0
          %v2768 = vadd.f32 0.0, %v2767
          %v2769 = vpop.f32.mrf.mxu0
          %v2770 = vadd.f32 0.0, %v2769
          %2771 = vmatmul.bf16.gmra.mxu0 %v2740
          %v2772 = vpop.f32.mrf.mxu0
          %v2773 = vadd.f32 0.0, %v2772
          %v2774 = vpop.f32.mrf.mxu0
          %v2775 = vadd.f32 0.0, %v2774
          %2776 = vmatmul.bf16.gmra.mxu0 %v2743
          %v2777 = vpop.f32.mrf.mxu0
          %v2778 = vadd.f32 0.0, %v2777
          %v2779 = vpop.f32.mrf.mxu0
          %v2780 = vadd.f32 0.0, %v2779
          %2781 = vmatmul.bf16.gmra.mxu0 %v2746
          %v2782 = vpop.f32.mrf.mxu0
          %v2783 = vadd.f32 0.0, %v2782
          %v2784 = vpop.f32.mrf.mxu0
          %v2785 = vadd.f32 0.0, %v2784
          %2786 = vdwg.mxu0
          %v2791 = vunpack.c.l.b16 %v2623
          %v2792 = vunpack.c.l.b16 %v2624
          %v2793 = vunpack.c.l.b16 %v2625
          %v2794 = vunpack.c.l.b16 %v2626
          %v2795 = vpack.c.b16 %v2792, %v2791
          %v2796 = vpack.c.b16 %v2794, %v2793
          %v2799 = vsel %vm574, %v2658, 0
          %v2801 = vsel %vm574, %v2659, 0
          %v2803 = vsel %vm574, %v2660, 0
          %v2805 = vsel %vm574, %v2661, 0
          %v2807 = vsel %vm574, %v2662, 0
          %v2809 = vsel %vm574, %v2663, 0
          %2811 = vmatpush.bf16.msra.mxu0 0
          %2812 = vmatpush.bf16.msra.mxu0 0
          %2813 = vmatpush.bf16.msra.mxu0 0
          %2814 = vmatpush.bf16.msra.mxu0 0
          %2815 = vmatpush.bf16.msra.mxu0 0
          %2816 = vmatpush.bf16.msra.mxu0 0
          %2817 = vmatpush.bf16.msra.mxu0 %v2796
          %2818 = vmatpush.bf16.msra.mxu0 %v2795
          %2819 = vmatmul.bf16.gmra.mxu0 %v2799
          %v2820 = vpop.f32.mrf.mxu0
          %v2821 = vadd.f32 %v2758, %v2820
          %v2822 = vpop.f32.mrf.mxu0
          %v2823 = vadd.f32 %v2760, %v2822
          %2824 = vmatmul.bf16.gmra.mxu0 %v2801
          %v2825 = vpop.f32.mrf.mxu0
          %v2826 = vadd.f32 %v2763, %v2825
          %v2827 = vpop.f32.mrf.mxu0
          %v2828 = vadd.f32 %v2765, %v2827
          %2829 = vmatmul.bf16.gmra.mxu0 %v2803
          %v2830 = vpop.f32.mrf.mxu0
          %v2831 = vadd.f32 %v2768, %v2830
          %v2832 = vpop.f32.mrf.mxu0
          %v2833 = vadd.f32 %v2770, %v2832
          %2834 = vmatmul.bf16.gmra.mxu0 %v2805
          %v2835 = vpop.f32.mrf.mxu0
          %v2836 = vadd.f32 %v2773, %v2835
          %v2837 = vpop.f32.mrf.mxu0
          %v2838 = vadd.f32 %v2775, %v2837
          %2839 = vmatmul.bf16.gmra.mxu0 %v2807
          %v2840 = vpop.f32.mrf.mxu0
          %v2841 = vadd.f32 %v2778, %v2840
          %v2842 = vpop.f32.mrf.mxu0
          %v2843 = vadd.f32 %v2780, %v2842
          %2844 = vmatmul.bf16.gmra.mxu0 %v2809
          %v2845 = vpop.f32.mrf.mxu0
          %v2846 = vadd.f32 %v2783, %v2845
          %v2847 = vpop.f32.mrf.mxu0
          %v2848 = vadd.f32 %v2785, %v2847
          %2849 = vdwg.mxu0
          %v2850 = vld [vmem:[#allocation3] sm:$0xe]
          %v2851 = vld [vmem:[%s3 + $0x20] sm:$0xf]
          %v2852 = vld [vmem:[%s3 + $0x24] sm:$0xf]
          %v2853 = vld [vmem:[%s3 + $0x28] sm:$0xf]
          %v2854 = vld [vmem:[%s3 + $0x2c] sm:$0xf]
          %v2856 = vunpack.c.l.b16 %v2850
          %v2857 = vpack.c.b16 %v2646, %v2856
          %vm2858 = vcmask 1046528
          %v2859 = vrot.slane %v2857, 1
          %v2860 = vrot.slane %v2659, 1
          %v2861 = vsel %vm2858, %v2859, %v2860
          %v2862 = vrot.slane %v2660, 1
          %v2863 = vsel %vm2858, %v2860, %v2862
          %v2864 = vrot.slane %v2661, 1
          %v2865 = vsel %vm2858, %v2862, %v2864
          %v2866 = vrot.slane %v2662, 1
          %v2867 = vsel %vm2858, %v2864, %v2866
          %v2868 = vrot.slane %v2663, 1
          %v2869 = vsel %vm2858, %v2866, %v2868
          %v2870 = vrot.slane %v2664, 1
          %v2871 = vsel %vm2858, %v2868, %v2870
          %v2876 = vunpack.c.l.b16 %v2851
          %v2877 = vunpack.c.l.b16 %v2852
          %v2878 = vunpack.c.l.b16 %v2853
          %v2879 = vunpack.c.l.b16 %v2854
          %v2880 = vpack.c.b16 %v2877, %v2876
          %v2881 = vpack.c.b16 %v2879, %v2878
          %v2885 = vsel %vm574, %v2861, 0
          %v2888 = vsel %vm574, %v2863, 0
          %v2891 = vsel %vm574, %v2865, 0
          %v2894 = vsel %vm574, %v2867, 0
          %v2897 = vsel %vm574, %v2869, 0
          %v2900 = vsel %vm574, %v2871, 0
          %2902 = vmatpush.bf16.msra.mxu0 0
          %2903 = vmatpush.bf16.msra.mxu0 0
          %2904 = vmatpush.bf16.msra.mxu0 0
          %2905 = vmatpush.bf16.msra.mxu0 0
          %2906 = vmatpush.bf16.msra.mxu0 0
          %2907 = vmatpush.bf16.msra.mxu0 0
          %2908 = vmatpush.bf16.msra.mxu0 %v2881
          %2909 = vmatpush.bf16.msra.mxu0 %v2880
          %2910 = vmatmul.bf16.gmra.mxu0 %v2885
          %v2911 = vpop.f32.mrf.mxu0
          %v2912 = vadd.f32 0.0, %v2911
          %v2913 = vpop.f32.mrf.mxu0
          %v2914 = vadd.f32 0.0, %v2913
          %2915 = vmatmul.bf16.gmra.mxu0 %v2888
          %v2916 = vpop.f32.mrf.mxu0
          %v2917 = vadd.f32 0.0, %v2916
          %v2918 = vpop.f32.mrf.mxu0
          %v2919 = vadd.f32 0.0, %v2918
          %2920 = vmatmul.bf16.gmra.mxu0 %v2891
          %v2921 = vpop.f32.mrf.mxu0
          %v2922 = vadd.f32 0.0, %v2921
          %v2923 = vpop.f32.mrf.mxu0
          %v2924 = vadd.f32 0.0, %v2923
          %2925 = vmatmul.bf16.gmra.mxu0 %v2894
          %v2926 = vpop.f32.mrf.mxu0
          %v2927 = vadd.f32 0.0, %v2926
          %v2928 = vpop.f32.mrf.mxu0
          %v2929 = vadd.f32 0.0, %v2928
          %2930 = vmatmul.bf16.gmra.mxu0 %v2897
          %v2931 = vpop.f32.mrf.mxu0
          %v2932 = vadd.f32 0.0, %v2931
          %v2933 = vpop.f32.mrf.mxu0
          %v2934 = vadd.f32 0.0, %v2933
          %2935 = vmatmul.bf16.gmra.mxu0 %v2900
          %v2936 = vpop.f32.mrf.mxu0
          %v2937 = vadd.f32 0.0, %v2936
          %v2938 = vpop.f32.mrf.mxu0
          %v2939 = vadd.f32 0.0, %v2938
          %2940 = vdwg.mxu0
          %v2941 = vadd.f32 %v2821, %v2912
          %v2942 = vadd.f32 %v2823, %v2914
          %v2943 = vadd.f32 %v2826, %v2917
          %v2944 = vadd.f32 %v2828, %v2919
          %v2945 = vadd.f32 %v2831, %v2922
          %v2946 = vadd.f32 %v2833, %v2924
          %v2947 = vadd.f32 %v2836, %v2927
          %v2948 = vadd.f32 %v2838, %v2929
          %v2949 = vadd.f32 %v2841, %v2932
          %v2950 = vadd.f32 %v2843, %v2934
          %v2951 = vadd.f32 %v2846, %v2937
          %v2952 = vadd.f32 %v2848, %v2939
          %v2953 = vld [vmem:[#allocation3 + $0x4] sm:$0x8]
          %v2954 = vld [vmem:[#allocation3 + $0x8] sm:$0xf]
          %v2955 = vld [vmem:[#allocation3 + $0xc] sm:$0xf]
          %v2956 = vld [vmem:[#allocation3 + $0x10] sm:$0xf]
          %v2957 = vld [vmem:[#allocation3 + $0x14] sm:$0xf]
          %v2958 = vld [vmem:[#allocation3 + $0x18] sm:$0xf]
          %v2959 = vld [vmem:[#allocation3 + $0x1c] sm:$0xf]
          %v2960 = vld [vmem:[#allocation3 + $0x20] sm:$0xf]
          %v2961 = vld [vmem:[#allocation3 + $0x24] sm:$0xf]
          %v2962 = vld [vmem:[#allocation3 + $0x28] sm:$0xf]
          %v2963 = vld [vmem:[#allocation3 + $0x2c] sm:$0xf]
          %v2964 = vld [vmem:[#allocation3 + $0x30] sm:$0xf]
          %v2965 = vld [vmem:[#allocation3 + $0x34] sm:$0xf]
          %v2966 = vld [vmem:[%s3 + $0x30] sm:$0xf]
          %v2967 = vld [vmem:[%s3 + $0x34] sm:$0xf]
          %v2968 = vld [vmem:[%s3 + $0x38] sm:$0xf]
          %v2969 = vld [vmem:[%s3 + $0x3c] sm:$0xf]
          %v2983 = vunpack.c.l.b16 %v2953
          %v2984 = vunpack.c.l.b16 %v2954
          %v2985 = vunpack.c.l.b16 %v2955
          %v2986 = vunpack.c.l.b16 %v2956
          %v2987 = vunpack.c.l.b16 %v2957
          %v2988 = vunpack.c.l.b16 %v2958
          %v2989 = vunpack.c.l.b16 %v2959
          %v2990 = vunpack.c.l.b16 %v2960
          %v2991 = vunpack.c.l.b16 %v2961
          %v2992 = vunpack.c.l.b16 %v2962
          %v2993 = vunpack.c.l.b16 %v2963
          %v2994 = vunpack.c.l.b16 %v2964
          %v2995 = vunpack.c.l.b16 %v2965
          %v2996 = vpack.c.b16 %v2984, %v2983
          %v2997 = vpack.c.b16 %v2986, %v2985
          %v2998 = vpack.c.b16 %v2988, %v2987
          %v2999 = vpack.c.b16 %v2990, %v2989
          %v3000 = vpack.c.b16 %v2992, %v2991
          %v3001 = vpack.c.b16 %v2994, %v2993
          %v3002 = vpack.c.b16 %v2995, %v2995
          %vm3003 = vsmask.f32 4352
          %v3005 = vshrl.u32 %v2996, 16
          %v3007 = vrot.slane %v3005, 3
          %v3008 = vshll.u32 %v2996, 16
          %v3010 = vrot.slane %v3008, 4
          %v3011 = vor.u32 %v3007, %v3010
          %v3013 = vshrl.u32 %v2997, 16
          %v3015 = vrot.slane %v3013, 3
          %v3016 = vshll.u32 %v2997, 16
          %v3018 = vrot.slane %v3016, 4
          %v3019 = vor.u32 %v3015, %v3018
          %v3020 = vsel %vm3003, %v3011, %v3019
          %v3022 = vshrl.u32 %v2998, 16
          %v3024 = vrot.slane %v3022, 3
          %v3025 = vshll.u32 %v2998, 16
          %v3027 = vrot.slane %v3025, 4
          %v3028 = vor.u32 %v3024, %v3027
          %v3029 = vsel %vm3003, %v3019, %v3028
          %v3031 = vshrl.u32 %v2999, 16
          %v3033 = vrot.slane %v3031, 3
          %v3034 = vshll.u32 %v2999, 16
          %v3036 = vrot.slane %v3034, 4
          %v3037 = vor.u32 %v3033, %v3036
          %v3038 = vsel %vm3003, %v3028, %v3037
          %v3040 = vshrl.u32 %v3000, 16
          %v3042 = vrot.slane %v3040, 3
          %v3043 = vshll.u32 %v3000, 16
          %v3045 = vrot.slane %v3043, 4
          %v3046 = vor.u32 %v3042, %v3045
          %v3047 = vsel %vm3003, %v3037, %v3046
          %v3049 = vshrl.u32 %v3001, 16
          %v3051 = vrot.slane %v3049, 3
          %v3052 = vshll.u32 %v3001, 16
          %v3054 = vrot.slane %v3052, 4
          %v3055 = vor.u32 %v3051, %v3054
          %v3056 = vsel %vm3003, %v3046, %v3055
          %v3058 = vshrl.u32 %v3002, 16
          %v3060 = vrot.slane %v3058, 3
          %v3061 = vshll.u32 %v3002, 16
          %v3063 = vrot.slane %v3061, 4
          %v3064 = vor.u32 %v3060, %v3063
          %v3065 = vsel %vm3003, %v3055, %v3064
          %v3070 = vunpack.c.l.b16 %v2966
          %v3071 = vunpack.c.l.b16 %v2967
          %v3072 = vunpack.c.l.b16 %v2968
          %v3073 = vunpack.c.l.b16 %v2969
          %v3074 = vpack.c.b16 %v3071, %v3070
          %v3075 = vpack.c.b16 %v3073, %v3072
          %v3079 = vsel %vm574, %v3020, 0
          %v3082 = vsel %vm574, %v3029, 0
          %v3085 = vsel %vm574, %v3038, 0
          %v3088 = vsel %vm574, %v3047, 0
          %v3091 = vsel %vm574, %v3056, 0
          %v3094 = vsel %vm574, %v3065, 0
          %3096 = vmatpush.bf16.msra.mxu0 0
          %3097 = vmatpush.bf16.msra.mxu0 0
          %3098 = vmatpush.bf16.msra.mxu0 0
          %3099 = vmatpush.bf16.msra.mxu0 0
          %3100 = vmatpush.bf16.msra.mxu0 0
          %3101 = vmatpush.bf16.msra.mxu0 0
          %3102 = vmatpush.bf16.msra.mxu0 %v3075
          %3103 = vmatpush.bf16.msra.mxu0 %v3074
          %3104 = vmatmul.bf16.gmra.mxu0 %v3079
          %v3105 = vpop.f32.mrf.mxu0
          %v3106 = vadd.f32 0.0, %v3105
          %v3107 = vpop.f32.mrf.mxu0
          %v3108 = vadd.f32 0.0, %v3107
          %3109 = vmatmul.bf16.gmra.mxu0 %v3082
          %v3110 = vpop.f32.mrf.mxu0
          %v3111 = vadd.f32 0.0, %v3110
          %v3112 = vpop.f32.mrf.mxu0
          %v3113 = vadd.f32 0.0, %v3112
          %3114 = vmatmul.bf16.gmra.mxu0 %v3085
          %v3115 = vpop.f32.mrf.mxu0
          %v3116 = vadd.f32 0.0, %v3115
          %v3117 = vpop.f32.mrf.mxu0
          %v3118 = vadd.f32 0.0, %v3117
          %3119 = vmatmul.bf16.gmra.mxu0 %v3088
          %v3120 = vpop.f32.mrf.mxu0
          %v3121 = vadd.f32 0.0, %v3120
          %v3122 = vpop.f32.mrf.mxu0
          %v3123 = vadd.f32 0.0, %v3122
          %3124 = vmatmul.bf16.gmra.mxu0 %v3091
          %v3125 = vpop.f32.mrf.mxu0
          %v3126 = vadd.f32 0.0, %v3125
          %v3127 = vpop.f32.mrf.mxu0
          %v3128 = vadd.f32 0.0, %v3127
          %3129 = vmatmul.bf16.gmra.mxu0 %v3094
          %v3130 = vpop.f32.mrf.mxu0
          %v3131 = vadd.f32 0.0, %v3130
          %v3132 = vpop.f32.mrf.mxu0
          %v3133 = vadd.f32 0.0, %v3132
          %3134 = vdwg.mxu0
          %v3135 = vadd.f32 %v2941, %v3106
          %v3136 = vadd.f32 %v2942, %v3108
          %v3137 = vadd.f32 %v2943, %v3111
          %v3138 = vadd.f32 %v2944, %v3113
          %v3139 = vadd.f32 %v2945, %v3116
          %v3140 = vadd.f32 %v2946, %v3118
          %v3141 = vadd.f32 %v2947, %v3121
          %v3142 = vadd.f32 %v2948, %v3123
          %v3143 = vadd.f32 %v2949, %v3126
          %v3144 = vadd.f32 %v2950, %v3128
          %v3145 = vadd.f32 %v2951, %v3131
          %v3146 = vadd.f32 %v2952, %v3133
          %v3147 = vld [vmem:[%s3 + $0x40] sm:$0xf]
          %v3148 = vld [vmem:[%s3 + $0x44] sm:$0xf]
          %v3149 = vld [vmem:[%s3 + $0x48] sm:$0xf]
          %v3150 = vld [vmem:[%s3 + $0x4c] sm:$0xf]
          %v3151 = vpack.c.b16 %v2985, %v2984
          %v3152 = vpack.c.b16 %v2987, %v2986
          %v3153 = vpack.c.b16 %v2989, %v2988
          %v3154 = vpack.c.b16 %v2991, %v2990
          %v3155 = vpack.c.b16 %v2993, %v2992
          %v3156 = vpack.c.b16 %v2995, %v2994
          %v3161 = vunpack.c.l.b16 %v3147
          %v3162 = vunpack.c.l.b16 %v3148
          %v3163 = vunpack.c.l.b16 %v3149
          %v3164 = vunpack.c.l.b16 %v3150
          %v3165 = vpack.c.b16 %v3162, %v3161
          %v3166 = vpack.c.b16 %v3164, %v3163
          %v3170 = vsel %vm574, %v3151, 0
          %v3173 = vsel %vm574, %v3152, 0
          %v3176 = vsel %vm574, %v3153, 0
          %v3179 = vsel %vm574, %v3154, 0
          %v3182 = vsel %vm574, %v3155, 0
          %v3185 = vsel %vm574, %v3156, 0
          %3187 = vmatpush.bf16.msra.mxu0 0
          %3188 = vmatpush.bf16.msra.mxu0 0
          %3189 = vmatpush.bf16.msra.mxu0 0
          %3190 = vmatpush.bf16.msra.mxu0 0
          %3191 = vmatpush.bf16.msra.mxu0 0
          %3192 = vmatpush.bf16.msra.mxu0 0
          %3193 = vmatpush.bf16.msra.mxu0 %v3166
          %3194 = vmatpush.bf16.msra.mxu0 %v3165
          %3195 = vmatmul.bf16.gmra.mxu0 %v3170
          %v3196 = vpop.f32.mrf.mxu0
          %v3197 = vadd.f32 0.0, %v3196
          %v3198 = vpop.f32.mrf.mxu0
          %v3199 = vadd.f32 0.0, %v3198
          %3200 = vmatmul.bf16.gmra.mxu0 %v3173
          %v3201 = vpop.f32.mrf.mxu0
          %v3202 = vadd.f32 0.0, %v3201
          %v3203 = vpop.f32.mrf.mxu0
          %v3204 = vadd.f32 0.0, %v3203
          %3205 = vmatmul.bf16.gmra.mxu0 %v3176
          %v3206 = vpop.f32.mrf.mxu0
          %v3207 = vadd.f32 0.0, %v3206
          %v3208 = vpop.f32.mrf.mxu0
          %v3209 = vadd.f32 0.0, %v3208
          %3210 = vmatmul.bf16.gmra.mxu0 %v3179
          %v3211 = vpop.f32.mrf.mxu0
          %v3212 = vadd.f32 0.0, %v3211
          %v3213 = vpop.f32.mrf.mxu0
          %v3214 = vadd.f32 0.0, %v3213
          %3215 = vmatmul.bf16.gmra.mxu0 %v3182
          %v3216 = vpop.f32.mrf.mxu0
          %v3217 = vadd.f32 0.0, %v3216
          %v3218 = vpop.f32.mrf.mxu0
          %v3219 = vadd.f32 0.0, %v3218
          %3220 = vmatmul.bf16.gmra.mxu0 %v3185
          %v3221 = vpop.f32.mrf.mxu0
          %v3222 = vadd.f32 0.0, %v3221
          %v3223 = vpop.f32.mrf.mxu0
          %v3224 = vadd.f32 0.0, %v3223
          %3225 = vdwg.mxu0
          %v3226 = vadd.f32 %v3135, %v3197
          %v3227 = vadd.f32 %v3136, %v3199
          %v3228 = vadd.f32 %v3137, %v3202
          %v3229 = vadd.f32 %v3138, %v3204
          %v3230 = vadd.f32 %v3139, %v3207
          %v3231 = vadd.f32 %v3140, %v3209
          %v3232 = vadd.f32 %v3141, %v3212
          %v3233 = vadd.f32 %v3142, %v3214
          %v3234 = vadd.f32 %v3143, %v3217
          %v3235 = vadd.f32 %v3144, %v3219
          %v3236 = vadd.f32 %v3145, %v3222
          %v3237 = vadd.f32 %v3146, %v3224
          %v3238 = vld [vmem:[#allocation3 + $0x8] sm:$0xf]
          %v3239 = vld [vmem:[#allocation3 + $0xc] sm:$0xf]
          %v3240 = vld [vmem:[#allocation3 + $0x10] sm:$0xf]
          %v3241 = vld [vmem:[#allocation3 + $0x14] sm:$0xf]
          %v3242 = vld [vmem:[#allocation3 + $0x18] sm:$0xf]
          %v3243 = vld [vmem:[#allocation3 + $0x1c] sm:$0xf]
          %v3244 = vld [vmem:[#allocation3 + $0x20] sm:$0xf]
          %v3245 = vld [vmem:[#allocation3 + $0x24] sm:$0xf]
          %v3246 = vld [vmem:[#allocation3 + $0x28] sm:$0xf]
          %v3247 = vld [vmem:[#allocation3 + $0x2c] sm:$0xf]
          %v3248 = vld [vmem:[#allocation3 + $0x30] sm:$0xf]
          %v3249 = vld [vmem:[#allocation3 + $0x34] sm:$0xf]
          %v3250 = vld [vmem:[#allocation3 + $0x38] sm:$0x1]
          %v3251 = vld [vmem:[%s3 + $0x50] sm:$0xf]
          %v3252 = vld [vmem:[%s3 + $0x54] sm:$0xf]
          %v3253 = vld [vmem:[%s3 + $0x58] sm:$0xf]
          %v3254 = vld [vmem:[%s3 + $0x5c] sm:$0xf]
          %v3268 = vunpack.c.l.b16 %v3238
          %v3269 = vunpack.c.l.b16 %v3239
          %v3270 = vunpack.c.l.b16 %v3240
          %v3271 = vunpack.c.l.b16 %v3241
          %v3272 = vunpack.c.l.b16 %v3242
          %v3273 = vunpack.c.l.b16 %v3243
          %v3274 = vunpack.c.l.b16 %v3244
          %v3275 = vunpack.c.l.b16 %v3245
          %v3276 = vunpack.c.l.b16 %v3246
          %v3277 = vunpack.c.l.b16 %v3247
          %v3278 = vunpack.c.l.b16 %v3248
          %v3279 = vunpack.c.l.b16 %v3249
          %v3280 = vunpack.c.l.b16 %v3250
          %v3281 = vpack.c.b16 %v3269, %v3268
          %v3282 = vpack.c.b16 %v3271, %v3270
          %v3283 = vpack.c.b16 %v3273, %v3272
          %v3284 = vpack.c.b16 %v3275, %v3274
          %v3285 = vpack.c.b16 %v3277, %v3276
          %v3286 = vpack.c.b16 %v3279, %v3278
          %v3287 = vpack.c.b16 %v3280, %v3280
          %v3289 = vshrl.u32 %v3281, 16
          %v3291 = vshll.u32 %v3281, 16
          %v3293 = vrot.slane %v3291, 1
          %v3294 = vor.u32 %v3289, %v3293
          %v3296 = vshll.u32 %v3282, 16
          %v3298 = vrot.slane %v3296, 1
          %v3299 = vsel %vm2665, %v3294, %v3298
          %v3300 = vshrl.u32 %v3282, 16
          %v3302 = vor.u32 %v3300, %v3298
          %v3304 = vshll.u32 %v3283, 16
          %v3306 = vrot.slane %v3304, 1
          %v3307 = vsel %vm2665, %v3302, %v3306
          %v3308 = vshrl.u32 %v3283, 16
          %v3310 = vor.u32 %v3308, %v3306
          %v3312 = vshll.u32 %v3284, 16
          %v3314 = vrot.slane %v3312, 1
          %v3315 = vsel %vm2665, %v3310, %v3314
          %v3316 = vshrl.u32 %v3284, 16
          %v3318 = vor.u32 %v3316, %v3314
          %v3320 = vshll.u32 %v3285, 16
          %v3322 = vrot.slane %v3320, 1
          %v3323 = vsel %vm2665, %v3318, %v3322
          %v3324 = vshrl.u32 %v3285, 16
          %v3326 = vor.u32 %v3324, %v3322
          %v3328 = vshll.u32 %v3286, 16
          %v3330 = vrot.slane %v3328, 1
          %v3331 = vsel %vm2665, %v3326, %v3330
          %v3332 = vshrl.u32 %v3286, 16
          %v3334 = vor.u32 %v3332, %v3330
          %v3336 = vshll.u32 %v3287, 16
          %v3338 = vrot.slane %v3336, 1
          %v3339 = vsel %vm2665, %v3334, %v3338
          %v3344 = vunpack.c.l.b16 %v3251
          %v3345 = vunpack.c.l.b16 %v3252
          %v3346 = vunpack.c.l.b16 %v3253
          %v3347 = vunpack.c.l.b16 %v3254
          %v3348 = vpack.c.b16 %v3345, %v3344
          %v3349 = vpack.c.b16 %v3347, %v3346
          %v3353 = vsel %vm574, %v3299, 0
          %v3356 = vsel %vm574, %v3307, 0
          %v3359 = vsel %vm574, %v3315, 0
          %v3362 = vsel %vm574, %v3323, 0
          %v3365 = vsel %vm574, %v3331, 0
          %v3368 = vsel %vm574, %v3339, 0
          %3370 = vmatpush.bf16.msra.mxu0 0
          %3371 = vmatpush.bf16.msra.mxu0 0
          %3372 = vmatpush.bf16.msra.mxu0 0
          %3373 = vmatpush.bf16.msra.mxu0 0
          %3374 = vmatpush.bf16.msra.mxu0 0
          %3375 = vmatpush.bf16.msra.mxu0 0
          %3376 = vmatpush.bf16.msra.mxu0 %v3349
          %3377 = vmatpush.bf16.msra.mxu0 %v3348
          %3378 = vmatmul.bf16.gmra.mxu0 %v3353
          %v3379 = vpop.f32.mrf.mxu0
          %v3380 = vadd.f32 0.0, %v3379
          %v3381 = vpop.f32.mrf.mxu0
          %v3382 = vadd.f32 0.0, %v3381
          %3383 = vmatmul.bf16.gmra.mxu0 %v3356
          %v3384 = vpop.f32.mrf.mxu0
          %v3385 = vadd.f32 0.0, %v3384
          %v3386 = vpop.f32.mrf.mxu0
          %v3387 = vadd.f32 0.0, %v3386
          %3388 = vmatmul.bf16.gmra.mxu0 %v3359
          %v3389 = vpop.f32.mrf.mxu0
          %v3390 = vadd.f32 0.0, %v3389
          %v3391 = vpop.f32.mrf.mxu0
          %v3392 = vadd.f32 0.0, %v3391
          %3393 = vmatmul.bf16.gmra.mxu0 %v3362
          %v3394 = vpop.f32.mrf.mxu0
          %v3395 = vadd.f32 0.0, %v3394
          %v3396 = vpop.f32.mrf.mxu0
          %v3397 = vadd.f32 0.0, %v3396
          %3398 = vmatmul.bf16.gmra.mxu0 %v3365
          %v3399 = vpop.f32.mrf.mxu0
          %v3400 = vadd.f32 0.0, %v3399
          %v3401 = vpop.f32.mrf.mxu0
          %v3402 = vadd.f32 0.0, %v3401
          %3403 = vmatmul.bf16.gmra.mxu0 %v3368
          %v3404 = vpop.f32.mrf.mxu0
          %v3405 = vadd.f32 0.0, %v3404
          %v3406 = vpop.f32.mrf.mxu0
          %v3407 = vadd.f32 0.0, %v3406
          %3408 = vdwg.mxu0
          %v3409 = vadd.f32 %v3226, %v3380
          %v3410 = vadd.f32 %v3227, %v3382
          %v3411 = vadd.f32 %v3228, %v3385
          %v3412 = vadd.f32 %v3229, %v3387
          %v3413 = vadd.f32 %v3230, %v3390
          %v3414 = vadd.f32 %v3231, %v3392
          %v3415 = vadd.f32 %v3232, %v3395
          %v3416 = vadd.f32 %v3233, %v3397
          %v3417 = vadd.f32 %v3234, %v3400
          %v3418 = vadd.f32 %v3235, %v3402
          %v3419 = vadd.f32 %v3236, %v3405
          %v3420 = vadd.f32 %v3237, %v3407
          %v3421 = vld [vmem:[#allocation3 + $0xc] sm:$0x8]
          %v3422 = vld [vmem:[#allocation3 + $0x10] sm:$0xf]
          %v3423 = vld [vmem:[#allocation3 + $0x14] sm:$0xf]
          %v3424 = vld [vmem:[#allocation3 + $0x18] sm:$0xf]
          %v3425 = vld [vmem:[#allocation3 + $0x1c] sm:$0xf]
          %v3426 = vld [vmem:[#allocation3 + $0x20] sm:$0xf]
          %v3427 = vld [vmem:[#allocation3 + $0x24] sm:$0xf]
          %v3428 = vld [vmem:[#allocation3 + $0x28] sm:$0xf]
          %v3429 = vld [vmem:[#allocation3 + $0x2c] sm:$0xf]
          %v3430 = vld [vmem:[#allocation3 + $0x30] sm:$0xf]
          %v3431 = vld [vmem:[#allocation3 + $0x34] sm:$0xf]
          %v3432 = vld [vmem:[#allocation3 + $0x38] sm:$0xf]
          %v3433 = vld [vmem:[#allocation3 + $0x3c] sm:$0x7]
          %v3434 = vld [vmem:[%s3 + $0x60] sm:$0xf]
          %v3435 = vld [vmem:[%s3 + $0x64] sm:$0xf]
          %v3436 = vld [vmem:[%s3 + $0x68] sm:$0xf]
          %v3437 = vld [vmem:[%s3 + $0x6c] sm:$0xf]
          %v3451 = vunpack.c.l.b16 %v3421
          %v3452 = vunpack.c.l.b16 %v3422
          %v3453 = vunpack.c.l.b16 %v3423
          %v3454 = vunpack.c.l.b16 %v3424
          %v3455 = vunpack.c.l.b16 %v3425
          %v3456 = vunpack.c.l.b16 %v3426
          %v3457 = vunpack.c.l.b16 %v3427
          %v3458 = vunpack.c.l.b16 %v3428
          %v3459 = vunpack.c.l.b16 %v3429
          %v3460 = vunpack.c.l.b16 %v3430
          %v3461 = vunpack.c.l.b16 %v3431
          %v3462 = vunpack.c.l.b16 %v3432
          %v3463 = vunpack.c.l.b16 %v3433
          %v3464 = vpack.c.b16 %v3452, %v3451
          %v3465 = vpack.c.b16 %v3454, %v3453
          %v3466 = vpack.c.b16 %v3456, %v3455
          %v3467 = vpack.c.b16 %v3458, %v3457
          %v3468 = vpack.c.b16 %v3460, %v3459
          %v3469 = vpack.c.b16 %v3462, %v3461
          %v3470 = vpack.c.b16 %v3463, %v3463
          %vm3471 = vcmask 1044480
          %v3472 = vrot.slane %v3464, 3
          %v3473 = vrot.slane %v3465, 3
          %v3474 = vsel %vm3471, %v3472, %v3473
          %v3475 = vrot.slane %v3466, 3
          %v3476 = vsel %vm3471, %v3473, %v3475
          %v3477 = vrot.slane %v3467, 3
          %v3478 = vsel %vm3471, %v3475, %v3477
          %v3479 = vrot.slane %v3468, 3
          %v3480 = vsel %vm3471, %v3477, %v3479
          %v3481 = vrot.slane %v3469, 3
          %v3482 = vsel %vm3471, %v3479, %v3481
          %v3483 = vrot.slane %v3470, 3
          %v3484 = vsel %vm3471, %v3481, %v3483
          %v3489 = vunpack.c.l.b16 %v3434
          %v3490 = vunpack.c.l.b16 %v3435
          %v3491 = vunpack.c.l.b16 %v3436
          %v3492 = vunpack.c.l.b16 %v3437
          %v3493 = vpack.c.b16 %v3490, %v3489
          %v3494 = vpack.c.b16 %v3492, %v3491
          %v3498 = vsel %vm574, %v3474, 0
          %v3501 = vsel %vm574, %v3476, 0
          %v3504 = vsel %vm574, %v3478, 0
          %v3507 = vsel %vm574, %v3480, 0
          %v3510 = vsel %vm574, %v3482, 0
          %v3513 = vsel %vm574, %v3484, 0
          %3515 = vmatpush.bf16.msra.mxu0 0
          %3516 = vmatpush.bf16.msra.mxu0 0
          %3517 = vmatpush.bf16.msra.mxu0 0
          %3518 = vmatpush.bf16.msra.mxu0 0
          %3519 = vmatpush.bf16.msra.mxu0 0
          %3520 = vmatpush.bf16.msra.mxu0 0
          %3521 = vmatpush.bf16.msra.mxu0 %v3494
          %3522 = vmatpush.bf16.msra.mxu0 %v3493
          %3523 = vmatmul.bf16.gmra.mxu0 %v3498
          %v3524 = vpop.f32.mrf.mxu0
          %v3525 = vadd.f32 0.0, %v3524
          %v3526 = vpop.f32.mrf.mxu0
          %v3527 = vadd.f32 0.0, %v3526
          %3528 = vmatmul.bf16.gmra.mxu0 %v3501
          %v3529 = vpop.f32.mrf.mxu0
          %v3530 = vadd.f32 0.0, %v3529
          %v3531 = vpop.f32.mrf.mxu0
          %v3532 = vadd.f32 0.0, %v3531
          %3533 = vmatmul.bf16.gmra.mxu0 %v3504
          %v3534 = vpop.f32.mrf.mxu0
          %v3535 = vadd.f32 0.0, %v3534
          %v3536 = vpop.f32.mrf.mxu0
          %v3537 = vadd.f32 0.0, %v3536
          %3538 = vmatmul.bf16.gmra.mxu0 %v3507
          %v3539 = vpop.f32.mrf.mxu0
          %v3540 = vadd.f32 0.0, %v3539
          %v3541 = vpop.f32.mrf.mxu0
          %v3542 = vadd.f32 0.0, %v3541
          %3543 = vmatmul.bf16.gmra.mxu0 %v3510
          %v3544 = vpop.f32.mrf.mxu0
          %v3545 = vadd.f32 0.0, %v3544
          %v3546 = vpop.f32.mrf.mxu0
          %v3547 = vadd.f32 0.0, %v3546
          %3548 = vmatmul.bf16.gmra.mxu0 %v3513
          %v3549 = vpop.f32.mrf.mxu0
          %v3550 = vadd.f32 0.0, %v3549
          %v3551 = vpop.f32.mrf.mxu0
          %v3552 = vadd.f32 0.0, %v3551
          %3553 = vdwg.mxu0
          %v3554 = vadd.f32 %v3409, %v3525
          %v3555 = vadd.f32 %v3410, %v3527
          %v3556 = vadd.f32 %v3411, %v3530
          %v3557 = vadd.f32 %v3412, %v3532
          %v3558 = vadd.f32 %v3413, %v3535
          %v3559 = vadd.f32 %v3414, %v3537
          %v3560 = vadd.f32 %v3415, %v3540
          %v3561 = vadd.f32 %v3416, %v3542
          %v3562 = vadd.f32 %v3417, %v3545
          %v3563 = vadd.f32 %v3418, %v3547
          %v3564 = vadd.f32 %v3419, %v3550
          %v3565 = vadd.f32 %v3420, %v3552
          %v3566 = vld [vmem:[#allocation3 + $0x3c] sm:$0xf]
          %v3567 = vld [vmem:[%s3 + $0x70] sm:$0xf]
          %v3568 = vld [vmem:[%s3 + $0x74] sm:$0xf]
          %v3569 = vld [vmem:[%s3 + $0x78] sm:$0xf]
          %v3570 = vld [vmem:[%s3 + $0x7c] sm:$0xf]
          %v3572 = vunpack.c.l.b16 %v3566
          %v3573 = vpack.c.b16 %v3572, %v3572
          %v3575 = vshrl.u32 %v3464, 16
          %v3577 = vrot.slane %v3575, 3
          %v3578 = vshll.u32 %v3464, 16
          %v3580 = vrot.slane %v3578, 4
          %v3581 = vor.u32 %v3577, %v3580
          %v3583 = vshrl.u32 %v3465, 16
          %v3585 = vrot.slane %v3583, 3
          %v3586 = vshll.u32 %v3465, 16
          %v3588 = vrot.slane %v3586, 4
          %v3589 = vor.u32 %v3585, %v3588
          %v3590 = vsel %vm3003, %v3581, %v3589
          %v3592 = vshrl.u32 %v3466, 16
          %v3594 = vrot.slane %v3592, 3
          %v3595 = vshll.u32 %v3466, 16
          %v3597 = vrot.slane %v3595, 4
          %v3598 = vor.u32 %v3594, %v3597
          %v3599 = vsel %vm3003, %v3589, %v3598
          %v3601 = vshrl.u32 %v3467, 16
          %v3603 = vrot.slane %v3601, 3
          %v3604 = vshll.u32 %v3467, 16
          %v3606 = vrot.slane %v3604, 4
          %v3607 = vor.u32 %v3603, %v3606
          %v3608 = vsel %vm3003, %v3598, %v3607
          %v3610 = vshrl.u32 %v3468, 16
          %v3612 = vrot.slane %v3610, 3
          %v3613 = vshll.u32 %v3468, 16
          %v3615 = vrot.slane %v3613, 4
          %v3616 = vor.u32 %v3612, %v3615
          %v3617 = vsel %vm3003, %v3607, %v3616
          %v3619 = vshrl.u32 %v3469, 16
          %v3621 = vrot.slane %v3619, 3
          %v3622 = vshll.u32 %v3469, 16
          %v3624 = vrot.slane %v3622, 4
          %v3625 = vor.u32 %v3621, %v3624
          %v3626 = vsel %vm3003, %v3616, %v3625
          %v3628 = vshrl.u32 %v3573, 16
          %v3630 = vrot.slane %v3628, 3
          %v3631 = vshll.u32 %v3573, 16
          %v3633 = vrot.slane %v3631, 4
          %v3634 = vor.u32 %v3630, %v3633
          %v3635 = vsel %vm3003, %v3625, %v3634
          %v3640 = vunpack.c.l.b16 %v3567
          %v3641 = vunpack.c.l.b16 %v3568
          %v3642 = vunpack.c.l.b16 %v3569
          %v3643 = vunpack.c.l.b16 %v3570
          %v3644 = vpack.c.b16 %v3641, %v3640
          %v3645 = vpack.c.b16 %v3643, %v3642
          %v3649 = vsel %vm574, %v3590, 0
          %v3652 = vsel %vm574, %v3599, 0
          %v3655 = vsel %vm574, %v3608, 0
          %v3658 = vsel %vm574, %v3617, 0
          %v3661 = vsel %vm574, %v3626, 0
          %v3664 = vsel %vm574, %v3635, 0
          %3666 = vmatpush.bf16.msra.mxu0 0
          %3667 = vmatpush.bf16.msra.mxu0 0
          %3668 = vmatpush.bf16.msra.mxu0 0
          %3669 = vmatpush.bf16.msra.mxu0 0
          %3670 = vmatpush.bf16.msra.mxu0 0
          %3671 = vmatpush.bf16.msra.mxu0 0
          %3672 = vmatpush.bf16.msra.mxu0 %v3645
          %3673 = vmatpush.bf16.msra.mxu0 %v3644
          %3674 = vmatmul.bf16.gmra.mxu0 %v3649
          %v3675 = vpop.f32.mrf.mxu0
          %v3676 = vadd.f32 0.0, %v3675
          %v3677 = vpop.f32.mrf.mxu0
          %v3678 = vadd.f32 0.0, %v3677
          %3679 = vmatmul.bf16.gmra.mxu0 %v3652
          %v3680 = vpop.f32.mrf.mxu0
          %v3681 = vadd.f32 0.0, %v3680
          %v3682 = vpop.f32.mrf.mxu0
          %v3683 = vadd.f32 0.0, %v3682
          %3684 = vmatmul.bf16.gmra.mxu0 %v3655
          %v3685 = vpop.f32.mrf.mxu0
          %v3686 = vadd.f32 0.0, %v3685
          %v3687 = vpop.f32.mrf.mxu0
          %v3688 = vadd.f32 0.0, %v3687
          %3689 = vmatmul.bf16.gmra.mxu0 %v3658
          %v3690 = vpop.f32.mrf.mxu0
          %v3691 = vadd.f32 0.0, %v3690
          %v3692 = vpop.f32.mrf.mxu0
          %v3693 = vadd.f32 0.0, %v3692
          %3694 = vmatmul.bf16.gmra.mxu0 %v3661
          %v3695 = vpop.f32.mrf.mxu0
          %v3696 = vadd.f32 0.0, %v3695
          %v3697 = vpop.f32.mrf.mxu0
          %v3698 = vadd.f32 0.0, %v3697
          %3699 = vmatmul.bf16.gmra.mxu0 %v3664
          %v3700 = vpop.f32.mrf.mxu0
          %v3701 = vadd.f32 0.0, %v3700
          %v3702 = vpop.f32.mrf.mxu0
          %v3703 = vadd.f32 0.0, %v3702
          %3704 = vdwg.mxu0
          %v3705 = vadd.f32 %v3554, %v3676
          %v3706 = vadd.f32 %v3555, %v3678
          %v3707 = vadd.f32 %v3556, %v3681
          %v3708 = vadd.f32 %v3557, %v3683
          %v3709 = vadd.f32 %v3558, %v3686
          %v3710 = vadd.f32 %v3559, %v3688
          %v3711 = vadd.f32 %v3560, %v3691
          %v3712 = vadd.f32 %v3561, %v3693
          %v3713 = vadd.f32 %v3562, %v3696
          %v3714 = vadd.f32 %v3563, %v3698
          %v3715 = vadd.f32 %v3564, %v3701
          %v3716 = vadd.f32 %v3565, %v3703
          %v3717 = vld [vmem:[%s3 + $0x80] sm:$0xf]
          %v3718 = vld [vmem:[%s3 + $0x84] sm:$0xf]
          %v3719 = vld [vmem:[%s3 + $0x88] sm:$0xf]
          %v3720 = vld [vmem:[%s3 + $0x8c] sm:$0xf]
          %v3721 = vpack.c.b16 %v3453, %v3452
          %v3722 = vpack.c.b16 %v3455, %v3454
          %v3723 = vpack.c.b16 %v3457, %v3456
          %v3724 = vpack.c.b16 %v3459, %v3458
          %v3725 = vpack.c.b16 %v3461, %v3460
          %v3726 = vpack.c.b16 %v3572, %v3462
          %v3731 = vunpack.c.l.b16 %v3717
          %v3732 = vunpack.c.l.b16 %v3718
          %v3733 = vunpack.c.l.b16 %v3719
          %v3734 = vunpack.c.l.b16 %v3720
          %v3735 = vpack.c.b16 %v3732, %v3731
          %v3736 = vpack.c.b16 %v3734, %v3733
          %v3740 = vsel %vm574, %v3721, 0
          %v3743 = vsel %vm574, %v3722, 0
          %v3746 = vsel %vm574, %v3723, 0
          %v3749 = vsel %vm574, %v3724, 0
          %v3752 = vsel %vm574, %v3725, 0
          %v3755 = vsel %vm574, %v3726, 0
          %3757 = vmatpush.bf16.msra.mxu0 0
          %3758 = vmatpush.bf16.msra.mxu0 0
          %3759 = vmatpush.bf16.msra.mxu0 0
          %3760 = vmatpush.bf16.msra.mxu0 0
          %3761 = vmatpush.bf16.msra.mxu0 0
          %3762 = vmatpush.bf16.msra.mxu0 0
          %3763 = vmatpush.bf16.msra.mxu0 %v3736
          %3764 = vmatpush.bf16.msra.mxu0 %v3735
          %3765 = vmatmul.bf16.gmra.mxu0 %v3740
          %v3766 = vpop.f32.mrf.mxu0
          %v3767 = vadd.f32 0.0, %v3766
          %v3768 = vpop.f32.mrf.mxu0
          %v3769 = vadd.f32 0.0, %v3768
          %3770 = vmatmul.bf16.gmra.mxu0 %v3743
          %v3771 = vpop.f32.mrf.mxu0
          %v3772 = vadd.f32 0.0, %v3771
          %v3773 = vpop.f32.mrf.mxu0
          %v3774 = vadd.f32 0.0, %v3773
          %3775 = vmatmul.bf16.gmra.mxu0 %v3746
          %v3776 = vpop.f32.mrf.mxu0
          %v3777 = vadd.f32 0.0, %v3776
          %v3778 = vpop.f32.mrf.mxu0
          %v3779 = vadd.f32 0.0, %v3778
          %3780 = vmatmul.bf16.gmra.mxu0 %v3749
          %v3781 = vpop.f32.mrf.mxu0
          %v3782 = vadd.f32 0.0, %v3781
          %v3783 = vpop.f32.mrf.mxu0
          %v3784 = vadd.f32 0.0, %v3783
          %3785 = vmatmul.bf16.gmra.mxu0 %v3752
          %v3786 = vpop.f32.mrf.mxu0
          %v3787 = vadd.f32 0.0, %v3786
          %v3788 = vpop.f32.mrf.mxu0
          %v3789 = vadd.f32 0.0, %v3788
          %3790 = vmatmul.bf16.gmra.mxu0 %v3755
          %v3791 = vpop.f32.mrf.mxu0
          %v3792 = vadd.f32 0.0, %v3791
          %v3793 = vpop.f32.mrf.mxu0
          %v3794 = vadd.f32 0.0, %v3793
          %3795 = vdwg.mxu0
          %v3796 = vadd.f32 %v3705, %v3767
          %v3797 = vadd.f32 %v3706, %v3769
          %v3798 = vadd.f32 %v3707, %v3772
          %v3799 = vadd.f32 %v3708, %v3774
          %v3800 = vadd.f32 %v3709, %v3777
          %v3801 = vadd.f32 %v3710, %v3779
          %v3802 = vadd.f32 %v3711, %v3782
          %v3803 = vadd.f32 %v3712, %v3784
          %v3804 = vadd.f32 %v3713, %v3787
          %v3805 = vadd.f32 %v3714, %v3789
          %v3806 = vadd.f32 %v3715, %v3792
          %v3807 = vadd.f32 %v3716, %v3794
          %v3808 = vld [vmem:[%s4] sm:$0x1]
          %v3810 = vperm.slane %v3808, 0
          %v3812 = vadd.f32 %v3796, %v3810
          %v3813 = vadd.f32 %v3797, %v3810
          %v3814 = vadd.f32 %v3798, %v3810
          %v3815 = vadd.f32 %v3799, %v3810
          %v3816 = vadd.f32 %v3800, %v3810
          %v3817 = vadd.f32 %v3801, %v3810
          %v3818 = vadd.f32 %v3802, %v3810
          %v3819 = vadd.f32 %v3803, %v3810
          %v3820 = vadd.f32 %v3804, %v3810
          %v3821 = vadd.f32 %v3805, %v3810
          %v3822 = vadd.f32 %v3806, %v3810
          %v3823 = vadd.f32 %v3807, %v3810
          %v3824 = vmax.f32 %v3812, 0.0
          %v3825 = vmax.f32 %v3813, 0.0
          %v3826 = vmax.f32 %v3814, 0.0
          %v3827 = vmax.f32 %v3815, 0.0
          %v3828 = vmax.f32 %v3816, 0.0
          %v3829 = vmax.f32 %v3817, 0.0
          %v3830 = vmax.f32 %v3818, 0.0
          %v3831 = vmax.f32 %v3819, 0.0
          %v3832 = vmax.f32 %v3820, 0.0
          %v3833 = vmax.f32 %v3821, 0.0
          %v3834 = vmax.f32 %v3822, 0.0
          %v3835 = vmax.f32 %v3823, 0.0
          %vm3836 = vcmask 523264
          %3837 = vst.msk [vmem:[#allocation4] sm:$0xff] %vm3836, %v3824
          %3838 = vst.msk [vmem:[#allocation4 + $0x8] sm:$0xff] %vm3836, %v3825
          %3839 = vst.msk [vmem:[#allocation4 + $0x10] sm:$0xff] %vm3836, %v3826
          %3840 = vst.msk [vmem:[#allocation4 + $0x18] sm:$0xff] %vm3836, %v3827
          %3841 = vst.msk [vmem:[#allocation4 + $0x20] sm:$0xff] %vm3836, %v3828
          %3842 = vst.msk [vmem:[#allocation4 + $0x28] sm:$0xff] %vm3836, %v3829
          %3843 = vst.msk [vmem:[#allocation4 + $0x30] sm:$0xff] %vm3836, %v3830
          %3844 = vst.msk [vmem:[#allocation4 + $0x38] sm:$0xff] %vm3836, %v3831
          %3845 = vst.msk [vmem:[#allocation4 + $0x40] sm:$0xff] %vm3836, %v3832
          %3846 = vst.msk [vmem:[#allocation4 + $0x48] sm:$0xff] %vm3836, %v3833
          %3847 = vst.msk [vmem:[#allocation4 + $0x50] sm:$0xff] %vm3836, %v3834
          %3848 = vst.msk [vmem:[#allocation4 + $0x58] sm:$0xff] %vm3836, %v3835
          %v3849 = vld [vmem:[#allocation3 + $0x30] sm:$0xf]
          %v3850 = vld [vmem:[#allocation3 + $0x34] sm:$0xf]
          %v3851 = vld [vmem:[#allocation3 + $0x38] sm:$0xf]
          %v3852 = vld [vmem:[#allocation3 + $0x3c] sm:$0xf]
          %v3853 = vld [vmem:[#allocation3 + $0x40] sm:$0xf]
          %v3854 = vld [vmem:[#allocation3 + $0x44] sm:$0xf]
          %v3855 = vld [vmem:[#allocation3 + $0x48] sm:$0xf]
          %v3856 = vld [vmem:[#allocation3 + $0x4c] sm:$0xf]
          %v3857 = vld [vmem:[#allocation3 + $0x50] sm:$0xf]
          %v3858 = vld [vmem:[#allocation3 + $0x54] sm:$0xf]
          %v3859 = vld [vmem:[#allocation3 + $0x58] sm:$0xf]
          %v3860 = vld [vmem:[#allocation3 + $0x5c] sm:$0xf]
          %v3861 = vld [vmem:[#allocation3 + $0x60] sm:$0x3]
          %v3862 = vld [vmem:[%s3] sm:$0xf]
          %v3863 = vld [vmem:[%s3 + $0x4] sm:$0xf]
          %v3864 = vld [vmem:[%s3 + $0x8] sm:$0xf]
          %v3865 = vld [vmem:[%s3 + $0xc] sm:$0xf]
          %v3866 = vld [vmem:[%s3 + $0x10] sm:$0xf]
          %v3867 = vld [vmem:[%s3 + $0x14] sm:$0xf]
          %v3868 = vld [vmem:[%s3 + $0x18] sm:$0xf]
          %v3869 = vld [vmem:[%s3 + $0x1c] sm:$0xf]
          %v3883 = vunpack.c.l.b16 %v3849
          %v3884 = vunpack.c.l.b16 %v3850
          %v3885 = vunpack.c.l.b16 %v3851
          %v3886 = vunpack.c.l.b16 %v3852
          %v3887 = vunpack.c.l.b16 %v3853
          %v3888 = vunpack.c.l.b16 %v3854
          %v3889 = vunpack.c.l.b16 %v3855
          %v3890 = vunpack.c.l.b16 %v3856
          %v3891 = vunpack.c.l.b16 %v3857
          %v3892 = vunpack.c.l.b16 %v3858
          %v3893 = vunpack.c.l.b16 %v3859
          %v3894 = vunpack.c.l.b16 %v3860
          %v3895 = vunpack.c.l.b16 %v3861
          %v3896 = vpack.c.b16 %v3884, %v3883
          %v3897 = vpack.c.b16 %v3886, %v3885
          %v3898 = vpack.c.b16 %v3888, %v3887
          %v3899 = vpack.c.b16 %v3890, %v3889
          %v3900 = vpack.c.b16 %v3892, %v3891
          %v3901 = vpack.c.b16 %v3894, %v3893
          %v3902 = vpack.c.b16 %v3895, %v3895
          %v3904 = vshrl.u32 %v3896, 16
          %v3906 = vshll.u32 %v3896, 16
          %v3908 = vrot.slane %v3906, 1
          %v3909 = vor.u32 %v3904, %v3908
          %v3911 = vshll.u32 %v3897, 16
          %v3913 = vrot.slane %v3911, 1
          %v3914 = vsel %vm2665, %v3909, %v3913
          %v3915 = vshrl.u32 %v3897, 16
          %v3917 = vor.u32 %v3915, %v3913
          %v3919 = vshll.u32 %v3898, 16
          %v3921 = vrot.slane %v3919, 1
          %v3922 = vsel %vm2665, %v3917, %v3921
          %v3923 = vshrl.u32 %v3898, 16
          %v3925 = vor.u32 %v3923, %v3921
          %v3927 = vshll.u32 %v3899, 16
          %v3929 = vrot.slane %v3927, 1
          %v3930 = vsel %vm2665, %v3925, %v3929
          %v3931 = vshrl.u32 %v3899, 16
          %v3933 = vor.u32 %v3931, %v3929
          %v3935 = vshll.u32 %v3900, 16
          %v3937 = vrot.slane %v3935, 1
          %v3938 = vsel %vm2665, %v3933, %v3937
          %v3939 = vshrl.u32 %v3900, 16
          %v3941 = vor.u32 %v3939, %v3937
          %v3943 = vshll.u32 %v3901, 16
          %v3945 = vrot.slane %v3943, 1
          %v3946 = vsel %vm2665, %v3941, %v3945
          %v3947 = vshrl.u32 %v3901, 16
          %v3949 = vor.u32 %v3947, %v3945
          %v3951 = vshll.u32 %v3902, 16
          %v3953 = vrot.slane %v3951, 1
          %v3954 = vsel %vm2665, %v3949, %v3953
          %v3955 = vshrl.u32 %v3902, 16
          %v3957 = vor.u32 %v3955, %v3953
          %v3962 = vunpack.c.l.b16 %v3866
          %v3963 = vunpack.c.l.b16 %v3867
          %v3964 = vunpack.c.l.b16 %v3868
          %v3965 = vunpack.c.l.b16 %v3869
          %v3966 = vpack.c.b16 %v3963, %v3962
          %v3967 = vpack.c.b16 %v3965, %v3964
          %v3971 = vsel %vm574, %v3914, 0
          %v3974 = vsel %vm574, %v3922, 0
          %v3977 = vsel %vm574, %v3930, 0
          %v3980 = vsel %vm574, %v3938, 0
          %v3983 = vsel %vm574, %v3946, 0
          %v3986 = vsel %vm574, %v3954, 0
          %v3989 = vsel %vm574, %v3957, 0
          %3991 = vmatpush.bf16.msra.mxu0 0
          %3992 = vmatpush.bf16.msra.mxu0 0
          %3993 = vmatpush.bf16.msra.mxu0 0
          %3994 = vmatpush.bf16.msra.mxu0 0
          %3995 = vmatpush.bf16.msra.mxu0 0
          %3996 = vmatpush.bf16.msra.mxu0 0
          %3997 = vmatpush.bf16.msra.mxu0 %v3967
          %3998 = vmatpush.bf16.msra.mxu0 %v3966
          %3999 = vmatmul.bf16.gmra.mxu0 %v3971
          %v4000 = vpop.f32.mrf.mxu0
          %v4001 = vadd.f32 0.0, %v4000
          %v4002 = vpop.f32.mrf.mxu0
          %v4003 = vadd.f32 0.0, %v4002
          %4004 = vmatmul.bf16.gmra.mxu0 %v3974
          %v4005 = vpop.f32.mrf.mxu0
          %v4006 = vadd.f32 0.0, %v4005
          %v4007 = vpop.f32.mrf.mxu0
          %v4008 = vadd.f32 0.0, %v4007
          %4009 = vmatmul.bf16.gmra.mxu0 %v3977
          %v4010 = vpop.f32.mrf.mxu0
          %v4011 = vadd.f32 0.0, %v4010
          %v4012 = vpop.f32.mrf.mxu0
          %v4013 = vadd.f32 0.0, %v4012
          %4014 = vmatmul.bf16.gmra.mxu0 %v3980
          %v4015 = vpop.f32.mrf.mxu0
          %v4016 = vadd.f32 0.0, %v4015
          %v4017 = vpop.f32.mrf.mxu0
          %v4018 = vadd.f32 0.0, %v4017
          %4019 = vmatmul.bf16.gmra.mxu0 %v3983
          %v4020 = vpop.f32.mrf.mxu0
          %v4021 = vadd.f32 0.0, %v4020
          %v4022 = vpop.f32.mrf.mxu0
          %v4023 = vadd.f32 0.0, %v4022
          %4024 = vmatmul.bf16.gmra.mxu0 %v3986
          %v4025 = vpop.f32.mrf.mxu0
          %v4026 = vadd.f32 0.0, %v4025
          %v4027 = vpop.f32.mrf.mxu0
          %v4028 = vadd.f32 0.0, %v4027
          %4029 = vmatmul.bf16.gmra.mxu0 %v3989
          %v4030 = vpop.f32.mrf.mxu0
          %v4031 = vadd.f32 0.0, %v4030
          %v4032 = vpop.f32.mrf.mxu0
          %4033 = vdwg.mxu0
          %v4038 = vunpack.c.l.b16 %v3862
          %v4039 = vunpack.c.l.b16 %v3863
          %v4040 = vunpack.c.l.b16 %v3864
          %v4041 = vunpack.c.l.b16 %v3865
          %v4042 = vpack.c.b16 %v4039, %v4038
          %v4043 = vpack.c.b16 %v4041, %v4040
          %v4046 = vsel %vm574, %v3896, 0
          %v4048 = vsel %vm574, %v3897, 0
          %v4050 = vsel %vm574, %v3898, 0
          %v4052 = vsel %vm574, %v3899, 0
          %v4054 = vsel %vm574, %v3900, 0
          %v4056 = vsel %vm574, %v3901, 0
          %v4058 = vsel %vm574, %v3902, 0
          %4060 = vmatpush.bf16.msra.mxu0 0
          %4061 = vmatpush.bf16.msra.mxu0 0
          %4062 = vmatpush.bf16.msra.mxu0 0
          %4063 = vmatpush.bf16.msra.mxu0 0
          %4064 = vmatpush.bf16.msra.mxu0 0
          %4065 = vmatpush.bf16.msra.mxu0 0
          %4066 = vmatpush.bf16.msra.mxu0 %v4043
          %4067 = vmatpush.bf16.msra.mxu0 %v4042
          %4068 = vmatmul.bf16.gmra.mxu0 %v4046
          %v4069 = vpop.f32.mrf.mxu0
          %v4070 = vadd.f32 %v4001, %v4069
          %v4071 = vpop.f32.mrf.mxu0
          %v4072 = vadd.f32 %v4003, %v4071
          %4073 = vmatmul.bf16.gmra.mxu0 %v4048
          %v4074 = vpop.f32.mrf.mxu0
          %v4075 = vadd.f32 %v4006, %v4074
          %v4076 = vpop.f32.mrf.mxu0
          %v4077 = vadd.f32 %v4008, %v4076
          %4078 = vmatmul.bf16.gmra.mxu0 %v4050
          %v4079 = vpop.f32.mrf.mxu0
          %v4080 = vadd.f32 %v4011, %v4079
          %v4081 = vpop.f32.mrf.mxu0
          %v4082 = vadd.f32 %v4013, %v4081
          %4083 = vmatmul.bf16.gmra.mxu0 %v4052
          %v4084 = vpop.f32.mrf.mxu0
          %v4085 = vadd.f32 %v4016, %v4084
          %v4086 = vpop.f32.mrf.mxu0
          %v4087 = vadd.f32 %v4018, %v4086
          %4088 = vmatmul.bf16.gmra.mxu0 %v4054
          %v4089 = vpop.f32.mrf.mxu0
          %v4090 = vadd.f32 %v4021, %v4089
          %v4091 = vpop.f32.mrf.mxu0
          %v4092 = vadd.f32 %v4023, %v4091
          %4093 = vmatmul.bf16.gmra.mxu0 %v4056
          %v4094 = vpop.f32.mrf.mxu0
          %v4095 = vadd.f32 %v4026, %v4094
          %v4096 = vpop.f32.mrf.mxu0
          %v4097 = vadd.f32 %v4028, %v4096
          %4098 = vmatmul.bf16.gmra.mxu0 %v4058
          %v4099 = vpop.f32.mrf.mxu0
          %v4100 = vadd.f32 %v4031, %v4099
          %v4101 = vpop.f32.mrf.mxu0
          %4102 = vdwg.mxu0
          %v4103 = vld [vmem:[#allocation3 + $0x30] sm:$0xe]
          %v4104 = vld [vmem:[#allocation3 + $0x60] sm:$0x7]
          %v4105 = vld [vmem:[%s3 + $0x20] sm:$0xf]
          %v4106 = vld [vmem:[%s3 + $0x24] sm:$0xf]
          %v4107 = vld [vmem:[%s3 + $0x28] sm:$0xf]
          %v4108 = vld [vmem:[%s3 + $0x2c] sm:$0xf]
          %v4111 = vunpack.c.l.b16 %v4103
          %v4112 = vunpack.c.l.b16 %v4104
          %v4113 = vpack.c.b16 %v3884, %v4111
          %v4114 = vpack.c.b16 %v4112, %v4112
          %v4115 = vrot.slane %v4113, 1
          %v4116 = vrot.slane %v3897, 1
          %v4117 = vsel %vm2858, %v4115, %v4116
          %v4118 = vrot.slane %v3898, 1
          %v4119 = vsel %vm2858, %v4116, %v4118
          %v4120 = vrot.slane %v3899, 1
          %v4121 = vsel %vm2858, %v4118, %v4120
          %v4122 = vrot.slane %v3900, 1
          %v4123 = vsel %vm2858, %v4120, %v4122
          %v4124 = vrot.slane %v3901, 1
          %v4125 = vsel %vm2858, %v4122, %v4124
          %v4126 = vrot.slane %v4114, 1
          %v4127 = vsel %vm2858, %v4124, %v4126
          %v4132 = vunpack.c.l.b16 %v4105
          %v4133 = vunpack.c.l.b16 %v4106
          %v4134 = vunpack.c.l.b16 %v4107
          %v4135 = vunpack.c.l.b16 %v4108
          %v4136 = vpack.c.b16 %v4133, %v4132
          %v4137 = vpack.c.b16 %v4135, %v4134
          %v4141 = vsel %vm574, %v4117, 0
          %v4144 = vsel %vm574, %v4119, 0
          %v4147 = vsel %vm574, %v4121, 0
          %v4150 = vsel %vm574, %v4123, 0
          %v4153 = vsel %vm574, %v4125, 0
          %v4156 = vsel %vm574, %v4127, 0
          %v4159 = vsel %vm574, %v4126, 0
          %4161 = vmatpush.bf16.msra.mxu0 0
          %4162 = vmatpush.bf16.msra.mxu0 0
          %4163 = vmatpush.bf16.msra.mxu0 0
          %4164 = vmatpush.bf16.msra.mxu0 0
          %4165 = vmatpush.bf16.msra.mxu0 0
          %4166 = vmatpush.bf16.msra.mxu0 0
          %4167 = vmatpush.bf16.msra.mxu0 %v4137
          %4168 = vmatpush.bf16.msra.mxu0 %v4136
          %4169 = vmatmul.bf16.gmra.mxu0 %v4141
          %v4170 = vpop.f32.mrf.mxu0
          %v4171 = vadd.f32 0.0, %v4170
          %v4172 = vpop.f32.mrf.mxu0
          %v4173 = vadd.f32 0.0, %v4172
          %4174 = vmatmul.bf16.gmra.mxu0 %v4144
          %v4175 = vpop.f32.mrf.mxu0
          %v4176 = vadd.f32 0.0, %v4175
          %v4177 = vpop.f32.mrf.mxu0
          %v4178 = vadd.f32 0.0, %v4177
          %4179 = vmatmul.bf16.gmra.mxu0 %v4147
          %v4180 = vpop.f32.mrf.mxu0
          %v4181 = vadd.f32 0.0, %v4180
          %v4182 = vpop.f32.mrf.mxu0
          %v4183 = vadd.f32 0.0, %v4182
          %4184 = vmatmul.bf16.gmra.mxu0 %v4150
          %v4185 = vpop.f32.mrf.mxu0
          %v4186 = vadd.f32 0.0, %v4185
          %v4187 = vpop.f32.mrf.mxu0
          %v4188 = vadd.f32 0.0, %v4187
          %4189 = vmatmul.bf16.gmra.mxu0 %v4153
          %v4190 = vpop.f32.mrf.mxu0
          %v4191 = vadd.f32 0.0, %v4190
          %v4192 = vpop.f32.mrf.mxu0
          %v4193 = vadd.f32 0.0, %v4192
          %4194 = vmatmul.bf16.gmra.mxu0 %v4156
          %v4195 = vpop.f32.mrf.mxu0
          %v4196 = vadd.f32 0.0, %v4195
          %v4197 = vpop.f32.mrf.mxu0
          %v4198 = vadd.f32 0.0, %v4197
          %4199 = vmatmul.bf16.gmra.mxu0 %v4159
          %v4200 = vpop.f32.mrf.mxu0
          %v4201 = vadd.f32 0.0, %v4200
          %v4202 = vpop.f32.mrf.mxu0
          %4203 = vdwg.mxu0
          %v4204 = vadd.f32 %v4070, %v4171
          %v4205 = vadd.f32 %v4072, %v4173
          %v4206 = vadd.f32 %v4075, %v4176
          %v4207 = vadd.f32 %v4077, %v4178
          %v4208 = vadd.f32 %v4080, %v4181
          %v4209 = vadd.f32 %v4082, %v4183
          %v4210 = vadd.f32 %v4085, %v4186
          %v4211 = vadd.f32 %v4087, %v4188
          %v4212 = vadd.f32 %v4090, %v4191
          %v4213 = vadd.f32 %v4092, %v4193
          %v4214 = vadd.f32 %v4095, %v4196
          %v4215 = vadd.f32 %v4097, %v4198
          %v4216 = vadd.f32 %v4100, %v4201
          %v4217 = vld [vmem:[#allocation3 + $0x34] sm:$0x8]
          %v4218 = vld [vmem:[#allocation3 + $0x38] sm:$0xf]
          %v4219 = vld [vmem:[#allocation3 + $0x3c] sm:$0xf]
          %v4220 = vld [vmem:[#allocation3 + $0x40] sm:$0xf]
          %v4221 = vld [vmem:[#allocation3 + $0x44] sm:$0xf]
          %v4222 = vld [vmem:[#allocation3 + $0x48] sm:$0xf]
          %v4223 = vld [vmem:[#allocation3 + $0x4c] sm:$0xf]
          %v4224 = vld [vmem:[#allocation3 + $0x50] sm:$0xf]
          %v4225 = vld [vmem:[#allocation3 + $0x54] sm:$0xf]
          %v4226 = vld [vmem:[#allocation3 + $0x58] sm:$0xf]
          %v4227 = vld [vmem:[#allocation3 + $0x5c] sm:$0xf]
          %v4228 = vld [vmem:[#allocation3 + $0x60] sm:$0xf]
          %v4229 = vld [vmem:[#allocation3 + $0x64] sm:$0xf]
          %v4230 = vld [vmem:[#allocation3 + $0x68] sm:$0x1]
          %v4231 = vld [vmem:[%s3 + $0x30] sm:$0xf]
          %v4232 = vld [vmem:[%s3 + $0x34] sm:$0xf]
          %v4233 = vld [vmem:[%s3 + $0x38] sm:$0xf]
          %v4234 = vld [vmem:[%s3 + $0x3c] sm:$0xf]
          %v4249 = vunpack.c.l.b16 %v4217
          %v4250 = vunpack.c.l.b16 %v4218
          %v4251 = vunpack.c.l.b16 %v4219
          %v4252 = vunpack.c.l.b16 %v4220
          %v4253 = vunpack.c.l.b16 %v4221
          %v4254 = vunpack.c.l.b16 %v4222
          %v4255 = vunpack.c.l.b16 %v4223
          %v4256 = vunpack.c.l.b16 %v4224
          %v4257 = vunpack.c.l.b16 %v4225
          %v4258 = vunpack.c.l.b16 %v4226
          %v4259 = vunpack.c.l.b16 %v4227
          %v4260 = vunpack.c.l.b16 %v4228
          %v4261 = vunpack.c.l.b16 %v4229
          %v4262 = vunpack.c.l.b16 %v4230
          %v4263 = vpack.c.b16 %v4250, %v4249
          %v4264 = vpack.c.b16 %v4252, %v4251
          %v4265 = vpack.c.b16 %v4254, %v4253
          %v4266 = vpack.c.b16 %v4256, %v4255
          %v4267 = vpack.c.b16 %v4258, %v4257
          %v4268 = vpack.c.b16 %v4260, %v4259
          %v4269 = vpack.c.b16 %v4262, %v4261
          %v4271 = vshrl.u32 %v4263, 16
          %v4273 = vrot.slane %v4271, 3
          %v4274 = vshll.u32 %v4263, 16
          %v4276 = vrot.slane %v4274, 4
          %v4277 = vor.u32 %v4273, %v4276
          %v4279 = vshrl.u32 %v4264, 16
          %v4281 = vrot.slane %v4279, 3
          %v4282 = vshll.u32 %v4264, 16
          %v4284 = vrot.slane %v4282, 4
          %v4285 = vor.u32 %v4281, %v4284
          %v4286 = vsel %vm3003, %v4277, %v4285
          %v4288 = vshrl.u32 %v4265, 16
          %v4290 = vrot.slane %v4288, 3
          %v4291 = vshll.u32 %v4265, 16
          %v4293 = vrot.slane %v4291, 4
          %v4294 = vor.u32 %v4290, %v4293
          %v4295 = vsel %vm3003, %v4285, %v4294
          %v4297 = vshrl.u32 %v4266, 16
          %v4299 = vrot.slane %v4297, 3
          %v4300 = vshll.u32 %v4266, 16
          %v4302 = vrot.slane %v4300, 4
          %v4303 = vor.u32 %v4299, %v4302
          %v4304 = vsel %vm3003, %v4294, %v4303
          %v4306 = vshrl.u32 %v4267, 16
          %v4308 = vrot.slane %v4306, 3
          %v4309 = vshll.u32 %v4267, 16
          %v4311 = vrot.slane %v4309, 4
          %v4312 = vor.u32 %v4308, %v4311
          %v4313 = vsel %vm3003, %v4303, %v4312
          %v4315 = vshrl.u32 %v4268, 16
          %v4317 = vrot.slane %v4315, 3
          %v4318 = vshll.u32 %v4268, 16
          %v4320 = vrot.slane %v4318, 4
          %v4321 = vor.u32 %v4317, %v4320
          %v4322 = vsel %vm3003, %v4312, %v4321
          %v4324 = vshrl.u32 %v4269, 16
          %v4326 = vrot.slane %v4324, 3
          %v4327 = vshll.u32 %v4269, 16
          %v4329 = vrot.slane %v4327, 4
          %v4330 = vor.u32 %v4326, %v4329
          %v4331 = vsel %vm3003, %v4321, %v4330
          %v4336 = vunpack.c.l.b16 %v4231
          %v4337 = vunpack.c.l.b16 %v4232
          %v4338 = vunpack.c.l.b16 %v4233
          %v4339 = vunpack.c.l.b16 %v4234
          %v4340 = vpack.c.b16 %v4337, %v4336
          %v4341 = vpack.c.b16 %v4339, %v4338
          %v4345 = vsel %vm574, %v4286, 0
          %v4348 = vsel %vm574, %v4295, 0
          %v4351 = vsel %vm574, %v4304, 0
          %v4354 = vsel %vm574, %v4313, 0
          %v4357 = vsel %vm574, %v4322, 0
          %v4360 = vsel %vm574, %v4331, 0
          %v4363 = vsel %vm574, %v4330, 0
          %4365 = vmatpush.bf16.msra.mxu0 0
          %4366 = vmatpush.bf16.msra.mxu0 0
          %4367 = vmatpush.bf16.msra.mxu0 0
          %4368 = vmatpush.bf16.msra.mxu0 0
          %4369 = vmatpush.bf16.msra.mxu0 0
          %4370 = vmatpush.bf16.msra.mxu0 0
          %4371 = vmatpush.bf16.msra.mxu0 %v4341
          %4372 = vmatpush.bf16.msra.mxu0 %v4340
          %4373 = vmatmul.bf16.gmra.mxu0 %v4345
          %v4374 = vpop.f32.mrf.mxu0
          %v4375 = vadd.f32 0.0, %v4374
          %v4376 = vpop.f32.mrf.mxu0
          %v4377 = vadd.f32 0.0, %v4376
          %4378 = vmatmul.bf16.gmra.mxu0 %v4348
          %v4379 = vpop.f32.mrf.mxu0
          %v4380 = vadd.f32 0.0, %v4379
          %v4381 = vpop.f32.mrf.mxu0
          %v4382 = vadd.f32 0.0, %v4381
          %4383 = vmatmul.bf16.gmra.mxu0 %v4351
          %v4384 = vpop.f32.mrf.mxu0
          %v4385 = vadd.f32 0.0, %v4384
          %v4386 = vpop.f32.mrf.mxu0
          %v4387 = vadd.f32 0.0, %v4386
          %4388 = vmatmul.bf16.gmra.mxu0 %v4354
          %v4389 = vpop.f32.mrf.mxu0
          %v4390 = vadd.f32 0.0, %v4389
          %v4391 = vpop.f32.mrf.mxu0
          %v4392 = vadd.f32 0.0, %v4391
          %4393 = vmatmul.bf16.gmra.mxu0 %v4357
          %v4394 = vpop.f32.mrf.mxu0
          %v4395 = vadd.f32 0.0, %v4394
          %v4396 = vpop.f32.mrf.mxu0
          %v4397 = vadd.f32 0.0, %v4396
          %4398 = vmatmul.bf16.gmra.mxu0 %v4360
          %v4399 = vpop.f32.mrf.mxu0
          %v4400 = vadd.f32 0.0, %v4399
          %v4401 = vpop.f32.mrf.mxu0
          %v4402 = vadd.f32 0.0, %v4401
          %4403 = vmatmul.bf16.gmra.mxu0 %v4363
          %v4404 = vpop.f32.mrf.mxu0
          %v4405 = vadd.f32 0.0, %v4404
          %v4406 = vpop.f32.mrf.mxu0
          %4407 = vdwg.mxu0
          %v4408 = vadd.f32 %v4204, %v4375
          %v4409 = vadd.f32 %v4205, %v4377
          %v4410 = vadd.f32 %v4206, %v4380
          %v4411 = vadd.f32 %v4207, %v4382
          %v4412 = vadd.f32 %v4208, %v4385
          %v4413 = vadd.f32 %v4209, %v4387
          %v4414 = vadd.f32 %v4210, %v4390
          %v4415 = vadd.f32 %v4211, %v4392
          %v4416 = vadd.f32 %v4212, %v4395
          %v4417 = vadd.f32 %v4213, %v4397
          %v4418 = vadd.f32 %v4214, %v4400
          %v4419 = vadd.f32 %v4215, %v4402
          %v4420 = vadd.f32 %v4216, %v4405
          %v4421 = vld [vmem:[#allocation3 + $0x68] sm:$0x3]
          %v4422 = vld [vmem:[%s3 + $0x40] sm:$0xf]
          %v4423 = vld [vmem:[%s3 + $0x44] sm:$0xf]
          %v4424 = vld [vmem:[%s3 + $0x48] sm:$0xf]
          %v4425 = vld [vmem:[%s3 + $0x4c] sm:$0xf]
          %v4427 = vunpack.c.l.b16 %v4421
          %v4428 = vpack.c.b16 %v4251, %v4250
          %v4429 = vpack.c.b16 %v4253, %v4252
          %v4430 = vpack.c.b16 %v4255, %v4254
          %v4431 = vpack.c.b16 %v4257, %v4256
          %v4432 = vpack.c.b16 %v4259, %v4258
          %v4433 = vpack.c.b16 %v4261, %v4260
          %v4434 = vpack.c.b16 %v4427, %v4427
          %v4439 = vunpack.c.l.b16 %v4422
          %v4440 = vunpack.c.l.b16 %v4423
          %v4441 = vunpack.c.l.b16 %v4424
          %v4442 = vunpack.c.l.b16 %v4425
          %v4443 = vpack.c.b16 %v4440, %v4439
          %v4444 = vpack.c.b16 %v4442, %v4441
          %v4448 = vsel %vm574, %v4428, 0
          %v4451 = vsel %vm574, %v4429, 0
          %v4454 = vsel %vm574, %v4430, 0
          %v4457 = vsel %vm574, %v4431, 0
          %v4460 = vsel %vm574, %v4432, 0
          %v4463 = vsel %vm574, %v4433, 0
          %v4466 = vsel %vm574, %v4434, 0
          %4468 = vmatpush.bf16.msra.mxu0 0
          %4469 = vmatpush.bf16.msra.mxu0 0
          %4470 = vmatpush.bf16.msra.mxu0 0
          %4471 = vmatpush.bf16.msra.mxu0 0
          %4472 = vmatpush.bf16.msra.mxu0 0
          %4473 = vmatpush.bf16.msra.mxu0 0
          %4474 = vmatpush.bf16.msra.mxu0 %v4444
          %4475 = vmatpush.bf16.msra.mxu0 %v4443
          %4476 = vmatmul.bf16.gmra.mxu0 %v4448
          %v4477 = vpop.f32.mrf.mxu0
          %v4478 = vadd.f32 0.0, %v4477
          %v4479 = vpop.f32.mrf.mxu0
          %v4480 = vadd.f32 0.0, %v4479
          %4481 = vmatmul.bf16.gmra.mxu0 %v4451
          %v4482 = vpop.f32.mrf.mxu0
          %v4483 = vadd.f32 0.0, %v4482
          %v4484 = vpop.f32.mrf.mxu0
          %v4485 = vadd.f32 0.0, %v4484
          %4486 = vmatmul.bf16.gmra.mxu0 %v4454
          %v4487 = vpop.f32.mrf.mxu0
          %v4488 = vadd.f32 0.0, %v4487
          %v4489 = vpop.f32.mrf.mxu0
          %v4490 = vadd.f32 0.0, %v4489
          %4491 = vmatmul.bf16.gmra.mxu0 %v4457
          %v4492 = vpop.f32.mrf.mxu0
          %v4493 = vadd.f32 0.0, %v4492
          %v4494 = vpop.f32.mrf.mxu0
          %v4495 = vadd.f32 0.0, %v4494
          %4496 = vmatmul.bf16.gmra.mxu0 %v4460
          %v4497 = vpop.f32.mrf.mxu0
          %v4498 = vadd.f32 0.0, %v4497
          %v4499 = vpop.f32.mrf.mxu0
          %v4500 = vadd.f32 0.0, %v4499
          %4501 = vmatmul.bf16.gmra.mxu0 %v4463
          %v4502 = vpop.f32.mrf.mxu0
          %v4503 = vadd.f32 0.0, %v4502
          %v4504 = vpop.f32.mrf.mxu0
          %v4505 = vadd.f32 0.0, %v4504
          %4506 = vmatmul.bf16.gmra.mxu0 %v4466
          %v4507 = vpop.f32.mrf.mxu0
          %v4508 = vadd.f32 0.0, %v4507
          %v4509 = vpop.f32.mrf.mxu0
          %4510 = vdwg.mxu0
          %v4511 = vadd.f32 %v4408, %v4478
          %v4512 = vadd.f32 %v4409, %v4480
          %v4513 = vadd.f32 %v4410, %v4483
          %v4514 = vadd.f32 %v4411, %v4485
          %v4515 = vadd.f32 %v4412, %v4488
          %v4516 = vadd.f32 %v4413, %v4490
          %v4517 = vadd.f32 %v4414, %v4493
          %v4518 = vadd.f32 %v4415, %v4495
          %v4519 = vadd.f32 %v4416, %v4498
          %v4520 = vadd.f32 %v4417, %v4500
          %v4521 = vadd.f32 %v4418, %v4503
          %v4522 = vadd.f32 %v4419, %v4505
          %v4523 = vadd.f32 %v4420, %v4508
          %v4524 = vld [vmem:[%s3 + $0x50] sm:$0xf]
          %v4525 = vld [vmem:[%s3 + $0x54] sm:$0xf]
          %v4526 = vld [vmem:[%s3 + $0x58] sm:$0xf]
          %v4527 = vld [vmem:[%s3 + $0x5c] sm:$0xf]
          %v4528 = vshrl.u32 %v4428, 16
          %v4530 = vshll.u32 %v4428, 16
          %v4532 = vrot.slane %v4530, 1
          %v4533 = vor.u32 %v4528, %v4532
          %v4534 = vshll.u32 %v4429, 16
          %v4536 = vrot.slane %v4534, 1
          %v4537 = vsel %vm2665, %v4533, %v4536
          %v4538 = vshrl.u32 %v4429, 16
          %v4540 = vor.u32 %v4538, %v4536
          %v4541 = vshll.u32 %v4430, 16
          %v4543 = vrot.slane %v4541, 1
          %v4544 = vsel %vm2665, %v4540, %v4543
          %v4545 = vshrl.u32 %v4430, 16
          %v4547 = vor.u32 %v4545, %v4543
          %v4548 = vshll.u32 %v4431, 16
          %v4550 = vrot.slane %v4548, 1
          %v4551 = vsel %vm2665, %v4547, %v4550
          %v4552 = vshrl.u32 %v4431, 16
          %v4554 = vor.u32 %v4552, %v4550
          %v4555 = vshll.u32 %v4432, 16
          %v4557 = vrot.slane %v4555, 1
          %v4558 = vsel %vm2665, %v4554, %v4557
          %v4559 = vshrl.u32 %v4432, 16
          %v4561 = vor.u32 %v4559, %v4557
          %v4562 = vshll.u32 %v4433, 16
          %v4564 = vrot.slane %v4562, 1
          %v4565 = vsel %vm2665, %v4561, %v4564
          %v4566 = vshrl.u32 %v4433, 16
          %v4568 = vor.u32 %v4566, %v4564
          %v4569 = vshll.u32 %v4434, 16
          %v4571 = vrot.slane %v4569, 1
          %v4572 = vsel %vm2665, %v4568, %v4571
          %v4573 = vshrl.u32 %v4434, 16
          %v4575 = vor.u32 %v4573, %v4571
          %v4580 = vunpack.c.l.b16 %v4524
          %v4581 = vunpack.c.l.b16 %v4525
          %v4582 = vunpack.c.l.b16 %v4526
          %v4583 = vunpack.c.l.b16 %v4527
          %v4584 = vpack.c.b16 %v4581, %v4580
          %v4585 = vpack.c.b16 %v4583, %v4582
          %v4589 = vsel %vm574, %v4537, 0
          %v4592 = vsel %vm574, %v4544, 0
          %v4595 = vsel %vm574, %v4551, 0
          %v4598 = vsel %vm574, %v4558, 0
          %v4601 = vsel %vm574, %v4565, 0
          %v4604 = vsel %vm574, %v4572, 0
          %v4607 = vsel %vm574, %v4575, 0
          %4609 = vmatpush.bf16.msra.mxu0 0
          %4610 = vmatpush.bf16.msra.mxu0 0
          %4611 = vmatpush.bf16.msra.mxu0 0
          %4612 = vmatpush.bf16.msra.mxu0 0
          %4613 = vmatpush.bf16.msra.mxu0 0
          %4614 = vmatpush.bf16.msra.mxu0 0
          %4615 = vmatpush.bf16.msra.mxu0 %v4585
          %4616 = vmatpush.bf16.msra.mxu0 %v4584
          %4617 = vmatmul.bf16.gmra.mxu0 %v4589
          %v4618 = vpop.f32.mrf.mxu0
          %v4619 = vadd.f32 0.0, %v4618
          %v4620 = vpop.f32.mrf.mxu0
          %v4621 = vadd.f32 0.0, %v4620
          %4622 = vmatmul.bf16.gmra.mxu0 %v4592
          %v4623 = vpop.f32.mrf.mxu0
          %v4624 = vadd.f32 0.0, %v4623
          %v4625 = vpop.f32.mrf.mxu0
          %v4626 = vadd.f32 0.0, %v4625
          %4627 = vmatmul.bf16.gmra.mxu0 %v4595
          %v4628 = vpop.f32.mrf.mxu0
          %v4629 = vadd.f32 0.0, %v4628
          %v4630 = vpop.f32.mrf.mxu0
          %v4631 = vadd.f32 0.0, %v4630
          %4632 = vmatmul.bf16.gmra.mxu0 %v4598
          %v4633 = vpop.f32.mrf.mxu0
          %v4634 = vadd.f32 0.0, %v4633
          %v4635 = vpop.f32.mrf.mxu0
          %v4636 = vadd.f32 0.0, %v4635
          %4637 = vmatmul.bf16.gmra.mxu0 %v4601
          %v4638 = vpop.f32.mrf.mxu0
          %v4639 = vadd.f32 0.0, %v4638
          %v4640 = vpop.f32.mrf.mxu0
          %v4641 = vadd.f32 0.0, %v4640
          %4642 = vmatmul.bf16.gmra.mxu0 %v4604
          %v4643 = vpop.f32.mrf.mxu0
          %v4644 = vadd.f32 0.0, %v4643
          %v4645 = vpop.f32.mrf.mxu0
          %v4646 = vadd.f32 0.0, %v4645
          %4647 = vmatmul.bf16.gmra.mxu0 %v4607
          %v4648 = vpop.f32.mrf.mxu0
          %v4649 = vadd.f32 0.0, %v4648
          %v4650 = vpop.f32.mrf.mxu0
          %4651 = vdwg.mxu0
          %v4652 = vadd.f32 %v4511, %v4619
          %v4653 = vadd.f32 %v4512, %v4621
          %v4654 = vadd.f32 %v4513, %v4624
          %v4655 = vadd.f32 %v4514, %v4626
          %v4656 = vadd.f32 %v4515, %v4629
          %v4657 = vadd.f32 %v4516, %v4631
          %v4658 = vadd.f32 %v4517, %v4634
          %v4659 = vadd.f32 %v4518, %v4636
          %v4660 = vadd.f32 %v4519, %v4639
          %v4661 = vadd.f32 %v4520, %v4641
          %v4662 = vadd.f32 %v4521, %v4644
          %v4663 = vadd.f32 %v4522, %v4646
          %v4664 = vadd.f32 %v4523, %v4649
          %v4665 = vld [vmem:[#allocation3 + $0x3c] sm:$0x8]
          %v4666 = vld [vmem:[#allocation3 + $0x40] sm:$0xf]
          %v4667 = vld [vmem:[#allocation3 + $0x44] sm:$0xf]
          %v4668 = vld [vmem:[#allocation3 + $0x48] sm:$0xf]
          %v4669 = vld [vmem:[#allocation3 + $0x4c] sm:$0xf]
          %v4670 = vld [vmem:[#allocation3 + $0x50] sm:$0xf]
          %v4671 = vld [vmem:[#allocation3 + $0x54] sm:$0xf]
          %v4672 = vld [vmem:[#allocation3 + $0x58] sm:$0xf]
          %v4673 = vld [vmem:[#allocation3 + $0x5c] sm:$0xf]
          %v4674 = vld [vmem:[#allocation3 + $0x60] sm:$0xf]
          %v4675 = vld [vmem:[#allocation3 + $0x64] sm:$0xf]
          %v4676 = vld [vmem:[#allocation3 + $0x68] sm:$0xf]
          %v4677 = vld [vmem:[#allocation3 + $0x6c] sm:$0xf]
          %v4678 = vld [vmem:[#allocation3 + $0x70] sm:$0x1]
          %v4679 = vld [vmem:[%s3 + $0x60] sm:$0xf]
          %v4680 = vld [vmem:[%s3 + $0x64] sm:$0xf]
          %v4681 = vld [vmem:[%s3 + $0x68] sm:$0xf]
          %v4682 = vld [vmem:[%s3 + $0x6c] sm:$0xf]
          %v4697 = vunpack.c.l.b16 %v4665
          %v4698 = vunpack.c.l.b16 %v4666
          %v4699 = vunpack.c.l.b16 %v4667
          %v4700 = vunpack.c.l.b16 %v4668
          %v4701 = vunpack.c.l.b16 %v4669
          %v4702 = vunpack.c.l.b16 %v4670
          %v4703 = vunpack.c.l.b16 %v4671
          %v4704 = vunpack.c.l.b16 %v4672
          %v4705 = vunpack.c.l.b16 %v4673
          %v4706 = vunpack.c.l.b16 %v4674
          %v4707 = vunpack.c.l.b16 %v4675
          %v4708 = vunpack.c.l.b16 %v4676
          %v4709 = vunpack.c.l.b16 %v4677
          %v4710 = vunpack.c.l.b16 %v4678
          %v4711 = vpack.c.b16 %v4698, %v4697
          %v4712 = vpack.c.b16 %v4700, %v4699
          %v4713 = vpack.c.b16 %v4702, %v4701
          %v4714 = vpack.c.b16 %v4704, %v4703
          %v4715 = vpack.c.b16 %v4706, %v4705
          %v4716 = vpack.c.b16 %v4708, %v4707
          %v4717 = vpack.c.b16 %v4710, %v4709
          %v4718 = vrot.slane %v4711, 3
          %v4719 = vrot.slane %v4712, 3
          %v4720 = vsel %vm3471, %v4718, %v4719
          %v4721 = vrot.slane %v4713, 3
          %v4722 = vsel %vm3471, %v4719, %v4721
          %v4723 = vrot.slane %v4714, 3
          %v4724 = vsel %vm3471, %v4721, %v4723
          %v4725 = vrot.slane %v4715, 3
          %v4726 = vsel %vm3471, %v4723, %v4725
          %v4727 = vrot.slane %v4716, 3
          %v4728 = vsel %vm3471, %v4725, %v4727
          %v4729 = vrot.slane %v4717, 3
          %v4730 = vsel %vm3471, %v4727, %v4729
          %v4735 = vunpack.c.l.b16 %v4679
          %v4736 = vunpack.c.l.b16 %v4680
          %v4737 = vunpack.c.l.b16 %v4681
          %v4738 = vunpack.c.l.b16 %v4682
          %v4739 = vpack.c.b16 %v4736, %v4735
          %v4740 = vpack.c.b16 %v4738, %v4737
          %v4744 = vsel %vm574, %v4720, 0
          %v4747 = vsel %vm574, %v4722, 0
          %v4750 = vsel %vm574, %v4724, 0
          %v4753 = vsel %vm574, %v4726, 0
          %v4756 = vsel %vm574, %v4728, 0
          %v4759 = vsel %vm574, %v4730, 0
          %v4762 = vsel %vm574, %v4729, 0
          %4764 = vmatpush.bf16.msra.mxu0 0
          %4765 = vmatpush.bf16.msra.mxu0 0
          %4766 = vmatpush.bf16.msra.mxu0 0
          %4767 = vmatpush.bf16.msra.mxu0 0
          %4768 = vmatpush.bf16.msra.mxu0 0
          %4769 = vmatpush.bf16.msra.mxu0 0
          %4770 = vmatpush.bf16.msra.mxu0 %v4740
          %4771 = vmatpush.bf16.msra.mxu0 %v4739
          %4772 = vmatmul.bf16.gmra.mxu0 %v4744
          %v4773 = vpop.f32.mrf.mxu0
          %v4774 = vadd.f32 0.0, %v4773
          %v4775 = vpop.f32.mrf.mxu0
          %v4776 = vadd.f32 0.0, %v4775
          %4777 = vmatmul.bf16.gmra.mxu0 %v4747
          %v4778 = vpop.f32.mrf.mxu0
          %v4779 = vadd.f32 0.0, %v4778
          %v4780 = vpop.f32.mrf.mxu0
          %v4781 = vadd.f32 0.0, %v4780
          %4782 = vmatmul.bf16.gmra.mxu0 %v4750
          %v4783 = vpop.f32.mrf.mxu0
          %v4784 = vadd.f32 0.0, %v4783
          %v4785 = vpop.f32.mrf.mxu0
          %v4786 = vadd.f32 0.0, %v4785
          %4787 = vmatmul.bf16.gmra.mxu0 %v4753
          %v4788 = vpop.f32.mrf.mxu0
          %v4789 = vadd.f32 0.0, %v4788
          %v4790 = vpop.f32.mrf.mxu0
          %v4791 = vadd.f32 0.0, %v4790
          %4792 = vmatmul.bf16.gmra.mxu0 %v4756
          %v4793 = vpop.f32.mrf.mxu0
          %v4794 = vadd.f32 0.0, %v4793
          %v4795 = vpop.f32.mrf.mxu0
          %v4796 = vadd.f32 0.0, %v4795
          %4797 = vmatmul.bf16.gmra.mxu0 %v4759
          %v4798 = vpop.f32.mrf.mxu0
          %v4799 = vadd.f32 0.0, %v4798
          %v4800 = vpop.f32.mrf.mxu0
          %v4801 = vadd.f32 0.0, %v4800
          %4802 = vmatmul.bf16.gmra.mxu0 %v4762
          %v4803 = vpop.f32.mrf.mxu0
          %v4804 = vadd.f32 0.0, %v4803
          %v4805 = vpop.f32.mrf.mxu0
          %4806 = vdwg.mxu0
          %v4807 = vadd.f32 %v4652, %v4774
          %v4808 = vadd.f32 %v4653, %v4776
          %v4809 = vadd.f32 %v4654, %v4779
          %v4810 = vadd.f32 %v4655, %v4781
          %v4811 = vadd.f32 %v4656, %v4784
          %v4812 = vadd.f32 %v4657, %v4786
          %v4813 = vadd.f32 %v4658, %v4789
          %v4814 = vadd.f32 %v4659, %v4791
          %v4815 = vadd.f32 %v4660, %v4794
          %v4816 = vadd.f32 %v4661, %v4796
          %v4817 = vadd.f32 %v4662, %v4799
          %v4818 = vadd.f32 %v4663, %v4801
          %v4819 = vadd.f32 %v4664, %v4804
          %v4820 = vld [vmem:[%s3 + $0x70] sm:$0xf]
          %v4821 = vld [vmem:[%s3 + $0x74] sm:$0xf]
          %v4822 = vld [vmem:[%s3 + $0x78] sm:$0xf]
          %v4823 = vld [vmem:[%s3 + $0x7c] sm:$0xf]
          %v4825 = vshrl.u32 %v4711, 16
          %v4827 = vrot.slane %v4825, 3
          %v4828 = vshll.u32 %v4711, 16
          %v4830 = vrot.slane %v4828, 4
          %v4831 = vor.u32 %v4827, %v4830
          %v4833 = vshrl.u32 %v4712, 16
          %v4835 = vrot.slane %v4833, 3
          %v4836 = vshll.u32 %v4712, 16
          %v4838 = vrot.slane %v4836, 4
          %v4839 = vor.u32 %v4835, %v4838
          %v4840 = vsel %vm3003, %v4831, %v4839
          %v4842 = vshrl.u32 %v4713, 16
          %v4844 = vrot.slane %v4842, 3
          %v4845 = vshll.u32 %v4713, 16
          %v4847 = vrot.slane %v4845, 4
          %v4848 = vor.u32 %v4844, %v4847
          %v4849 = vsel %vm3003, %v4839, %v4848
          %v4851 = vshrl.u32 %v4714, 16
          %v4853 = vrot.slane %v4851, 3
          %v4854 = vshll.u32 %v4714, 16
          %v4856 = vrot.slane %v4854, 4
          %v4857 = vor.u32 %v4853, %v4856
          %v4858 = vsel %vm3003, %v4848, %v4857
          %v4860 = vshrl.u32 %v4715, 16
          %v4862 = vrot.slane %v4860, 3
          %v4863 = vshll.u32 %v4715, 16
          %v4865 = vrot.slane %v4863, 4
          %v4866 = vor.u32 %v4862, %v4865
          %v4867 = vsel %vm3003, %v4857, %v4866
          %v4869 = vshrl.u32 %v4716, 16
          %v4871 = vrot.slane %v4869, 3
          %v4872 = vshll.u32 %v4716, 16
          %v4874 = vrot.slane %v4872, 4
          %v4875 = vor.u32 %v4871, %v4874
          %v4876 = vsel %vm3003, %v4866, %v4875
          %v4878 = vshrl.u32 %v4717, 16
          %v4880 = vrot.slane %v4878, 3
          %v4881 = vshll.u32 %v4717, 16
          %v4883 = vrot.slane %v4881, 4
          %v4884 = vor.u32 %v4880, %v4883
          %v4885 = vsel %vm3003, %v4875, %v4884
          %v4890 = vunpack.c.l.b16 %v4820
          %v4891 = vunpack.c.l.b16 %v4821
          %v4892 = vunpack.c.l.b16 %v4822
          %v4893 = vunpack.c.l.b16 %v4823
          %v4894 = vpack.c.b16 %v4891, %v4890
          %v4895 = vpack.c.b16 %v4893, %v4892
          %v4899 = vsel %vm574, %v4840, 0
          %v4902 = vsel %vm574, %v4849, 0
          %v4905 = vsel %vm574, %v4858, 0
          %v4908 = vsel %vm574, %v4867, 0
          %v4911 = vsel %vm574, %v4876, 0
          %v4914 = vsel %vm574, %v4885, 0
          %v4917 = vsel %vm574, %v4884, 0
          %4919 = vmatpush.bf16.msra.mxu0 0
          %4920 = vmatpush.bf16.msra.mxu0 0
          %4921 = vmatpush.bf16.msra.mxu0 0
          %4922 = vmatpush.bf16.msra.mxu0 0
          %4923 = vmatpush.bf16.msra.mxu0 0
          %4924 = vmatpush.bf16.msra.mxu0 0
          %4925 = vmatpush.bf16.msra.mxu0 %v4895
          %4926 = vmatpush.bf16.msra.mxu0 %v4894
          %4927 = vmatmul.bf16.gmra.mxu0 %v4899
          %v4928 = vpop.f32.mrf.mxu0
          %v4929 = vadd.f32 0.0, %v4928
          %v4930 = vpop.f32.mrf.mxu0
          %v4931 = vadd.f32 0.0, %v4930
          %4932 = vmatmul.bf16.gmra.mxu0 %v4902
          %v4933 = vpop.f32.mrf.mxu0
          %v4934 = vadd.f32 0.0, %v4933
          %v4935 = vpop.f32.mrf.mxu0
          %v4936 = vadd.f32 0.0, %v4935
          %4937 = vmatmul.bf16.gmra.mxu0 %v4905
          %v4938 = vpop.f32.mrf.mxu0
          %v4939 = vadd.f32 0.0, %v4938
          %v4940 = vpop.f32.mrf.mxu0
          %v4941 = vadd.f32 0.0, %v4940
          %4942 = vmatmul.bf16.gmra.mxu0 %v4908
          %v4943 = vpop.f32.mrf.mxu0
          %v4944 = vadd.f32 0.0, %v4943
          %v4945 = vpop.f32.mrf.mxu0
          %v4946 = vadd.f32 0.0, %v4945
          %4947 = vmatmul.bf16.gmra.mxu0 %v4911
          %v4948 = vpop.f32.mrf.mxu0
          %v4949 = vadd.f32 0.0, %v4948
          %v4950 = vpop.f32.mrf.mxu0
          %v4951 = vadd.f32 0.0, %v4950
          %4952 = vmatmul.bf16.gmra.mxu0 %v4914
          %v4953 = vpop.f32.mrf.mxu0
          %v4954 = vadd.f32 0.0, %v4953
          %v4955 = vpop.f32.mrf.mxu0
          %v4956 = vadd.f32 0.0, %v4955
          %4957 = vmatmul.bf16.gmra.mxu0 %v4917
          %v4958 = vpop.f32.mrf.mxu0
          %v4959 = vadd.f32 0.0, %v4958
          %v4960 = vpop.f32.mrf.mxu0
          %4961 = vdwg.mxu0
          %v4962 = vadd.f32 %v4807, %v4929
          %v4963 = vadd.f32 %v4808, %v4931
          %v4964 = vadd.f32 %v4809, %v4934
          %v4965 = vadd.f32 %v4810, %v4936
          %v4966 = vadd.f32 %v4811, %v4939
          %v4967 = vadd.f32 %v4812, %v4941
          %v4968 = vadd.f32 %v4813, %v4944
          %v4969 = vadd.f32 %v4814, %v4946
          %v4970 = vadd.f32 %v4815, %v4949
          %v4971 = vadd.f32 %v4816, %v4951
          %v4972 = vadd.f32 %v4817, %v4954
          %v4973 = vadd.f32 %v4818, %v4956
          %v4974 = vadd.f32 %v4819, %v4959
          %v4975 = vld [vmem:[#allocation3 + $0x70] sm:$0x3]
          %v4976 = vld [vmem:[%s3 + $0x80] sm:$0xf]
          %v4977 = vld [vmem:[%s3 + $0x84] sm:$0xf]
          %v4978 = vld [vmem:[%s3 + $0x88] sm:$0xf]
          %v4979 = vld [vmem:[%s3 + $0x8c] sm:$0xf]
          %v4981 = vunpack.c.l.b16 %v4975
          %v4982 = vpack.c.b16 %v4699, %v4698
          %v4983 = vpack.c.b16 %v4701, %v4700
          %v4984 = vpack.c.b16 %v4703, %v4702
          %v4985 = vpack.c.b16 %v4705, %v4704
          %v4986 = vpack.c.b16 %v4707, %v4706
          %v4987 = vpack.c.b16 %v4709, %v4708
          %v4988 = vpack.c.b16 %v4981, %v4981
          %v4993 = vunpack.c.l.b16 %v4976
          %v4994 = vunpack.c.l.b16 %v4977
          %v4995 = vunpack.c.l.b16 %v4978
          %v4996 = vunpack.c.l.b16 %v4979
          %v4997 = vpack.c.b16 %v4994, %v4993
          %v4998 = vpack.c.b16 %v4996, %v4995
          %v5002 = vsel %vm574, %v4982, 0
          %v5005 = vsel %vm574, %v4983, 0
          %v5008 = vsel %vm574, %v4984, 0
          %v5011 = vsel %vm574, %v4985, 0
          %v5014 = vsel %vm574, %v4986, 0
          %v5017 = vsel %vm574, %v4987, 0
          %v5020 = vsel %vm574, %v4988, 0
          %5022 = vmatpush.bf16.msra.mxu0 0
          %5023 = vmatpush.bf16.msra.mxu0 0
          %5024 = vmatpush.bf16.msra.mxu0 0
          %5025 = vmatpush.bf16.msra.mxu0 0
          %5026 = vmatpush.bf16.msra.mxu0 0
          %5027 = vmatpush.bf16.msra.mxu0 0
          %5028 = vmatpush.bf16.msra.mxu0 %v4998
          %5029 = vmatpush.bf16.msra.mxu0 %v4997
          %5030 = vmatmul.bf16.gmra.mxu0 %v5002
          %v5031 = vpop.f32.mrf.mxu0
          %v5032 = vadd.f32 0.0, %v5031
          %v5033 = vpop.f32.mrf.mxu0
          %v5034 = vadd.f32 0.0, %v5033
          %5035 = vmatmul.bf16.gmra.mxu0 %v5005
          %v5036 = vpop.f32.mrf.mxu0
          %v5037 = vadd.f32 0.0, %v5036
          %v5038 = vpop.f32.mrf.mxu0
          %v5039 = vadd.f32 0.0, %v5038
          %5040 = vmatmul.bf16.gmra.mxu0 %v5008
          %v5041 = vpop.f32.mrf.mxu0
          %v5042 = vadd.f32 0.0, %v5041
          %v5043 = vpop.f32.mrf.mxu0
          %v5044 = vadd.f32 0.0, %v5043
          %5045 = vmatmul.bf16.gmra.mxu0 %v5011
          %v5046 = vpop.f32.mrf.mxu0
          %v5047 = vadd.f32 0.0, %v5046
          %v5048 = vpop.f32.mrf.mxu0
          %v5049 = vadd.f32 0.0, %v5048
          %5050 = vmatmul.bf16.gmra.mxu0 %v5014
          %v5051 = vpop.f32.mrf.mxu0
          %v5052 = vadd.f32 0.0, %v5051
          %v5053 = vpop.f32.mrf.mxu0
          %v5054 = vadd.f32 0.0, %v5053
          %5055 = vmatmul.bf16.gmra.mxu0 %v5017
          %v5056 = vpop.f32.mrf.mxu0
          %v5057 = vadd.f32 0.0, %v5056
          %v5058 = vpop.f32.mrf.mxu0
          %v5059 = vadd.f32 0.0, %v5058
          %5060 = vmatmul.bf16.gmra.mxu0 %v5020
          %v5061 = vpop.f32.mrf.mxu0
          %v5062 = vadd.f32 0.0, %v5061
          %v5063 = vpop.f32.mrf.mxu0
          %5064 = vdwg.mxu0
          %v5065 = vadd.f32 %v4962, %v5032
          %v5066 = vadd.f32 %v4963, %v5034
          %v5067 = vadd.f32 %v4964, %v5037
          %v5068 = vadd.f32 %v4965, %v5039
          %v5069 = vadd.f32 %v4966, %v5042
          %v5070 = vadd.f32 %v4967, %v5044
          %v5071 = vadd.f32 %v4968, %v5047
          %v5072 = vadd.f32 %v4969, %v5049
          %v5073 = vadd.f32 %v4970, %v5052
          %v5074 = vadd.f32 %v4971, %v5054
          %v5075 = vadd.f32 %v4972, %v5057
          %v5076 = vadd.f32 %v4973, %v5059
          %v5077 = vadd.f32 %v4974, %v5062
          %v5078 = vld [vmem:[%s4] sm:$0x1]
          %v5080 = vperm.slane %v5078, 0
          %v5082 = vadd.f32 %v5065, %v5080
          %v5083 = vadd.f32 %v5066, %v5080
          %v5084 = vadd.f32 %v5067, %v5080
          %v5085 = vadd.f32 %v5068, %v5080
          %v5086 = vadd.f32 %v5069, %v5080
          %v5087 = vadd.f32 %v5070, %v5080
          %v5088 = vadd.f32 %v5071, %v5080
          %v5089 = vadd.f32 %v5072, %v5080
          %v5090 = vadd.f32 %v5073, %v5080
          %v5091 = vadd.f32 %v5074, %v5080
          %v5092 = vadd.f32 %v5075, %v5080
          %v5093 = vadd.f32 %v5076, %v5080
          %v5094 = vadd.f32 %v5077, %v5080
          %v5095 = vmax.f32 %v5082, 0.0
          %v5096 = vmax.f32 %v5083, 0.0
          %v5097 = vmax.f32 %v5084, 0.0
          %v5098 = vmax.f32 %v5085, 0.0
          %v5099 = vmax.f32 %v5086, 0.0
          %v5100 = vmax.f32 %v5087, 0.0
          %v5101 = vmax.f32 %v5088, 0.0
          %v5102 = vmax.f32 %v5089, 0.0
          %v5103 = vmax.f32 %v5090, 0.0
          %v5104 = vmax.f32 %v5091, 0.0
          %v5105 = vmax.f32 %v5092, 0.0
          %v5106 = vmax.f32 %v5093, 0.0
          %v5107 = vmax.f32 %v5094, 0.0
          %5108 = vst.msk [vmem:[#allocation4 + $0x60] sm:$0xff] %vm3836, %v5095
          %5109 = vst.msk [vmem:[#allocation4 + $0x68] sm:$0xff] %vm3836, %v5096
          %5110 = vst.msk [vmem:[#allocation4 + $0x70] sm:$0xff] %vm3836, %v5097
          %5111 = vst.msk [vmem:[#allocation4 + $0x78] sm:$0xff] %vm3836, %v5098
          %5112 = vst.msk [vmem:[#allocation4 + $0x80] sm:$0xff] %vm3836, %v5099
          %5113 = vst.msk [vmem:[#allocation4 + $0x88] sm:$0xff] %vm3836, %v5100
          %5114 = vst.msk [vmem:[#allocation4 + $0x90] sm:$0xff] %vm3836, %v5101
          %5115 = vst.msk [vmem:[#allocation4 + $0x98] sm:$0xff] %vm3836, %v5102
          %5116 = vst.msk [vmem:[#allocation4 + $0xa0] sm:$0xff] %vm3836, %v5103
          %5117 = vst.msk [vmem:[#allocation4 + $0xa8] sm:$0xff] %vm3836, %v5104
          %5118 = vst.msk [vmem:[#allocation4 + $0xb0] sm:$0xff] %vm3836, %v5105
          %5119 = vst.msk [vmem:[#allocation4 + $0xb8] sm:$0xff] %vm3836, %v5106
          %vm5120 = vcmask 518144
          %5121 = vst.msk [vmem:[#allocation4 + $0xc0] sm:$0x7] %vm5120, %v5107
          %v5122 = vld [vmem:[#allocation4] sm:$0xff]
          %v5123 = vld [vmem:[#allocation4 + $0x8] sm:$0x7f]
          %v5124 = vld [vmem:[#allocation4 + $0xf] sm:$0xff]
          %v5125 = vld [vmem:[#allocation4 + $0x17] sm:$0x7f]
          %v5126 = vmax.f32 %v5122, %v5124
          %v5127 = vmax.f32 %v5123, %v5125
          %5128 = vst.msk [vmem:[#allocation4] sm:$0xff] %vm3836, %v5126
          %vm5129 = vcmask 522240
          %5130 = vst.msk [vmem:[#allocation4 + $0x8] sm:$0x7f] %vm5129, %v5127
          %v5131 = vld [vmem:[#allocation4] ss:$2 sm:$0x3f]
          %s5132 = scalar_lea.vmem [#allocation4], 1
          %v5133 = vld [vmem:[%s5132] ss:$2 sm:$0x3f]
          %v5134 = vmax.f32 %v5131, %v5133
          %v5135 = vpack.c.bf16 %v5134, %v5134
          %5136 = vst.msk [vmem:[#allocation5] sm:$0x7] %vm5120, %v5135
          %v5137 = vld [vmem:[#allocation4 + $0x1e] sm:$0xff]
          %v5138 = vld [vmem:[#allocation4 + $0x26] sm:$0x7f]
          %v5139 = vld [vmem:[#allocation4 + $0x2d] sm:$0xff]
          %v5140 = vld [vmem:[#allocation4 + $0x35] sm:$0x7f]
          %v5141 = vmax.f32 %v5137, %v5139
          %v5142 = vmax.f32 %v5138, %v5140
          %5143 = vst.msk [vmem:[#allocation4 + $0x1e] sm:$0xff] %vm3836, %v5141
          %5144 = vst.msk [vmem:[#allocation4 + $0x26] sm:$0x7f] %vm5129, %v5142
          %s5145 = scalar_lea.vmem [#allocation4], 30
          %v5146 = vld [vmem:[%s5145] ss:$2 sm:$0x3f]
          %s5147 = scalar_lea.vmem [#allocation4], 31
          %v5148 = vld [vmem:[%s5147] ss:$2 sm:$0x3f]
          %v5149 = vmax.f32 %v5146, %v5148
          %v5150 = vpack.c.bf16 %v5149, %v5149
          %v5152 = vrot.slane %v5150, 5
          %v5153 = vrot.slane %v5152, 4
          %vm5156 = vcmask 519171
          %5157 = vst.msk [vmem:[#allocation5] sm:$0x8] %vm5156, %v5152
          %vm5158 = vcmask 517120
          %5159 = vst.msk [vmem:[#allocation5 + $0x4] sm:$0x3] %vm5158, %v5153
          %v5160 = vld [vmem:[#allocation4 + $0x3c] sm:$0xff]
          %v5161 = vld [vmem:[#allocation4 + $0x44] sm:$0x7f]
          %v5162 = vld [vmem:[#allocation4 + $0x4b] sm:$0xff]
          %v5163 = vld [vmem:[#allocation4 + $0x53] sm:$0x7f]
          %v5164 = vmax.f32 %v5160, %v5162
          %v5165 = vmax.f32 %v5161, %v5163
          %5166 = vst.msk [vmem:[#allocation4 + $0x3c] sm:$0xff] %vm3836, %v5164
          %5167 = vst.msk [vmem:[#allocation4 + $0x44] sm:$0x7f] %vm5129, %v5165
          %s5168 = scalar_lea.vmem [#allocation4], 60
          %v5169 = vld [vmem:[%s5168] ss:$2 sm:$0x3f]
          %s5170 = scalar_lea.vmem [#allocation4], 61
          %v5171 = vld [vmem:[%s5170] ss:$2 sm:$0x3f]
          %v5172 = vmax.f32 %v5169, %v5171
          %v5173 = vpack.c.bf16 %v5172, %v5172
          %v5175 = vrot.slane %v5173, 6
          %v5176 = vrot.slane %v5175, 4
          %vm5179 = vcmask 519170
          %5180 = vst.msk [vmem:[#allocation5 + $0x4] sm:$0xc] %vm5179, %v5175
          %vm5181 = vcmask 516096
          %5182 = vst.msk [vmem:[#allocation5 + $0x8] sm:$0x1] %vm5181, %v5176
          %v5183 = vld [vmem:[#allocation4 + $0x5a] sm:$0xff]
          %v5184 = vld [vmem:[#allocation4 + $0x62] sm:$0x7f]
          %v5185 = vld [vmem:[#allocation4 + $0x69] sm:$0xff]
          %v5186 = vld [vmem:[#allocation4 + $0x71] sm:$0x7f]
          %v5187 = vmax.f32 %v5183, %v5185
          %v5188 = vmax.f32 %v5184, %v5186
          %5189 = vst.msk [vmem:[#allocation4 + $0x5a] sm:$0xff] %vm3836, %v5187
          %5190 = vst.msk [vmem:[#allocation4 + $0x62] sm:$0x7f] %vm5129, %v5188
          %s5191 = scalar_lea.vmem [#allocation4], 90
          %v5192 = vld [vmem:[%s5191] ss:$2 sm:$0x3f]
          %s5193 = scalar_lea.vmem [#allocation4], 91
          %v5194 = vld [vmem:[%s5193] ss:$2 sm:$0x3f]
          %v5195 = vmax.f32 %v5192, %v5194
          %v5196 = vpack.c.bf16 %v5195, %v5195
          %v5198 = vrot.slane %v5196, 7
          %vm5200 = vcmask 519169
          %5201 = vst.msk [vmem:[#allocation5 + $0x8] sm:$0xe] %vm5200, %v5198
          %v5202 = vld [vmem:[#allocation4 + $0x78] sm:$0xff]
          %v5203 = vld [vmem:[#allocation4 + $0x80] sm:$0x7f]
          %v5204 = vld [vmem:[#allocation4 + $0x87] sm:$0xff]
          %v5205 = vld [vmem:[#allocation4 + $0x8f] sm:$0x7f]
          %v5206 = vmax.f32 %v5202, %v5204
          %v5207 = vmax.f32 %v5203, %v5205
          %5208 = vst.msk [vmem:[#allocation4 + $0x78] sm:$0xff] %vm3836, %v5206
          %5209 = vst.msk [vmem:[#allocation4 + $0x80] sm:$0x7f] %vm5129, %v5207
          %s5210 = scalar_lea.vmem [#allocation4], 120
          %v5211 = vld [vmem:[%s5210] ss:$2 sm:$0x3f]
          %s5212 = scalar_lea.vmem [#allocation4], 121
          %v5213 = vld [vmem:[%s5212] ss:$2 sm:$0x3f]
          %v5214 = vmax.f32 %v5211, %v5213
          %v5215 = vpack.c.bf16 %v5214, %v5214
          %5216 = vst.msk [vmem:[#allocation5 + $0xc] sm:$0x7] %vm5120, %v5215
          %v5217 = vld [vmem:[#allocation4 + $0x96] sm:$0xff]
          %v5218 = vld [vmem:[#allocation4 + $0x9e] sm:$0x7f]
          %v5219 = vld [vmem:[#allocation4 + $0xa5] sm:$0xff]
          %v5220 = vld [vmem:[#allocation4 + $0xad] sm:$0x7f]
          %v5221 = vmax.f32 %v5217, %v5219
          %v5222 = vmax.f32 %v5218, %v5220
          %5223 = vst.msk [vmem:[#allocation4 + $0x96] sm:$0xff] %vm3836, %v5221
          %5224 = vst.msk [vmem:[#allocation4 + $0x9e] sm:$0x7f] %vm5129, %v5222
          %s5225 = scalar_lea.vmem [#allocation4], 150
          %v5226 = vld [vmem:[%s5225] ss:$2 sm:$0x3f]
          %s5227 = scalar_lea.vmem [#allocation4], 151
          %v5228 = vld [vmem:[%s5227] ss:$2 sm:$0x3f]
          %v5229 = vmax.f32 %v5226, %v5228
          %v5230 = vpack.c.bf16 %v5229, %v5229
          %v5232 = vrot.slane %v5230, 5
          %v5233 = vrot.slane %v5232, 4
          %5236 = vst.msk [vmem:[#allocation5 + $0xc] sm:$0x8] %vm5156, %v5232
          %5237 = vst.msk [vmem:[#allocation5 + $0x10] sm:$0x3] %vm5158, %v5233
          %v5238 = vld [vmem:[#allocation5] sm:$0xf]
          %v5239 = vld [vmem:[#allocation5 + $0x4] sm:$0xf]
          %v5240 = vld [vmem:[#allocation5 + $0x8] sm:$0xf]
          %v5241 = vld [vmem:[%s5] sm:$0xf]
          %v5242 = vld [vmem:[%s5 + $0x4] sm:$0xf]
          %v5243 = vld [vmem:[%s5 + $0x8] sm:$0xf]
          %v5244 = vld [vmem:[%s5 + $0xc] sm:$0xf]
          %v5245 = vld [vmem:[%s5 + $0x10] sm:$0xf]
          %v5246 = vld [vmem:[%s5 + $0x14] sm:$0xf]
          %v5247 = vld [vmem:[%s5 + $0x18] sm:$0xf]
          %v5248 = vld [vmem:[%s5 + $0x1c] sm:$0xf]
          %v5249 = vld [vmem:[#allocation5 + $0xc] sm:$0x1]
          %v5250 = vld [vmem:[%s5 + $0x20] sm:$0xf]
          %v5251 = vld [vmem:[%s5 + $0x24] sm:$0xf]
          %v5252 = vld [vmem:[%s5 + $0x28] sm:$0xf]
          %v5253 = vld [vmem:[%s5 + $0x2c] sm:$0xf]
          %v5254 = vld [vmem:[%s5 + $0x30] sm:$0xf]
          %v5255 = vld [vmem:[%s5 + $0x34] sm:$0xf]
          %v5256 = vld [vmem:[%s5 + $0x38] sm:$0xf]
          %v5257 = vld [vmem:[%s5 + $0x3c] sm:$0xf]
          %v5262 = vunpack.c.l.b16 %v5238
          %v5263 = vunpack.c.l.b16 %v5239
          %v5264 = vunpack.c.l.b16 %v5240
          %v5265 = vunpack.c.l.b16 %v5249
          %v5266 = vpack.c.b16 %v5263, %v5262
          %v5267 = vpack.c.b16 %v5265, %v5264
          %v5269 = vshrl.u32 %v5266, 16
          %v5271 = vshll.u32 %v5266, 16
          %v5273 = vrot.slane %v5271, 1
          %v5274 = vor.u32 %v5269, %v5273
          %v5276 = vshll.u32 %v5267, 16
          %v5278 = vrot.slane %v5276, 1
          %v5279 = vsel %vm2665, %v5274, %v5278
          %v5280 = vshrl.u32 %v5267, 16
          %v5282 = vor.u32 %v5280, %v5278
          %v5291 = vunpack.c.l.b16 %v5250
          %v5292 = vunpack.c.l.b16 %v5251
          %v5293 = vunpack.c.l.b16 %v5252
          %v5294 = vunpack.c.l.b16 %v5253
          %v5295 = vunpack.c.l.b16 %v5254
          %v5296 = vunpack.c.l.b16 %v5255
          %v5297 = vunpack.c.l.b16 %v5256
          %v5298 = vunpack.c.l.b16 %v5257
          %v5299 = vpack.c.b16 %v5292, %v5291
          %v5300 = vpack.c.b16 %v5294, %v5293
          %v5301 = vpack.c.b16 %v5296, %v5295
          %v5302 = vpack.c.b16 %v5298, %v5297
          %v5308 = vsel %vm3836, %v5279, 0
          %v5311 = vsel %vm3836, %v5282, 0
          %5313 = vmatpush.bf16.msra.mxu0 0
          %5314 = vmatpush.bf16.msra.mxu0 0
          %5315 = vmatpush.bf16.msra.mxu0 0
          %5316 = vmatpush.bf16.msra.mxu0 0
          %5317 = vmatpush.bf16.msra.mxu0 %v5302
          %5318 = vmatpush.bf16.msra.mxu0 %v5301
          %5319 = vmatpush.bf16.msra.mxu0 %v5300
          %5320 = vmatpush.bf16.msra.mxu0 %v5299
          %5321 = vmatmul.bf16.gmra.mxu0 %v5308
          %v5322 = vpop.f32.mrf.mxu0
          %v5323 = vadd.f32 0.0, %v5322
          %v5324 = vpop.f32.mrf.mxu0
          %v5325 = vadd.f32 0.0, %v5324
          %5326 = vmatmul.bf16.gmra.mxu0 %v5311
          %v5327 = vpop.f32.mrf.mxu0
          %v5328 = vadd.f32 0.0, %v5327
          %v5329 = vpop.f32.mrf.mxu0
          %5330 = vdwg.mxu0
          %v5331 = vpack.c.b16 %v5264, %v5264
          %v5340 = vunpack.c.l.b16 %v5241
          %v5341 = vunpack.c.l.b16 %v5242
          %v5342 = vunpack.c.l.b16 %v5243
          %v5343 = vunpack.c.l.b16 %v5244
          %v5344 = vunpack.c.l.b16 %v5245
          %v5345 = vunpack.c.l.b16 %v5246
          %v5346 = vunpack.c.l.b16 %v5247
          %v5347 = vunpack.c.l.b16 %v5248
          %v5348 = vpack.c.b16 %v5341, %v5340
          %v5349 = vpack.c.b16 %v5343, %v5342
          %v5350 = vpack.c.b16 %v5345, %v5344
          %v5351 = vpack.c.b16 %v5347, %v5346
          %v5356 = vsel %vm3836, %v5266, 0
          %v5359 = vsel %vm3836, %v5331, 0
          %5361 = vmatpush.bf16.msra.mxu0 0
          %5362 = vmatpush.bf16.msra.mxu0 0
          %5363 = vmatpush.bf16.msra.mxu0 0
          %5364 = vmatpush.bf16.msra.mxu0 0
          %5365 = vmatpush.bf16.msra.mxu0 %v5351
          %5366 = vmatpush.bf16.msra.mxu0 %v5350
          %5367 = vmatpush.bf16.msra.mxu0 %v5349
          %5368 = vmatpush.bf16.msra.mxu0 %v5348
          %5369 = vmatmul.bf16.gmra.mxu0 %v5356
          %v5370 = vpop.f32.mrf.mxu0
          %v5371 = vadd.f32 %v5323, %v5370
          %v5372 = vpop.f32.mrf.mxu0
          %v5373 = vadd.f32 %v5325, %v5372
          %5374 = vmatmul.bf16.gmra.mxu0 %v5359
          %v5375 = vpop.f32.mrf.mxu0
          %v5376 = vadd.f32 %v5328, %v5375
          %v5377 = vpop.f32.mrf.mxu0
          %5378 = vdwg.mxu0
          %v5379 = vld [vmem:[#allocation5] sm:$0xe]
          %v5380 = vld [vmem:[%s5 + $0x40] sm:$0xf]
          %v5381 = vld [vmem:[%s5 + $0x44] sm:$0xf]
          %v5382 = vld [vmem:[%s5 + $0x48] sm:$0xf]
          %v5383 = vld [vmem:[%s5 + $0x4c] sm:$0xf]
          %v5384 = vld [vmem:[%s5 + $0x50] sm:$0xf]
          %v5385 = vld [vmem:[%s5 + $0x54] sm:$0xf]
          %v5386 = vld [vmem:[%s5 + $0x58] sm:$0xf]
          %v5387 = vld [vmem:[%s5 + $0x5c] sm:$0xf]
          %v5389 = vunpack.c.l.b16 %v5379
          %v5390 = vpack.c.b16 %v5263, %v5389
          %v5391 = vrot.slane %v5390, 1
          %v5392 = vrot.slane %v5267, 1
          %v5393 = vsel %vm2858, %v5391, %v5392
          %v5402 = vunpack.c.l.b16 %v5380
          %v5403 = vunpack.c.l.b16 %v5381
          %v5404 = vunpack.c.l.b16 %v5382
          %v5405 = vunpack.c.l.b16 %v5383
          %v5406 = vunpack.c.l.b16 %v5384
          %v5407 = vunpack.c.l.b16 %v5385
          %v5408 = vunpack.c.l.b16 %v5386
          %v5409 = vunpack.c.l.b16 %v5387
          %v5410 = vpack.c.b16 %v5403, %v5402
          %v5411 = vpack.c.b16 %v5405, %v5404
          %v5412 = vpack.c.b16 %v5407, %v5406
          %v5413 = vpack.c.b16 %v5409, %v5408
          %v5419 = vsel %vm3836, %v5393, 0
          %v5422 = vsel %vm3836, %v5392, 0
          %5424 = vmatpush.bf16.msra.mxu0 0
          %5425 = vmatpush.bf16.msra.mxu0 0
          %5426 = vmatpush.bf16.msra.mxu0 0
          %5427 = vmatpush.bf16.msra.mxu0 0
          %5428 = vmatpush.bf16.msra.mxu0 %v5413
          %5429 = vmatpush.bf16.msra.mxu0 %v5412
          %5430 = vmatpush.bf16.msra.mxu0 %v5411
          %5431 = vmatpush.bf16.msra.mxu0 %v5410
          %5432 = vmatmul.bf16.gmra.mxu0 %v5419
          %v5433 = vpop.f32.mrf.mxu0
          %v5434 = vadd.f32 0.0, %v5433
          %v5435 = vpop.f32.mrf.mxu0
          %v5436 = vadd.f32 0.0, %v5435
          %5437 = vmatmul.bf16.gmra.mxu0 %v5422
          %v5438 = vpop.f32.mrf.mxu0
          %v5439 = vadd.f32 0.0, %v5438
          %v5440 = vpop.f32.mrf.mxu0
          %5441 = vdwg.mxu0
          %v5442 = vadd.f32 %v5371, %v5434
          %v5443 = vadd.f32 %v5373, %v5436
          %v5444 = vadd.f32 %v5376, %v5439
          %v5445 = vld [vmem:[#allocation5] sm:$0x8]
          %v5446 = vld [vmem:[#allocation5 + $0xc] sm:$0x7]
          %v5447 = vld [vmem:[%s5 + $0x60] sm:$0xf]
          %v5448 = vld [vmem:[%s5 + $0x64] sm:$0xf]
          %v5449 = vld [vmem:[%s5 + $0x68] sm:$0xf]
          %v5450 = vld [vmem:[%s5 + $0x6c] sm:$0xf]
          %v5451 = vld [vmem:[%s5 + $0x70] sm:$0xf]
          %v5452 = vld [vmem:[%s5 + $0x74] sm:$0xf]
          %v5453 = vld [vmem:[%s5 + $0x78] sm:$0xf]
          %v5454 = vld [vmem:[%s5 + $0x7c] sm:$0xf]
          %v5457 = vunpack.c.l.b16 %v5445
          %v5458 = vunpack.c.l.b16 %v5446
          %v5459 = vpack.c.b16 %v5263, %v5457
          %v5460 = vpack.c.b16 %v5458, %v5264
          %v5461 = vrot.slane %v5459, 3
          %v5462 = vrot.slane %v5460, 3
          %v5463 = vsel %vm3471, %v5461, %v5462
          %v5472 = vunpack.c.l.b16 %v5447
          %v5473 = vunpack.c.l.b16 %v5448
          %v5474 = vunpack.c.l.b16 %v5449
          %v5475 = vunpack.c.l.b16 %v5450
          %v5476 = vunpack.c.l.b16 %v5451
          %v5477 = vunpack.c.l.b16 %v5452
          %v5478 = vunpack.c.l.b16 %v5453
          %v5479 = vunpack.c.l.b16 %v5454
          %v5480 = vpack.c.b16 %v5473, %v5472
          %v5481 = vpack.c.b16 %v5475, %v5474
          %v5482 = vpack.c.b16 %v5477, %v5476
          %v5483 = vpack.c.b16 %v5479, %v5478
          %v5489 = vsel %vm3836, %v5463, 0
          %v5492 = vsel %vm3836, %v5462, 0
          %5494 = vmatpush.bf16.msra.mxu0 0
          %5495 = vmatpush.bf16.msra.mxu0 0
          %5496 = vmatpush.bf16.msra.mxu0 0
          %5497 = vmatpush.bf16.msra.mxu0 0
          %5498 = vmatpush.bf16.msra.mxu0 %v5483
          %5499 = vmatpush.bf16.msra.mxu0 %v5482
          %5500 = vmatpush.bf16.msra.mxu0 %v5481
          %5501 = vmatpush.bf16.msra.mxu0 %v5480
          %5502 = vmatmul.bf16.gmra.mxu0 %v5489
          %v5503 = vpop.f32.mrf.mxu0
          %v5504 = vadd.f32 0.0, %v5503
          %v5505 = vpop.f32.mrf.mxu0
          %v5506 = vadd.f32 0.0, %v5505
          %5507 = vmatmul.bf16.gmra.mxu0 %v5492
          %v5508 = vpop.f32.mrf.mxu0
          %v5509 = vadd.f32 0.0, %v5508
          %v5510 = vpop.f32.mrf.mxu0
          %5511 = vdwg.mxu0
          %v5512 = vadd.f32 %v5442, %v5504
          %v5513 = vadd.f32 %v5443, %v5506
          %v5514 = vadd.f32 %v5444, %v5509
          %v5515 = vld [vmem:[#allocation5 + $0xc] sm:$0xf]
          %v5516 = vld [vmem:[%s5 + $0x80] sm:$0xf]
          %v5517 = vld [vmem:[%s5 + $0x84] sm:$0xf]
          %v5518 = vld [vmem:[%s5 + $0x88] sm:$0xf]
          %v5519 = vld [vmem:[%s5 + $0x8c] sm:$0xf]
          %v5520 = vld [vmem:[%s5 + $0x90] sm:$0xf]
          %v5521 = vld [vmem:[%s5 + $0x94] sm:$0xf]
          %v5522 = vld [vmem:[%s5 + $0x98] sm:$0xf]
          %v5523 = vld [vmem:[%s5 + $0x9c] sm:$0xf]
          %v5525 = vunpack.c.l.b16 %v5515
          %v5526 = vpack.c.b16 %v5525, %v5264
          %v5528 = vshrl.u32 %v5459, 16
          %v5530 = vrot.slane %v5528, 3
          %v5531 = vshll.u32 %v5459, 16
          %v5533 = vrot.slane %v5531, 4
          %v5534 = vor.u32 %v5530, %v5533
          %v5536 = vshrl.u32 %v5526, 16
          %v5538 = vrot.slane %v5536, 3
          %v5539 = vshll.u32 %v5526, 16
          %v5541 = vrot.slane %v5539, 4
          %v5542 = vor.u32 %v5538, %v5541
          %v5543 = vsel %vm3003, %v5534, %v5542
          %v5552 = vunpack.c.l.b16 %v5516
          %v5553 = vunpack.c.l.b16 %v5517
          %v5554 = vunpack.c.l.b16 %v5518
          %v5555 = vunpack.c.l.b16 %v5519
          %v5556 = vunpack.c.l.b16 %v5520
          %v5557 = vunpack.c.l.b16 %v5521
          %v5558 = vunpack.c.l.b16 %v5522
          %v5559 = vunpack.c.l.b16 %v5523
          %v5560 = vpack.c.b16 %v5553, %v5552
          %v5561 = vpack.c.b16 %v5555, %v5554
          %v5562 = vpack.c.b16 %v5557, %v5556
          %v5563 = vpack.c.b16 %v5559, %v5558
          %v5569 = vsel %vm3836, %v5543, 0
          %v5572 = vsel %vm3836, %v5542, 0
          %5574 = vmatpush.bf16.msra.mxu0 0
          %5575 = vmatpush.bf16.msra.mxu0 0
          %5576 = vmatpush.bf16.msra.mxu0 0
          %5577 = vmatpush.bf16.msra.mxu0 0
          %5578 = vmatpush.bf16.msra.mxu0 %v5563
          %5579 = vmatpush.bf16.msra.mxu0 %v5562
          %5580 = vmatpush.bf16.msra.mxu0 %v5561
          %5581 = vmatpush.bf16.msra.mxu0 %v5560
          %5582 = vmatmul.bf16.gmra.mxu0 %v5569
          %v5583 = vpop.f32.mrf.mxu0
          %v5584 = vadd.f32 0.0, %v5583
          %v5585 = vpop.f32.mrf.mxu0
          %v5586 = vadd.f32 0.0, %v5585
          %5587 = vmatmul.bf16.gmra.mxu0 %v5572
          %v5588 = vpop.f32.mrf.mxu0
          %v5589 = vadd.f32 0.0, %v5588
          %v5590 = vpop.f32.mrf.mxu0
          %5591 = vdwg.mxu0
          %v5592 = vadd.f32 %v5512, %v5584
          %v5593 = vadd.f32 %v5513, %v5586
          %v5594 = vadd.f32 %v5514, %v5589
          %v5595 = vld [vmem:[%s5 + $0xa0] sm:$0xf]
          %v5596 = vld [vmem:[%s5 + $0xa4] sm:$0xf]
          %v5597 = vld [vmem:[%s5 + $0xa8] sm:$0xf]
          %v5598 = vld [vmem:[%s5 + $0xac] sm:$0xf]
          %v5599 = vld [vmem:[%s5 + $0xb0] sm:$0xf]
          %v5600 = vld [vmem:[%s5 + $0xb4] sm:$0xf]
          %v5601 = vld [vmem:[%s5 + $0xb8] sm:$0xf]
          %v5602 = vld [vmem:[%s5 + $0xbc] sm:$0xf]
          %v5603 = vpack.c.b16 %v5264, %v5263
          %v5604 = vpack.c.b16 %v5525, %v5525
          %v5613 = vunpack.c.l.b16 %v5595
          %v5614 = vunpack.c.l.b16 %v5596
          %v5615 = vunpack.c.l.b16 %v5597
          %v5616 = vunpack.c.l.b16 %v5598
          %v5617 = vunpack.c.l.b16 %v5599
          %v5618 = vunpack.c.l.b16 %v5600
          %v5619 = vunpack.c.l.b16 %v5601
          %v5620 = vunpack.c.l.b16 %v5602
          %v5621 = vpack.c.b16 %v5614, %v5613
          %v5622 = vpack.c.b16 %v5616, %v5615
          %v5623 = vpack.c.b16 %v5618, %v5617
          %v5624 = vpack.c.b16 %v5620, %v5619
          %v5630 = vsel %vm3836, %v5603, 0
          %v5633 = vsel %vm3836, %v5604, 0
          %5635 = vmatpush.bf16.msra.mxu0 0
          %5636 = vmatpush.bf16.msra.mxu0 0
          %5637 = vmatpush.bf16.msra.mxu0 0
          %5638 = vmatpush.bf16.msra.mxu0 0
          %5639 = vmatpush.bf16.msra.mxu0 %v5624
          %5640 = vmatpush.bf16.msra.mxu0 %v5623
          %5641 = vmatpush.bf16.msra.mxu0 %v5622
          %5642 = vmatpush.bf16.msra.mxu0 %v5621
          %5643 = vmatmul.bf16.gmra.mxu0 %v5630
          %v5644 = vpop.f32.mrf.mxu0
          %v5645 = vadd.f32 0.0, %v5644
          %v5646 = vpop.f32.mrf.mxu0
          %v5647 = vadd.f32 0.0, %v5646
          %5648 = vmatmul.bf16.gmra.mxu0 %v5633
          %v5649 = vpop.f32.mrf.mxu0
          %v5650 = vadd.f32 0.0, %v5649
          %v5651 = vpop.f32.mrf.mxu0
          %5652 = vdwg.mxu0
          %v5653 = vadd.f32 %v5592, %v5645
          %v5654 = vadd.f32 %v5593, %v5647
          %v5655 = vadd.f32 %v5594, %v5650
          %v5656 = vld [vmem:[#allocation5 + $0x4] sm:$0xc]
          %v5657 = vld [vmem:[#allocation5 + $0x8] sm:$0xf]
          %v5658 = vld [vmem:[#allocation5 + $0xc] sm:$0xf]
          %v5659 = vld [vmem:[#allocation5 + $0x10] sm:$0x3]
          %v5660 = vld [vmem:[%s5 + $0xc0] sm:$0xf]
          %v5661 = vld [vmem:[%s5 + $0xc4] sm:$0xf]
          %v5662 = vld [vmem:[%s5 + $0xc8] sm:$0xf]
          %v5663 = vld [vmem:[%s5 + $0xcc] sm:$0xf]
          %v5664 = vld [vmem:[%s5 + $0xd0] sm:$0xf]
          %v5665 = vld [vmem:[%s5 + $0xd4] sm:$0xf]
          %v5666 = vld [vmem:[%s5 + $0xd8] sm:$0xf]
          %v5667 = vld [vmem:[%s5 + $0xdc] sm:$0xf]
          %v5672 = vunpack.c.l.b16 %v5656
          %v5673 = vunpack.c.l.b16 %v5657
          %v5674 = vunpack.c.l.b16 %v5658
          %v5675 = vunpack.c.l.b16 %v5659
          %v5676 = vpack.c.b16 %v5673, %v5672
          %v5677 = vpack.c.b16 %v5675, %v5674
          %vm5678 = vcmask 1045504
          %v5679 = vrot.slane %v5676, 2
          %v5680 = vrot.slane %v5677, 2
          %v5681 = vsel %vm5678, %v5679, %v5680
          %v5690 = vunpack.c.l.b16 %v5660
          %v5691 = vunpack.c.l.b16 %v5661
          %v5692 = vunpack.c.l.b16 %v5662
          %v5693 = vunpack.c.l.b16 %v5663
          %v5694 = vunpack.c.l.b16 %v5664
          %v5695 = vunpack.c.l.b16 %v5665
          %v5696 = vunpack.c.l.b16 %v5666
          %v5697 = vunpack.c.l.b16 %v5667
          %v5698 = vpack.c.b16 %v5691, %v5690
          %v5699 = vpack.c.b16 %v5693, %v5692
          %v5700 = vpack.c.b16 %v5695, %v5694
          %v5701 = vpack.c.b16 %v5697, %v5696
          %v5707 = vsel %vm3836, %v5681, 0
          %v5710 = vsel %vm3836, %v5680, 0
          %5712 = vmatpush.bf16.msra.mxu0 0
          %5713 = vmatpush.bf16.msra.mxu0 0
          %5714 = vmatpush.bf16.msra.mxu0 0
          %5715 = vmatpush.bf16.msra.mxu0 0
          %5716 = vmatpush.bf16.msra.mxu0 %v5701
          %5717 = vmatpush.bf16.msra.mxu0 %v5700
          %5718 = vmatpush.bf16.msra.mxu0 %v5699
          %5719 = vmatpush.bf16.msra.mxu0 %v5698
          %5720 = vmatmul.bf16.gmra.mxu0 %v5707
          %v5721 = vpop.f32.mrf.mxu0
          %v5722 = vadd.f32 0.0, %v5721
          %v5723 = vpop.f32.mrf.mxu0
          %v5724 = vadd.f32 0.0, %v5723
          %5725 = vmatmul.bf16.gmra.mxu0 %v5710
          %v5726 = vpop.f32.mrf.mxu0
          %v5727 = vadd.f32 0.0, %v5726
          %v5728 = vpop.f32.mrf.mxu0
          %5729 = vdwg.mxu0
          %v5730 = vadd.f32 %v5653, %v5722
          %v5731 = vadd.f32 %v5654, %v5724
          %v5732 = vadd.f32 %v5655, %v5727
          %v5733 = vld [vmem:[#allocation5 + $0x10] sm:$0x7]
          %v5734 = vld [vmem:[%s5 + $0xe0] sm:$0xf]
          %v5735 = vld [vmem:[%s5 + $0xe4] sm:$0xf]
          %v5736 = vld [vmem:[%s5 + $0xe8] sm:$0xf]
          %v5737 = vld [vmem:[%s5 + $0xec] sm:$0xf]
          %v5738 = vld [vmem:[%s5 + $0xf0] sm:$0xf]
          %v5739 = vld [vmem:[%s5 + $0xf4] sm:$0xf]
          %v5740 = vld [vmem:[%s5 + $0xf8] sm:$0xf]
          %v5741 = vld [vmem:[%s5 + $0xfc] sm:$0xf]
          %v5743 = vunpack.c.l.b16 %v5733
          %v5744 = vpack.c.b16 %v5743, %v5674
          %vm5745 = vsmask.f32 5376
          %v5747 = vshrl.u32 %v5676, 16
          %v5749 = vrot.slane %v5747, 2
          %v5750 = vshll.u32 %v5676, 16
          %v5752 = vrot.slane %v5750, 3
          %v5753 = vor.u32 %v5749, %v5752
          %v5755 = vshrl.u32 %v5744, 16
          %v5757 = vrot.slane %v5755, 2
          %v5758 = vshll.u32 %v5744, 16
          %v5760 = vrot.slane %v5758, 3
          %v5761 = vor.u32 %v5757, %v5760
          %v5762 = vsel %vm5745, %v5753, %v5761
          %v5771 = vunpack.c.l.b16 %v5734
          %v5772 = vunpack.c.l.b16 %v5735
          %v5773 = vunpack.c.l.b16 %v5736
          %v5774 = vunpack.c.l.b16 %v5737
          %v5775 = vunpack.c.l.b16 %v5738
          %v5776 = vunpack.c.l.b16 %v5739
          %v5777 = vunpack.c.l.b16 %v5740
          %v5778 = vunpack.c.l.b16 %v5741
          %v5779 = vpack.c.b16 %v5772, %v5771
          %v5780 = vpack.c.b16 %v5774, %v5773
          %v5781 = vpack.c.b16 %v5776, %v5775
          %v5782 = vpack.c.b16 %v5778, %v5777
          %v5788 = vsel %vm3836, %v5762, 0
          %v5791 = vsel %vm3836, %v5761, 0
          %5793 = vmatpush.bf16.msra.mxu0 0
          %5794 = vmatpush.bf16.msra.mxu0 0
          %5795 = vmatpush.bf16.msra.mxu0 0
          %5796 = vmatpush.bf16.msra.mxu0 0
          %5797 = vmatpush.bf16.msra.mxu0 %v5782
          %5798 = vmatpush.bf16.msra.mxu0 %v5781
          %5799 = vmatpush.bf16.msra.mxu0 %v5780
          %5800 = vmatpush.bf16.msra.mxu0 %v5779
          %5801 = vmatmul.bf16.gmra.mxu0 %v5788
          %v5802 = vpop.f32.mrf.mxu0
          %v5803 = vadd.f32 0.0, %v5802
          %v5804 = vpop.f32.mrf.mxu0
          %v5805 = vadd.f32 0.0, %v5804
          %5806 = vmatmul.bf16.gmra.mxu0 %v5791
          %v5807 = vpop.f32.mrf.mxu0
          %v5808 = vadd.f32 0.0, %v5807
          %v5809 = vpop.f32.mrf.mxu0
          %5810 = vdwg.mxu0
          %v5811 = vadd.f32 %v5730, %v5803
          %v5812 = vadd.f32 %v5731, %v5805
          %v5813 = vadd.f32 %v5732, %v5808
          %v5814 = vld [vmem:[#allocation5 + $0x4] sm:$0x8]
          %v5815 = vld [vmem:[%s5 + $0x100] sm:$0xf]
          %v5816 = vld [vmem:[%s5 + $0x104] sm:$0xf]
          %v5817 = vld [vmem:[%s5 + $0x108] sm:$0xf]
          %v5818 = vld [vmem:[%s5 + $0x10c] sm:$0xf]
          %v5819 = vld [vmem:[%s5 + $0x110] sm:$0xf]
          %v5820 = vld [vmem:[%s5 + $0x114] sm:$0xf]
          %v5821 = vld [vmem:[%s5 + $0x118] sm:$0xf]
          %v5822 = vld [vmem:[%s5 + $0x11c] sm:$0xf]
          %v5824 = vunpack.c.l.b16 %v5814
          %v5825 = vpack.c.b16 %v5673, %v5824
          %v5826 = vrot.slane %v5825, 3
          %v5827 = vrot.slane %v5744, 3
          %v5828 = vsel %vm3471, %v5826, %v5827
          %v5837 = vunpack.c.l.b16 %v5815
          %v5838 = vunpack.c.l.b16 %v5816
          %v5839 = vunpack.c.l.b16 %v5817
          %v5840 = vunpack.c.l.b16 %v5818
          %v5841 = vunpack.c.l.b16 %v5819
          %v5842 = vunpack.c.l.b16 %v5820
          %v5843 = vunpack.c.l.b16 %v5821
          %v5844 = vunpack.c.l.b16 %v5822
          %v5845 = vpack.c.b16 %v5838, %v5837
          %v5846 = vpack.c.b16 %v5840, %v5839
          %v5847 = vpack.c.b16 %v5842, %v5841
          %v5848 = vpack.c.b16 %v5844, %v5843
          %v5854 = vsel %vm3836, %v5828, 0
          %v5857 = vsel %vm3836, %v5827, 0
          %5859 = vmatpush.bf16.msra.mxu0 0
          %5860 = vmatpush.bf16.msra.mxu0 0
          %5861 = vmatpush.bf16.msra.mxu0 0
          %5862 = vmatpush.bf16.msra.mxu0 0
          %5863 = vmatpush.bf16.msra.mxu0 %v5848
          %5864 = vmatpush.bf16.msra.mxu0 %v5847
          %5865 = vmatpush.bf16.msra.mxu0 %v5846
          %5866 = vmatpush.bf16.msra.mxu0 %v5845
          %5867 = vmatmul.bf16.gmra.mxu0 %v5854
          %v5868 = vpop.f32.mrf.mxu0
          %v5869 = vadd.f32 0.0, %v5868
          %v5870 = vpop.f32.mrf.mxu0
          %v5871 = vadd.f32 0.0, %v5870
          %5872 = vmatmul.bf16.gmra.mxu0 %v5857
          %v5873 = vpop.f32.mrf.mxu0
          %v5874 = vadd.f32 0.0, %v5873
          %v5875 = vpop.f32.mrf.mxu0
          %5876 = vdwg.mxu0
          %v5877 = vadd.f32 %v5811, %v5869
          %v5878 = vadd.f32 %v5812, %v5871
          %v5879 = vadd.f32 %v5813, %v5874
          %v5880 = vld [vmem:[%s6] sm:$0x1]
          %v5882 = vperm.slane %v5880, 0
          %v5884 = vadd.f32 %v5877, %v5882
          %v5885 = vadd.f32 %v5878, %v5882
          %v5886 = vadd.f32 %v5879, %v5882
          %s5887 = smul.u32 %s397, 32
          %s5888 = scalar_lea.vmem [#allocation6], %s5887
          %5889 = vst.msk [vmem:[%s5888] sm:$0xff] %vm3836, %v5884
          %5890 = vst.msk [vmem:[%s5888 + $0x8] sm:$0xff] %vm3836, %v5885
          %5891 = vst.msk [vmem:[%s5888 + $0x10] sm:$0xff] %vm3836, %v5886
        $region69: #{forward.1} parent=63 // loop_footer
          %s401 = sadd.s32 1, %s397
        $region70: #{forward.1} parent=63 // loop_footer_branch
          %396 = sbr.rel target = $region66
        $region71: #{forward.1} parent=63 // loop_exit
          _
        %v5892 = vld [vmem:[#allocation6] ss:$32 sm:$0x1]
        %v5893 = vld [vmem:[#allocation6] ss:$32 sm:$0x2]
        %v5894 = vor.u32 %v5892, %v5893
        %v5895 = vld [vmem:[#allocation6] ss:$32 sm:$0x4]
        %v5896 = vor.u32 %v5894, %v5895
        %v5897 = vld [vmem:[#allocation6] ss:$32 sm:$0x8]
        %v5898 = vor.u32 %v5896, %v5897
        %v5899 = vld [vmem:[#allocation6] ss:$32 sm:$0x10]
        %v5900 = vor.u32 %v5898, %v5899
        %v5901 = vld [vmem:[#allocation6] ss:$32 sm:$0x20]
        %v5902 = vor.u32 %v5900, %v5901
        %v5903 = vld [vmem:[#allocation6] ss:$32 sm:$0x40]
        %v5904 = vor.u32 %v5902, %v5903
        %v5905 = vld [vmem:[#allocation6] ss:$32 sm:$0x80]
        %v5906 = vor.u32 %v5904, %v5905
        %v5907 = vpack.c.bf16 %v5906, %v5906
        %v5908 = vld [vmem:[%s7] sm:$0xff]
        %v5909 = vld [vmem:[%s7 + $0x8] sm:$0xff]
        %v5910 = vld [vmem:[%s7 + $0x10] sm:$0xff]
        %v5911 = vld [vmem:[%s7 + $0x18] sm:$0xff]
        %v5912 = vld [vmem:[%s7 + $0x20] sm:$0xff]
        %v5913 = vld [vmem:[%s7 + $0x28] sm:$0xff]
        %v5914 = vld [vmem:[%s7 + $0x30] sm:$0xff]
        %v5915 = vld [vmem:[%s7 + $0x38] sm:$0xff]
        %s5916 = scalar_lea.vmem [#allocation6], 1
        %v5917 = vld [vmem:[%s5916] ss:$32 sm:$0x1]
        %v5918 = vld [vmem:[%s5916] ss:$32 sm:$0x2]
        %v5919 = vor.u32 %v5917, %v5918
        %v5920 = vld [vmem:[%s5916] ss:$32 sm:$0x4]
        %v5921 = vor.u32 %v5919, %v5920
        %v5922 = vld [vmem:[%s5916] ss:$32 sm:$0x8]
        %v5923 = vor.u32 %v5921, %v5922
        %v5924 = vld [vmem:[%s5916] ss:$32 sm:$0x10]
        %v5925 = vor.u32 %v5923, %v5924
        %v5926 = vld [vmem:[%s5916] ss:$32 sm:$0x20]
        %v5927 = vor.u32 %v5925, %v5926
        %v5928 = vld [vmem:[%s5916] ss:$32 sm:$0x40]
        %v5929 = vor.u32 %v5927, %v5928
        %v5930 = vld [vmem:[%s5916] ss:$32 sm:$0x80]
        %v5931 = vor.u32 %v5929, %v5930
        %v5932 = vpack.c.bf16 %v5931, %v5931
        %v5933 = vld [vmem:[%s7 + $0x40] sm:$0xff]
        %v5934 = vld [vmem:[%s7 + $0x48] sm:$0xff]
        %v5935 = vld [vmem:[%s7 + $0x50] sm:$0xff]
        %v5936 = vld [vmem:[%s7 + $0x58] sm:$0xff]
        %v5937 = vld [vmem:[%s7 + $0x60] sm:$0xff]
        %v5938 = vld [vmem:[%s7 + $0x68] sm:$0xff]
        %v5939 = vld [vmem:[%s7 + $0x70] sm:$0xff]
        %v5940 = vld [vmem:[%s7 + $0x78] sm:$0xff]
        %v5949 = vunpack.c.l.b16 %v5933
        %v5950 = vunpack.c.h.b16 %v5933
        %v5951 = vunpack.c.l.b16 %v5934
        %v5952 = vunpack.c.h.b16 %v5934
        %v5953 = vunpack.c.l.b16 %v5935
        %v5954 = vunpack.c.h.b16 %v5935
        %v5955 = vunpack.c.l.b16 %v5936
        %v5956 = vunpack.c.h.b16 %v5936
        %v5957 = vunpack.c.l.b16 %v5937
        %v5958 = vunpack.c.h.b16 %v5937
        %v5959 = vunpack.c.l.b16 %v5938
        %v5960 = vunpack.c.h.b16 %v5938
        %v5961 = vunpack.c.l.b16 %v5939
        %v5962 = vunpack.c.h.b16 %v5939
        %v5963 = vunpack.c.l.b16 %v5940
        %v5964 = vunpack.c.h.b16 %v5940
        %v5965 = vpack.c.b16 %v5951, %v5949
        %v5966 = vpack.c.b16 %v5952, %v5950
        %v5967 = vpack.c.b16 %v5955, %v5953
        %v5968 = vpack.c.b16 %v5956, %v5954
        %v5969 = vpack.c.b16 %v5959, %v5957
        %v5970 = vpack.c.b16 %v5960, %v5958
        %v5971 = vpack.c.b16 %v5963, %v5961
        %v5972 = vpack.c.b16 %v5964, %v5962
        %vm5981 = vcmask 523264
        %v5983 = vsel %vm5981, %v5932, 0
        %5985 = vmatpush.bf16.msra.mxu0 0
        %5986 = vmatpush.bf16.msra.mxu0 0
        %5987 = vmatpush.bf16.msra.mxu0 0
        %5988 = vmatpush.bf16.msra.mxu0 0
        %5989 = vmatpush.bf16.msra.mxu0 %v5971
        %5990 = vmatpush.bf16.msra.mxu0 %v5969
        %5991 = vmatpush.bf16.msra.mxu0 %v5967
        %5992 = vmatpush.bf16.msra.mxu0 %v5965
        %5993 = vmatmul.bf16.gmra.mxu0 %v5983
        %v5994 = vpop.f32.mrf.mxu0
        %v5995 = vadd.f32 0.0, %v5994
        %v5996 = vpop.f32.mrf.mxu0
        %5997 = vdwg.mxu0
        %5998 = vmatpush.bf16.msra.mxu0 0
        %5999 = vmatpush.bf16.msra.mxu0 0
        %6000 = vmatpush.bf16.msra.mxu0 0
        %6001 = vmatpush.bf16.msra.mxu0 0
        %6002 = vmatpush.bf16.msra.mxu0 %v5972
        %6003 = vmatpush.bf16.msra.mxu0 %v5970
        %6004 = vmatpush.bf16.msra.mxu0 %v5968
        %6005 = vmatpush.bf16.msra.mxu0 %v5966
        %6006 = vmatmul.bf16.gmra.mxu0 %v5983
        %v6007 = vpop.f32.mrf.mxu0
        %v6008 = vadd.f32 0.0, %v6007
        %v6009 = vpop.f32.mrf.mxu0
        %6010 = vdwg.mxu0
        %v6019 = vunpack.c.l.b16 %v5908
        %v6020 = vunpack.c.h.b16 %v5908
        %v6021 = vunpack.c.l.b16 %v5909
        %v6022 = vunpack.c.h.b16 %v5909
        %v6023 = vunpack.c.l.b16 %v5910
        %v6024 = vunpack.c.h.b16 %v5910
        %v6025 = vunpack.c.l.b16 %v5911
        %v6026 = vunpack.c.h.b16 %v5911
        %v6027 = vunpack.c.l.b16 %v5912
        %v6028 = vunpack.c.h.b16 %v5912
        %v6029 = vunpack.c.l.b16 %v5913
        %v6030 = vunpack.c.h.b16 %v5913
        %v6031 = vunpack.c.l.b16 %v5914
        %v6032 = vunpack.c.h.b16 %v5914
        %v6033 = vunpack.c.l.b16 %v5915
        %v6034 = vunpack.c.h.b16 %v5915
        %v6035 = vpack.c.b16 %v6021, %v6019
        %v6036 = vpack.c.b16 %v6022, %v6020
        %v6037 = vpack.c.b16 %v6025, %v6023
        %v6038 = vpack.c.b16 %v6026, %v6024
        %v6039 = vpack.c.b16 %v6029, %v6027
        %v6040 = vpack.c.b16 %v6030, %v6028
        %v6041 = vpack.c.b16 %v6033, %v6031
        %v6042 = vpack.c.b16 %v6034, %v6032
        %v6052 = vsel %vm5981, %v5907, 0
        %6054 = vmatpush.bf16.msra.mxu0 0
        %6055 = vmatpush.bf16.msra.mxu0 0
        %6056 = vmatpush.bf16.msra.mxu0 0
        %6057 = vmatpush.bf16.msra.mxu0 0
        %6058 = vmatpush.bf16.msra.mxu0 %v6041
        %6059 = vmatpush.bf16.msra.mxu0 %v6039
        %6060 = vmatpush.bf16.msra.mxu0 %v6037
        %6061 = vmatpush.bf16.msra.mxu0 %v6035
        %6062 = vmatmul.bf16.gmra.mxu0 %v6052
        %v6063 = vpop.f32.mrf.mxu0
        %v6064 = vadd.f32 %v5995, %v6063
        %v6065 = vpop.f32.mrf.mxu0
        %6066 = vdwg.mxu0
        %6067 = vmatpush.bf16.msra.mxu0 0
        %6068 = vmatpush.bf16.msra.mxu0 0
        %6069 = vmatpush.bf16.msra.mxu0 0
        %6070 = vmatpush.bf16.msra.mxu0 0
        %6071 = vmatpush.bf16.msra.mxu0 %v6042
        %6072 = vmatpush.bf16.msra.mxu0 %v6040
        %6073 = vmatpush.bf16.msra.mxu0 %v6038
        %6074 = vmatpush.bf16.msra.mxu0 %v6036
        %6075 = vmatmul.bf16.gmra.mxu0 %v6052
        %v6076 = vpop.f32.mrf.mxu0
        %v6077 = vadd.f32 %v6008, %v6076
        %v6078 = vpop.f32.mrf.mxu0
        %6079 = vdwg.mxu0
        %s6080 = scalar_lea.vmem [#allocation6], 2
        %v6081 = vld [vmem:[%s6080] ss:$32 sm:$0x1]
        %v6082 = vld [vmem:[%s6080] ss:$32 sm:$0x2]
        %v6083 = vor.u32 %v6081, %v6082
        %v6084 = vld [vmem:[%s6080] ss:$32 sm:$0x4]
        %v6085 = vor.u32 %v6083, %v6084
        %v6086 = vld [vmem:[%s6080] ss:$32 sm:$0x8]
        %v6087 = vor.u32 %v6085, %v6086
        %v6088 = vld [vmem:[%s6080] ss:$32 sm:$0x10]
        %v6089 = vor.u32 %v6087, %v6088
        %v6090 = vld [vmem:[%s6080] ss:$32 sm:$0x20]
        %v6091 = vor.u32 %v6089, %v6090
        %v6092 = vld [vmem:[%s6080] ss:$32 sm:$0x40]
        %v6093 = vor.u32 %v6091, %v6092
        %v6094 = vld [vmem:[%s6080] ss:$32 sm:$0x80]
        %v6095 = vor.u32 %v6093, %v6094
        %v6096 = vpack.c.bf16 %v6095, %v6095
        %v6097 = vld [vmem:[%s7 + $0x80] sm:$0xff]
        %v6098 = vld [vmem:[%s7 + $0x88] sm:$0xff]
        %v6099 = vld [vmem:[%s7 + $0x90] sm:$0xff]
        %v6100 = vld [vmem:[%s7 + $0x98] sm:$0xff]
        %v6101 = vld [vmem:[%s7 + $0xa0] sm:$0xff]
        %v6102 = vld [vmem:[%s7 + $0xa8] sm:$0xff]
        %v6103 = vld [vmem:[%s7 + $0xb0] sm:$0xff]
        %v6104 = vld [vmem:[%s7 + $0xb8] sm:$0xff]
        %v6113 = vunpack.c.l.b16 %v6097
        %v6114 = vunpack.c.h.b16 %v6097
        %v6115 = vunpack.c.l.b16 %v6098
        %v6116 = vunpack.c.h.b16 %v6098
        %v6117 = vunpack.c.l.b16 %v6099
        %v6118 = vunpack.c.h.b16 %v6099
        %v6119 = vunpack.c.l.b16 %v6100
        %v6120 = vunpack.c.h.b16 %v6100
        %v6121 = vunpack.c.l.b16 %v6101
        %v6122 = vunpack.c.h.b16 %v6101
        %v6123 = vunpack.c.l.b16 %v6102
        %v6124 = vunpack.c.h.b16 %v6102
        %v6125 = vunpack.c.l.b16 %v6103
        %v6126 = vunpack.c.h.b16 %v6103
        %v6127 = vunpack.c.l.b16 %v6104
        %v6128 = vunpack.c.h.b16 %v6104
        %v6129 = vpack.c.b16 %v6115, %v6113
        %v6130 = vpack.c.b16 %v6116, %v6114
        %v6131 = vpack.c.b16 %v6119, %v6117
        %v6132 = vpack.c.b16 %v6120, %v6118
        %v6133 = vpack.c.b16 %v6123, %v6121
        %v6134 = vpack.c.b16 %v6124, %v6122
        %v6135 = vpack.c.b16 %v6127, %v6125
        %v6136 = vpack.c.b16 %v6128, %v6126
        %v6146 = vsel %vm5981, %v6096, 0
        %6148 = vmatpush.bf16.msra.mxu0 0
        %6149 = vmatpush.bf16.msra.mxu0 0
        %6150 = vmatpush.bf16.msra.mxu0 0
        %6151 = vmatpush.bf16.msra.mxu0 0
        %6152 = vmatpush.bf16.msra.mxu0 %v6135
        %6153 = vmatpush.bf16.msra.mxu0 %v6133
        %6154 = vmatpush.bf16.msra.mxu0 %v6131
        %6155 = vmatpush.bf16.msra.mxu0 %v6129
        %6156 = vmatmul.bf16.gmra.mxu0 %v6146
        %v6157 = vpop.f32.mrf.mxu0
        %v6158 = vadd.f32 0.0, %v6157
        %v6159 = vpop.f32.mrf.mxu0
        %6160 = vdwg.mxu0
        %6161 = vmatpush.bf16.msra.mxu0 0
        %6162 = vmatpush.bf16.msra.mxu0 0
        %6163 = vmatpush.bf16.msra.mxu0 0
        %6164 = vmatpush.bf16.msra.mxu0 0
        %6165 = vmatpush.bf16.msra.mxu0 %v6136
        %6166 = vmatpush.bf16.msra.mxu0 %v6134
        %6167 = vmatpush.bf16.msra.mxu0 %v6132
        %6168 = vmatpush.bf16.msra.mxu0 %v6130
        %6169 = vmatmul.bf16.gmra.mxu0 %v6146
        %v6170 = vpop.f32.mrf.mxu0
        %v6171 = vadd.f32 0.0, %v6170
        %v6172 = vpop.f32.mrf.mxu0
        %6173 = vdwg.mxu0
        %v6174 = vadd.f32 %v6064, %v6158
        %v6175 = vadd.f32 %v6077, %v6171
        %s6176 = scalar_lea.vmem [#allocation6], 3
        %v6177 = vld [vmem:[%s6176] ss:$32 sm:$0x1]
        %v6178 = vld [vmem:[%s6176] ss:$32 sm:$0x2]
        %v6179 = vor.u32 %v6177, %v6178
        %v6180 = vld [vmem:[%s6176] ss:$32 sm:$0x4]
        %v6181 = vor.u32 %v6179, %v6180
        %v6182 = vld [vmem:[%s6176] ss:$32 sm:$0x8]
        %v6183 = vor.u32 %v6181, %v6182
        %v6184 = vld [vmem:[%s6176] ss:$32 sm:$0x10]
        %v6185 = vor.u32 %v6183, %v6184
        %v6186 = vld [vmem:[%s6176] ss:$32 sm:$0x20]
        %v6187 = vor.u32 %v6185, %v6186
        %v6188 = vld [vmem:[%s6176] ss:$32 sm:$0x40]
        %v6189 = vor.u32 %v6187, %v6188
        %v6190 = vld [vmem:[%s6176] ss:$32 sm:$0x80]
        %v6191 = vor.u32 %v6189, %v6190
        %v6192 = vpack.c.bf16 %v6191, %v6191
        %v6193 = vld [vmem:[%s7 + $0xc0] sm:$0xff]
        %v6194 = vld [vmem:[%s7 + $0xc8] sm:$0xff]
        %v6195 = vld [vmem:[%s7 + $0xd0] sm:$0xff]
        %v6196 = vld [vmem:[%s7 + $0xd8] sm:$0xff]
        %v6197 = vld [vmem:[%s7 + $0xe0] sm:$0xff]
        %v6198 = vld [vmem:[%s7 + $0xe8] sm:$0xff]
        %v6199 = vld [vmem:[%s7 + $0xf0] sm:$0xff]
        %v6200 = vld [vmem:[%s7 + $0xf8] sm:$0xff]
        %v6209 = vunpack.c.l.b16 %v6193
        %v6210 = vunpack.c.h.b16 %v6193
        %v6211 = vunpack.c.l.b16 %v6194
        %v6212 = vunpack.c.h.b16 %v6194
        %v6213 = vunpack.c.l.b16 %v6195
        %v6214 = vunpack.c.h.b16 %v6195
        %v6215 = vunpack.c.l.b16 %v6196
        %v6216 = vunpack.c.h.b16 %v6196
        %v6217 = vunpack.c.l.b16 %v6197
        %v6218 = vunpack.c.h.b16 %v6197
        %v6219 = vunpack.c.l.b16 %v6198
        %v6220 = vunpack.c.h.b16 %v6198
        %v6221 = vunpack.c.l.b16 %v6199
        %v6222 = vunpack.c.h.b16 %v6199
        %v6223 = vunpack.c.l.b16 %v6200
        %v6224 = vunpack.c.h.b16 %v6200
        %v6225 = vpack.c.b16 %v6211, %v6209
        %v6226 = vpack.c.b16 %v6212, %v6210
        %v6227 = vpack.c.b16 %v6215, %v6213
        %v6228 = vpack.c.b16 %v6216, %v6214
        %v6229 = vpack.c.b16 %v6219, %v6217
        %v6230 = vpack.c.b16 %v6220, %v6218
        %v6231 = vpack.c.b16 %v6223, %v6221
        %v6232 = vpack.c.b16 %v6224, %v6222
        %v6242 = vsel %vm5981, %v6192, 0
        %6244 = vmatpush.bf16.msra.mxu0 0
        %6245 = vmatpush.bf16.msra.mxu0 0
        %6246 = vmatpush.bf16.msra.mxu0 0
        %6247 = vmatpush.bf16.msra.mxu0 0
        %6248 = vmatpush.bf16.msra.mxu0 %v6231
        %6249 = vmatpush.bf16.msra.mxu0 %v6229
        %6250 = vmatpush.bf16.msra.mxu0 %v6227
        %6251 = vmatpush.bf16.msra.mxu0 %v6225
        %6252 = vmatmul.bf16.gmra.mxu0 %v6242
        %v6253 = vpop.f32.mrf.mxu0
        %v6254 = vadd.f32 0.0, %v6253
        %v6255 = vpop.f32.mrf.mxu0
        %6256 = vdwg.mxu0
        %6257 = vmatpush.bf16.msra.mxu0 0
        %6258 = vmatpush.bf16.msra.mxu0 0
        %6259 = vmatpush.bf16.msra.mxu0 0
        %6260 = vmatpush.bf16.msra.mxu0 0
        %6261 = vmatpush.bf16.msra.mxu0 %v6232
        %6262 = vmatpush.bf16.msra.mxu0 %v6230
        %6263 = vmatpush.bf16.msra.mxu0 %v6228
        %6264 = vmatpush.bf16.msra.mxu0 %v6226
        %6265 = vmatmul.bf16.gmra.mxu0 %v6242
        %v6266 = vpop.f32.mrf.mxu0
        %v6267 = vadd.f32 0.0, %v6266
        %v6268 = vpop.f32.mrf.mxu0
        %6269 = vdwg.mxu0
        %v6270 = vadd.f32 %v6174, %v6254
        %v6271 = vadd.f32 %v6175, %v6267
        %s6272 = scalar_lea.vmem [#allocation6], 6
        %v6273 = vld [vmem:[%s6272] ss:$32 sm:$0x1]
        %v6274 = vld [vmem:[%s6272] ss:$32 sm:$0x2]
        %v6275 = vor.u32 %v6273, %v6274
        %v6276 = vld [vmem:[%s6272] ss:$32 sm:$0x4]
        %v6277 = vor.u32 %v6275, %v6276
        %v6278 = vld [vmem:[%s6272] ss:$32 sm:$0x8]
        %v6279 = vor.u32 %v6277, %v6278
        %v6280 = vld [vmem:[%s6272] ss:$32 sm:$0x10]
        %v6281 = vor.u32 %v6279, %v6280
        %v6282 = vld [vmem:[%s6272] ss:$32 sm:$0x20]
        %v6283 = vor.u32 %v6281, %v6282
        %v6284 = vld [vmem:[%s6272] ss:$32 sm:$0x40]
        %v6285 = vor.u32 %v6283, %v6284
        %v6286 = vld [vmem:[%s6272] ss:$32 sm:$0x80]
        %v6287 = vor.u32 %v6285, %v6286
        %v6288 = vpack.c.bf16 %v6287, %v6287
        %v6289 = vld [vmem:[%s7 + $0x100] sm:$0xff]
        %v6290 = vld [vmem:[%s7 + $0x108] sm:$0xff]
        %v6291 = vld [vmem:[%s7 + $0x110] sm:$0xff]
        %v6292 = vld [vmem:[%s7 + $0x118] sm:$0xff]
        %v6293 = vld [vmem:[%s7 + $0x120] sm:$0xff]
        %v6294 = vld [vmem:[%s7 + $0x128] sm:$0xff]
        %v6295 = vld [vmem:[%s7 + $0x130] sm:$0xff]
        %v6296 = vld [vmem:[%s7 + $0x138] sm:$0xff]
        %v6305 = vunpack.c.l.b16 %v6289
        %v6306 = vunpack.c.h.b16 %v6289
        %v6307 = vunpack.c.l.b16 %v6290
        %v6308 = vunpack.c.h.b16 %v6290
        %v6309 = vunpack.c.l.b16 %v6291
        %v6310 = vunpack.c.h.b16 %v6291
        %v6311 = vunpack.c.l.b16 %v6292
        %v6312 = vunpack.c.h.b16 %v6292
        %v6313 = vunpack.c.l.b16 %v6293
        %v6314 = vunpack.c.h.b16 %v6293
        %v6315 = vunpack.c.l.b16 %v6294
        %v6316 = vunpack.c.h.b16 %v6294
        %v6317 = vunpack.c.l.b16 %v6295
        %v6318 = vunpack.c.h.b16 %v6295
        %v6319 = vunpack.c.l.b16 %v6296
        %v6320 = vunpack.c.h.b16 %v6296
        %v6321 = vpack.c.b16 %v6307, %v6305
        %v6322 = vpack.c.b16 %v6308, %v6306
        %v6323 = vpack.c.b16 %v6311, %v6309
        %v6324 = vpack.c.b16 %v6312, %v6310
        %v6325 = vpack.c.b16 %v6315, %v6313
        %v6326 = vpack.c.b16 %v6316, %v6314
        %v6327 = vpack.c.b16 %v6319, %v6317
        %v6328 = vpack.c.b16 %v6320, %v6318
        %v6338 = vsel %vm5981, %v6288, 0
        %6340 = vmatpush.bf16.msra.mxu0 0
        %6341 = vmatpush.bf16.msra.mxu0 0
        %6342 = vmatpush.bf16.msra.mxu0 0
        %6343 = vmatpush.bf16.msra.mxu0 0
        %6344 = vmatpush.bf16.msra.mxu0 %v6327
        %6345 = vmatpush.bf16.msra.mxu0 %v6325
        %6346 = vmatpush.bf16.msra.mxu0 %v6323
        %6347 = vmatpush.bf16.msra.mxu0 %v6321
        %6348 = vmatmul.bf16.gmra.mxu0 %v6338
        %v6349 = vpop.f32.mrf.mxu0
        %v6350 = vadd.f32 0.0, %v6349
        %v6351 = vpop.f32.mrf.mxu0
        %6352 = vdwg.mxu0
        %6353 = vmatpush.bf16.msra.mxu0 0
        %6354 = vmatpush.bf16.msra.mxu0 0
        %6355 = vmatpush.bf16.msra.mxu0 0
        %6356 = vmatpush.bf16.msra.mxu0 0
        %6357 = vmatpush.bf16.msra.mxu0 %v6328
        %6358 = vmatpush.bf16.msra.mxu0 %v6326
        %6359 = vmatpush.bf16.msra.mxu0 %v6324
        %6360 = vmatpush.bf16.msra.mxu0 %v6322
        %6361 = vmatmul.bf16.gmra.mxu0 %v6338
        %v6362 = vpop.f32.mrf.mxu0
        %v6363 = vadd.f32 0.0, %v6362
        %v6364 = vpop.f32.mrf.mxu0
        %6365 = vdwg.mxu0
        %v6366 = vadd.f32 %v6270, %v6350
        %v6367 = vadd.f32 %v6271, %v6363
        %s6368 = scalar_lea.vmem [#allocation6], 7
        %v6369 = vld [vmem:[%s6368] ss:$32 sm:$0x1]
        %v6370 = vld [vmem:[%s6368] ss:$32 sm:$0x2]
        %v6371 = vor.u32 %v6369, %v6370
        %v6372 = vld [vmem:[%s6368] ss:$32 sm:$0x4]
        %v6373 = vor.u32 %v6371, %v6372
        %v6374 = vld [vmem:[%s6368] ss:$32 sm:$0x8]
        %v6375 = vor.u32 %v6373, %v6374
        %v6376 = vld [vmem:[%s6368] ss:$32 sm:$0x10]
        %v6377 = vor.u32 %v6375, %v6376
        %v6378 = vld [vmem:[%s6368] ss:$32 sm:$0x20]
        %v6379 = vor.u32 %v6377, %v6378
        %v6380 = vld [vmem:[%s6368] ss:$32 sm:$0x40]
        %v6381 = vor.u32 %v6379, %v6380
        %v6382 = vld [vmem:[%s6368] ss:$32 sm:$0x80]
        %v6383 = vor.u32 %v6381, %v6382
        %v6384 = vpack.c.bf16 %v6383, %v6383
        %v6385 = vld [vmem:[%s7 + $0x140] sm:$0xff]
        %v6386 = vld [vmem:[%s7 + $0x148] sm:$0xff]
        %v6387 = vld [vmem:[%s7 + $0x150] sm:$0xff]
        %v6388 = vld [vmem:[%s7 + $0x158] sm:$0xff]
        %v6389 = vld [vmem:[%s7 + $0x160] sm:$0xff]
        %v6390 = vld [vmem:[%s7 + $0x168] sm:$0xff]
        %v6391 = vld [vmem:[%s7 + $0x170] sm:$0xff]
        %v6392 = vld [vmem:[%s7 + $0x178] sm:$0xff]
        %v6401 = vunpack.c.l.b16 %v6385
        %v6402 = vunpack.c.h.b16 %v6385
        %v6403 = vunpack.c.l.b16 %v6386
        %v6404 = vunpack.c.h.b16 %v6386
        %v6405 = vunpack.c.l.b16 %v6387
        %v6406 = vunpack.c.h.b16 %v6387
        %v6407 = vunpack.c.l.b16 %v6388
        %v6408 = vunpack.c.h.b16 %v6388
        %v6409 = vunpack.c.l.b16 %v6389
        %v6410 = vunpack.c.h.b16 %v6389
        %v6411 = vunpack.c.l.b16 %v6390
        %v6412 = vunpack.c.h.b16 %v6390
        %v6413 = vunpack.c.l.b16 %v6391
        %v6414 = vunpack.c.h.b16 %v6391
        %v6415 = vunpack.c.l.b16 %v6392
        %v6416 = vunpack.c.h.b16 %v6392
        %v6417 = vpack.c.b16 %v6403, %v6401
        %v6418 = vpack.c.b16 %v6404, %v6402
        %v6419 = vpack.c.b16 %v6407, %v6405
        %v6420 = vpack.c.b16 %v6408, %v6406
        %v6421 = vpack.c.b16 %v6411, %v6409
        %v6422 = vpack.c.b16 %v6412, %v6410
        %v6423 = vpack.c.b16 %v6415, %v6413
        %v6424 = vpack.c.b16 %v6416, %v6414
        %v6434 = vsel %vm5981, %v6384, 0
        %6436 = vmatpush.bf16.msra.mxu0 0
        %6437 = vmatpush.bf16.msra.mxu0 0
        %6438 = vmatpush.bf16.msra.mxu0 0
        %6439 = vmatpush.bf16.msra.mxu0 0
        %6440 = vmatpush.bf16.msra.mxu0 %v6423
        %6441 = vmatpush.bf16.msra.mxu0 %v6421
        %6442 = vmatpush.bf16.msra.mxu0 %v6419
        %6443 = vmatpush.bf16.msra.mxu0 %v6417
        %6444 = vmatmul.bf16.gmra.mxu0 %v6434
        %v6445 = vpop.f32.mrf.mxu0
        %v6446 = vadd.f32 0.0, %v6445
        %v6447 = vpop.f32.mrf.mxu0
        %6448 = vdwg.mxu0
        %6449 = vmatpush.bf16.msra.mxu0 0
        %6450 = vmatpush.bf16.msra.mxu0 0
        %6451 = vmatpush.bf16.msra.mxu0 0
        %6452 = vmatpush.bf16.msra.mxu0 0
        %6453 = vmatpush.bf16.msra.mxu0 %v6424
        %6454 = vmatpush.bf16.msra.mxu0 %v6422
        %6455 = vmatpush.bf16.msra.mxu0 %v6420
        %6456 = vmatpush.bf16.msra.mxu0 %v6418
        %6457 = vmatmul.bf16.gmra.mxu0 %v6434
        %v6458 = vpop.f32.mrf.mxu0
        %v6459 = vadd.f32 0.0, %v6458
        %v6460 = vpop.f32.mrf.mxu0
        %6461 = vdwg.mxu0
        %v6462 = vadd.f32 %v6366, %v6446
        %v6463 = vadd.f32 %v6367, %v6459
        %s6464 = scalar_lea.vmem [#allocation6], 8
        %v6465 = vld [vmem:[%s6464] ss:$32 sm:$0x1]
        %v6466 = vld [vmem:[%s6464] ss:$32 sm:$0x2]
        %v6467 = vor.u32 %v6465, %v6466
        %v6468 = vld [vmem:[%s6464] ss:$32 sm:$0x4]
        %v6469 = vor.u32 %v6467, %v6468
        %v6470 = vld [vmem:[%s6464] ss:$32 sm:$0x8]
        %v6471 = vor.u32 %v6469, %v6470
        %v6472 = vld [vmem:[%s6464] ss:$32 sm:$0x10]
        %v6473 = vor.u32 %v6471, %v6472
        %v6474 = vld [vmem:[%s6464] ss:$32 sm:$0x20]
        %v6475 = vor.u32 %v6473, %v6474
        %v6476 = vld [vmem:[%s6464] ss:$32 sm:$0x40]
        %v6477 = vor.u32 %v6475, %v6476
        %v6478 = vld [vmem:[%s6464] ss:$32 sm:$0x80]
        %v6479 = vor.u32 %v6477, %v6478
        %v6480 = vpack.c.bf16 %v6479, %v6479
        %v6481 = vld [vmem:[%s7 + $0x180] sm:$0xff]
        %v6482 = vld [vmem:[%s7 + $0x188] sm:$0xff]
        %v6483 = vld [vmem:[%s7 + $0x190] sm:$0xff]
        %v6484 = vld [vmem:[%s7 + $0x198] sm:$0xff]
        %v6485 = vld [vmem:[%s7 + $0x1a0] sm:$0xff]
        %v6486 = vld [vmem:[%s7 + $0x1a8] sm:$0xff]
        %v6487 = vld [vmem:[%s7 + $0x1b0] sm:$0xff]
        %v6488 = vld [vmem:[%s7 + $0x1b8] sm:$0xff]
        %v6497 = vunpack.c.l.b16 %v6481
        %v6498 = vunpack.c.h.b16 %v6481
        %v6499 = vunpack.c.l.b16 %v6482
        %v6500 = vunpack.c.h.b16 %v6482
        %v6501 = vunpack.c.l.b16 %v6483
        %v6502 = vunpack.c.h.b16 %v6483
        %v6503 = vunpack.c.l.b16 %v6484
        %v6504 = vunpack.c.h.b16 %v6484
        %v6505 = vunpack.c.l.b16 %v6485
        %v6506 = vunpack.c.h.b16 %v6485
        %v6507 = vunpack.c.l.b16 %v6486
        %v6508 = vunpack.c.h.b16 %v6486
        %v6509 = vunpack.c.l.b16 %v6487
        %v6510 = vunpack.c.h.b16 %v6487
        %v6511 = vunpack.c.l.b16 %v6488
        %v6512 = vunpack.c.h.b16 %v6488
        %v6513 = vpack.c.b16 %v6499, %v6497
        %v6514 = vpack.c.b16 %v6500, %v6498
        %v6515 = vpack.c.b16 %v6503, %v6501
        %v6516 = vpack.c.b16 %v6504, %v6502
        %v6517 = vpack.c.b16 %v6507, %v6505
        %v6518 = vpack.c.b16 %v6508, %v6506
        %v6519 = vpack.c.b16 %v6511, %v6509
        %v6520 = vpack.c.b16 %v6512, %v6510
        %v6530 = vsel %vm5981, %v6480, 0
        %6532 = vmatpush.bf16.msra.mxu0 0
        %6533 = vmatpush.bf16.msra.mxu0 0
        %6534 = vmatpush.bf16.msra.mxu0 0
        %6535 = vmatpush.bf16.msra.mxu0 0
        %6536 = vmatpush.bf16.msra.mxu0 %v6519
        %6537 = vmatpush.bf16.msra.mxu0 %v6517
        %6538 = vmatpush.bf16.msra.mxu0 %v6515
        %6539 = vmatpush.bf16.msra.mxu0 %v6513
        %6540 = vmatmul.bf16.gmra.mxu0 %v6530
        %v6541 = vpop.f32.mrf.mxu0
        %v6542 = vadd.f32 0.0, %v6541
        %v6543 = vpop.f32.mrf.mxu0
        %6544 = vdwg.mxu0
        %6545 = vmatpush.bf16.msra.mxu0 0
        %6546 = vmatpush.bf16.msra.mxu0 0
        %6547 = vmatpush.bf16.msra.mxu0 0
        %6548 = vmatpush.bf16.msra.mxu0 0
        %6549 = vmatpush.bf16.msra.mxu0 %v6520
        %6550 = vmatpush.bf16.msra.mxu0 %v6518
        %6551 = vmatpush.bf16.msra.mxu0 %v6516
        %6552 = vmatpush.bf16.msra.mxu0 %v6514
        %6553 = vmatmul.bf16.gmra.mxu0 %v6530
        %v6554 = vpop.f32.mrf.mxu0
        %v6555 = vadd.f32 0.0, %v6554
        %v6556 = vpop.f32.mrf.mxu0
        %6557 = vdwg.mxu0
        %v6558 = vadd.f32 %v6462, %v6542
        %v6559 = vadd.f32 %v6463, %v6555
        %s6560 = scalar_lea.vmem [#allocation6], 9
        %v6561 = vld [vmem:[%s6560] ss:$32 sm:$0x1]
        %v6562 = vld [vmem:[%s6560] ss:$32 sm:$0x2]
        %v6563 = vor.u32 %v6561, %v6562
        %v6564 = vld [vmem:[%s6560] ss:$32 sm:$0x4]
        %v6565 = vor.u32 %v6563, %v6564
        %v6566 = vld [vmem:[%s6560] ss:$32 sm:$0x8]
        %v6567 = vor.u32 %v6565, %v6566
        %v6568 = vld [vmem:[%s6560] ss:$32 sm:$0x10]
        %v6569 = vor.u32 %v6567, %v6568
        %v6570 = vld [vmem:[%s6560] ss:$32 sm:$0x20]
        %v6571 = vor.u32 %v6569, %v6570
        %v6572 = vld [vmem:[%s6560] ss:$32 sm:$0x40]
        %v6573 = vor.u32 %v6571, %v6572
        %v6574 = vld [vmem:[%s6560] ss:$32 sm:$0x80]
        %v6575 = vor.u32 %v6573, %v6574
        %v6576 = vpack.c.bf16 %v6575, %v6575
        %v6577 = vld [vmem:[%s7 + $0x1c0] sm:$0xff]
        %v6578 = vld [vmem:[%s7 + $0x1c8] sm:$0xff]
        %v6579 = vld [vmem:[%s7 + $0x1d0] sm:$0xff]
        %v6580 = vld [vmem:[%s7 + $0x1d8] sm:$0xff]
        %v6581 = vld [vmem:[%s7 + $0x1e0] sm:$0xff]
        %v6582 = vld [vmem:[%s7 + $0x1e8] sm:$0xff]
        %v6583 = vld [vmem:[%s7 + $0x1f0] sm:$0xff]
        %v6584 = vld [vmem:[%s7 + $0x1f8] sm:$0xff]
        %v6593 = vunpack.c.l.b16 %v6577
        %v6594 = vunpack.c.h.b16 %v6577
        %v6595 = vunpack.c.l.b16 %v6578
        %v6596 = vunpack.c.h.b16 %v6578
        %v6597 = vunpack.c.l.b16 %v6579
        %v6598 = vunpack.c.h.b16 %v6579
        %v6599 = vunpack.c.l.b16 %v6580
        %v6600 = vunpack.c.h.b16 %v6580
        %v6601 = vunpack.c.l.b16 %v6581
        %v6602 = vunpack.c.h.b16 %v6581
        %v6603 = vunpack.c.l.b16 %v6582
        %v6604 = vunpack.c.h.b16 %v6582
        %v6605 = vunpack.c.l.b16 %v6583
        %v6606 = vunpack.c.h.b16 %v6583
        %v6607 = vunpack.c.l.b16 %v6584
        %v6608 = vunpack.c.h.b16 %v6584
        %v6609 = vpack.c.b16 %v6595, %v6593
        %v6610 = vpack.c.b16 %v6596, %v6594
        %v6611 = vpack.c.b16 %v6599, %v6597
        %v6612 = vpack.c.b16 %v6600, %v6598
        %v6613 = vpack.c.b16 %v6603, %v6601
        %v6614 = vpack.c.b16 %v6604, %v6602
        %v6615 = vpack.c.b16 %v6607, %v6605
        %v6616 = vpack.c.b16 %v6608, %v6606
        %v6626 = vsel %vm5981, %v6576, 0
        %6628 = vmatpush.bf16.msra.mxu0 0
        %6629 = vmatpush.bf16.msra.mxu0 0
        %6630 = vmatpush.bf16.msra.mxu0 0
        %6631 = vmatpush.bf16.msra.mxu0 0
        %6632 = vmatpush.bf16.msra.mxu0 %v6615
        %6633 = vmatpush.bf16.msra.mxu0 %v6613
        %6634 = vmatpush.bf16.msra.mxu0 %v6611
        %6635 = vmatpush.bf16.msra.mxu0 %v6609
        %6636 = vmatmul.bf16.gmra.mxu0 %v6626
        %v6637 = vpop.f32.mrf.mxu0
        %v6638 = vadd.f32 0.0, %v6637
        %v6639 = vpop.f32.mrf.mxu0
        %6640 = vdwg.mxu0
        %6641 = vmatpush.bf16.msra.mxu0 0
        %6642 = vmatpush.bf16.msra.mxu0 0
        %6643 = vmatpush.bf16.msra.mxu0 0
        %6644 = vmatpush.bf16.msra.mxu0 0
        %6645 = vmatpush.bf16.msra.mxu0 %v6616
        %6646 = vmatpush.bf16.msra.mxu0 %v6614
        %6647 = vmatpush.bf16.msra.mxu0 %v6612
        %6648 = vmatpush.bf16.msra.mxu0 %v6610
        %6649 = vmatmul.bf16.gmra.mxu0 %v6626
        %v6650 = vpop.f32.mrf.mxu0
        %v6651 = vadd.f32 0.0, %v6650
        %v6652 = vpop.f32.mrf.mxu0
        %6653 = vdwg.mxu0
        %v6654 = vadd.f32 %v6558, %v6638
        %v6655 = vadd.f32 %v6559, %v6651
        %s6656 = scalar_lea.vmem [#allocation6], 12
        %v6657 = vld [vmem:[%s6656] ss:$32 sm:$0x1]
        %v6658 = vld [vmem:[%s6656] ss:$32 sm:$0x2]
        %v6659 = vor.u32 %v6657, %v6658
        %v6660 = vld [vmem:[%s6656] ss:$32 sm:$0x4]
        %v6661 = vor.u32 %v6659, %v6660
        %v6662 = vld [vmem:[%s6656] ss:$32 sm:$0x8]
        %v6663 = vor.u32 %v6661, %v6662
        %v6664 = vld [vmem:[%s6656] ss:$32 sm:$0x10]
        %v6665 = vor.u32 %v6663, %v6664
        %v6666 = vld [vmem:[%s6656] ss:$32 sm:$0x20]
        %v6667 = vor.u32 %v6665, %v6666
        %v6668 = vld [vmem:[%s6656] ss:$32 sm:$0x40]
        %v6669 = vor.u32 %v6667, %v6668
        %v6670 = vld [vmem:[%s6656] ss:$32 sm:$0x80]
        %v6671 = vor.u32 %v6669, %v6670
        %v6672 = vpack.c.bf16 %v6671, %v6671
        %v6673 = vld [vmem:[%s7 + $0x200] sm:$0xff]
        %v6674 = vld [vmem:[%s7 + $0x208] sm:$0xff]
        %v6675 = vld [vmem:[%s7 + $0x210] sm:$0xff]
        %v6676 = vld [vmem:[%s7 + $0x218] sm:$0xff]
        %v6677 = vld [vmem:[%s7 + $0x220] sm:$0xff]
        %v6678 = vld [vmem:[%s7 + $0x228] sm:$0xff]
        %v6679 = vld [vmem:[%s7 + $0x230] sm:$0xff]
        %v6680 = vld [vmem:[%s7 + $0x238] sm:$0xff]
        %v6689 = vunpack.c.l.b16 %v6673
        %v6690 = vunpack.c.h.b16 %v6673
        %v6691 = vunpack.c.l.b16 %v6674
        %v6692 = vunpack.c.h.b16 %v6674
        %v6693 = vunpack.c.l.b16 %v6675
        %v6694 = vunpack.c.h.b16 %v6675
        %v6695 = vunpack.c.l.b16 %v6676
        %v6696 = vunpack.c.h.b16 %v6676
        %v6697 = vunpack.c.l.b16 %v6677
        %v6698 = vunpack.c.h.b16 %v6677
        %v6699 = vunpack.c.l.b16 %v6678
        %v6700 = vunpack.c.h.b16 %v6678
        %v6701 = vunpack.c.l.b16 %v6679
        %v6702 = vunpack.c.h.b16 %v6679
        %v6703 = vunpack.c.l.b16 %v6680
        %v6704 = vunpack.c.h.b16 %v6680
        %v6705 = vpack.c.b16 %v6691, %v6689
        %v6706 = vpack.c.b16 %v6692, %v6690
        %v6707 = vpack.c.b16 %v6695, %v6693
        %v6708 = vpack.c.b16 %v6696, %v6694
        %v6709 = vpack.c.b16 %v6699, %v6697
        %v6710 = vpack.c.b16 %v6700, %v6698
        %v6711 = vpack.c.b16 %v6703, %v6701
        %v6712 = vpack.c.b16 %v6704, %v6702
        %v6722 = vsel %vm5981, %v6672, 0
        %6724 = vmatpush.bf16.msra.mxu0 0
        %6725 = vmatpush.bf16.msra.mxu0 0
        %6726 = vmatpush.bf16.msra.mxu0 0
        %6727 = vmatpush.bf16.msra.mxu0 0
        %6728 = vmatpush.bf16.msra.mxu0 %v6711
        %6729 = vmatpush.bf16.msra.mxu0 %v6709
        %6730 = vmatpush.bf16.msra.mxu0 %v6707
        %6731 = vmatpush.bf16.msra.mxu0 %v6705
        %6732 = vmatmul.bf16.gmra.mxu0 %v6722
        %v6733 = vpop.f32.mrf.mxu0
        %v6734 = vadd.f32 0.0, %v6733
        %v6735 = vpop.f32.mrf.mxu0
        %6736 = vdwg.mxu0
        %6737 = vmatpush.bf16.msra.mxu0 0
        %6738 = vmatpush.bf16.msra.mxu0 0
        %6739 = vmatpush.bf16.msra.mxu0 0
        %6740 = vmatpush.bf16.msra.mxu0 0
        %6741 = vmatpush.bf16.msra.mxu0 %v6712
        %6742 = vmatpush.bf16.msra.mxu0 %v6710
        %6743 = vmatpush.bf16.msra.mxu0 %v6708
        %6744 = vmatpush.bf16.msra.mxu0 %v6706
        %6745 = vmatmul.bf16.gmra.mxu0 %v6722
        %v6746 = vpop.f32.mrf.mxu0
        %v6747 = vadd.f32 0.0, %v6746
        %v6748 = vpop.f32.mrf.mxu0
        %6749 = vdwg.mxu0
        %v6750 = vadd.f32 %v6654, %v6734
        %v6751 = vadd.f32 %v6655, %v6747
        %s6752 = scalar_lea.vmem [#allocation6], 13
        %v6753 = vld [vmem:[%s6752] ss:$32 sm:$0x1]
        %v6754 = vld [vmem:[%s6752] ss:$32 sm:$0x2]
        %v6755 = vor.u32 %v6753, %v6754
        %v6756 = vld [vmem:[%s6752] ss:$32 sm:$0x4]
        %v6757 = vor.u32 %v6755, %v6756
        %v6758 = vld [vmem:[%s6752] ss:$32 sm:$0x8]
        %v6759 = vor.u32 %v6757, %v6758
        %v6760 = vld [vmem:[%s6752] ss:$32 sm:$0x10]
        %v6761 = vor.u32 %v6759, %v6760
        %v6762 = vld [vmem:[%s6752] ss:$32 sm:$0x20]
        %v6763 = vor.u32 %v6761, %v6762
        %v6764 = vld [vmem:[%s6752] ss:$32 sm:$0x40]
        %v6765 = vor.u32 %v6763, %v6764
        %v6766 = vld [vmem:[%s6752] ss:$32 sm:$0x80]
        %v6767 = vor.u32 %v6765, %v6766
        %v6768 = vpack.c.bf16 %v6767, %v6767
        %v6769 = vld [vmem:[%s7 + $0x240] sm:$0xff]
        %v6770 = vld [vmem:[%s7 + $0x248] sm:$0xff]
        %v6771 = vld [vmem:[%s7 + $0x250] sm:$0xff]
        %v6772 = vld [vmem:[%s7 + $0x258] sm:$0xff]
        %v6773 = vld [vmem:[%s7 + $0x260] sm:$0xff]
        %v6774 = vld [vmem:[%s7 + $0x268] sm:$0xff]
        %v6775 = vld [vmem:[%s7 + $0x270] sm:$0xff]
        %v6776 = vld [vmem:[%s7 + $0x278] sm:$0xff]
        %v6785 = vunpack.c.l.b16 %v6769
        %v6786 = vunpack.c.h.b16 %v6769
        %v6787 = vunpack.c.l.b16 %v6770
        %v6788 = vunpack.c.h.b16 %v6770
        %v6789 = vunpack.c.l.b16 %v6771
        %v6790 = vunpack.c.h.b16 %v6771
        %v6791 = vunpack.c.l.b16 %v6772
        %v6792 = vunpack.c.h.b16 %v6772
        %v6793 = vunpack.c.l.b16 %v6773
        %v6794 = vunpack.c.h.b16 %v6773
        %v6795 = vunpack.c.l.b16 %v6774
        %v6796 = vunpack.c.h.b16 %v6774
        %v6797 = vunpack.c.l.b16 %v6775
        %v6798 = vunpack.c.h.b16 %v6775
        %v6799 = vunpack.c.l.b16 %v6776
        %v6800 = vunpack.c.h.b16 %v6776
        %v6801 = vpack.c.b16 %v6787, %v6785
        %v6802 = vpack.c.b16 %v6788, %v6786
        %v6803 = vpack.c.b16 %v6791, %v6789
        %v6804 = vpack.c.b16 %v6792, %v6790
        %v6805 = vpack.c.b16 %v6795, %v6793
        %v6806 = vpack.c.b16 %v6796, %v6794
        %v6807 = vpack.c.b16 %v6799, %v6797
        %v6808 = vpack.c.b16 %v6800, %v6798
        %v6818 = vsel %vm5981, %v6768, 0
        %6820 = vmatpush.bf16.msra.mxu0 0
        %6821 = vmatpush.bf16.msra.mxu0 0
        %6822 = vmatpush.bf16.msra.mxu0 0
        %6823 = vmatpush.bf16.msra.mxu0 0
        %6824 = vmatpush.bf16.msra.mxu0 %v6807
        %6825 = vmatpush.bf16.msra.mxu0 %v6805
        %6826 = vmatpush.bf16.msra.mxu0 %v6803
        %6827 = vmatpush.bf16.msra.mxu0 %v6801
        %6828 = vmatmul.bf16.gmra.mxu0 %v6818
        %v6829 = vpop.f32.mrf.mxu0
        %v6830 = vadd.f32 0.0, %v6829
        %v6831 = vpop.f32.mrf.mxu0
        %6832 = vdwg.mxu0
        %6833 = vmatpush.bf16.msra.mxu0 0
        %6834 = vmatpush.bf16.msra.mxu0 0
        %6835 = vmatpush.bf16.msra.mxu0 0
        %6836 = vmatpush.bf16.msra.mxu0 0
        %6837 = vmatpush.bf16.msra.mxu0 %v6808
        %6838 = vmatpush.bf16.msra.mxu0 %v6806
        %6839 = vmatpush.bf16.msra.mxu0 %v6804
        %6840 = vmatpush.bf16.msra.mxu0 %v6802
        %6841 = vmatmul.bf16.gmra.mxu0 %v6818
        %v6842 = vpop.f32.mrf.mxu0
        %v6843 = vadd.f32 0.0, %v6842
        %v6844 = vpop.f32.mrf.mxu0
        %6845 = vdwg.mxu0
        %v6846 = vadd.f32 %v6750, %v6830
        %v6847 = vadd.f32 %v6751, %v6843
        %s6848 = scalar_lea.vmem [#allocation6], 14
        %v6849 = vld [vmem:[%s6848] ss:$32 sm:$0x1]
        %v6850 = vld [vmem:[%s6848] ss:$32 sm:$0x2]
        %v6851 = vor.u32 %v6849, %v6850
        %v6852 = vld [vmem:[%s6848] ss:$32 sm:$0x4]
        %v6853 = vor.u32 %v6851, %v6852
        %v6854 = vld [vmem:[%s6848] ss:$32 sm:$0x8]
        %v6855 = vor.u32 %v6853, %v6854
        %v6856 = vld [vmem:[%s6848] ss:$32 sm:$0x10]
        %v6857 = vor.u32 %v6855, %v6856
        %v6858 = vld [vmem:[%s6848] ss:$32 sm:$0x20]
        %v6859 = vor.u32 %v6857, %v6858
        %v6860 = vld [vmem:[%s6848] ss:$32 sm:$0x40]
        %v6861 = vor.u32 %v6859, %v6860
        %v6862 = vld [vmem:[%s6848] ss:$32 sm:$0x80]
        %v6863 = vor.u32 %v6861, %v6862
        %v6864 = vpack.c.bf16 %v6863, %v6863
        %v6865 = vld [vmem:[%s7 + $0x280] sm:$0xff]
        %v6866 = vld [vmem:[%s7 + $0x288] sm:$0xff]
        %v6867 = vld [vmem:[%s7 + $0x290] sm:$0xff]
        %v6868 = vld [vmem:[%s7 + $0x298] sm:$0xff]
        %v6869 = vld [vmem:[%s7 + $0x2a0] sm:$0xff]
        %v6870 = vld [vmem:[%s7 + $0x2a8] sm:$0xff]
        %v6871 = vld [vmem:[%s7 + $0x2b0] sm:$0xff]
        %v6872 = vld [vmem:[%s7 + $0x2b8] sm:$0xff]
        %v6881 = vunpack.c.l.b16 %v6865
        %v6882 = vunpack.c.h.b16 %v6865
        %v6883 = vunpack.c.l.b16 %v6866
        %v6884 = vunpack.c.h.b16 %v6866
        %v6885 = vunpack.c.l.b16 %v6867
        %v6886 = vunpack.c.h.b16 %v6867
        %v6887 = vunpack.c.l.b16 %v6868
        %v6888 = vunpack.c.h.b16 %v6868
        %v6889 = vunpack.c.l.b16 %v6869
        %v6890 = vunpack.c.h.b16 %v6869
        %v6891 = vunpack.c.l.b16 %v6870
        %v6892 = vunpack.c.h.b16 %v6870
        %v6893 = vunpack.c.l.b16 %v6871
        %v6894 = vunpack.c.h.b16 %v6871
        %v6895 = vunpack.c.l.b16 %v6872
        %v6896 = vunpack.c.h.b16 %v6872
        %v6897 = vpack.c.b16 %v6883, %v6881
        %v6898 = vpack.c.b16 %v6884, %v6882
        %v6899 = vpack.c.b16 %v6887, %v6885
        %v6900 = vpack.c.b16 %v6888, %v6886
        %v6901 = vpack.c.b16 %v6891, %v6889
        %v6902 = vpack.c.b16 %v6892, %v6890
        %v6903 = vpack.c.b16 %v6895, %v6893
        %v6904 = vpack.c.b16 %v6896, %v6894
        %v6914 = vsel %vm5981, %v6864, 0
        %6916 = vmatpush.bf16.msra.mxu0 0
        %6917 = vmatpush.bf16.msra.mxu0 0
        %6918 = vmatpush.bf16.msra.mxu0 0
        %6919 = vmatpush.bf16.msra.mxu0 0
        %6920 = vmatpush.bf16.msra.mxu0 %v6903
        %6921 = vmatpush.bf16.msra.mxu0 %v6901
        %6922 = vmatpush.bf16.msra.mxu0 %v6899
        %6923 = vmatpush.bf16.msra.mxu0 %v6897
        %6924 = vmatmul.bf16.gmra.mxu0 %v6914
        %v6925 = vpop.f32.mrf.mxu0
        %v6926 = vadd.f32 0.0, %v6925
        %v6927 = vpop.f32.mrf.mxu0
        %6928 = vdwg.mxu0
        %6929 = vmatpush.bf16.msra.mxu0 0
        %6930 = vmatpush.bf16.msra.mxu0 0
        %6931 = vmatpush.bf16.msra.mxu0 0
        %6932 = vmatpush.bf16.msra.mxu0 0
        %6933 = vmatpush.bf16.msra.mxu0 %v6904
        %6934 = vmatpush.bf16.msra.mxu0 %v6902
        %6935 = vmatpush.bf16.msra.mxu0 %v6900
        %6936 = vmatpush.bf16.msra.mxu0 %v6898
        %6937 = vmatmul.bf16.gmra.mxu0 %v6914
        %v6938 = vpop.f32.mrf.mxu0
        %v6939 = vadd.f32 0.0, %v6938
        %v6940 = vpop.f32.mrf.mxu0
        %6941 = vdwg.mxu0
        %v6942 = vadd.f32 %v6846, %v6926
        %v6943 = vadd.f32 %v6847, %v6939
        %s6944 = scalar_lea.vmem [#allocation6], 15
        %v6945 = vld [vmem:[%s6944] ss:$32 sm:$0x1]
        %v6946 = vld [vmem:[%s6944] ss:$32 sm:$0x2]
        %v6947 = vor.u32 %v6945, %v6946
        %v6948 = vld [vmem:[%s6944] ss:$32 sm:$0x4]
        %v6949 = vor.u32 %v6947, %v6948
        %v6950 = vld [vmem:[%s6944] ss:$32 sm:$0x8]
        %v6951 = vor.u32 %v6949, %v6950
        %v6952 = vld [vmem:[%s6944] ss:$32 sm:$0x10]
        %v6953 = vor.u32 %v6951, %v6952
        %v6954 = vld [vmem:[%s6944] ss:$32 sm:$0x20]
        %v6955 = vor.u32 %v6953, %v6954
        %v6956 = vld [vmem:[%s6944] ss:$32 sm:$0x40]
        %v6957 = vor.u32 %v6955, %v6956
        %v6958 = vld [vmem:[%s6944] ss:$32 sm:$0x80]
        %v6959 = vor.u32 %v6957, %v6958
        %v6960 = vpack.c.bf16 %v6959, %v6959
        %v6961 = vld [vmem:[%s7 + $0x2c0] sm:$0xff]
        %v6962 = vld [vmem:[%s7 + $0x2c8] sm:$0xff]
        %v6963 = vld [vmem:[%s7 + $0x2d0] sm:$0xff]
        %v6964 = vld [vmem:[%s7 + $0x2d8] sm:$0xff]
        %v6965 = vld [vmem:[%s7 + $0x2e0] sm:$0xff]
        %v6966 = vld [vmem:[%s7 + $0x2e8] sm:$0xff]
        %v6967 = vld [vmem:[%s7 + $0x2f0] sm:$0xff]
        %v6968 = vld [vmem:[%s7 + $0x2f8] sm:$0xff]
        %v6977 = vunpack.c.l.b16 %v6961
        %v6978 = vunpack.c.h.b16 %v6961
        %v6979 = vunpack.c.l.b16 %v6962
        %v6980 = vunpack.c.h.b16 %v6962
        %v6981 = vunpack.c.l.b16 %v6963
        %v6982 = vunpack.c.h.b16 %v6963
        %v6983 = vunpack.c.l.b16 %v6964
        %v6984 = vunpack.c.h.b16 %v6964
        %v6985 = vunpack.c.l.b16 %v6965
        %v6986 = vunpack.c.h.b16 %v6965
        %v6987 = vunpack.c.l.b16 %v6966
        %v6988 = vunpack.c.h.b16 %v6966
        %v6989 = vunpack.c.l.b16 %v6967
        %v6990 = vunpack.c.h.b16 %v6967
        %v6991 = vunpack.c.l.b16 %v6968
        %v6992 = vunpack.c.h.b16 %v6968
        %v6993 = vpack.c.b16 %v6979, %v6977
        %v6994 = vpack.c.b16 %v6980, %v6978
        %v6995 = vpack.c.b16 %v6983, %v6981
        %v6996 = vpack.c.b16 %v6984, %v6982
        %v6997 = vpack.c.b16 %v6987, %v6985
        %v6998 = vpack.c.b16 %v6988, %v6986
        %v6999 = vpack.c.b16 %v6991, %v6989
        %v7000 = vpack.c.b16 %v6992, %v6990
        %v7010 = vsel %vm5981, %v6960, 0
        %7012 = vmatpush.bf16.msra.mxu0 0
        %7013 = vmatpush.bf16.msra.mxu0 0
        %7014 = vmatpush.bf16.msra.mxu0 0
        %7015 = vmatpush.bf16.msra.mxu0 0
        %7016 = vmatpush.bf16.msra.mxu0 %v6999
        %7017 = vmatpush.bf16.msra.mxu0 %v6997
        %7018 = vmatpush.bf16.msra.mxu0 %v6995
        %7019 = vmatpush.bf16.msra.mxu0 %v6993
        %7020 = vmatmul.bf16.gmra.mxu0 %v7010
        %v7021 = vpop.f32.mrf.mxu0
        %v7022 = vadd.f32 0.0, %v7021
        %v7023 = vpop.f32.mrf.mxu0
        %7024 = vdwg.mxu0
        %7025 = vmatpush.bf16.msra.mxu0 0
        %7026 = vmatpush.bf16.msra.mxu0 0
        %7027 = vmatpush.bf16.msra.mxu0 0
        %7028 = vmatpush.bf16.msra.mxu0 0
        %7029 = vmatpush.bf16.msra.mxu0 %v7000
        %7030 = vmatpush.bf16.msra.mxu0 %v6998
        %7031 = vmatpush.bf16.msra.mxu0 %v6996
        %7032 = vmatpush.bf16.msra.mxu0 %v6994
        %7033 = vmatmul.bf16.gmra.mxu0 %v7010
        %v7034 = vpop.f32.mrf.mxu0
        %v7035 = vadd.f32 0.0, %v7034
        %v7036 = vpop.f32.mrf.mxu0
        %7037 = vdwg.mxu0
        %v7038 = vadd.f32 %v6942, %v7022
        %v7039 = vadd.f32 %v6943, %v7035
        %s7040 = scalar_lea.vmem [#allocation6], 18
        %v7041 = vld [vmem:[%s7040] ss:$32 sm:$0x1]
        %v7042 = vld [vmem:[%s7040] ss:$32 sm:$0x2]
        %v7043 = vor.u32 %v7041, %v7042
        %v7044 = vld [vmem:[%s7040] ss:$32 sm:$0x4]
        %v7045 = vor.u32 %v7043, %v7044
        %v7046 = vld [vmem:[%s7040] ss:$32 sm:$0x8]
        %v7047 = vor.u32 %v7045, %v7046
        %v7048 = vld [vmem:[%s7040] ss:$32 sm:$0x10]
        %v7049 = vor.u32 %v7047, %v7048
        %v7050 = vld [vmem:[%s7040] ss:$32 sm:$0x20]
        %v7051 = vor.u32 %v7049, %v7050
        %v7052 = vld [vmem:[%s7040] ss:$32 sm:$0x40]
        %v7053 = vor.u32 %v7051, %v7052
        %v7054 = vld [vmem:[%s7040] ss:$32 sm:$0x80]
        %v7055 = vor.u32 %v7053, %v7054
        %v7056 = vpack.c.bf16 %v7055, %v7055
        %v7057 = vld [vmem:[%s7 + $0x300] sm:$0xff]
        %v7058 = vld [vmem:[%s7 + $0x308] sm:$0xff]
        %v7059 = vld [vmem:[%s7 + $0x310] sm:$0xff]
        %v7060 = vld [vmem:[%s7 + $0x318] sm:$0xff]
        %v7061 = vld [vmem:[%s7 + $0x320] sm:$0xff]
        %v7062 = vld [vmem:[%s7 + $0x328] sm:$0xff]
        %v7063 = vld [vmem:[%s7 + $0x330] sm:$0xff]
        %v7064 = vld [vmem:[%s7 + $0x338] sm:$0xff]
        %v7073 = vunpack.c.l.b16 %v7057
        %v7074 = vunpack.c.h.b16 %v7057
        %v7075 = vunpack.c.l.b16 %v7058
        %v7076 = vunpack.c.h.b16 %v7058
        %v7077 = vunpack.c.l.b16 %v7059
        %v7078 = vunpack.c.h.b16 %v7059
        %v7079 = vunpack.c.l.b16 %v7060
        %v7080 = vunpack.c.h.b16 %v7060
        %v7081 = vunpack.c.l.b16 %v7061
        %v7082 = vunpack.c.h.b16 %v7061
        %v7083 = vunpack.c.l.b16 %v7062
        %v7084 = vunpack.c.h.b16 %v7062
        %v7085 = vunpack.c.l.b16 %v7063
        %v7086 = vunpack.c.h.b16 %v7063
        %v7087 = vunpack.c.l.b16 %v7064
        %v7088 = vunpack.c.h.b16 %v7064
        %v7089 = vpack.c.b16 %v7075, %v7073
        %v7090 = vpack.c.b16 %v7076, %v7074
        %v7091 = vpack.c.b16 %v7079, %v7077
        %v7092 = vpack.c.b16 %v7080, %v7078
        %v7093 = vpack.c.b16 %v7083, %v7081
        %v7094 = vpack.c.b16 %v7084, %v7082
        %v7095 = vpack.c.b16 %v7087, %v7085
        %v7096 = vpack.c.b16 %v7088, %v7086
        %v7106 = vsel %vm5981, %v7056, 0
        %7108 = vmatpush.bf16.msra.mxu0 0
        %7109 = vmatpush.bf16.msra.mxu0 0
        %7110 = vmatpush.bf16.msra.mxu0 0
        %7111 = vmatpush.bf16.msra.mxu0 0
        %7112 = vmatpush.bf16.msra.mxu0 %v7095
        %7113 = vmatpush.bf16.msra.mxu0 %v7093
        %7114 = vmatpush.bf16.msra.mxu0 %v7091
        %7115 = vmatpush.bf16.msra.mxu0 %v7089
        %7116 = vmatmul.bf16.gmra.mxu0 %v7106
        %v7117 = vpop.f32.mrf.mxu0
        %v7118 = vadd.f32 0.0, %v7117
        %v7119 = vpop.f32.mrf.mxu0
        %7120 = vdwg.mxu0
        %7121 = vmatpush.bf16.msra.mxu0 0
        %7122 = vmatpush.bf16.msra.mxu0 0
        %7123 = vmatpush.bf16.msra.mxu0 0
        %7124 = vmatpush.bf16.msra.mxu0 0
        %7125 = vmatpush.bf16.msra.mxu0 %v7096
        %7126 = vmatpush.bf16.msra.mxu0 %v7094
        %7127 = vmatpush.bf16.msra.mxu0 %v7092
        %7128 = vmatpush.bf16.msra.mxu0 %v7090
        %7129 = vmatmul.bf16.gmra.mxu0 %v7106
        %v7130 = vpop.f32.mrf.mxu0
        %v7131 = vadd.f32 0.0, %v7130
        %v7132 = vpop.f32.mrf.mxu0
        %7133 = vdwg.mxu0
        %v7134 = vadd.f32 %v7038, %v7118
        %v7135 = vadd.f32 %v7039, %v7131
        %s7136 = scalar_lea.vmem [#allocation6], 19
        %v7137 = vld [vmem:[%s7136] ss:$32 sm:$0x1]
        %v7138 = vld [vmem:[%s7136] ss:$32 sm:$0x2]
        %v7139 = vor.u32 %v7137, %v7138
        %v7140 = vld [vmem:[%s7136] ss:$32 sm:$0x4]
        %v7141 = vor.u32 %v7139, %v7140
        %v7142 = vld [vmem:[%s7136] ss:$32 sm:$0x8]
        %v7143 = vor.u32 %v7141, %v7142
        %v7144 = vld [vmem:[%s7136] ss:$32 sm:$0x10]
        %v7145 = vor.u32 %v7143, %v7144
        %v7146 = vld [vmem:[%s7136] ss:$32 sm:$0x20]
        %v7147 = vor.u32 %v7145, %v7146
        %v7148 = vld [vmem:[%s7136] ss:$32 sm:$0x40]
        %v7149 = vor.u32 %v7147, %v7148
        %v7150 = vld [vmem:[%s7136] ss:$32 sm:$0x80]
        %v7151 = vor.u32 %v7149, %v7150
        %v7152 = vpack.c.bf16 %v7151, %v7151
        %v7153 = vld [vmem:[%s7 + $0x340] sm:$0xff]
        %v7154 = vld [vmem:[%s7 + $0x348] sm:$0xff]
        %v7155 = vld [vmem:[%s7 + $0x350] sm:$0xff]
        %v7156 = vld [vmem:[%s7 + $0x358] sm:$0xff]
        %v7157 = vld [vmem:[%s7 + $0x360] sm:$0xff]
        %v7158 = vld [vmem:[%s7 + $0x368] sm:$0xff]
        %v7159 = vld [vmem:[%s7 + $0x370] sm:$0xff]
        %v7160 = vld [vmem:[%s7 + $0x378] sm:$0xff]
        %v7169 = vunpack.c.l.b16 %v7153
        %v7170 = vunpack.c.h.b16 %v7153
        %v7171 = vunpack.c.l.b16 %v7154
        %v7172 = vunpack.c.h.b16 %v7154
        %v7173 = vunpack.c.l.b16 %v7155
        %v7174 = vunpack.c.h.b16 %v7155
        %v7175 = vunpack.c.l.b16 %v7156
        %v7176 = vunpack.c.h.b16 %v7156
        %v7177 = vunpack.c.l.b16 %v7157
        %v7178 = vunpack.c.h.b16 %v7157
        %v7179 = vunpack.c.l.b16 %v7158
        %v7180 = vunpack.c.h.b16 %v7158
        %v7181 = vunpack.c.l.b16 %v7159
        %v7182 = vunpack.c.h.b16 %v7159
        %v7183 = vunpack.c.l.b16 %v7160
        %v7184 = vunpack.c.h.b16 %v7160
        %v7185 = vpack.c.b16 %v7171, %v7169
        %v7186 = vpack.c.b16 %v7172, %v7170
        %v7187 = vpack.c.b16 %v7175, %v7173
        %v7188 = vpack.c.b16 %v7176, %v7174
        %v7189 = vpack.c.b16 %v7179, %v7177
        %v7190 = vpack.c.b16 %v7180, %v7178
        %v7191 = vpack.c.b16 %v7183, %v7181
        %v7192 = vpack.c.b16 %v7184, %v7182
        %v7202 = vsel %vm5981, %v7152, 0
        %7204 = vmatpush.bf16.msra.mxu0 0
        %7205 = vmatpush.bf16.msra.mxu0 0
        %7206 = vmatpush.bf16.msra.mxu0 0
        %7207 = vmatpush.bf16.msra.mxu0 0
        %7208 = vmatpush.bf16.msra.mxu0 %v7191
        %7209 = vmatpush.bf16.msra.mxu0 %v7189
        %7210 = vmatpush.bf16.msra.mxu0 %v7187
        %7211 = vmatpush.bf16.msra.mxu0 %v7185
        %7212 = vmatmul.bf16.gmra.mxu0 %v7202
        %v7213 = vpop.f32.mrf.mxu0
        %v7214 = vadd.f32 0.0, %v7213
        %v7215 = vpop.f32.mrf.mxu0
        %7216 = vdwg.mxu0
        %7217 = vmatpush.bf16.msra.mxu0 0
        %7218 = vmatpush.bf16.msra.mxu0 0
        %7219 = vmatpush.bf16.msra.mxu0 0
        %7220 = vmatpush.bf16.msra.mxu0 0
        %7221 = vmatpush.bf16.msra.mxu0 %v7192
        %7222 = vmatpush.bf16.msra.mxu0 %v7190
        %7223 = vmatpush.bf16.msra.mxu0 %v7188
        %7224 = vmatpush.bf16.msra.mxu0 %v7186
        %7225 = vmatmul.bf16.gmra.mxu0 %v7202
        %v7226 = vpop.f32.mrf.mxu0
        %v7227 = vadd.f32 0.0, %v7226
        %v7228 = vpop.f32.mrf.mxu0
        %7229 = vdwg.mxu0
        %v7230 = vadd.f32 %v7134, %v7214
        %v7231 = vadd.f32 %v7135, %v7227
        %s7232 = scalar_lea.vmem [#allocation6], 20
        %v7233 = vld [vmem:[%s7232] ss:$32 sm:$0x1]
        %v7234 = vld [vmem:[%s7232] ss:$32 sm:$0x2]
        %v7235 = vor.u32 %v7233, %v7234
        %v7236 = vld [vmem:[%s7232] ss:$32 sm:$0x4]
        %v7237 = vor.u32 %v7235, %v7236
        %v7238 = vld [vmem:[%s7232] ss:$32 sm:$0x8]
        %v7239 = vor.u32 %v7237, %v7238
        %v7240 = vld [vmem:[%s7232] ss:$32 sm:$0x10]
        %v7241 = vor.u32 %v7239, %v7240
        %v7242 = vld [vmem:[%s7232] ss:$32 sm:$0x20]
        %v7243 = vor.u32 %v7241, %v7242
        %v7244 = vld [vmem:[%s7232] ss:$32 sm:$0x40]
        %v7245 = vor.u32 %v7243, %v7244
        %v7246 = vld [vmem:[%s7232] ss:$32 sm:$0x80]
        %v7247 = vor.u32 %v7245, %v7246
        %v7248 = vpack.c.bf16 %v7247, %v7247
        %v7249 = vld [vmem:[%s7 + $0x380] sm:$0xff]
        %v7250 = vld [vmem:[%s7 + $0x388] sm:$0xff]
        %v7251 = vld [vmem:[%s7 + $0x390] sm:$0xff]
        %v7252 = vld [vmem:[%s7 + $0x398] sm:$0xff]
        %v7253 = vld [vmem:[%s7 + $0x3a0] sm:$0xff]
        %v7254 = vld [vmem:[%s7 + $0x3a8] sm:$0xff]
        %v7255 = vld [vmem:[%s7 + $0x3b0] sm:$0xff]
        %v7256 = vld [vmem:[%s7 + $0x3b8] sm:$0xff]
        %v7265 = vunpack.c.l.b16 %v7249
        %v7266 = vunpack.c.h.b16 %v7249
        %v7267 = vunpack.c.l.b16 %v7250
        %v7268 = vunpack.c.h.b16 %v7250
        %v7269 = vunpack.c.l.b16 %v7251
        %v7270 = vunpack.c.h.b16 %v7251
        %v7271 = vunpack.c.l.b16 %v7252
        %v7272 = vunpack.c.h.b16 %v7252
        %v7273 = vunpack.c.l.b16 %v7253
        %v7274 = vunpack.c.h.b16 %v7253
        %v7275 = vunpack.c.l.b16 %v7254
        %v7276 = vunpack.c.h.b16 %v7254
        %v7277 = vunpack.c.l.b16 %v7255
        %v7278 = vunpack.c.h.b16 %v7255
        %v7279 = vunpack.c.l.b16 %v7256
        %v7280 = vunpack.c.h.b16 %v7256
        %v7281 = vpack.c.b16 %v7267, %v7265
        %v7282 = vpack.c.b16 %v7268, %v7266
        %v7283 = vpack.c.b16 %v7271, %v7269
        %v7284 = vpack.c.b16 %v7272, %v7270
        %v7285 = vpack.c.b16 %v7275, %v7273
        %v7286 = vpack.c.b16 %v7276, %v7274
        %v7287 = vpack.c.b16 %v7279, %v7277
        %v7288 = vpack.c.b16 %v7280, %v7278
        %v7298 = vsel %vm5981, %v7248, 0
        %7300 = vmatpush.bf16.msra.mxu0 0
        %7301 = vmatpush.bf16.msra.mxu0 0
        %7302 = vmatpush.bf16.msra.mxu0 0
        %7303 = vmatpush.bf16.msra.mxu0 0
        %7304 = vmatpush.bf16.msra.mxu0 %v7287
        %7305 = vmatpush.bf16.msra.mxu0 %v7285
        %7306 = vmatpush.bf16.msra.mxu0 %v7283
        %7307 = vmatpush.bf16.msra.mxu0 %v7281
        %7308 = vmatmul.bf16.gmra.mxu0 %v7298
        %v7309 = vpop.f32.mrf.mxu0
        %v7310 = vadd.f32 0.0, %v7309
        %v7311 = vpop.f32.mrf.mxu0
        %7312 = vdwg.mxu0
        %7313 = vmatpush.bf16.msra.mxu0 0
        %7314 = vmatpush.bf16.msra.mxu0 0
        %7315 = vmatpush.bf16.msra.mxu0 0
        %7316 = vmatpush.bf16.msra.mxu0 0
        %7317 = vmatpush.bf16.msra.mxu0 %v7288
        %7318 = vmatpush.bf16.msra.mxu0 %v7286
        %7319 = vmatpush.bf16.msra.mxu0 %v7284
        %7320 = vmatpush.bf16.msra.mxu0 %v7282
        %7321 = vmatmul.bf16.gmra.mxu0 %v7298
        %v7322 = vpop.f32.mrf.mxu0
        %v7323 = vadd.f32 0.0, %v7322
        %v7324 = vpop.f32.mrf.mxu0
        %7325 = vdwg.mxu0
        %v7326 = vadd.f32 %v7230, %v7310
        %v7327 = vadd.f32 %v7231, %v7323
        %s7328 = scalar_lea.vmem [#allocation6], 21
        %v7329 = vld [vmem:[%s7328] ss:$32 sm:$0x1]
        %v7330 = vld [vmem:[%s7328] ss:$32 sm:$0x2]
        %v7331 = vor.u32 %v7329, %v7330
        %v7332 = vld [vmem:[%s7328] ss:$32 sm:$0x4]
        %v7333 = vor.u32 %v7331, %v7332
        %v7334 = vld [vmem:[%s7328] ss:$32 sm:$0x8]
        %v7335 = vor.u32 %v7333, %v7334
        %v7336 = vld [vmem:[%s7328] ss:$32 sm:$0x10]
        %v7337 = vor.u32 %v7335, %v7336
        %v7338 = vld [vmem:[%s7328] ss:$32 sm:$0x20]
        %v7339 = vor.u32 %v7337, %v7338
        %v7340 = vld [vmem:[%s7328] ss:$32 sm:$0x40]
        %v7341 = vor.u32 %v7339, %v7340
        %v7342 = vld [vmem:[%s7328] ss:$32 sm:$0x80]
        %v7343 = vor.u32 %v7341, %v7342
        %v7344 = vpack.c.bf16 %v7343, %v7343
        %v7345 = vld [vmem:[%s7 + $0x3c0] sm:$0xff]
        %v7346 = vld [vmem:[%s7 + $0x3c8] sm:$0xff]
        %v7347 = vld [vmem:[%s7 + $0x3d0] sm:$0xff]
        %v7348 = vld [vmem:[%s7 + $0x3d8] sm:$0xff]
        %v7349 = vld [vmem:[%s7 + $0x3e0] sm:$0xff]
        %v7350 = vld [vmem:[%s7 + $0x3e8] sm:$0xff]
        %v7351 = vld [vmem:[%s7 + $0x3f0] sm:$0xff]
        %v7352 = vld [vmem:[%s7 + $0x3f8] sm:$0xff]
        %v7361 = vunpack.c.l.b16 %v7345
        %v7362 = vunpack.c.h.b16 %v7345
        %v7363 = vunpack.c.l.b16 %v7346
        %v7364 = vunpack.c.h.b16 %v7346
        %v7365 = vunpack.c.l.b16 %v7347
        %v7366 = vunpack.c.h.b16 %v7347
        %v7367 = vunpack.c.l.b16 %v7348
        %v7368 = vunpack.c.h.b16 %v7348
        %v7369 = vunpack.c.l.b16 %v7349
        %v7370 = vunpack.c.h.b16 %v7349
        %v7371 = vunpack.c.l.b16 %v7350
        %v7372 = vunpack.c.h.b16 %v7350
        %v7373 = vunpack.c.l.b16 %v7351
        %v7374 = vunpack.c.h.b16 %v7351
        %v7375 = vunpack.c.l.b16 %v7352
        %v7376 = vunpack.c.h.b16 %v7352
        %v7377 = vpack.c.b16 %v7363, %v7361
        %v7378 = vpack.c.b16 %v7364, %v7362
        %v7379 = vpack.c.b16 %v7367, %v7365
        %v7380 = vpack.c.b16 %v7368, %v7366
        %v7381 = vpack.c.b16 %v7371, %v7369
        %v7382 = vpack.c.b16 %v7372, %v7370
        %v7383 = vpack.c.b16 %v7375, %v7373
        %v7384 = vpack.c.b16 %v7376, %v7374
        %v7394 = vsel %vm5981, %v7344, 0
        %7396 = vmatpush.bf16.msra.mxu0 0
        %7397 = vmatpush.bf16.msra.mxu0 0
        %7398 = vmatpush.bf16.msra.mxu0 0
        %7399 = vmatpush.bf16.msra.mxu0 0
        %7400 = vmatpush.bf16.msra.mxu0 %v7383
        %7401 = vmatpush.bf16.msra.mxu0 %v7381
        %7402 = vmatpush.bf16.msra.mxu0 %v7379
        %7403 = vmatpush.bf16.msra.mxu0 %v7377
        %7404 = vmatmul.bf16.gmra.mxu0 %v7394
        %v7405 = vpop.f32.mrf.mxu0
        %v7406 = vadd.f32 0.0, %v7405
        %v7407 = vpop.f32.mrf.mxu0
        %7408 = vdwg.mxu0
        %7409 = vmatpush.bf16.msra.mxu0 0
        %7410 = vmatpush.bf16.msra.mxu0 0
        %7411 = vmatpush.bf16.msra.mxu0 0
        %7412 = vmatpush.bf16.msra.mxu0 0
        %7413 = vmatpush.bf16.msra.mxu0 %v7384
        %7414 = vmatpush.bf16.msra.mxu0 %v7382
        %7415 = vmatpush.bf16.msra.mxu0 %v7380
        %7416 = vmatpush.bf16.msra.mxu0 %v7378
        %7417 = vmatmul.bf16.gmra.mxu0 %v7394
        %v7418 = vpop.f32.mrf.mxu0
        %v7419 = vadd.f32 0.0, %v7418
        %v7420 = vpop.f32.mrf.mxu0
        %7421 = vdwg.mxu0
        %v7422 = vadd.f32 %v7326, %v7406
        %v7423 = vadd.f32 %v7327, %v7419
        %v7424 = vld [vmem:[%s8] sm:$0x3]
        %v7426 = vperm.slane %v7424, 0
        %v7427 = vperm.slane %v7424, 1
        %v7430 = vadd.f32 %v7422, %v7426
        %v7431 = vadd.f32 %v7423, %v7427
        %v7432 = vmax.f32 %v7430, 0.0
        %v7433 = vmax.f32 %v7431, 0.0
        %v7434 = vpack.c.bf16 %v7432, %v7432
        %v7435 = vpack.c.bf16 %v7433, %v7433
        %v7436 = vld [vmem:[%s9] sm:$0xf]
        %v7437 = vld [vmem:[%s9 + $0x4] sm:$0xf]
        %v7438 = vld [vmem:[%s9 + $0x8] sm:$0xf]
        %v7439 = vld [vmem:[%s9 + $0xc] sm:$0xf]
        %v7440 = vld [vmem:[%s9 + $0x10] sm:$0xf]
        %v7441 = vld [vmem:[%s9 + $0x14] sm:$0xf]
        %v7442 = vld [vmem:[%s9 + $0x18] sm:$0xf]
        %v7443 = vld [vmem:[%s9 + $0x1c] sm:$0xf]
        %v7444 = vld [vmem:[%s9 + $0x20] sm:$0xf]
        %v7445 = vld [vmem:[%s9 + $0x24] sm:$0xf]
        %v7446 = vld [vmem:[%s9 + $0x28] sm:$0xf]
        %v7447 = vld [vmem:[%s9 + $0x2c] sm:$0xf]
        %v7448 = vld [vmem:[%s9 + $0x30] sm:$0xf]
        %v7449 = vld [vmem:[%s9 + $0x34] sm:$0xf]
        %v7450 = vld [vmem:[%s9 + $0x38] sm:$0xf]
        %v7451 = vld [vmem:[%s9 + $0x3c] sm:$0xf]
        %v7452 = vld [vmem:[%s9 + $0x40] sm:$0xf]
        %v7453 = vld [vmem:[%s9 + $0x44] sm:$0xf]
        %v7454 = vld [vmem:[%s9 + $0x48] sm:$0xf]
        %v7455 = vld [vmem:[%s9 + $0x4c] sm:$0xf]
        %v7456 = vld [vmem:[%s9 + $0x50] sm:$0xf]
        %v7457 = vld [vmem:[%s9 + $0x54] sm:$0xf]
        %v7458 = vld [vmem:[%s9 + $0x58] sm:$0xf]
        %v7459 = vld [vmem:[%s9 + $0x5c] sm:$0xf]
        %v7460 = vld [vmem:[%s9 + $0x60] sm:$0xf]
        %v7461 = vld [vmem:[%s9 + $0x64] sm:$0xf]
        %v7462 = vld [vmem:[%s9 + $0x68] sm:$0xf]
        %v7463 = vld [vmem:[%s9 + $0x6c] sm:$0xf]
        %v7464 = vld [vmem:[%s9 + $0x70] sm:$0xf]
        %v7465 = vld [vmem:[%s9 + $0x74] sm:$0xf]
        %v7466 = vld [vmem:[%s9 + $0x78] sm:$0xf]
        %v7467 = vld [vmem:[%s9 + $0x7c] sm:$0xf]
        %v7468 = vld [vmem:[%s10] sm:$0x1]
        %v7470 = vperm.slane %v7468, 0
        %v7504 = vunpack.c.l.b16 %v7436
        %v7505 = vunpack.c.l.b16 %v7437
        %v7506 = vunpack.c.l.b16 %v7438
        %v7507 = vunpack.c.l.b16 %v7439
        %v7508 = vunpack.c.l.b16 %v7440
        %v7509 = vunpack.c.l.b16 %v7441
        %v7510 = vunpack.c.l.b16 %v7442
        %v7511 = vunpack.c.l.b16 %v7443
        %v7512 = vunpack.c.l.b16 %v7444
        %v7513 = vunpack.c.l.b16 %v7445
        %v7514 = vunpack.c.l.b16 %v7446
        %v7515 = vunpack.c.l.b16 %v7447
        %v7516 = vunpack.c.l.b16 %v7448
        %v7517 = vunpack.c.l.b16 %v7449
        %v7518 = vunpack.c.l.b16 %v7450
        %v7519 = vunpack.c.l.b16 %v7451
        %v7520 = vunpack.c.l.b16 %v7452
        %v7521 = vunpack.c.l.b16 %v7453
        %v7522 = vunpack.c.l.b16 %v7454
        %v7523 = vunpack.c.l.b16 %v7455
        %v7524 = vunpack.c.l.b16 %v7456
        %v7525 = vunpack.c.l.b16 %v7457
        %v7526 = vunpack.c.l.b16 %v7458
        %v7527 = vunpack.c.l.b16 %v7459
        %v7528 = vunpack.c.l.b16 %v7460
        %v7529 = vunpack.c.l.b16 %v7461
        %v7530 = vunpack.c.l.b16 %v7462
        %v7531 = vunpack.c.l.b16 %v7463
        %v7532 = vunpack.c.l.b16 %v7464
        %v7533 = vunpack.c.l.b16 %v7465
        %v7534 = vunpack.c.l.b16 %v7466
        %v7535 = vunpack.c.l.b16 %v7467
        %v7536 = vpack.c.b16 %v7505, %v7504
        %v7537 = vpack.c.b16 %v7507, %v7506
        %v7538 = vpack.c.b16 %v7509, %v7508
        %v7539 = vpack.c.b16 %v7511, %v7510
        %v7540 = vpack.c.b16 %v7513, %v7512
        %v7541 = vpack.c.b16 %v7515, %v7514
        %v7542 = vpack.c.b16 %v7517, %v7516
        %v7543 = vpack.c.b16 %v7519, %v7518
        %v7544 = vpack.c.b16 %v7521, %v7520
        %v7545 = vpack.c.b16 %v7523, %v7522
        %v7546 = vpack.c.b16 %v7525, %v7524
        %v7547 = vpack.c.b16 %v7527, %v7526
        %v7548 = vpack.c.b16 %v7529, %v7528
        %v7549 = vpack.c.b16 %v7531, %v7530
        %v7550 = vpack.c.b16 %v7533, %v7532
        %v7551 = vpack.c.b16 %v7535, %v7534
        %7568 = vmatpush.bf16.msra.mxu0 %v7543
        %7569 = vmatpush.bf16.msra.mxu0 %v7542
        %7570 = vmatpush.bf16.msra.mxu0 %v7541
        %7571 = vmatpush.bf16.msra.mxu0 %v7540
        %7572 = vmatpush.bf16.msra.mxu0 %v7539
        %7573 = vmatpush.bf16.msra.mxu0 %v7538
        %7574 = vmatpush.bf16.msra.mxu0 %v7537
        %7575 = vmatpush.bf16.msra.mxu0 %v7536
        %7576 = vmatmul.bf16.gmra.mxu0 %v7434
        %v7577 = vpop.f32.mrf.mxu0
        %v7578 = vadd.f32 %v7470, %v7577
        %v7579 = vpop.f32.mrf.mxu0
        %7580 = vdwg.mxu0
        %7581 = vmatpush.bf16.msra.mxu0 %v7551
        %7582 = vmatpush.bf16.msra.mxu0 %v7550
        %7583 = vmatpush.bf16.msra.mxu0 %v7549
        %7584 = vmatpush.bf16.msra.mxu0 %v7548
        %7585 = vmatpush.bf16.msra.mxu0 %v7547
        %7586 = vmatpush.bf16.msra.mxu0 %v7546
        %7587 = vmatpush.bf16.msra.mxu0 %v7545
        %7588 = vmatpush.bf16.msra.mxu0 %v7544
        %7589 = vmatmul.bf16.gmra.mxu0 %v7435
        %v7590 = vpop.f32.mrf.mxu0
        %v7591 = vadd.f32 %v7578, %v7590
        %v7592 = vpop.f32.mrf.mxu0
        %7593 = vdwg.mxu0
        %7594 = vst [vmem:[%s380] sm:$0xff] %v7591
        %s7595 = sand.u32 %s269, 1
        %s7596 = scalar_lea.sflag [#allocation8], %s7595
        %s7597 = sand.u32 %s269, 1
        %s7598 = smul.addr %s7597, 8
        %s7599 = scalar_lea.vmem [#allocation7], %s7598
        // Predicated region
        $region72: #{forward.1} parent=63 // pred_check
          %p7600 = pneg %p279
        $region73: #{forward.1} parent=63 // pred_check_branch
          %7602 = sbr.rel (%p7600) target = $region75
        $region74: #{forward.1} parent=63 // pred_region
          %7604 = vsyncadd %s7596, 0
          %s7605 = smul.addr %s25, 8
          %s7606 = scalar_lea.hbm %s11, %s7605
          %s7608 = sshll.u32 %s7599, 4
          %s7609 = int_to_ptr.vmem [resolvable:$true] %s7608
          %s7610 = sshll.u32 %s7606, 4
          %s7611 = int_to_ptr.hbm [resolvable:$true] %s7610
          %7613 = dma.vmem_to_hbm [thread:$0]  %s7609, 128, %s7611, %s7596
        $region75: #{forward.1} parent=63 // pred_fallthru
          _
      $region64: #{forward.1} parent=5 // pred_fallthru
        _
      %p7614 = scmp.le.s32.totalorder 2, %s20
      // Predicated region
      $region76: #{forward.1} parent=5 // pred_check
        %p7615 = pneg %p7614
      $region77: #{forward.1} parent=5 // pred_check_branch
        %7617 = sbr.rel (%p7615) target = $region79
      $region78: #{forward.1} parent=5 // pred_region
        %s7618 = ssub.s32 %s20, 2
        // Predicated region
        $region80: #{forward.1} parent=78 // pred_check
          %p7619 = pneg %p285
        $region81: #{forward.1} parent=78 // pred_check_branch
          %7621 = sbr.rel (%p7619) target = $region83
        $region82: #{forward.1} parent=78 // pred_region
          %s7622 = sand.u32 %s270, 1
          %s7623 = scalar_lea.sflag [#allocation8], %s7622
          %s7624 = sand.u32 %s270, 1
          %s7625 = smul.addr %s7624, 8
          %s7626 = scalar_lea.vmem [#allocation7], %s7625
          %7628 = dma.done %s7623, 128
        $region83: #{forward.1} parent=78 // pred_fallthru
          _
      $region79: #{forward.1} parent=5 // pred_fallthru
        _
    $region6: #{forward.1} parent=1 // loop_footer
      %s24 = sadd.s32 1, %s20
    $region7: #{forward.1} parent=1 // loop_footer_branch
      %19 = sbr.rel target = $region3
    $region8: #{forward.1} parent=1 // loop_exit
      _
    %7629 = vsyncpa [#allocation8], 1
    %s7630 = scalar_lea.sflag [#allocation8], 1
    %7631 = vsyncpa %s7630, 1

</llo_original>
